<compile_context>
chip_gen: v6e
topology: v6e:2x2x1
jax: 0.10.0
libtpu: 0.0.40
codegen_flags: <defaults>
</compile_context>

<pallas_src>
import functools

import jax
import jax.numpy as jnp
from jax.experimental import pallas as pl
from jax.experimental.pallas import tpu as pltpu

EPS = 1e-5
LEAKY_SLOPE = 0.2
LANE = 128


def _leaky_relu(y):
    return jnp.where(y >= 0.0, y, LEAKY_SLOPE * y)


# ------------------------------ fused kernel ------------------------------- #

def _fused_forward_kernel(x_ref,
                          wd_ref, bd_ref,
                          w1_ref, b1_ref,
                          w2_ref, b2_ref,
                          w3_ref, b3_ref,
                          w4_ref, b4_ref,
                          wc_ref, bc_ref,
                          o_ref):
    """Entire SingleHeadClassifier forward for one batch tile (eval mode).

    Weight refs are bf16 with BN pre-folded; biases are f32. All matmuls
    accumulate in f32 on the MXU; bias / LeakyReLU / residual are f32 VPU ops.
    """
    x_bf16 = x_ref[...].astype(jnp.bfloat16)

    # identity = downsample(x)
    identity = (jnp.dot(x_bf16, wd_ref[...], preferred_element_type=jnp.float32)
                + bd_ref[...])

    def block(h_bf16, w_ref, b_ref):
        # Linear(+folded BN) -> LeakyReLU(0.2); Dropout(0.4) is identity in eval.
        y = (jnp.dot(h_bf16, w_ref[...], preferred_element_type=jnp.float32)
             + b_ref[...])
        return _leaky_relu(y)

    out = block(x_bf16, w1_ref, b1_ref)                       # block1
    out = block(out.astype(jnp.bfloat16), w2_ref, b2_ref)     # block2
    out = block(out.astype(jnp.bfloat16), w3_ref, b3_ref)     # block3
    out = out + identity                                      # out += identity (f32)
    out = block(out.astype(jnp.bfloat16), w4_ref, b4_ref)     # block4

    # classifier into a lane-dense 128-wide output slab
    o_ref[...] = (jnp.dot(out.astype(jnp.bfloat16), wc_ref[...],
                          preferred_element_type=jnp.float32)
                  + bc_ref[...])


# --------------------------- parameter preparation -------------------------- #

def _fold_bn(w, b, gamma, beta, mu, var):
    """Fold eval-mode BatchNorm1d into the preceding Linear (f32)."""
    scale = gamma * jax.lax.rsqrt(var + EPS)          # (1, N)
    return w * scale, (b - mu) * scale + beta


def _prepare_fused_params(params, num_classes):
    """BN-fold, pad the classifier to a lane multiple, cast weights to bf16."""
    layers = [params["downsample"]]                    # plain Linear (no BN)
    for i in range(1, 5):
        w, b, g, be, mu, var = params[f"block{i}"]
        layers.append(_fold_bn(w, b, g, be, mu, var))

    wc, bc = params["classifier"]
    n_pad = ((num_classes + LANE - 1) // LANE) * LANE
    wc = jnp.pad(wc, ((0, 0), (0, n_pad - num_classes)))
    bc = jnp.pad(bc, ((0, 0), (0, n_pad - num_classes)))
    layers.append((wc, bc))

    flat = []
    for w, b in layers:
        flat.append(w.astype(jnp.bfloat16))            # weights: bf16
        flat.append(b.astype(jnp.float32))             # biases : f32
    return tuple(flat), n_pad


# ------------------------------ forward pass -------------------------------- #

@functools.partial(jax.jit, static_argnames=("num_classes",))
def single_head_classifier(params, x, *, num_classes):
    flat, n_pad = _prepare_fused_params(params, num_classes)
    batch, d_in = x.shape

    # Batch tile (multiple of 8). For large production batches this becomes a
    # multi-step "parallel" grid axis that v7x's two TensorCores can split.
    tile_b = batch if batch <= 256 else 256
    assert batch % tile_b == 0 and tile_b % 8 == 0, (batch, tile_b)
    grid = (batch // tile_b,)

    x_spec = pl.BlockSpec((tile_b, d_in), lambda i: (i, 0))
    param_specs = [pl.BlockSpec(a.shape, lambda i: (0, 0)) for a in flat]
    out_spec = pl.BlockSpec((tile_b, n_pad), lambda i: (i, 0))

    out_padded = pl.pallas_call(
        _fused_forward_kernel,
        out_shape=jax.ShapeDtypeStruct((batch, n_pad), jnp.float32),
        grid=grid,
        in_specs=[x_spec] + param_specs,
        out_specs=out_spec,
        compiler_params=pltpu.CompilerParams(
            dimension_semantics=("parallel",)),
    )(x, *flat)

    return out_padded[:, :num_classes]


# --------------------------- parameter initialization ----------------------- #

def _init_linear(key, fan_in, fan_out):
    # PyTorch nn.Linear default init: U(-1/sqrt(fan_in), +1/sqrt(fan_in)).
    kw, kb = jax.random.split(key)
    bound = 1.0 / float(fan_in) ** 0.5
    w = jax.random.uniform(kw, (fan_in, fan_out), jnp.float32, -bound, bound)
    b = jax.random.uniform(kb, (1, fan_out), jnp.float32, -bound, bound)
    return w, b


def _init_bn(n):
    gamma = jnp.ones((1, n), jnp.float32)
    beta = jnp.zeros((1, n), jnp.float32)
    running_mean = jnp.zeros((1, n), jnp.float32)
    running_var = jnp.ones((1, n), jnp.float32)
    return gamma, beta, running_mean, running_var


def init_params(key, input_dim, num_classes):
    ks = jax.random.split(key, 6)
    params = {}
    dims = [(input_dim, 2048), (2048, 1024), (1024, 512), (512, 512)]
    for i, (di, do) in enumerate(dims, start=1):
        w, b = _init_linear(ks[i - 1], di, do)
        params[f"block{i}"] = (w, b) + _init_bn(do)
    params["classifier"] = _init_linear(ks[4], 512, num_classes)
    params["downsample"] = _init_linear(ks[5], input_dim, 512)
    return params


# --------------------------- pure-JAX f32 reference ------------------------- #

def reference_forward(params, x):
    def linear(h, w, b):
        return h @ w + b

    def block(h, p):
        w, b, g, be, mu, var = p
        y = linear(h, w, b)
        y = (y - mu) * jax.lax.rsqrt(var + EPS) * g + be
        return jnp.where(y >= 0.0, y, LEAKY_SLOPE * y)

    identity = linear(x, *params["downsample"])
    out = block(x, params["block1"])
    out = block(out, params["block2"])
    out = block(out, params["block3"])
    out = out + identity
    out = block(out, params["block4"])
    return linear(out, *params["classifier"])


# TODO(synk): training-mode BatchNorm (batch-stat updates) and Dropout sampling
# are not implemented; this kernel is the eval-mode forward pass only.

if __name__ == "__main__":
    key = jax.random.PRNGKey(0)
    kp, kx = jax.random.split(key)

    batch, input_dim, num_classes = 8, 32, 10
    params = init_params(kp, input_dim, num_classes)
    x = jax.random.normal(kx, (batch, input_dim), jnp.float32)

    out = single_head_classifier(params, x, num_classes=num_classes)
    jax.block_until_ready(out)

    assert out.shape == (batch, num_classes), out.shape
    assert out.dtype == jnp.float32

    ref = reference_forward(params, x)
    # bf16 weights => a few % deviation vs the f32 reference is expected.
    assert jnp.allclose(out, ref, rtol=0.1, atol=0.1), (
        float(jnp.max(jnp.abs(out - ref))))

    print("KERNEL_OK")
</pallas_src>

<mosaic_0001>
module attributes {stable_mosaic.version = 11 : i64} {
  func.func @_fused_forward_kernel(%arg0: i32, %arg1: memref<8x32xf32, #tpu.memory_space<vmem>>, %arg2: memref<32x512xbf16, #tpu.memory_space<vmem>>, %arg3: memref<1x512xf32, #tpu.memory_space<vmem>>, %arg4: memref<32x2048xbf16, #tpu.memory_space<vmem>>, %arg5: memref<1x2048xf32, #tpu.memory_space<vmem>>, %arg6: memref<2048x1024xbf16, #tpu.memory_space<vmem>>, %arg7: memref<1x1024xf32, #tpu.memory_space<vmem>>, %arg8: memref<1024x512xbf16, #tpu.memory_space<vmem>>, %arg9: memref<1x512xf32, #tpu.memory_space<vmem>>, %arg10: memref<512x512xbf16, #tpu.memory_space<vmem>>, %arg11: memref<1x512xf32, #tpu.memory_space<vmem>>, %arg12: memref<512x128xbf16, #tpu.memory_space<vmem>>, %arg13: memref<1x128xf32, #tpu.memory_space<vmem>>, %arg14: memref<8x128xf32, #tpu.memory_space<vmem>>) attributes {dimension_semantics = [#tpu.dimension_semantics<parallel>], iteration_bounds = array<i64: 1>, scalar_prefetch = 0 : i64, scratch_operands = 0 : i64, tpu.core_type = #tpu.core_type<tc>, window_params = [{transform_indices = @transform_0, window_bounds = array<i64: 8, 32>}, {pipeline_mode = #tpu.pipeline_mode<synchronous>, transform_indices = @transform_1, window_bounds = array<i64: 32, 512>}, {pipeline_mode = #tpu.pipeline_mode<synchronous>, transform_indices = @transform_2, window_bounds = array<i64: 1, 512>}, {pipeline_mode = #tpu.pipeline_mode<synchronous>, transform_indices = @transform_3, window_bounds = array<i64: 32, 2048>}, {pipeline_mode = #tpu.pipeline_mode<synchronous>, transform_indices = @transform_4, window_bounds = array<i64: 1, 2048>}, {pipeline_mode = #tpu.pipeline_mode<synchronous>, transform_indices = @transform_5, window_bounds = array<i64: 2048, 1024>}, {pipeline_mode = #tpu.pipeline_mode<synchronous>, transform_indices = @transform_6, window_bounds = array<i64: 1, 1024>}, {pipeline_mode = #tpu.pipeline_mode<synchronous>, transform_indices = @transform_7, window_bounds = array<i64: 1024, 512>}, {pipeline_mode = #tpu.pipeline_mode<synchronous>, transform_indices = @transform_8, window_bounds = array<i64: 1, 512>}, {pipeline_mode = #tpu.pipeline_mode<synchronous>, transform_indices = @transform_9, window_bounds = array<i64: 512, 512>}, {pipeline_mode = #tpu.pipeline_mode<synchronous>, transform_indices = @transform_10, window_bounds = array<i64: 1, 512>}, {pipeline_mode = #tpu.pipeline_mode<synchronous>, transform_indices = @transform_11, window_bounds = array<i64: 512, 128>}, {pipeline_mode = #tpu.pipeline_mode<synchronous>, transform_indices = @transform_12, window_bounds = array<i64: 1, 128>}, {transform_indices = @transform_13, window_bounds = array<i64: 8, 128>}]} {
    %c0 = arith.constant 0 : index
    %c0_0 = arith.constant 0 : index
    %0 = vector.load %arg1[%c0, %c0_0] : memref<8x32xf32, #tpu.memory_space<vmem>>, vector<8x32xf32>
    %1 = arith.truncf %0 : vector<8x32xf32> to vector<8x32xbf16>
    %c0_1 = arith.constant 0 : index
    %c0_2 = arith.constant 0 : index
    %2 = vector.load %arg2[%c0_1, %c0_2] : memref<32x512xbf16, #tpu.memory_space<vmem>>, vector<32x512xbf16>
    %cst = arith.constant dense<0.000000e+00> : vector<8x512xf32>
    %3 = tpu.matmul %1, %2, %cst {dimension_numbers = #tpu.dot_dimension_numbers<[1], [0], [0], [1], [0, 0, 1, 1], [], []>} : vector<8x32xbf16>, vector<32x512xbf16>, vector<8x512xf32> -> vector<8x512xf32>
    %c0_3 = arith.constant 0 : index
    %c0_4 = arith.constant 0 : index
    %4 = vector.load %arg3[%c0_3, %c0_4] : memref<1x512xf32, #tpu.memory_space<vmem>>, vector<1x512xf32>
    %5 = vector.broadcast %4 : vector<1x512xf32> to vector<8x512xf32>
    %6 = arith.addf %3, %5 : vector<8x512xf32>
    %c0_5 = arith.constant 0 : index
    %c0_6 = arith.constant 0 : index
    %7 = vector.load %arg4[%c0_5, %c0_6] : memref<32x2048xbf16, #tpu.memory_space<vmem>>, vector<32x2048xbf16>
    %cst_7 = arith.constant dense<0.000000e+00> : vector<8x2048xf32>
    %8 = tpu.matmul %1, %7, %cst_7 {dimension_numbers = #tpu.dot_dimension_numbers<[1], [0], [0], [1], [0, 0, 1, 1], [], []>} : vector<8x32xbf16>, vector<32x2048xbf16>, vector<8x2048xf32> -> vector<8x2048xf32>
    %c0_8 = arith.constant 0 : index
    %c0_9 = arith.constant 0 : index
    %9 = vector.load %arg5[%c0_8, %c0_9] : memref<1x2048xf32, #tpu.memory_space<vmem>>, vector<1x2048xf32>
    %10 = vector.broadcast %9 : vector<1x2048xf32> to vector<8x2048xf32>
    %11 = arith.addf %8, %10 : vector<8x2048xf32>
    %cst_10 = arith.constant 0.000000e+00 : f32
    %12 = vector.broadcast %cst_10 : f32 to vector<8x2048xf32>
    %13 = arith.cmpf oge, %11, %12 : vector<8x2048xf32>
    %cst_11 = arith.constant 2.000000e-01 : f32
    %14 = vector.broadcast %cst_11 : f32 to vector<8x2048xf32>
    %15 = arith.mulf %14, %11 : vector<8x2048xf32>
    %16 = arith.select %13, %11, %15 : vector<8x2048xi1>, vector<8x2048xf32>
    %17 = arith.truncf %16 : vector<8x2048xf32> to vector<8x2048xbf16>
    %c0_12 = arith.constant 0 : index
    %c0_13 = arith.constant 0 : index
    %18 = vector.load %arg6[%c0_12, %c0_13] : memref<2048x1024xbf16, #tpu.memory_space<vmem>>, vector<2048x1024xbf16>
    %cst_14 = arith.constant dense<0.000000e+00> : vector<8x1024xf32>
    %19 = tpu.matmul %17, %18, %cst_14 {dimension_numbers = #tpu.dot_dimension_numbers<[1], [0], [0], [1], [0, 0, 1, 1], [], []>} : vector<8x2048xbf16>, vector<2048x1024xbf16>, vector<8x1024xf32> -> vector<8x1024xf32>
    %c0_15 = arith.constant 0 : index
    %c0_16 = arith.constant 0 : index
    %20 = vector.load %arg7[%c0_15, %c0_16] : memref<1x1024xf32, #tpu.memory_space<vmem>>, vector<1x1024xf32>
    %21 = vector.broadcast %20 : vector<1x1024xf32> to vector<8x1024xf32>
    %22 = arith.addf %19, %21 : vector<8x1024xf32>
    %cst_17 = arith.constant 0.000000e+00 : f32
    %23 = vector.broadcast %cst_17 : f32 to vector<8x1024xf32>
    %24 = arith.cmpf oge, %22, %23 : vector<8x1024xf32>
    %cst_18 = arith.constant 2.000000e-01 : f32
    %25 = vector.broadcast %cst_18 : f32 to vector<8x1024xf32>
    %26 = arith.mulf %25, %22 : vector<8x1024xf32>
    %27 = arith.select %24, %22, %26 : vector<8x1024xi1>, vector<8x1024xf32>
    %28 = arith.truncf %27 : vector<8x1024xf32> to vector<8x1024xbf16>
    %c0_19 = arith.constant 0 : index
    %c0_20 = arith.constant 0 : index
    %29 = vector.load %arg8[%c0_19, %c0_20] : memref<1024x512xbf16, #tpu.memory_space<vmem>>, vector<1024x512xbf16>
    %cst_21 = arith.constant dense<0.000000e+00> : vector<8x512xf32>
    %30 = tpu.matmul %28, %29, %cst_21 {dimension_numbers = #tpu.dot_dimension_numbers<[1], [0], [0], [1], [0, 0, 1, 1], [], []>} : vector<8x1024xbf16>, vector<1024x512xbf16>, vector<8x512xf32> -> vector<8x512xf32>
    %c0_22 = arith.constant 0 : index
    %c0_23 = arith.constant 0 : index
    %31 = vector.load %arg9[%c0_22, %c0_23] : memref<1x512xf32, #tpu.memory_space<vmem>>, vector<1x512xf32>
    %32 = vector.broadcast %31 : vector<1x512xf32> to vector<8x512xf32>
    %33 = arith.addf %30, %32 : vector<8x512xf32>
    %cst_24 = arith.constant 0.000000e+00 : f32
    %34 = vector.broadcast %cst_24 : f32 to vector<8x512xf32>
    %35 = arith.cmpf oge, %33, %34 : vector<8x512xf32>
    %cst_25 = arith.constant 2.000000e-01 : f32
    %36 = vector.broadcast %cst_25 : f32 to vector<8x512xf32>
    %37 = arith.mulf %36, %33 : vector<8x512xf32>
    %38 = arith.select %35, %33, %37 : vector<8x512xi1>, vector<8x512xf32>
    %39 = arith.addf %38, %6 : vector<8x512xf32>
    %40 = arith.truncf %39 : vector<8x512xf32> to vector<8x512xbf16>
    %c0_26 = arith.constant 0 : index
    %c0_27 = arith.constant 0 : index
    %41 = vector.load %arg10[%c0_26, %c0_27] : memref<512x512xbf16, #tpu.memory_space<vmem>>, vector<512x512xbf16>
    %cst_28 = arith.constant dense<0.000000e+00> : vector<8x512xf32>
    %42 = tpu.matmul %40, %41, %cst_28 {dimension_numbers = #tpu.dot_dimension_numbers<[1], [0], [0], [1], [0, 0, 1, 1], [], []>} : vector<8x512xbf16>, vector<512x512xbf16>, vector<8x512xf32> -> vector<8x512xf32>
    %c0_29 = arith.constant 0 : index
    %c0_30 = arith.constant 0 : index
    %43 = vector.load %arg11[%c0_29, %c0_30] : memref<1x512xf32, #tpu.memory_space<vmem>>, vector<1x512xf32>
    %44 = vector.broadcast %43 : vector<1x512xf32> to vector<8x512xf32>
    %45 = arith.addf %42, %44 : vector<8x512xf32>
    %cst_31 = arith.constant 0.000000e+00 : f32
    %46 = vector.broadcast %cst_31 : f32 to vector<8x512xf32>
    %47 = arith.cmpf oge, %45, %46 : vector<8x512xf32>
    %cst_32 = arith.constant 2.000000e-01 : f32
    %48 = vector.broadcast %cst_32 : f32 to vector<8x512xf32>
    %49 = arith.mulf %48, %45 : vector<8x512xf32>
    %50 = arith.select %47, %45, %49 : vector<8x512xi1>, vector<8x512xf32>
    %51 = arith.truncf %50 : vector<8x512xf32> to vector<8x512xbf16>
    %c0_33 = arith.constant 0 : index
    %c0_34 = arith.constant 0 : index
    %52 = vector.load %arg12[%c0_33, %c0_34] : memref<512x128xbf16, #tpu.memory_space<vmem>>, vector<512x128xbf16>
    %cst_35 = arith.constant dense<0.000000e+00> : vector<8x128xf32>
    %53 = tpu.matmul %51, %52, %cst_35 {dimension_numbers = #tpu.dot_dimension_numbers<[1], [0], [0], [1], [0, 0, 1, 1], [], []>} : vector<8x512xbf16>, vector<512x128xbf16>, vector<8x128xf32> -> vector<8x128xf32>
    %c0_36 = arith.constant 0 : index
    %c0_37 = arith.constant 0 : index
    %54 = vector.load %arg13[%c0_36, %c0_37] : memref<1x128xf32, #tpu.memory_space<vmem>>, vector<1x128xf32>
    %55 = vector.broadcast %54 : vector<1x128xf32> to vector<8x128xf32>
    %56 = arith.addf %53, %55 : vector<8x128xf32>
    %c0_38 = arith.constant 0 : index
    %c0_39 = arith.constant 0 : index
    %57 = vector.load %arg14[%c0_38, %c0_39] : memref<8x128xf32, #tpu.memory_space<vmem>>, vector<8x128xf32>
    tpu.vector_store %arg14[%c0_38, %c0_39], %56 {strides = array<i32>} : memref<8x128xf32, #tpu.memory_space<vmem>>, vector<8x128xf32>,
    return
  }
  func.func @transform_0(%arg0: i32) -> (i32, i32) {
    %c0_i32 = arith.constant 0 : i32
    %c0_i32_0 = arith.constant 0 : i32
    return %arg0, %c0_i32 : i32, i32
  }
  func.func @transform_1(%arg0: i32) -> (i32, i32) {
    %c0_i32 = arith.constant 0 : i32
    %c0_i32_0 = arith.constant 0 : i32
    %c0_i32_1 = arith.constant 0 : i32
    return %c0_i32, %c0_i32_0 : i32, i32
  }
  func.func @transform_2(%arg0: i32) -> (i32, i32) {
    %c0_i32 = arith.constant 0 : i32
    %c0_i32_0 = arith.constant 0 : i32
    %c0_i32_1 = arith.constant 0 : i32
    return %c0_i32, %c0_i32_0 : i32, i32
  }
  func.func @transform_3(%arg0: i32) -> (i32, i32) {
    %c0_i32 = arith.constant 0 : i32
    %c0_i32_0 = arith.constant 0 : i32
    %c0_i32_1 = arith.constant 0 : i32
    return %c0_i32, %c0_i32_0 : i32, i32
  }
  func.func @transform_4(%arg0: i32) -> (i32, i32) {
    %c0_i32 = arith.constant 0 : i32
    %c0_i32_0 = arith.constant 0 : i32
    %c0_i32_1 = arith.constant 0 : i32
    return %c0_i32, %c0_i32_0 : i32, i32
  }
  func.func @transform_5(%arg0: i32) -> (i32, i32) {
    %c0_i32 = arith.constant 0 : i32
    %c0_i32_0 = arith.constant 0 : i32
    %c0_i32_1 = arith.constant 0 : i32
    return %c0_i32, %c0_i32_0 : i32, i32
  }
  func.func @transform_6(%arg0: i32) -> (i32, i32) {
    %c0_i32 = arith.constant 0 : i32
    %c0_i32_0 = arith.constant 0 : i32
    %c0_i32_1 = arith.constant 0 : i32
    return %c0_i32, %c0_i32_0 : i32, i32
  }
  func.func @transform_7(%arg0: i32) -> (i32, i32) {
    %c0_i32 = arith.constant 0 : i32
    %c0_i32_0 = arith.constant 0 : i32
    %c0_i32_1 = arith.constant 0 : i32
    return %c0_i32, %c0_i32_0 : i32, i32
  }
  func.func @transform_8(%arg0: i32) -> (i32, i32) {
    %c0_i32 = arith.constant 0 : i32
    %c0_i32_0 = arith.constant 0 : i32
    %c0_i32_1 = arith.constant 0 : i32
    return %c0_i32, %c0_i32_0 : i32, i32
  }
  func.func @transform_9(%arg0: i32) -> (i32, i32) {
    %c0_i32 = arith.constant 0 : i32
    %c0_i32_0 = arith.constant 0 : i32
    %c0_i32_1 = arith.constant 0 : i32
    return %c0_i32, %c0_i32_0 : i32, i32
  }
  func.func @transform_10(%arg0: i32) -> (i32, i32) {
    %c0_i32 = arith.constant 0 : i32
    %c0_i32_0 = arith.constant 0 : i32
    %c0_i32_1 = arith.constant 0 : i32
    return %c0_i32, %c0_i32_0 : i32, i32
  }
  func.func @transform_11(%arg0: i32) -> (i32, i32) {
    %c0_i32 = arith.constant 0 : i32
    %c0_i32_0 = arith.constant 0 : i32
    %c0_i32_1 = arith.constant 0 : i32
    return %c0_i32, %c0_i32_0 : i32, i32
  }
  func.func @transform_12(%arg0: i32) -> (i32, i32) {
    %c0_i32 = arith.constant 0 : i32
    %c0_i32_0 = arith.constant 0 : i32
    %c0_i32_1 = arith.constant 0 : i32
    return %c0_i32, %c0_i32_0 : i32, i32
  }
  func.func @transform_13(%arg0: i32) -> (i32, i32) {
    %c0_i32 = arith.constant 0 : i32
    %c0_i32_0 = arith.constant 0 : i32
    return %arg0, %c0_i32 : i32, i32
  }
}

</mosaic_0001>

<llo_original>
// kernel: single_head_classifier.1
$region0: #{single_head_classifier.1}
  #allocation0 [shape = 'u32[]', space=smem, size = 0x4, offset = 0x4, fixed_abs, tag = 'smem constant byte address 0x4 - core index']
  #allocation1 [shape = 'u32[144,128]{1,0:T(1,128)}', space=vmem, size = 0x12000, scoped, tag = 'internal scratch']
  %s0 = inlined_call_operand.vmem [shape: f32[8,32], index: 0, kind: input, shape index: {}]
  %s1 = inlined_call_operand.vmem [shape: bf16[32,512], index: 1, kind: input, shape index: {}]
  %s2 = inlined_call_operand.vmem [shape: f32[1,512], index: 2, kind: input, shape index: {}]
  %s3 = inlined_call_operand.vmem [shape: bf16[32,2048], index: 3, kind: input, shape index: {}]
  %s4 = inlined_call_operand.vmem [shape: f32[1,2048], index: 4, kind: input, shape index: {}]
  %s5 = inlined_call_operand.vmem [shape: bf16[2048,1024], index: 5, kind: input, shape index: {}]
  %s6 = inlined_call_operand.vmem [shape: f32[1,1024], index: 6, kind: input, shape index: {}]
  %s7 = inlined_call_operand.vmem [shape: bf16[1024,512], index: 7, kind: input, shape index: {}]
  %s8 = inlined_call_operand.vmem [shape: f32[1,512], index: 8, kind: input, shape index: {}]
  %s9 = inlined_call_operand.vmem [shape: bf16[512,512], index: 9, kind: input, shape index: {}]
  %s10 = inlined_call_operand.vmem [shape: f32[1,512], index: 10, kind: input, shape index: {}]
  %s11 = inlined_call_operand.vmem [shape: bf16[512,128], index: 11, kind: input, shape index: {}]
  %s12 = inlined_call_operand.vmem [shape: f32[1,128], index: 12, kind: input, shape index: {}]
  %s13 = inlined_call_operand.hbm [shape: f32[8,128], index: 13, kind: output, shape index: {}]
  %s14 = sld [smem:[#allocation0]]
  $region62: #{single_head_classifier.1} parent=0
    _
  %s16 = ssub.s32 1, %s14
  %s17 = scalar_select 0, %s16, %s14
  $region1: #{single_head_classifier.1} parent=0
    #allocation2 [shape = 'u8[4096]{0}', space=vmem, size = 0x1000, scoped, tag = 'output window, operand 0, single buffered']
    #allocation3 [shape = 's32[1]{0}', space=sflag, size = 0x4, scoped, tag = 'scoped memory for single_head_classifier.1']
    %18 = vsyncpa [#allocation3], 0
    // Predicated region
    $region2: #{single_head_classifier.1} parent=1 // pred_check
      _
    $region3: #{single_head_classifier.1} parent=1 // pred_check_branch
      %20 = sbr.rel (0) target = $region5
    $region4: #{single_head_classifier.1} parent=1 // pred_region
      _
    $region5: #{single_head_classifier.1} parent=1 // pred_fallthru
      _
    // Predicated region
    $region6: #{single_head_classifier.1} parent=1 // pred_check
      _
    $region7: #{single_head_classifier.1} parent=1 // pred_check_branch
      %22 = sbr.rel (0) target = $region9
    $region8: #{single_head_classifier.1} parent=1 // pred_region
      _
    $region9: #{single_head_classifier.1} parent=1 // pred_fallthru
      _
    // Predicated region
    $region10: #{single_head_classifier.1} parent=1 // pred_check
      _
    $region11: #{single_head_classifier.1} parent=1 // pred_check_branch
      %24 = sbr.rel (0) target = $region13
    $region12: #{single_head_classifier.1} parent=1 // pred_region
      _
    $region13: #{single_head_classifier.1} parent=1 // pred_fallthru
      _
    // Predicated region
    $region14: #{single_head_classifier.1} parent=1 // pred_check
      _
    $region15: #{single_head_classifier.1} parent=1 // pred_check_branch
      %26 = sbr.rel (0) target = $region17
    $region16: #{single_head_classifier.1} parent=1 // pred_region
      _
    $region17: #{single_head_classifier.1} parent=1 // pred_fallthru
      _
    // Predicated region
    $region18: #{single_head_classifier.1} parent=1 // pred_check
      _
    $region19: #{single_head_classifier.1} parent=1 // pred_check_branch
      %28 = sbr.rel (0) target = $region21
    $region20: #{single_head_classifier.1} parent=1 // pred_region
      _
    $region21: #{single_head_classifier.1} parent=1 // pred_fallthru
      _
    // Predicated region
    $region22: #{single_head_classifier.1} parent=1 // pred_check
      _
    $region23: #{single_head_classifier.1} parent=1 // pred_check_branch
      %30 = sbr.rel (0) target = $region25
    $region24: #{single_head_classifier.1} parent=1 // pred_region
      _
    $region25: #{single_head_classifier.1} parent=1 // pred_fallthru
      _
    // Predicated region
    $region26: #{single_head_classifier.1} parent=1 // pred_check
      _
    $region27: #{single_head_classifier.1} parent=1 // pred_check_branch
      %32 = sbr.rel (0) target = $region29
    $region28: #{single_head_classifier.1} parent=1 // pred_region
      _
    $region29: #{single_head_classifier.1} parent=1 // pred_fallthru
      _
    // Predicated region
    $region30: #{single_head_classifier.1} parent=1 // pred_check
      _
    $region31: #{single_head_classifier.1} parent=1 // pred_check_branch
      %34 = sbr.rel (0) target = $region33
    $region32: #{single_head_classifier.1} parent=1 // pred_region
      _
    $region33: #{single_head_classifier.1} parent=1 // pred_fallthru
      _
    // Predicated region
    $region34: #{single_head_classifier.1} parent=1 // pred_check
      _
    $region35: #{single_head_classifier.1} parent=1 // pred_check_branch
      %36 = sbr.rel (0) target = $region37
    $region36: #{single_head_classifier.1} parent=1 // pred_region
      _
    $region37: #{single_head_classifier.1} parent=1 // pred_fallthru
      _
    // Predicated region
    $region38: #{single_head_classifier.1} parent=1 // pred_check
      _
    $region39: #{single_head_classifier.1} parent=1 // pred_check_branch
      %38 = sbr.rel (0) target = $region41
    $region40: #{single_head_classifier.1} parent=1 // pred_region
      _
    $region41: #{single_head_classifier.1} parent=1 // pred_fallthru
      _
    // Predicated region
    $region42: #{single_head_classifier.1} parent=1 // pred_check
      _
    $region43: #{single_head_classifier.1} parent=1 // pred_check_branch
      %40 = sbr.rel (0) target = $region45
    $region44: #{single_head_classifier.1} parent=1 // pred_region
      _
    $region45: #{single_head_classifier.1} parent=1 // pred_fallthru
      _
    // Predicated region
    $region46: #{single_head_classifier.1} parent=1 // pred_check
      _
    $region47: #{single_head_classifier.1} parent=1 // pred_check_branch
      %42 = sbr.rel (0) target = $region49
    $region48: #{single_head_classifier.1} parent=1 // pred_region
      _
    $region49: #{single_head_classifier.1} parent=1 // pred_fallthru
      _
    // Predicated region
    $region50: #{single_head_classifier.1} parent=1 // pred_check
      _
    $region51: #{single_head_classifier.1} parent=1 // pred_check_branch
      %44 = sbr.rel (0) target = $region53
    $region52: #{single_head_classifier.1} parent=1 // pred_region
      _
    $region53: #{single_head_classifier.1} parent=1 // pred_fallthru
      _
    %v46 = vld [vmem:[%s0] sm:$0xff]
    %v47 = vpack.c.bf16 %v46, %v46
    %v48 = vld [vmem:[%s1] sm:$0xff]
    %v49 = vld [vmem:[%s1 + $0x8] sm:$0xff]
    %v50 = vld [vmem:[%s1 + $0x10] sm:$0xff]
    %v51 = vld [vmem:[%s1 + $0x18] sm:$0xff]
    %v52 = vld [vmem:[%s1 + $0x20] sm:$0xff]
    %v53 = vld [vmem:[%s1 + $0x28] sm:$0xff]
    %v54 = vld [vmem:[%s1 + $0x30] sm:$0xff]
    %v55 = vld [vmem:[%s1 + $0x38] sm:$0xff]
    %v56 = vld [vmem:[%s2] sm:$0xf]
    %v58 = vlaneseq
    %v59 = vshrl.u32 %v58, 7
    %v60 = vsub.s32 0, %v59
    %v61 = vrot.slane %v56, %v60
    %v62 = vlaneseq
    %v63 = vshrl.u32 %v62, 7
    %v64 = vsub.s32 1, %v63
    %v65 = vrot.slane %v56, %v64
    %v66 = vlaneseq
    %v67 = vshrl.u32 %v66, 7
    %v68 = vsub.s32 2, %v67
    %v69 = vrot.slane %v56, %v68
    %v70 = vlaneseq
    %v71 = vshrl.u32 %v70, 7
    %v72 = vsub.s32 3, %v71
    %v73 = vrot.slane %v56, %v72
    %v86 = vunpack.c.l.b16 %v48
    %v87 = vunpack.c.h.b16 %v48
    %v88 = vunpack.c.l.b16 %v49
    %v89 = vunpack.c.h.b16 %v49
    %v90 = vunpack.c.l.b16 %v50
    %v91 = vunpack.c.h.b16 %v50
    %v92 = vunpack.c.l.b16 %v51
    %v93 = vunpack.c.h.b16 %v51
    %v94 = vunpack.c.l.b16 %v52
    %v95 = vunpack.c.h.b16 %v52
    %v96 = vunpack.c.l.b16 %v53
    %v97 = vunpack.c.h.b16 %v53
    %v98 = vunpack.c.l.b16 %v54
    %v99 = vunpack.c.h.b16 %v54
    %v100 = vunpack.c.l.b16 %v55
    %v101 = vunpack.c.h.b16 %v55
    %v102 = vpack.c.b16 %v90, %v86
    %v103 = vpack.c.b16 %v91, %v87
    %v104 = vpack.c.b16 %v92, %v88
    %v105 = vpack.c.b16 %v93, %v89
    %v106 = vpack.c.b16 %v98, %v94
    %v107 = vpack.c.b16 %v99, %v95
    %v108 = vpack.c.b16 %v100, %v96
    %v109 = vpack.c.b16 %v101, %v97
    %vm118 = vcmask 261120
    %v120 = vsel %vm118, %v47, 0
    %122 = vmatprep.subr.bf16.mxu0 0
    %123 = vmatpush1.bf16.msra.mxu0 0
    %124 = vmatprep.subr.bf16.mxu0 0
    %125 = vmatpush1.bf16.msra.mxu0 0
    %126 = vmatprep.subr.bf16.mxu0 0
    %127 = vmatpush1.bf16.msra.mxu0 0
    %128 = vmatprep.subr.bf16.mxu0 0
    %129 = vmatpush1.bf16.msra.mxu0 0
    %130 = vmatprep.subr.bf16.mxu0 0
    %131 = vmatpush1.bf16.msra.mxu0 0
    %132 = vmatprep.subr.bf16.mxu0 0
    %133 = vmatpush1.bf16.msra.mxu0 0
    %134 = vmatprep.subr.bf16.mxu0 %v107
    %135 = vmatpush1.bf16.msra.mxu0 %v106
    %136 = vmatprep.subr.bf16.mxu0 %v103
    %137 = vmatpush1.bf16.msra.mxu0 %v102
    %138 = vmatprep.subr.bf16.mxu0 0
    %139 = vmatpush2.bf16.msra.mxu0 0
    %140 = vmatprep.subr.bf16.mxu0 0
    %141 = vmatpush2.bf16.msra.mxu0 0
    %142 = vmatprep.subr.bf16.mxu0 0
    %143 = vmatpush2.bf16.msra.mxu0 0
    %144 = vmatprep.subr.bf16.mxu0 0
    %145 = vmatpush2.bf16.msra.mxu0 0
    %146 = vmatprep.subr.bf16.mxu0 0
    %147 = vmatpush2.bf16.msra.mxu0 0
    %148 = vmatprep.subr.bf16.mxu0 0
    %149 = vmatpush2.bf16.msra.mxu0 0
    %150 = vmatprep.subr.bf16.mxu0 0
    %151 = vmatpush2.bf16.msra.mxu0 0
    %152 = vmatprep.subr.bf16.mxu0 0
    %153 = vmatpush2.bf16.msra.mxu0 0
    %154 = vmatprep.mubr.bf16.mxu0 0
    %155 = vmatmul.mubr.bf16.gmra.mxu0 %v120
    %v156 = vpop.f32.mrf.mxu0
    %v157 = vadd.f32 %v61, %v156
    %v158 = vpop.f32.mrf.mxu0
    %v159 = vadd.f32 %v65, %v158
    %v160 = vpop.f32.mrf.mxu0
    %v161 = vpop.f32.mrf.mxu0
    %162 = vdwg.mxu0
    %163 = vmatprep.subr.bf16.mxu0 0
    %164 = vmatpush1.bf16.msra.mxu0 0
    %165 = vmatprep.subr.bf16.mxu0 0
    %166 = vmatpush1.bf16.msra.mxu0 0
    %167 = vmatprep.subr.bf16.mxu0 0
    %168 = vmatpush1.bf16.msra.mxu0 0
    %169 = vmatprep.subr.bf16.mxu0 0
    %170 = vmatpush1.bf16.msra.mxu0 0
    %171 = vmatprep.subr.bf16.mxu0 0
    %172 = vmatpush1.bf16.msra.mxu0 0
    %173 = vmatprep.subr.bf16.mxu0 0
    %174 = vmatpush1.bf16.msra.mxu0 0
    %175 = vmatprep.subr.bf16.mxu0 %v109
    %176 = vmatpush1.bf16.msra.mxu0 %v108
    %177 = vmatprep.subr.bf16.mxu0 %v105
    %178 = vmatpush1.bf16.msra.mxu0 %v104
    %179 = vmatprep.subr.bf16.mxu0 0
    %180 = vmatpush2.bf16.msra.mxu0 0
    %181 = vmatprep.subr.bf16.mxu0 0
    %182 = vmatpush2.bf16.msra.mxu0 0
    %183 = vmatprep.subr.bf16.mxu0 0
    %184 = vmatpush2.bf16.msra.mxu0 0
    %185 = vmatprep.subr.bf16.mxu0 0
    %186 = vmatpush2.bf16.msra.mxu0 0
    %187 = vmatprep.subr.bf16.mxu0 0
    %188 = vmatpush2.bf16.msra.mxu0 0
    %189 = vmatprep.subr.bf16.mxu0 0
    %190 = vmatpush2.bf16.msra.mxu0 0
    %191 = vmatprep.subr.bf16.mxu0 0
    %192 = vmatpush2.bf16.msra.mxu0 0
    %193 = vmatprep.subr.bf16.mxu0 0
    %194 = vmatpush2.bf16.msra.mxu0 0
    %195 = vmatprep.mubr.bf16.mxu0 0
    %196 = vmatmul.mubr.bf16.gmra.mxu0 %v120
    %v197 = vpop.f32.mrf.mxu0
    %v198 = vadd.f32 %v69, %v197
    %v199 = vpop.f32.mrf.mxu0
    %v200 = vadd.f32 %v73, %v199
    %v201 = vpop.f32.mrf.mxu0
    %v202 = vpop.f32.mrf.mxu0
    %203 = vdwg.mxu0
    %v204 = vld [vmem:[%s3] sm:$0xff]
    %v205 = vld [vmem:[%s3 + $0x8] sm:$0xff]
    %v206 = vld [vmem:[%s3 + $0x10] sm:$0xff]
    %v207 = vld [vmem:[%s3 + $0x18] sm:$0xff]
    %v208 = vld [vmem:[%s3 + $0x20] sm:$0xff]
    %v209 = vld [vmem:[%s3 + $0x28] sm:$0xff]
    %v210 = vld [vmem:[%s3 + $0x30] sm:$0xff]
    %v211 = vld [vmem:[%s3 + $0x38] sm:$0xff]
    %v212 = vld [vmem:[%s3 + $0x40] sm:$0xff]
    %v213 = vld [vmem:[%s3 + $0x48] sm:$0xff]
    %v214 = vld [vmem:[%s3 + $0x50] sm:$0xff]
    %v215 = vld [vmem:[%s3 + $0x58] sm:$0xff]
    %v216 = vld [vmem:[%s3 + $0x60] sm:$0xff]
    %v217 = vld [vmem:[%s3 + $0x68] sm:$0xff]
    %v218 = vld [vmem:[%s3 + $0x70] sm:$0xff]
    %v219 = vld [vmem:[%s3 + $0x78] sm:$0xff]
    %v220 = vld [vmem:[%s3 + $0x80] sm:$0xff]
    %v221 = vld [vmem:[%s3 + $0x88] sm:$0xff]
    %v222 = vld [vmem:[%s3 + $0x90] sm:$0xff]
    %v223 = vld [vmem:[%s3 + $0x98] sm:$0xff]
    %v224 = vld [vmem:[%s3 + $0xa0] sm:$0xff]
    %v225 = vld [vmem:[%s3 + $0xa8] sm:$0xff]
    %v226 = vld [vmem:[%s3 + $0xb0] sm:$0xff]
    %v227 = vld [vmem:[%s3 + $0xb8] sm:$0xff]
    %v228 = vld [vmem:[%s3 + $0xc0] sm:$0xff]
    %v229 = vld [vmem:[%s3 + $0xc8] sm:$0xff]
    %v230 = vld [vmem:[%s3 + $0xd0] sm:$0xff]
    %v231 = vld [vmem:[%s3 + $0xd8] sm:$0xff]
    %v232 = vld [vmem:[%s3 + $0xe0] sm:$0xff]
    %v233 = vld [vmem:[%s3 + $0xe8] sm:$0xff]
    %v234 = vld [vmem:[%s3 + $0xf0] sm:$0xff]
    %v235 = vld [vmem:[%s3 + $0xf8] sm:$0xff]
    %v236 = vld [vmem:[%s4] sm:$0xff]
    %v237 = vld [vmem:[%s4 + $0x8] sm:$0xff]
    %v240 = vlaneseq
    %v241 = vshrl.u32 %v240, 7
    %v242 = vsub.s32 0, %v241
    %v243 = vrot.slane %v236, %v242
    %v244 = vlaneseq
    %v245 = vshrl.u32 %v244, 7
    %v246 = vsub.s32 1, %v245
    %v247 = vrot.slane %v236, %v246
    %v248 = vlaneseq
    %v249 = vshrl.u32 %v248, 7
    %v250 = vsub.s32 2, %v249
    %v251 = vrot.slane %v236, %v250
    %v252 = vlaneseq
    %v253 = vshrl.u32 %v252, 7
    %v254 = vsub.s32 3, %v253
    %v255 = vrot.slane %v236, %v254
    %v256 = vlaneseq
    %v257 = vshrl.u32 %v256, 7
    %v258 = vsub.s32 4, %v257
    %v259 = vrot.slane %v236, %v258
    %v260 = vlaneseq
    %v261 = vshrl.u32 %v260, 7
    %v262 = vsub.s32 5, %v261
    %v263 = vrot.slane %v236, %v262
    %v264 = vlaneseq
    %v265 = vshrl.u32 %v264, 7
    %v266 = vsub.s32 6, %v265
    %v267 = vrot.slane %v236, %v266
    %v268 = vlaneseq
    %v269 = vshrl.u32 %v268, 7
    %v270 = vsub.s32 7, %v269
    %v271 = vrot.slane %v236, %v270
    %v272 = vlaneseq
    %v273 = vshrl.u32 %v272, 7
    %v274 = vsub.s32 0, %v273
    %v275 = vrot.slane %v237, %v274
    %v276 = vlaneseq
    %v277 = vshrl.u32 %v276, 7
    %v278 = vsub.s32 1, %v277
    %v279 = vrot.slane %v237, %v278
    %v280 = vlaneseq
    %v281 = vshrl.u32 %v280, 7
    %v282 = vsub.s32 2, %v281
    %v283 = vrot.slane %v237, %v282
    %v284 = vlaneseq
    %v285 = vshrl.u32 %v284, 7
    %v286 = vsub.s32 3, %v285
    %v287 = vrot.slane %v237, %v286
    %v288 = vlaneseq
    %v289 = vshrl.u32 %v288, 7
    %v290 = vsub.s32 4, %v289
    %v291 = vrot.slane %v237, %v290
    %v292 = vlaneseq
    %v293 = vshrl.u32 %v292, 7
    %v294 = vsub.s32 5, %v293
    %v295 = vrot.slane %v237, %v294
    %v296 = vlaneseq
    %v297 = vshrl.u32 %v296, 7
    %v298 = vsub.s32 6, %v297
    %v299 = vrot.slane %v237, %v298
    %v300 = vlaneseq
    %v301 = vshrl.u32 %v300, 7
    %v302 = vsub.s32 7, %v301
    %v303 = vrot.slane %v237, %v302
    %v352 = vunpack.c.l.b16 %v204
    %v353 = vunpack.c.h.b16 %v204
    %v354 = vunpack.c.l.b16 %v205
    %v355 = vunpack.c.h.b16 %v205
    %v356 = vunpack.c.l.b16 %v206
    %v357 = vunpack.c.h.b16 %v206
    %v358 = vunpack.c.l.b16 %v207
    %v359 = vunpack.c.h.b16 %v207
    %v360 = vunpack.c.l.b16 %v208
    %v361 = vunpack.c.h.b16 %v208
    %v362 = vunpack.c.l.b16 %v209
    %v363 = vunpack.c.h.b16 %v209
    %v364 = vunpack.c.l.b16 %v210
    %v365 = vunpack.c.h.b16 %v210
    %v366 = vunpack.c.l.b16 %v211
    %v367 = vunpack.c.h.b16 %v211
    %v368 = vunpack.c.l.b16 %v212
    %v369 = vunpack.c.h.b16 %v212
    %v370 = vunpack.c.l.b16 %v213
    %v371 = vunpack.c.h.b16 %v213
    %v372 = vunpack.c.l.b16 %v214
    %v373 = vunpack.c.h.b16 %v214
    %v374 = vunpack.c.l.b16 %v215
    %v375 = vunpack.c.h.b16 %v215
    %v376 = vunpack.c.l.b16 %v216
    %v377 = vunpack.c.h.b16 %v216
    %v378 = vunpack.c.l.b16 %v217
    %v379 = vunpack.c.h.b16 %v217
    %v380 = vunpack.c.l.b16 %v218
    %v381 = vunpack.c.h.b16 %v218
    %v382 = vunpack.c.l.b16 %v219
    %v383 = vunpack.c.h.b16 %v219
    %v384 = vunpack.c.l.b16 %v220
    %v385 = vunpack.c.h.b16 %v220
    %v386 = vunpack.c.l.b16 %v221
    %v387 = vunpack.c.h.b16 %v221
    %v388 = vunpack.c.l.b16 %v222
    %v389 = vunpack.c.h.b16 %v222
    %v390 = vunpack.c.l.b16 %v223
    %v391 = vunpack.c.h.b16 %v223
    %v392 = vunpack.c.l.b16 %v224
    %v393 = vunpack.c.h.b16 %v224
    %v394 = vunpack.c.l.b16 %v225
    %v395 = vunpack.c.h.b16 %v225
    %v396 = vunpack.c.l.b16 %v226
    %v397 = vunpack.c.h.b16 %v226
    %v398 = vunpack.c.l.b16 %v227
    %v399 = vunpack.c.h.b16 %v227
    %v400 = vunpack.c.l.b16 %v228
    %v401 = vunpack.c.h.b16 %v228
    %v402 = vunpack.c.l.b16 %v229
    %v403 = vunpack.c.h.b16 %v229
    %v404 = vunpack.c.l.b16 %v230
    %v405 = vunpack.c.h.b16 %v230
    %v406 = vunpack.c.l.b16 %v231
    %v407 = vunpack.c.h.b16 %v231
    %v408 = vunpack.c.l.b16 %v232
    %v409 = vunpack.c.h.b16 %v232
    %v410 = vunpack.c.l.b16 %v233
    %v411 = vunpack.c.h.b16 %v233
    %v412 = vunpack.c.l.b16 %v234
    %v413 = vunpack.c.h.b16 %v234
    %v414 = vunpack.c.l.b16 %v235
    %v415 = vunpack.c.h.b16 %v235
    %v416 = vpack.c.b16 %v368, %v352
    %v417 = vpack.c.b16 %v369, %v353
    %v418 = vpack.c.b16 %v370, %v354
    %v419 = vpack.c.b16 %v371, %v355
    %v420 = vpack.c.b16 %v372, %v356
    %v421 = vpack.c.b16 %v373, %v357
    %v422 = vpack.c.b16 %v374, %v358
    %v423 = vpack.c.b16 %v375, %v359
    %v424 = vpack.c.b16 %v376, %v360
    %v425 = vpack.c.b16 %v377, %v361
    %v426 = vpack.c.b16 %v378, %v362
    %v427 = vpack.c.b16 %v379, %v363
    %v428 = vpack.c.b16 %v380, %v364
    %v429 = vpack.c.b16 %v381, %v365
    %v430 = vpack.c.b16 %v382, %v366
    %v431 = vpack.c.b16 %v383, %v367
    %v432 = vpack.c.b16 %v400, %v384
    %v433 = vpack.c.b16 %v401, %v385
    %v434 = vpack.c.b16 %v402, %v386
    %v435 = vpack.c.b16 %v403, %v387
    %v436 = vpack.c.b16 %v404, %v388
    %v437 = vpack.c.b16 %v405, %v389
    %v438 = vpack.c.b16 %v406, %v390
    %v439 = vpack.c.b16 %v407, %v391
    %v440 = vpack.c.b16 %v408, %v392
    %v441 = vpack.c.b16 %v409, %v393
    %v442 = vpack.c.b16 %v410, %v394
    %v443 = vpack.c.b16 %v411, %v395
    %v444 = vpack.c.b16 %v412, %v396
    %v445 = vpack.c.b16 %v413, %v397
    %v446 = vpack.c.b16 %v414, %v398
    %v447 = vpack.c.b16 %v415, %v399
    %480 = vmatprep.subr.bf16.mxu0 0
    %481 = vmatpush1.bf16.msra.mxu0 0
    %482 = vmatprep.subr.bf16.mxu0 0
    %483 = vmatpush1.bf16.msra.mxu0 0
    %484 = vmatprep.subr.bf16.mxu0 0
    %485 = vmatpush1.bf16.msra.mxu0 0
    %486 = vmatprep.subr.bf16.mxu0 0
    %487 = vmatpush1.bf16.msra.mxu0 0
    %488 = vmatprep.subr.bf16.mxu0 0
    %489 = vmatpush1.bf16.msra.mxu0 0
    %490 = vmatprep.subr.bf16.mxu0 0
    %491 = vmatpush1.bf16.msra.mxu0 0
    %492 = vmatprep.subr.bf16.mxu0 %v433
    %493 = vmatpush1.bf16.msra.mxu0 %v432
    %494 = vmatprep.subr.bf16.mxu0 %v417
    %495 = vmatpush1.bf16.msra.mxu0 %v416
    %496 = vmatprep.subr.bf16.mxu0 0
    %497 = vmatpush2.bf16.msra.mxu0 0
    %498 = vmatprep.subr.bf16.mxu0 0
    %499 = vmatpush2.bf16.msra.mxu0 0
    %500 = vmatprep.subr.bf16.mxu0 0
    %501 = vmatpush2.bf16.msra.mxu0 0
    %502 = vmatprep.subr.bf16.mxu0 0
    %503 = vmatpush2.bf16.msra.mxu0 0
    %504 = vmatprep.subr.bf16.mxu0 0
    %505 = vmatpush2.bf16.msra.mxu0 0
    %506 = vmatprep.subr.bf16.mxu0 0
    %507 = vmatpush2.bf16.msra.mxu0 0
    %508 = vmatprep.subr.bf16.mxu0 0
    %509 = vmatpush2.bf16.msra.mxu0 0
    %510 = vmatprep.subr.bf16.mxu0 0
    %511 = vmatpush2.bf16.msra.mxu0 0
    %512 = vmatprep.mubr.bf16.mxu0 0
    %513 = vmatmul.mubr.bf16.gmra.mxu0 %v120
    %v514 = vpop.f32.mrf.mxu0
    %v515 = vadd.f32 %v243, %v514
    %v516 = vpop.f32.mrf.mxu0
    %v517 = vadd.f32 %v247, %v516
    %v518 = vpop.f32.mrf.mxu0
    %v519 = vpop.f32.mrf.mxu0
    %520 = vdwg.mxu0
    %521 = vmatprep.subr.bf16.mxu0 0
    %522 = vmatpush1.bf16.msra.mxu0 0
    %523 = vmatprep.subr.bf16.mxu0 0
    %524 = vmatpush1.bf16.msra.mxu0 0
    %525 = vmatprep.subr.bf16.mxu0 0
    %526 = vmatpush1.bf16.msra.mxu0 0
    %527 = vmatprep.subr.bf16.mxu0 0
    %528 = vmatpush1.bf16.msra.mxu0 0
    %529 = vmatprep.subr.bf16.mxu0 0
    %530 = vmatpush1.bf16.msra.mxu0 0
    %531 = vmatprep.subr.bf16.mxu0 0
    %532 = vmatpush1.bf16.msra.mxu0 0
    %533 = vmatprep.subr.bf16.mxu0 %v435
    %534 = vmatpush1.bf16.msra.mxu0 %v434
    %535 = vmatprep.subr.bf16.mxu0 %v419
    %536 = vmatpush1.bf16.msra.mxu0 %v418
    %537 = vmatprep.subr.bf16.mxu0 0
    %538 = vmatpush2.bf16.msra.mxu0 0
    %539 = vmatprep.subr.bf16.mxu0 0
    %540 = vmatpush2.bf16.msra.mxu0 0
    %541 = vmatprep.subr.bf16.mxu0 0
    %542 = vmatpush2.bf16.msra.mxu0 0
    %543 = vmatprep.subr.bf16.mxu0 0
    %544 = vmatpush2.bf16.msra.mxu0 0
    %545 = vmatprep.subr.bf16.mxu0 0
    %546 = vmatpush2.bf16.msra.mxu0 0
    %547 = vmatprep.subr.bf16.mxu0 0
    %548 = vmatpush2.bf16.msra.mxu0 0
    %549 = vmatprep.subr.bf16.mxu0 0
    %550 = vmatpush2.bf16.msra.mxu0 0
    %551 = vmatprep.subr.bf16.mxu0 0
    %552 = vmatpush2.bf16.msra.mxu0 0
    %553 = vmatprep.mubr.bf16.mxu0 0
    %554 = vmatmul.mubr.bf16.gmra.mxu0 %v120
    %v555 = vpop.f32.mrf.mxu0
    %v556 = vadd.f32 %v251, %v555
    %v557 = vpop.f32.mrf.mxu0
    %v558 = vadd.f32 %v255, %v557
    %v559 = vpop.f32.mrf.mxu0
    %v560 = vpop.f32.mrf.mxu0
    %561 = vdwg.mxu0
    %562 = vmatprep.subr.bf16.mxu0 0
    %563 = vmatpush1.bf16.msra.mxu0 0
    %564 = vmatprep.subr.bf16.mxu0 0
    %565 = vmatpush1.bf16.msra.mxu0 0
    %566 = vmatprep.subr.bf16.mxu0 0
    %567 = vmatpush1.bf16.msra.mxu0 0
    %568 = vmatprep.subr.bf16.mxu0 0
    %569 = vmatpush1.bf16.msra.mxu0 0
    %570 = vmatprep.subr.bf16.mxu0 0
    %571 = vmatpush1.bf16.msra.mxu0 0
    %572 = vmatprep.subr.bf16.mxu0 0
    %573 = vmatpush1.bf16.msra.mxu0 0
    %574 = vmatprep.subr.bf16.mxu0 %v437
    %575 = vmatpush1.bf16.msra.mxu0 %v436
    %576 = vmatprep.subr.bf16.mxu0 %v421
    %577 = vmatpush1.bf16.msra.mxu0 %v420
    %578 = vmatprep.subr.bf16.mxu0 0
    %579 = vmatpush2.bf16.msra.mxu0 0
    %580 = vmatprep.subr.bf16.mxu0 0
    %581 = vmatpush2.bf16.msra.mxu0 0
    %582 = vmatprep.subr.bf16.mxu0 0
    %583 = vmatpush2.bf16.msra.mxu0 0
    %584 = vmatprep.subr.bf16.mxu0 0
    %585 = vmatpush2.bf16.msra.mxu0 0
    %586 = vmatprep.subr.bf16.mxu0 0
    %587 = vmatpush2.bf16.msra.mxu0 0
    %588 = vmatprep.subr.bf16.mxu0 0
    %589 = vmatpush2.bf16.msra.mxu0 0
    %590 = vmatprep.subr.bf16.mxu0 0
    %591 = vmatpush2.bf16.msra.mxu0 0
    %592 = vmatprep.subr.bf16.mxu0 0
    %593 = vmatpush2.bf16.msra.mxu0 0
    %594 = vmatprep.mubr.bf16.mxu0 0
    %595 = vmatmul.mubr.bf16.gmra.mxu0 %v120
    %v596 = vpop.f32.mrf.mxu0
    %v597 = vadd.f32 %v259, %v596
    %v598 = vpop.f32.mrf.mxu0
    %v599 = vadd.f32 %v263, %v598
    %v600 = vpop.f32.mrf.mxu0
    %v601 = vpop.f32.mrf.mxu0
    %602 = vdwg.mxu0
    %603 = vmatprep.subr.bf16.mxu0 0
    %604 = vmatpush1.bf16.msra.mxu0 0
    %605 = vmatprep.subr.bf16.mxu0 0
    %606 = vmatpush1.bf16.msra.mxu0 0
    %607 = vmatprep.subr.bf16.mxu0 0
    %608 = vmatpush1.bf16.msra.mxu0 0
    %609 = vmatprep.subr.bf16.mxu0 0
    %610 = vmatpush1.bf16.msra.mxu0 0
    %611 = vmatprep.subr.bf16.mxu0 0
    %612 = vmatpush1.bf16.msra.mxu0 0
    %613 = vmatprep.subr.bf16.mxu0 0
    %614 = vmatpush1.bf16.msra.mxu0 0
    %615 = vmatprep.subr.bf16.mxu0 %v439
    %616 = vmatpush1.bf16.msra.mxu0 %v438
    %617 = vmatprep.subr.bf16.mxu0 %v423
    %618 = vmatpush1.bf16.msra.mxu0 %v422
    %619 = vmatprep.subr.bf16.mxu0 0
    %620 = vmatpush2.bf16.msra.mxu0 0
    %621 = vmatprep.subr.bf16.mxu0 0
    %622 = vmatpush2.bf16.msra.mxu0 0
    %623 = vmatprep.subr.bf16.mxu0 0
    %624 = vmatpush2.bf16.msra.mxu0 0
    %625 = vmatprep.subr.bf16.mxu0 0
    %626 = vmatpush2.bf16.msra.mxu0 0
    %627 = vmatprep.subr.bf16.mxu0 0
    %628 = vmatpush2.bf16.msra.mxu0 0
    %629 = vmatprep.subr.bf16.mxu0 0
    %630 = vmatpush2.bf16.msra.mxu0 0
    %631 = vmatprep.subr.bf16.mxu0 0
    %632 = vmatpush2.bf16.msra.mxu0 0
    %633 = vmatprep.subr.bf16.mxu0 0
    %634 = vmatpush2.bf16.msra.mxu0 0
    %635 = vmatprep.mubr.bf16.mxu0 0
    %636 = vmatmul.mubr.bf16.gmra.mxu0 %v120
    %v637 = vpop.f32.mrf.mxu0
    %v638 = vadd.f32 %v267, %v637
    %v639 = vpop.f32.mrf.mxu0
    %v640 = vadd.f32 %v271, %v639
    %v641 = vpop.f32.mrf.mxu0
    %v642 = vpop.f32.mrf.mxu0
    %643 = vdwg.mxu0
    %644 = vmatprep.subr.bf16.mxu0 0
    %645 = vmatpush1.bf16.msra.mxu0 0
    %646 = vmatprep.subr.bf16.mxu0 0
    %647 = vmatpush1.bf16.msra.mxu0 0
    %648 = vmatprep.subr.bf16.mxu0 0
    %649 = vmatpush1.bf16.msra.mxu0 0
    %650 = vmatprep.subr.bf16.mxu0 0
    %651 = vmatpush1.bf16.msra.mxu0 0
    %652 = vmatprep.subr.bf16.mxu0 0
    %653 = vmatpush1.bf16.msra.mxu0 0
    %654 = vmatprep.subr.bf16.mxu0 0
    %655 = vmatpush1.bf16.msra.mxu0 0
    %656 = vmatprep.subr.bf16.mxu0 %v441
    %657 = vmatpush1.bf16.msra.mxu0 %v440
    %658 = vmatprep.subr.bf16.mxu0 %v425
    %659 = vmatpush1.bf16.msra.mxu0 %v424
    %660 = vmatprep.subr.bf16.mxu0 0
    %661 = vmatpush2.bf16.msra.mxu0 0
    %662 = vmatprep.subr.bf16.mxu0 0
    %663 = vmatpush2.bf16.msra.mxu0 0
    %664 = vmatprep.subr.bf16.mxu0 0
    %665 = vmatpush2.bf16.msra.mxu0 0
    %666 = vmatprep.subr.bf16.mxu0 0
    %667 = vmatpush2.bf16.msra.mxu0 0
    %668 = vmatprep.subr.bf16.mxu0 0
    %669 = vmatpush2.bf16.msra.mxu0 0
    %670 = vmatprep.subr.bf16.mxu0 0
    %671 = vmatpush2.bf16.msra.mxu0 0
    %672 = vmatprep.subr.bf16.mxu0 0
    %673 = vmatpush2.bf16.msra.mxu0 0
    %674 = vmatprep.subr.bf16.mxu0 0
    %675 = vmatpush2.bf16.msra.mxu0 0
    %676 = vmatprep.mubr.bf16.mxu0 0
    %677 = vmatmul.mubr.bf16.gmra.mxu0 %v120
    %v678 = vpop.f32.mrf.mxu0
    %v679 = vadd.f32 %v275, %v678
    %v680 = vpop.f32.mrf.mxu0
    %v681 = vadd.f32 %v279, %v680
    %v682 = vpop.f32.mrf.mxu0
    %v683 = vpop.f32.mrf.mxu0
    %684 = vdwg.mxu0
    %685 = vmatprep.subr.bf16.mxu0 0
    %686 = vmatpush1.bf16.msra.mxu0 0
    %687 = vmatprep.subr.bf16.mxu0 0
    %688 = vmatpush1.bf16.msra.mxu0 0
    %689 = vmatprep.subr.bf16.mxu0 0
    %690 = vmatpush1.bf16.msra.mxu0 0
    %691 = vmatprep.subr.bf16.mxu0 0
    %692 = vmatpush1.bf16.msra.mxu0 0
    %693 = vmatprep.subr.bf16.mxu0 0
    %694 = vmatpush1.bf16.msra.mxu0 0
    %695 = vmatprep.subr.bf16.mxu0 0
    %696 = vmatpush1.bf16.msra.mxu0 0
    %697 = vmatprep.subr.bf16.mxu0 %v443
    %698 = vmatpush1.bf16.msra.mxu0 %v442
    %699 = vmatprep.subr.bf16.mxu0 %v427
    %700 = vmatpush1.bf16.msra.mxu0 %v426
    %701 = vmatprep.subr.bf16.mxu0 0
    %702 = vmatpush2.bf16.msra.mxu0 0
    %703 = vmatprep.subr.bf16.mxu0 0
    %704 = vmatpush2.bf16.msra.mxu0 0
    %705 = vmatprep.subr.bf16.mxu0 0
    %706 = vmatpush2.bf16.msra.mxu0 0
    %707 = vmatprep.subr.bf16.mxu0 0
    %708 = vmatpush2.bf16.msra.mxu0 0
    %709 = vmatprep.subr.bf16.mxu0 0
    %710 = vmatpush2.bf16.msra.mxu0 0
    %711 = vmatprep.subr.bf16.mxu0 0
    %712 = vmatpush2.bf16.msra.mxu0 0
    %713 = vmatprep.subr.bf16.mxu0 0
    %714 = vmatpush2.bf16.msra.mxu0 0
    %715 = vmatprep.subr.bf16.mxu0 0
    %716 = vmatpush2.bf16.msra.mxu0 0
    %717 = vmatprep.mubr.bf16.mxu0 0
    %718 = vmatmul.mubr.bf16.gmra.mxu0 %v120
    %v719 = vpop.f32.mrf.mxu0
    %v720 = vadd.f32 %v283, %v719
    %v721 = vpop.f32.mrf.mxu0
    %v722 = vadd.f32 %v287, %v721
    %v723 = vpop.f32.mrf.mxu0
    %v724 = vpop.f32.mrf.mxu0
    %725 = vdwg.mxu0
    %726 = vmatprep.subr.bf16.mxu0 0
    %727 = vmatpush1.bf16.msra.mxu0 0
    %728 = vmatprep.subr.bf16.mxu0 0
    %729 = vmatpush1.bf16.msra.mxu0 0
    %730 = vmatprep.subr.bf16.mxu0 0
    %731 = vmatpush1.bf16.msra.mxu0 0
    %732 = vmatprep.subr.bf16.mxu0 0
    %733 = vmatpush1.bf16.msra.mxu0 0
    %734 = vmatprep.subr.bf16.mxu0 0
    %735 = vmatpush1.bf16.msra.mxu0 0
    %736 = vmatprep.subr.bf16.mxu0 0
    %737 = vmatpush1.bf16.msra.mxu0 0
    %738 = vmatprep.subr.bf16.mxu0 %v445
    %739 = vmatpush1.bf16.msra.mxu0 %v444
    %740 = vmatprep.subr.bf16.mxu0 %v429
    %741 = vmatpush1.bf16.msra.mxu0 %v428
    %742 = vmatprep.subr.bf16.mxu0 0
    %743 = vmatpush2.bf16.msra.mxu0 0
    %744 = vmatprep.subr.bf16.mxu0 0
    %745 = vmatpush2.bf16.msra.mxu0 0
    %746 = vmatprep.subr.bf16.mxu0 0
    %747 = vmatpush2.bf16.msra.mxu0 0
    %748 = vmatprep.subr.bf16.mxu0 0
    %749 = vmatpush2.bf16.msra.mxu0 0
    %750 = vmatprep.subr.bf16.mxu0 0
    %751 = vmatpush2.bf16.msra.mxu0 0
    %752 = vmatprep.subr.bf16.mxu0 0
    %753 = vmatpush2.bf16.msra.mxu0 0
    %754 = vmatprep.subr.bf16.mxu0 0
    %755 = vmatpush2.bf16.msra.mxu0 0
    %756 = vmatprep.subr.bf16.mxu0 0
    %757 = vmatpush2.bf16.msra.mxu0 0
    %758 = vmatprep.mubr.bf16.mxu0 0
    %759 = vmatmul.mubr.bf16.gmra.mxu0 %v120
    %v760 = vpop.f32.mrf.mxu0
    %v761 = vadd.f32 %v291, %v760
    %v762 = vpop.f32.mrf.mxu0
    %v763 = vadd.f32 %v295, %v762
    %v764 = vpop.f32.mrf.mxu0
    %v765 = vpop.f32.mrf.mxu0
    %766 = vdwg.mxu0
    %767 = vmatprep.subr.bf16.mxu0 0
    %768 = vmatpush1.bf16.msra.mxu0 0
    %769 = vmatprep.subr.bf16.mxu0 0
    %770 = vmatpush1.bf16.msra.mxu0 0
    %771 = vmatprep.subr.bf16.mxu0 0
    %772 = vmatpush1.bf16.msra.mxu0 0
    %773 = vmatprep.subr.bf16.mxu0 0
    %774 = vmatpush1.bf16.msra.mxu0 0
    %775 = vmatprep.subr.bf16.mxu0 0
    %776 = vmatpush1.bf16.msra.mxu0 0
    %777 = vmatprep.subr.bf16.mxu0 0
    %778 = vmatpush1.bf16.msra.mxu0 0
    %779 = vmatprep.subr.bf16.mxu0 %v447
    %780 = vmatpush1.bf16.msra.mxu0 %v446
    %781 = vmatprep.subr.bf16.mxu0 %v431
    %782 = vmatpush1.bf16.msra.mxu0 %v430
    %783 = vmatprep.subr.bf16.mxu0 0
    %784 = vmatpush2.bf16.msra.mxu0 0
    %785 = vmatprep.subr.bf16.mxu0 0
    %786 = vmatpush2.bf16.msra.mxu0 0
    %787 = vmatprep.subr.bf16.mxu0 0
    %788 = vmatpush2.bf16.msra.mxu0 0
    %789 = vmatprep.subr.bf16.mxu0 0
    %790 = vmatpush2.bf16.msra.mxu0 0
    %791 = vmatprep.subr.bf16.mxu0 0
    %792 = vmatpush2.bf16.msra.mxu0 0
    %793 = vmatprep.subr.bf16.mxu0 0
    %794 = vmatpush2.bf16.msra.mxu0 0
    %795 = vmatprep.subr.bf16.mxu0 0
    %796 = vmatpush2.bf16.msra.mxu0 0
    %797 = vmatprep.subr.bf16.mxu0 0
    %798 = vmatpush2.bf16.msra.mxu0 0
    %799 = vmatprep.mubr.bf16.mxu0 0
    %800 = vmatmul.mubr.bf16.gmra.mxu0 %v120
    %v801 = vpop.f32.mrf.mxu0
    %v802 = vadd.f32 %v299, %v801
    %v803 = vpop.f32.mrf.mxu0
    %v804 = vadd.f32 %v303, %v803
    %v805 = vpop.f32.mrf.mxu0
    %v806 = vpop.f32.mrf.mxu0
    %807 = vdwg.mxu0
    %vm808 = vcmp.ge.f32.partialorder %v515, 0.0
    %vm809 = vcmp.ge.f32.partialorder %v517, 0.0
    %vm810 = vcmp.ge.f32.partialorder %v556, 0.0
    %vm811 = vcmp.ge.f32.partialorder %v558, 0.0
    %vm812 = vcmp.ge.f32.partialorder %v597, 0.0
    %vm813 = vcmp.ge.f32.partialorder %v599, 0.0
    %vm814 = vcmp.ge.f32.partialorder %v638, 0.0
    %vm815 = vcmp.ge.f32.partialorder %v640, 0.0
    %vm816 = vcmp.ge.f32.partialorder %v679, 0.0
    %vm817 = vcmp.ge.f32.partialorder %v681, 0.0
    %vm818 = vcmp.ge.f32.partialorder %v720, 0.0
    %vm819 = vcmp.ge.f32.partialorder %v722, 0.0
    %vm820 = vcmp.ge.f32.partialorder %v761, 0.0
    %vm821 = vcmp.ge.f32.partialorder %v763, 0.0
    %vm822 = vcmp.ge.f32.partialorder %v802, 0.0
    %vm823 = vcmp.ge.f32.partialorder %v804, 0.0
    %v824 = vmul.f32 %v515, 0.2
    %v825 = vmul.f32 %v517, 0.2
    %v826 = vmul.f32 %v556, 0.2
    %v827 = vmul.f32 %v558, 0.2
    %v828 = vmul.f32 %v597, 0.2
    %v829 = vmul.f32 %v599, 0.2
    %v830 = vmul.f32 %v638, 0.2
    %v831 = vmul.f32 %v640, 0.2
    %v832 = vmul.f32 %v679, 0.2
    %v833 = vmul.f32 %v681, 0.2
    %v834 = vmul.f32 %v720, 0.2
    %v835 = vmul.f32 %v722, 0.2
    %v836 = vmul.f32 %v761, 0.2
    %v837 = vmul.f32 %v763, 0.2
    %v838 = vmul.f32 %v802, 0.2
    %v839 = vmul.f32 %v804, 0.2
    %v840 = vsel %vm808, %v515, %v824
    %v841 = vsel %vm809, %v517, %v825
    %v842 = vsel %vm810, %v556, %v826
    %v843 = vsel %vm811, %v558, %v827
    %v844 = vsel %vm812, %v597, %v828
    %v845 = vsel %vm813, %v599, %v829
    %v846 = vsel %vm814, %v638, %v830
    %v847 = vsel %vm815, %v640, %v831
    %v848 = vsel %vm816, %v679, %v832
    %v849 = vsel %vm817, %v681, %v833
    %v850 = vsel %vm818, %v720, %v834
    %v851 = vsel %vm819, %v722, %v835
    %v852 = vsel %vm820, %v761, %v836
    %v853 = vsel %vm821, %v763, %v837
    %v854 = vsel %vm822, %v802, %v838
    %v855 = vsel %vm823, %v804, %v839
    %v856 = vpack.c.bf16 %v840, %v840
    %v857 = vpack.c.bf16 %v841, %v841
    %v858 = vpack.c.bf16 %v842, %v842
    %v859 = vpack.c.bf16 %v843, %v843
    %v860 = vpack.c.bf16 %v844, %v844
    %v861 = vpack.c.bf16 %v845, %v845
    %v862 = vpack.c.bf16 %v846, %v846
    %v863 = vpack.c.bf16 %v847, %v847
    %v864 = vpack.c.bf16 %v848, %v848
    %v865 = vpack.c.bf16 %v849, %v849
    %v866 = vpack.c.bf16 %v850, %v850
    %v867 = vpack.c.bf16 %v851, %v851
    %v868 = vpack.c.bf16 %v852, %v852
    %v869 = vpack.c.bf16 %v853, %v853
    %v870 = vpack.c.bf16 %v854, %v854
    %v871 = vpack.c.bf16 %v855, %v855
    %v872 = vld [vmem:[%s5] sm:$0xff]
    %v873 = vld [vmem:[%s5 + $0x8] sm:$0xff]
    %v874 = vld [vmem:[%s5 + $0x10] sm:$0xff]
    %v875 = vld [vmem:[%s5 + $0x18] sm:$0xff]
    %v876 = vld [vmem:[%s5 + $0x20] sm:$0xff]
    %v877 = vld [vmem:[%s5 + $0x28] sm:$0xff]
    %v878 = vld [vmem:[%s5 + $0x30] sm:$0xff]
    %v879 = vld [vmem:[%s5 + $0x38] sm:$0xff]
    %v880 = vld [vmem:[%s5 + $0x40] sm:$0xff]
    %v881 = vld [vmem:[%s5 + $0x48] sm:$0xff]
    %v882 = vld [vmem:[%s5 + $0x50] sm:$0xff]
    %v883 = vld [vmem:[%s5 + $0x58] sm:$0xff]
    %v884 = vld [vmem:[%s5 + $0x60] sm:$0xff]
    %v885 = vld [vmem:[%s5 + $0x68] sm:$0xff]
    %v886 = vld [vmem:[%s5 + $0x70] sm:$0xff]
    %v887 = vld [vmem:[%s5 + $0x78] sm:$0xff]
    %v888 = vld [vmem:[%s5 + $0x80] sm:$0xff]
    %v889 = vld [vmem:[%s5 + $0x88] sm:$0xff]
    %v890 = vld [vmem:[%s5 + $0x90] sm:$0xff]
    %v891 = vld [vmem:[%s5 + $0x98] sm:$0xff]
    %v892 = vld [vmem:[%s5 + $0xa0] sm:$0xff]
    %v893 = vld [vmem:[%s5 + $0xa8] sm:$0xff]
    %v894 = vld [vmem:[%s5 + $0xb0] sm:$0xff]
    %v895 = vld [vmem:[%s5 + $0xb8] sm:$0xff]
    %v896 = vld [vmem:[%s5 + $0xc0] sm:$0xff]
    %v897 = vld [vmem:[%s5 + $0xc8] sm:$0xff]
    %v898 = vld [vmem:[%s5 + $0xd0] sm:$0xff]
    %v899 = vld [vmem:[%s5 + $0xd8] sm:$0xff]
    %v900 = vld [vmem:[%s5 + $0xe0] sm:$0xff]
    %v901 = vld [vmem:[%s5 + $0xe8] sm:$0xff]
    %v902 = vld [vmem:[%s5 + $0xf0] sm:$0xff]
    %v903 = vld [vmem:[%s5 + $0xf8] sm:$0xff]
    %v904 = vld [vmem:[%s5 + $0x100] sm:$0xff]
    %v905 = vld [vmem:[%s5 + $0x108] sm:$0xff]
    %v906 = vld [vmem:[%s5 + $0x110] sm:$0xff]
    %v907 = vld [vmem:[%s5 + $0x118] sm:$0xff]
    %v908 = vld [vmem:[%s5 + $0x120] sm:$0xff]
    %v909 = vld [vmem:[%s5 + $0x128] sm:$0xff]
    %v910 = vld [vmem:[%s5 + $0x130] sm:$0xff]
    %v911 = vld [vmem:[%s5 + $0x138] sm:$0xff]
    %v912 = vld [vmem:[%s5 + $0x140] sm:$0xff]
    %v913 = vld [vmem:[%s5 + $0x148] sm:$0xff]
    %v914 = vld [vmem:[%s5 + $0x150] sm:$0xff]
    %v915 = vld [vmem:[%s5 + $0x158] sm:$0xff]
    %v916 = vld [vmem:[%s5 + $0x160] sm:$0xff]
    %v917 = vld [vmem:[%s5 + $0x168] sm:$0xff]
    %v918 = vld [vmem:[%s5 + $0x170] sm:$0xff]
    %v919 = vld [vmem:[%s5 + $0x178] sm:$0xff]
    %v920 = vld [vmem:[%s5 + $0x180] sm:$0xff]
    %v921 = vld [vmem:[%s5 + $0x188] sm:$0xff]
    %v922 = vld [vmem:[%s5 + $0x190] sm:$0xff]
    %v923 = vld [vmem:[%s5 + $0x198] sm:$0xff]
    %v924 = vld [vmem:[%s5 + $0x1a0] sm:$0xff]
    %v925 = vld [vmem:[%s5 + $0x1a8] sm:$0xff]
    %v926 = vld [vmem:[%s5 + $0x1b0] sm:$0xff]
    %v927 = vld [vmem:[%s5 + $0x1b8] sm:$0xff]
    %v928 = vld [vmem:[%s5 + $0x1c0] sm:$0xff]
    %v929 = vld [vmem:[%s5 + $0x1c8] sm:$0xff]
    %v930 = vld [vmem:[%s5 + $0x1d0] sm:$0xff]
    %v931 = vld [vmem:[%s5 + $0x1d8] sm:$0xff]
    %v932 = vld [vmem:[%s5 + $0x1e0] sm:$0xff]
    %v933 = vld [vmem:[%s5 + $0x1e8] sm:$0xff]
    %v934 = vld [vmem:[%s5 + $0x1f0] sm:$0xff]
    %v935 = vld [vmem:[%s5 + $0x1f8] sm:$0xff]
    %v936 = vld [vmem:[%s5 + $0x200] sm:$0xff]
    %v937 = vld [vmem:[%s5 + $0x208] sm:$0xff]
    %v938 = vld [vmem:[%s5 + $0x210] sm:$0xff]
    %v939 = vld [vmem:[%s5 + $0x218] sm:$0xff]
    %v940 = vld [vmem:[%s5 + $0x220] sm:$0xff]
    %v941 = vld [vmem:[%s5 + $0x228] sm:$0xff]
    %v942 = vld [vmem:[%s5 + $0x230] sm:$0xff]
    %v943 = vld [vmem:[%s5 + $0x238] sm:$0xff]
    %v944 = vld [vmem:[%s5 + $0x240] sm:$0xff]
    %v945 = vld [vmem:[%s5 + $0x248] sm:$0xff]
    %v946 = vld [vmem:[%s5 + $0x250] sm:$0xff]
    %v947 = vld [vmem:[%s5 + $0x258] sm:$0xff]
    %v948 = vld [vmem:[%s5 + $0x260] sm:$0xff]
    %v949 = vld [vmem:[%s5 + $0x268] sm:$0xff]
    %v950 = vld [vmem:[%s5 + $0x270] sm:$0xff]
    %v951 = vld [vmem:[%s5 + $0x278] sm:$0xff]
    %v952 = vld [vmem:[%s5 + $0x280] sm:$0xff]
    %v953 = vld [vmem:[%s5 + $0x288] sm:$0xff]
    %v954 = vld [vmem:[%s5 + $0x290] sm:$0xff]
    %v955 = vld [vmem:[%s5 + $0x298] sm:$0xff]
    %v956 = vld [vmem:[%s5 + $0x2a0] sm:$0xff]
    %v957 = vld [vmem:[%s5 + $0x2a8] sm:$0xff]
    %v958 = vld [vmem:[%s5 + $0x2b0] sm:$0xff]
    %v959 = vld [vmem:[%s5 + $0x2b8] sm:$0xff]
    %v960 = vld [vmem:[%s5 + $0x2c0] sm:$0xff]
    %v961 = vld [vmem:[%s5 + $0x2c8] sm:$0xff]
    %v962 = vld [vmem:[%s5 + $0x2d0] sm:$0xff]
    %v963 = vld [vmem:[%s5 + $0x2d8] sm:$0xff]
    %v964 = vld [vmem:[%s5 + $0x2e0] sm:$0xff]
    %v965 = vld [vmem:[%s5 + $0x2e8] sm:$0xff]
    %v966 = vld [vmem:[%s5 + $0x2f0] sm:$0xff]
    %v967 = vld [vmem:[%s5 + $0x2f8] sm:$0xff]
    %v968 = vld [vmem:[%s5 + $0x300] sm:$0xff]
    %v969 = vld [vmem:[%s5 + $0x308] sm:$0xff]
    %v970 = vld [vmem:[%s5 + $0x310] sm:$0xff]
    %v971 = vld [vmem:[%s5 + $0x318] sm:$0xff]
    %v972 = vld [vmem:[%s5 + $0x320] sm:$0xff]
    %v973 = vld [vmem:[%s5 + $0x328] sm:$0xff]
    %v974 = vld [vmem:[%s5 + $0x330] sm:$0xff]
    %v975 = vld [vmem:[%s5 + $0x338] sm:$0xff]
    %v976 = vld [vmem:[%s5 + $0x340] sm:$0xff]
    %v977 = vld [vmem:[%s5 + $0x348] sm:$0xff]
    %v978 = vld [vmem:[%s5 + $0x350] sm:$0xff]
    %v979 = vld [vmem:[%s5 + $0x358] sm:$0xff]
    %v980 = vld [vmem:[%s5 + $0x360] sm:$0xff]
    %v981 = vld [vmem:[%s5 + $0x368] sm:$0xff]
    %v982 = vld [vmem:[%s5 + $0x370] sm:$0xff]
    %v983 = vld [vmem:[%s5 + $0x378] sm:$0xff]
    %v984 = vld [vmem:[%s5 + $0x380] sm:$0xff]
    %v985 = vld [vmem:[%s5 + $0x388] sm:$0xff]
    %v986 = vld [vmem:[%s5 + $0x390] sm:$0xff]
    %v987 = vld [vmem:[%s5 + $0x398] sm:$0xff]
    %v988 = vld [vmem:[%s5 + $0x3a0] sm:$0xff]
    %v989 = vld [vmem:[%s5 + $0x3a8] sm:$0xff]
    %v990 = vld [vmem:[%s5 + $0x3b0] sm:$0xff]
    %v991 = vld [vmem:[%s5 + $0x3b8] sm:$0xff]
    %v992 = vld [vmem:[%s5 + $0x3c0] sm:$0xff]
    %v993 = vld [vmem:[%s5 + $0x3c8] sm:$0xff]
    %v994 = vld [vmem:[%s5 + $0x3d0] sm:$0xff]
    %v995 = vld [vmem:[%s5 + $0x3d8] sm:$0xff]
    %v996 = vld [vmem:[%s5 + $0x3e0] sm:$0xff]
    %v997 = vld [vmem:[%s5 + $0x3e8] sm:$0xff]
    %v998 = vld [vmem:[%s5 + $0x3f0] sm:$0xff]
    %v999 = vld [vmem:[%s5 + $0x3f8] sm:$0xff]
    %v1000 = vld [vmem:[%s5 + $0x400] sm:$0xff]
    %v1001 = vld [vmem:[%s5 + $0x408] sm:$0xff]
    %v1002 = vld [vmem:[%s5 + $0x410] sm:$0xff]
    %v1003 = vld [vmem:[%s5 + $0x418] sm:$0xff]
    %v1004 = vld [vmem:[%s5 + $0x420] sm:$0xff]
    %v1005 = vld [vmem:[%s5 + $0x428] sm:$0xff]
    %v1006 = vld [vmem:[%s5 + $0x430] sm:$0xff]
    %v1007 = vld [vmem:[%s5 + $0x438] sm:$0xff]
    %v1008 = vld [vmem:[%s5 + $0x440] sm:$0xff]
    %v1009 = vld [vmem:[%s5 + $0x448] sm:$0xff]
    %v1010 = vld [vmem:[%s5 + $0x450] sm:$0xff]
    %v1011 = vld [vmem:[%s5 + $0x458] sm:$0xff]
    %v1012 = vld [vmem:[%s5 + $0x460] sm:$0xff]
    %v1013 = vld [vmem:[%s5 + $0x468] sm:$0xff]
    %v1014 = vld [vmem:[%s5 + $0x470] sm:$0xff]
    %v1015 = vld [vmem:[%s5 + $0x478] sm:$0xff]
    %v1016 = vld [vmem:[%s5 + $0x480] sm:$0xff]
    %v1017 = vld [vmem:[%s5 + $0x488] sm:$0xff]
    %v1018 = vld [vmem:[%s5 + $0x490] sm:$0xff]
    %v1019 = vld [vmem:[%s5 + $0x498] sm:$0xff]
    %v1020 = vld [vmem:[%s5 + $0x4a0] sm:$0xff]
    %v1021 = vld [vmem:[%s5 + $0x4a8] sm:$0xff]
    %v1022 = vld [vmem:[%s5 + $0x4b0] sm:$0xff]
    %v1023 = vld [vmem:[%s5 + $0x4b8] sm:$0xff]
    %v1024 = vld [vmem:[%s5 + $0x4c0] sm:$0xff]
    %v1025 = vld [vmem:[%s5 + $0x4c8] sm:$0xff]
    %v1026 = vld [vmem:[%s5 + $0x4d0] sm:$0xff]
    %v1027 = vld [vmem:[%s5 + $0x4d8] sm:$0xff]
    %v1028 = vld [vmem:[%s5 + $0x4e0] sm:$0xff]
    %v1029 = vld [vmem:[%s5 + $0x4e8] sm:$0xff]
    %v1030 = vld [vmem:[%s5 + $0x4f0] sm:$0xff]
    %v1031 = vld [vmem:[%s5 + $0x4f8] sm:$0xff]
    %v1032 = vld [vmem:[%s5 + $0x500] sm:$0xff]
    %v1033 = vld [vmem:[%s5 + $0x508] sm:$0xff]
    %v1034 = vld [vmem:[%s5 + $0x510] sm:$0xff]
    %v1035 = vld [vmem:[%s5 + $0x518] sm:$0xff]
    %v1036 = vld [vmem:[%s5 + $0x520] sm:$0xff]
    %v1037 = vld [vmem:[%s5 + $0x528] sm:$0xff]
    %v1038 = vld [vmem:[%s5 + $0x530] sm:$0xff]
    %v1039 = vld [vmem:[%s5 + $0x538] sm:$0xff]
    %v1040 = vld [vmem:[%s5 + $0x540] sm:$0xff]
    %v1041 = vld [vmem:[%s5 + $0x548] sm:$0xff]
    %v1042 = vld [vmem:[%s5 + $0x550] sm:$0xff]
    %v1043 = vld [vmem:[%s5 + $0x558] sm:$0xff]
    %v1044 = vld [vmem:[%s5 + $0x560] sm:$0xff]
    %v1045 = vld [vmem:[%s5 + $0x568] sm:$0xff]
    %v1046 = vld [vmem:[%s5 + $0x570] sm:$0xff]
    %v1047 = vld [vmem:[%s5 + $0x578] sm:$0xff]
    %v1048 = vld [vmem:[%s5 + $0x580] sm:$0xff]
    %v1049 = vld [vmem:[%s5 + $0x588] sm:$0xff]
    %v1050 = vld [vmem:[%s5 + $0x590] sm:$0xff]
    %v1051 = vld [vmem:[%s5 + $0x598] sm:$0xff]
    %v1052 = vld [vmem:[%s5 + $0x5a0] sm:$0xff]
    %v1053 = vld [vmem:[%s5 + $0x5a8] sm:$0xff]
    %v1054 = vld [vmem:[%s5 + $0x5b0] sm:$0xff]
    %v1055 = vld [vmem:[%s5 + $0x5b8] sm:$0xff]
    %v1056 = vld [vmem:[%s5 + $0x5c0] sm:$0xff]
    %v1057 = vld [vmem:[%s5 + $0x5c8] sm:$0xff]
    %v1058 = vld [vmem:[%s5 + $0x5d0] sm:$0xff]
    %v1059 = vld [vmem:[%s5 + $0x5d8] sm:$0xff]
    %v1060 = vld [vmem:[%s5 + $0x5e0] sm:$0xff]
    %v1061 = vld [vmem:[%s5 + $0x5e8] sm:$0xff]
    %v1062 = vld [vmem:[%s5 + $0x5f0] sm:$0xff]
    %v1063 = vld [vmem:[%s5 + $0x5f8] sm:$0xff]
    %v1064 = vld [vmem:[%s5 + $0x600] sm:$0xff]
    %v1065 = vld [vmem:[%s5 + $0x608] sm:$0xff]
    %v1066 = vld [vmem:[%s5 + $0x610] sm:$0xff]
    %v1067 = vld [vmem:[%s5 + $0x618] sm:$0xff]
    %v1068 = vld [vmem:[%s5 + $0x620] sm:$0xff]
    %v1069 = vld [vmem:[%s5 + $0x628] sm:$0xff]
    %v1070 = vld [vmem:[%s5 + $0x630] sm:$0xff]
    %v1071 = vld [vmem:[%s5 + $0x638] sm:$0xff]
    %v1072 = vld [vmem:[%s5 + $0x640] sm:$0xff]
    %v1073 = vld [vmem:[%s5 + $0x648] sm:$0xff]
    %v1074 = vld [vmem:[%s5 + $0x650] sm:$0xff]
    %v1075 = vld [vmem:[%s5 + $0x658] sm:$0xff]
    %v1076 = vld [vmem:[%s5 + $0x660] sm:$0xff]
    %v1077 = vld [vmem:[%s5 + $0x668] sm:$0xff]
    %v1078 = vld [vmem:[%s5 + $0x670] sm:$0xff]
    %v1079 = vld [vmem:[%s5 + $0x678] sm:$0xff]
    %v1080 = vld [vmem:[%s5 + $0x680] sm:$0xff]
    %v1081 = vld [vmem:[%s5 + $0x688] sm:$0xff]
    %v1082 = vld [vmem:[%s5 + $0x690] sm:$0xff]
    %v1083 = vld [vmem:[%s5 + $0x698] sm:$0xff]
    %v1084 = vld [vmem:[%s5 + $0x6a0] sm:$0xff]
    %v1085 = vld [vmem:[%s5 + $0x6a8] sm:$0xff]
    %v1086 = vld [vmem:[%s5 + $0x6b0] sm:$0xff]
    %v1087 = vld [vmem:[%s5 + $0x6b8] sm:$0xff]
    %v1088 = vld [vmem:[%s5 + $0x6c0] sm:$0xff]
    %v1089 = vld [vmem:[%s5 + $0x6c8] sm:$0xff]
    %v1090 = vld [vmem:[%s5 + $0x6d0] sm:$0xff]
    %v1091 = vld [vmem:[%s5 + $0x6d8] sm:$0xff]
    %v1092 = vld [vmem:[%s5 + $0x6e0] sm:$0xff]
    %v1093 = vld [vmem:[%s5 + $0x6e8] sm:$0xff]
    %v1094 = vld [vmem:[%s5 + $0x6f0] sm:$0xff]
    %v1095 = vld [vmem:[%s5 + $0x6f8] sm:$0xff]
    %v1096 = vld [vmem:[%s5 + $0x700] sm:$0xff]
    %v1097 = vld [vmem:[%s5 + $0x708] sm:$0xff]
    %v1098 = vld [vmem:[%s5 + $0x710] sm:$0xff]
    %v1099 = vld [vmem:[%s5 + $0x718] sm:$0xff]
    %v1100 = vld [vmem:[%s5 + $0x720] sm:$0xff]
    %v1101 = vld [vmem:[%s5 + $0x728] sm:$0xff]
    %v1102 = vld [vmem:[%s5 + $0x730] sm:$0xff]
    %v1103 = vld [vmem:[%s5 + $0x738] sm:$0xff]
    %v1104 = vld [vmem:[%s5 + $0x740] sm:$0xff]
    %v1105 = vld [vmem:[%s5 + $0x748] sm:$0xff]
    %v1106 = vld [vmem:[%s5 + $0x750] sm:$0xff]
    %v1107 = vld [vmem:[%s5 + $0x758] sm:$0xff]
    %v1108 = vld [vmem:[%s5 + $0x760] sm:$0xff]
    %v1109 = vld [vmem:[%s5 + $0x768] sm:$0xff]
    %v1110 = vld [vmem:[%s5 + $0x770] sm:$0xff]
    %v1111 = vld [vmem:[%s5 + $0x778] sm:$0xff]
    %v1112 = vld [vmem:[%s5 + $0x780] sm:$0xff]
    %v1113 = vld [vmem:[%s5 + $0x788] sm:$0xff]
    %v1114 = vld [vmem:[%s5 + $0x790] sm:$0xff]
    %v1115 = vld [vmem:[%s5 + $0x798] sm:$0xff]
    %v1116 = vld [vmem:[%s5 + $0x7a0] sm:$0xff]
    %v1117 = vld [vmem:[%s5 + $0x7a8] sm:$0xff]
    %v1118 = vld [vmem:[%s5 + $0x7b0] sm:$0xff]
    %v1119 = vld [vmem:[%s5 + $0x7b8] sm:$0xff]
    %v1120 = vld [vmem:[%s5 + $0x7c0] sm:$0xff]
    %v1121 = vld [vmem:[%s5 + $0x7c8] sm:$0xff]
    %v1122 = vld [vmem:[%s5 + $0x7d0] sm:$0xff]
    %v1123 = vld [vmem:[%s5 + $0x7d8] sm:$0xff]
    %v1124 = vld [vmem:[%s5 + $0x7e0] sm:$0xff]
    %v1125 = vld [vmem:[%s5 + $0x7e8] sm:$0xff]
    %v1126 = vld [vmem:[%s5 + $0x7f0] sm:$0xff]
    %v1127 = vld [vmem:[%s5 + $0x7f8] sm:$0xff]
    %v1128 = vld [vmem:[%s5 + $0x800] sm:$0xff]
    %v1129 = vld [vmem:[%s5 + $0x808] sm:$0xff]
    %v1130 = vld [vmem:[%s5 + $0x810] sm:$0xff]
    %v1131 = vld [vmem:[%s5 + $0x818] sm:$0xff]
    %v1132 = vld [vmem:[%s5 + $0x820] sm:$0xff]
    %v1133 = vld [vmem:[%s5 + $0x828] sm:$0xff]
    %v1134 = vld [vmem:[%s5 + $0x830] sm:$0xff]
    %v1135 = vld [vmem:[%s5 + $0x838] sm:$0xff]
    %v1136 = vld [vmem:[%s5 + $0x840] sm:$0xff]
    %v1137 = vld [vmem:[%s5 + $0x848] sm:$0xff]
    %v1138 = vld [vmem:[%s5 + $0x850] sm:$0xff]
    %v1139 = vld [vmem:[%s5 + $0x858] sm:$0xff]
    %v1140 = vld [vmem:[%s5 + $0x860] sm:$0xff]
    %v1141 = vld [vmem:[%s5 + $0x868] sm:$0xff]
    %v1142 = vld [vmem:[%s5 + $0x870] sm:$0xff]
    %v1143 = vld [vmem:[%s5 + $0x878] sm:$0xff]
    %v1144 = vld [vmem:[%s5 + $0x880] sm:$0xff]
    %v1145 = vld [vmem:[%s5 + $0x888] sm:$0xff]
    %v1146 = vld [vmem:[%s5 + $0x890] sm:$0xff]
    %v1147 = vld [vmem:[%s5 + $0x898] sm:$0xff]
    %v1148 = vld [vmem:[%s5 + $0x8a0] sm:$0xff]
    %v1149 = vld [vmem:[%s5 + $0x8a8] sm:$0xff]
    %v1150 = vld [vmem:[%s5 + $0x8b0] sm:$0xff]
    %v1151 = vld [vmem:[%s5 + $0x8b8] sm:$0xff]
    %v1152 = vld [vmem:[%s5 + $0x8c0] sm:$0xff]
    %v1153 = vld [vmem:[%s5 + $0x8c8] sm:$0xff]
    %v1154 = vld [vmem:[%s5 + $0x8d0] sm:$0xff]
    %v1155 = vld [vmem:[%s5 + $0x8d8] sm:$0xff]
    %v1156 = vld [vmem:[%s5 + $0x8e0] sm:$0xff]
    %v1157 = vld [vmem:[%s5 + $0x8e8] sm:$0xff]
    %v1158 = vld [vmem:[%s5 + $0x8f0] sm:$0xff]
    %v1159 = vld [vmem:[%s5 + $0x8f8] sm:$0xff]
    %v1160 = vld [vmem:[%s5 + $0x900] sm:$0xff]
    %v1161 = vld [vmem:[%s5 + $0x908] sm:$0xff]
    %v1162 = vld [vmem:[%s5 + $0x910] sm:$0xff]
    %v1163 = vld [vmem:[%s5 + $0x918] sm:$0xff]
    %v1164 = vld [vmem:[%s5 + $0x920] sm:$0xff]
    %v1165 = vld [vmem:[%s5 + $0x928] sm:$0xff]
    %v1166 = vld [vmem:[%s5 + $0x930] sm:$0xff]
    %v1167 = vld [vmem:[%s5 + $0x938] sm:$0xff]
    %v1168 = vld [vmem:[%s5 + $0x940] sm:$0xff]
    %v1169 = vld [vmem:[%s5 + $0x948] sm:$0xff]
    %v1170 = vld [vmem:[%s5 + $0x950] sm:$0xff]
    %v1171 = vld [vmem:[%s5 + $0x958] sm:$0xff]
    %v1172 = vld [vmem:[%s5 + $0x960] sm:$0xff]
    %v1173 = vld [vmem:[%s5 + $0x968] sm:$0xff]
    %v1174 = vld [vmem:[%s5 + $0x970] sm:$0xff]
    %v1175 = vld [vmem:[%s5 + $0x978] sm:$0xff]
    %v1176 = vld [vmem:[%s5 + $0x980] sm:$0xff]
    %v1177 = vld [vmem:[%s5 + $0x988] sm:$0xff]
    %v1178 = vld [vmem:[%s5 + $0x990] sm:$0xff]
    %v1179 = vld [vmem:[%s5 + $0x998] sm:$0xff]
    %v1180 = vld [vmem:[%s5 + $0x9a0] sm:$0xff]
    %v1181 = vld [vmem:[%s5 + $0x9a8] sm:$0xff]
    %v1182 = vld [vmem:[%s5 + $0x9b0] sm:$0xff]
    %v1183 = vld [vmem:[%s5 + $0x9b8] sm:$0xff]
    %v1184 = vld [vmem:[%s5 + $0x9c0] sm:$0xff]
    %v1185 = vld [vmem:[%s5 + $0x9c8] sm:$0xff]
    %v1186 = vld [vmem:[%s5 + $0x9d0] sm:$0xff]
    %v1187 = vld [vmem:[%s5 + $0x9d8] sm:$0xff]
    %v1188 = vld [vmem:[%s5 + $0x9e0] sm:$0xff]
    %v1189 = vld [vmem:[%s5 + $0x9e8] sm:$0xff]
    %v1190 = vld [vmem:[%s5 + $0x9f0] sm:$0xff]
    %v1191 = vld [vmem:[%s5 + $0x9f8] sm:$0xff]
    %v1192 = vld [vmem:[%s5 + $0xa00] sm:$0xff]
    %v1193 = vld [vmem:[%s5 + $0xa08] sm:$0xff]
    %v1194 = vld [vmem:[%s5 + $0xa10] sm:$0xff]
    %v1195 = vld [vmem:[%s5 + $0xa18] sm:$0xff]
    %v1196 = vld [vmem:[%s5 + $0xa20] sm:$0xff]
    %v1197 = vld [vmem:[%s5 + $0xa28] sm:$0xff]
    %v1198 = vld [vmem:[%s5 + $0xa30] sm:$0xff]
    %v1199 = vld [vmem:[%s5 + $0xa38] sm:$0xff]
    %v1200 = vld [vmem:[%s5 + $0xa40] sm:$0xff]
    %v1201 = vld [vmem:[%s5 + $0xa48] sm:$0xff]
    %v1202 = vld [vmem:[%s5 + $0xa50] sm:$0xff]
    %v1203 = vld [vmem:[%s5 + $0xa58] sm:$0xff]
    %v1204 = vld [vmem:[%s5 + $0xa60] sm:$0xff]
    %v1205 = vld [vmem:[%s5 + $0xa68] sm:$0xff]
    %v1206 = vld [vmem:[%s5 + $0xa70] sm:$0xff]
    %v1207 = vld [vmem:[%s5 + $0xa78] sm:$0xff]
    %v1208 = vld [vmem:[%s5 + $0xa80] sm:$0xff]
    %v1209 = vld [vmem:[%s5 + $0xa88] sm:$0xff]
    %v1210 = vld [vmem:[%s5 + $0xa90] sm:$0xff]
    %v1211 = vld [vmem:[%s5 + $0xa98] sm:$0xff]
    %v1212 = vld [vmem:[%s5 + $0xaa0] sm:$0xff]
    %v1213 = vld [vmem:[%s5 + $0xaa8] sm:$0xff]
    %v1214 = vld [vmem:[%s5 + $0xab0] sm:$0xff]
    %v1215 = vld [vmem:[%s5 + $0xab8] sm:$0xff]
    %v1216 = vld [vmem:[%s5 + $0xac0] sm:$0xff]
    %v1217 = vld [vmem:[%s5 + $0xac8] sm:$0xff]
    %v1218 = vld [vmem:[%s5 + $0xad0] sm:$0xff]
    %v1219 = vld [vmem:[%s5 + $0xad8] sm:$0xff]
    %v1220 = vld [vmem:[%s5 + $0xae0] sm:$0xff]
    %v1221 = vld [vmem:[%s5 + $0xae8] sm:$0xff]
    %v1222 = vld [vmem:[%s5 + $0xaf0] sm:$0xff]
    %v1223 = vld [vmem:[%s5 + $0xaf8] sm:$0xff]
    %v1224 = vld [vmem:[%s5 + $0xb00] sm:$0xff]
    %v1225 = vld [vmem:[%s5 + $0xb08] sm:$0xff]
    %v1226 = vld [vmem:[%s5 + $0xb10] sm:$0xff]
    %v1227 = vld [vmem:[%s5 + $0xb18] sm:$0xff]
    %v1228 = vld [vmem:[%s5 + $0xb20] sm:$0xff]
    %v1229 = vld [vmem:[%s5 + $0xb28] sm:$0xff]
    %v1230 = vld [vmem:[%s5 + $0xb30] sm:$0xff]
    %v1231 = vld [vmem:[%s5 + $0xb38] sm:$0xff]
    %v1232 = vld [vmem:[%s5 + $0xb40] sm:$0xff]
    %v1233 = vld [vmem:[%s5 + $0xb48] sm:$0xff]
    %v1234 = vld [vmem:[%s5 + $0xb50] sm:$0xff]
    %v1235 = vld [vmem:[%s5 + $0xb58] sm:$0xff]
    %v1236 = vld [vmem:[%s5 + $0xb60] sm:$0xff]
    %v1237 = vld [vmem:[%s5 + $0xb68] sm:$0xff]
    %v1238 = vld [vmem:[%s5 + $0xb70] sm:$0xff]
    %v1239 = vld [vmem:[%s5 + $0xb78] sm:$0xff]
    %v1240 = vld [vmem:[%s5 + $0xb80] sm:$0xff]
    %v1241 = vld [vmem:[%s5 + $0xb88] sm:$0xff]
    %v1242 = vld [vmem:[%s5 + $0xb90] sm:$0xff]
    %v1243 = vld [vmem:[%s5 + $0xb98] sm:$0xff]
    %v1244 = vld [vmem:[%s5 + $0xba0] sm:$0xff]
    %v1245 = vld [vmem:[%s5 + $0xba8] sm:$0xff]
    %v1246 = vld [vmem:[%s5 + $0xbb0] sm:$0xff]
    %v1247 = vld [vmem:[%s5 + $0xbb8] sm:$0xff]
    %v1248 = vld [vmem:[%s5 + $0xbc0] sm:$0xff]
    %v1249 = vld [vmem:[%s5 + $0xbc8] sm:$0xff]
    %v1250 = vld [vmem:[%s5 + $0xbd0] sm:$0xff]
    %v1251 = vld [vmem:[%s5 + $0xbd8] sm:$0xff]
    %v1252 = vld [vmem:[%s5 + $0xbe0] sm:$0xff]
    %v1253 = vld [vmem:[%s5 + $0xbe8] sm:$0xff]
    %v1254 = vld [vmem:[%s5 + $0xbf0] sm:$0xff]
    %v1255 = vld [vmem:[%s5 + $0xbf8] sm:$0xff]
    %v1256 = vld [vmem:[%s5 + $0xc00] sm:$0xff]
    %v1257 = vld [vmem:[%s5 + $0xc08] sm:$0xff]
    %v1258 = vld [vmem:[%s5 + $0xc10] sm:$0xff]
    %v1259 = vld [vmem:[%s5 + $0xc18] sm:$0xff]
    %v1260 = vld [vmem:[%s5 + $0xc20] sm:$0xff]
    %v1261 = vld [vmem:[%s5 + $0xc28] sm:$0xff]
    %v1262 = vld [vmem:[%s5 + $0xc30] sm:$0xff]
    %v1263 = vld [vmem:[%s5 + $0xc38] sm:$0xff]
    %v1264 = vld [vmem:[%s5 + $0xc40] sm:$0xff]
    %v1265 = vld [vmem:[%s5 + $0xc48] sm:$0xff]
    %v1266 = vld [vmem:[%s5 + $0xc50] sm:$0xff]
    %v1267 = vld [vmem:[%s5 + $0xc58] sm:$0xff]
    %v1268 = vld [vmem:[%s5 + $0xc60] sm:$0xff]
    %v1269 = vld [vmem:[%s5 + $0xc68] sm:$0xff]
    %v1270 = vld [vmem:[%s5 + $0xc70] sm:$0xff]
    %v1271 = vld [vmem:[%s5 + $0xc78] sm:$0xff]
    %v1272 = vld [vmem:[%s5 + $0xc80] sm:$0xff]
    %v1273 = vld [vmem:[%s5 + $0xc88] sm:$0xff]
    %v1274 = vld [vmem:[%s5 + $0xc90] sm:$0xff]
    %v1275 = vld [vmem:[%s5 + $0xc98] sm:$0xff]
    %v1276 = vld [vmem:[%s5 + $0xca0] sm:$0xff]
    %v1277 = vld [vmem:[%s5 + $0xca8] sm:$0xff]
    %v1278 = vld [vmem:[%s5 + $0xcb0] sm:$0xff]
    %v1279 = vld [vmem:[%s5 + $0xcb8] sm:$0xff]
    %v1280 = vld [vmem:[%s5 + $0xcc0] sm:$0xff]
    %v1281 = vld [vmem:[%s5 + $0xcc8] sm:$0xff]
    %v1282 = vld [vmem:[%s5 + $0xcd0] sm:$0xff]
    %v1283 = vld [vmem:[%s5 + $0xcd8] sm:$0xff]
    %v1284 = vld [vmem:[%s5 + $0xce0] sm:$0xff]
    %v1285 = vld [vmem:[%s5 + $0xce8] sm:$0xff]
    %v1286 = vld [vmem:[%s5 + $0xcf0] sm:$0xff]
    %v1287 = vld [vmem:[%s5 + $0xcf8] sm:$0xff]
    %v1288 = vld [vmem:[%s5 + $0xd00] sm:$0xff]
    %v1289 = vld [vmem:[%s5 + $0xd08] sm:$0xff]
    %v1290 = vld [vmem:[%s5 + $0xd10] sm:$0xff]
    %v1291 = vld [vmem:[%s5 + $0xd18] sm:$0xff]
    %v1292 = vld [vmem:[%s5 + $0xd20] sm:$0xff]
    %v1293 = vld [vmem:[%s5 + $0xd28] sm:$0xff]
    %v1294 = vld [vmem:[%s5 + $0xd30] sm:$0xff]
    %v1295 = vld [vmem:[%s5 + $0xd38] sm:$0xff]
    %v1296 = vld [vmem:[%s5 + $0xd40] sm:$0xff]
    %v1297 = vld [vmem:[%s5 + $0xd48] sm:$0xff]
    %v1298 = vld [vmem:[%s5 + $0xd50] sm:$0xff]
    %v1299 = vld [vmem:[%s5 + $0xd58] sm:$0xff]
    %v1300 = vld [vmem:[%s5 + $0xd60] sm:$0xff]
    %v1301 = vld [vmem:[%s5 + $0xd68] sm:$0xff]
    %v1302 = vld [vmem:[%s5 + $0xd70] sm:$0xff]
    %v1303 = vld [vmem:[%s5 + $0xd78] sm:$0xff]
    %v1304 = vld [vmem:[%s5 + $0xd80] sm:$0xff]
    %v1305 = vld [vmem:[%s5 + $0xd88] sm:$0xff]
    %v1306 = vld [vmem:[%s5 + $0xd90] sm:$0xff]
    %v1307 = vld [vmem:[%s5 + $0xd98] sm:$0xff]
    %v1308 = vld [vmem:[%s5 + $0xda0] sm:$0xff]
    %v1309 = vld [vmem:[%s5 + $0xda8] sm:$0xff]
    %v1310 = vld [vmem:[%s5 + $0xdb0] sm:$0xff]
    %v1311 = vld [vmem:[%s5 + $0xdb8] sm:$0xff]
    %v1312 = vld [vmem:[%s5 + $0xdc0] sm:$0xff]
    %v1313 = vld [vmem:[%s5 + $0xdc8] sm:$0xff]
    %v1314 = vld [vmem:[%s5 + $0xdd0] sm:$0xff]
    %v1315 = vld [vmem:[%s5 + $0xdd8] sm:$0xff]
    %v1316 = vld [vmem:[%s5 + $0xde0] sm:$0xff]
    %v1317 = vld [vmem:[%s5 + $0xde8] sm:$0xff]
    %v1318 = vld [vmem:[%s5 + $0xdf0] sm:$0xff]
    %v1319 = vld [vmem:[%s5 + $0xdf8] sm:$0xff]
    %v1320 = vld [vmem:[%s5 + $0xe00] sm:$0xff]
    %v1321 = vld [vmem:[%s5 + $0xe08] sm:$0xff]
    %v1322 = vld [vmem:[%s5 + $0xe10] sm:$0xff]
    %v1323 = vld [vmem:[%s5 + $0xe18] sm:$0xff]
    %v1324 = vld [vmem:[%s5 + $0xe20] sm:$0xff]
    %v1325 = vld [vmem:[%s5 + $0xe28] sm:$0xff]
    %v1326 = vld [vmem:[%s5 + $0xe30] sm:$0xff]
    %v1327 = vld [vmem:[%s5 + $0xe38] sm:$0xff]
    %v1328 = vld [vmem:[%s5 + $0xe40] sm:$0xff]
    %v1329 = vld [vmem:[%s5 + $0xe48] sm:$0xff]
    %v1330 = vld [vmem:[%s5 + $0xe50] sm:$0xff]
    %v1331 = vld [vmem:[%s5 + $0xe58] sm:$0xff]
    %v1332 = vld [vmem:[%s5 + $0xe60] sm:$0xff]
    %v1333 = vld [vmem:[%s5 + $0xe68] sm:$0xff]
    %v1334 = vld [vmem:[%s5 + $0xe70] sm:$0xff]
    %v1335 = vld [vmem:[%s5 + $0xe78] sm:$0xff]
    %v1336 = vld [vmem:[%s5 + $0xe80] sm:$0xff]
    %v1337 = vld [vmem:[%s5 + $0xe88] sm:$0xff]
    %v1338 = vld [vmem:[%s5 + $0xe90] sm:$0xff]
    %v1339 = vld [vmem:[%s5 + $0xe98] sm:$0xff]
    %v1340 = vld [vmem:[%s5 + $0xea0] sm:$0xff]
    %v1341 = vld [vmem:[%s5 + $0xea8] sm:$0xff]
    %v1342 = vld [vmem:[%s5 + $0xeb0] sm:$0xff]
    %v1343 = vld [vmem:[%s5 + $0xeb8] sm:$0xff]
    %v1344 = vld [vmem:[%s5 + $0xec0] sm:$0xff]
    %v1345 = vld [vmem:[%s5 + $0xec8] sm:$0xff]
    %v1346 = vld [vmem:[%s5 + $0xed0] sm:$0xff]
    %v1347 = vld [vmem:[%s5 + $0xed8] sm:$0xff]
    %v1348 = vld [vmem:[%s5 + $0xee0] sm:$0xff]
    %v1349 = vld [vmem:[%s5 + $0xee8] sm:$0xff]
    %v1350 = vld [vmem:[%s5 + $0xef0] sm:$0xff]
    %v1351 = vld [vmem:[%s5 + $0xef8] sm:$0xff]
    %v1352 = vld [vmem:[%s5 + $0xf00] sm:$0xff]
    %v1353 = vld [vmem:[%s5 + $0xf08] sm:$0xff]
    %v1354 = vld [vmem:[%s5 + $0xf10] sm:$0xff]
    %v1355 = vld [vmem:[%s5 + $0xf18] sm:$0xff]
    %v1356 = vld [vmem:[%s5 + $0xf20] sm:$0xff]
    %v1357 = vld [vmem:[%s5 + $0xf28] sm:$0xff]
    %v1358 = vld [vmem:[%s5 + $0xf30] sm:$0xff]
    %v1359 = vld [vmem:[%s5 + $0xf38] sm:$0xff]
    %v1360 = vld [vmem:[%s5 + $0xf40] sm:$0xff]
    %v1361 = vld [vmem:[%s5 + $0xf48] sm:$0xff]
    %v1362 = vld [vmem:[%s5 + $0xf50] sm:$0xff]
    %v1363 = vld [vmem:[%s5 + $0xf58] sm:$0xff]
    %v1364 = vld [vmem:[%s5 + $0xf60] sm:$0xff]
    %v1365 = vld [vmem:[%s5 + $0xf68] sm:$0xff]
    %v1366 = vld [vmem:[%s5 + $0xf70] sm:$0xff]
    %v1367 = vld [vmem:[%s5 + $0xf78] sm:$0xff]
    %v1368 = vld [vmem:[%s5 + $0xf80] sm:$0xff]
    %v1369 = vld [vmem:[%s5 + $0xf88] sm:$0xff]
    %v1370 = vld [vmem:[%s5 + $0xf90] sm:$0xff]
    %v1371 = vld [vmem:[%s5 + $0xf98] sm:$0xff]
    %v1372 = vld [vmem:[%s5 + $0xfa0] sm:$0xff]
    %v1373 = vld [vmem:[%s5 + $0xfa8] sm:$0xff]
    %v1374 = vld [vmem:[%s5 + $0xfb0] sm:$0xff]
    %v1375 = vld [vmem:[%s5 + $0xfb8] sm:$0xff]
    %v1376 = vld [vmem:[%s5 + $0xfc0] sm:$0xff]
    %v1377 = vld [vmem:[%s5 + $0xfc8] sm:$0xff]
    %v1378 = vld [vmem:[%s5 + $0xfd0] sm:$0xff]
    %v1379 = vld [vmem:[%s5 + $0xfd8] sm:$0xff]
    %v1380 = vld [vmem:[%s5 + $0xfe0] sm:$0xff]
    %v1381 = vld [vmem:[%s5 + $0xfe8] sm:$0xff]
    %v1382 = vld [vmem:[%s5 + $0xff0] sm:$0xff]
    %v1383 = vld [vmem:[%s5 + $0xff8] sm:$0xff]
    %v1384 = vld [vmem:[%s5 + $0x1000] sm:$0xff]
    %v1385 = vld [vmem:[%s5 + $0x1008] sm:$0xff]
    %v1386 = vld [vmem:[%s5 + $0x1010] sm:$0xff]
    %v1387 = vld [vmem:[%s5 + $0x1018] sm:$0xff]
    %v1388 = vld [vmem:[%s5 + $0x1020] sm:$0xff]
    %v1389 = vld [vmem:[%s5 + $0x1028] sm:$0xff]
    %v1390 = vld [vmem:[%s5 + $0x1030] sm:$0xff]
    %v1391 = vld [vmem:[%s5 + $0x1038] sm:$0xff]
    %v1392 = vld [vmem:[%s5 + $0x1040] sm:$0xff]
    %v1393 = vld [vmem:[%s5 + $0x1048] sm:$0xff]
    %v1394 = vld [vmem:[%s5 + $0x1050] sm:$0xff]
    %v1395 = vld [vmem:[%s5 + $0x1058] sm:$0xff]
    %v1396 = vld [vmem:[%s5 + $0x1060] sm:$0xff]
    %v1397 = vld [vmem:[%s5 + $0x1068] sm:$0xff]
    %v1398 = vld [vmem:[%s5 + $0x1070] sm:$0xff]
    %v1399 = vld [vmem:[%s5 + $0x1078] sm:$0xff]
    %v1400 = vld [vmem:[%s5 + $0x1080] sm:$0xff]
    %v1401 = vld [vmem:[%s5 + $0x1088] sm:$0xff]
    %v1402 = vld [vmem:[%s5 + $0x1090] sm:$0xff]
    %v1403 = vld [vmem:[%s5 + $0x1098] sm:$0xff]
    %v1404 = vld [vmem:[%s5 + $0x10a0] sm:$0xff]
    %v1405 = vld [vmem:[%s5 + $0x10a8] sm:$0xff]
    %v1406 = vld [vmem:[%s5 + $0x10b0] sm:$0xff]
    %v1407 = vld [vmem:[%s5 + $0x10b8] sm:$0xff]
    %v1408 = vld [vmem:[%s5 + $0x10c0] sm:$0xff]
    %v1409 = vld [vmem:[%s5 + $0x10c8] sm:$0xff]
    %v1410 = vld [vmem:[%s5 + $0x10d0] sm:$0xff]
    %v1411 = vld [vmem:[%s5 + $0x10d8] sm:$0xff]
    %v1412 = vld [vmem:[%s5 + $0x10e0] sm:$0xff]
    %v1413 = vld [vmem:[%s5 + $0x10e8] sm:$0xff]
    %v1414 = vld [vmem:[%s5 + $0x10f0] sm:$0xff]
    %v1415 = vld [vmem:[%s5 + $0x10f8] sm:$0xff]
    %v1416 = vld [vmem:[%s5 + $0x1100] sm:$0xff]
    %v1417 = vld [vmem:[%s5 + $0x1108] sm:$0xff]
    %v1418 = vld [vmem:[%s5 + $0x1110] sm:$0xff]
    %v1419 = vld [vmem:[%s5 + $0x1118] sm:$0xff]
    %v1420 = vld [vmem:[%s5 + $0x1120] sm:$0xff]
    %v1421 = vld [vmem:[%s5 + $0x1128] sm:$0xff]
    %v1422 = vld [vmem:[%s5 + $0x1130] sm:$0xff]
    %v1423 = vld [vmem:[%s5 + $0x1138] sm:$0xff]
    %v1424 = vld [vmem:[%s5 + $0x1140] sm:$0xff]
    %v1425 = vld [vmem:[%s5 + $0x1148] sm:$0xff]
    %v1426 = vld [vmem:[%s5 + $0x1150] sm:$0xff]
    %v1427 = vld [vmem:[%s5 + $0x1158] sm:$0xff]
    %v1428 = vld [vmem:[%s5 + $0x1160] sm:$0xff]
    %v1429 = vld [vmem:[%s5 + $0x1168] sm:$0xff]
    %v1430 = vld [vmem:[%s5 + $0x1170] sm:$0xff]
    %v1431 = vld [vmem:[%s5 + $0x1178] sm:$0xff]
    %v1432 = vld [vmem:[%s5 + $0x1180] sm:$0xff]
    %v1433 = vld [vmem:[%s5 + $0x1188] sm:$0xff]
    %v1434 = vld [vmem:[%s5 + $0x1190] sm:$0xff]
    %v1435 = vld [vmem:[%s5 + $0x1198] sm:$0xff]
    %v1436 = vld [vmem:[%s5 + $0x11a0] sm:$0xff]
    %v1437 = vld [vmem:[%s5 + $0x11a8] sm:$0xff]
    %v1438 = vld [vmem:[%s5 + $0x11b0] sm:$0xff]
    %v1439 = vld [vmem:[%s5 + $0x11b8] sm:$0xff]
    %v1440 = vld [vmem:[%s5 + $0x11c0] sm:$0xff]
    %v1441 = vld [vmem:[%s5 + $0x11c8] sm:$0xff]
    %v1442 = vld [vmem:[%s5 + $0x11d0] sm:$0xff]
    %v1443 = vld [vmem:[%s5 + $0x11d8] sm:$0xff]
    %v1444 = vld [vmem:[%s5 + $0x11e0] sm:$0xff]
    %v1445 = vld [vmem:[%s5 + $0x11e8] sm:$0xff]
    %v1446 = vld [vmem:[%s5 + $0x11f0] sm:$0xff]
    %v1447 = vld [vmem:[%s5 + $0x11f8] sm:$0xff]
    %v1448 = vld [vmem:[%s5 + $0x1200] sm:$0xff]
    %v1449 = vld [vmem:[%s5 + $0x1208] sm:$0xff]
    %v1450 = vld [vmem:[%s5 + $0x1210] sm:$0xff]
    %v1451 = vld [vmem:[%s5 + $0x1218] sm:$0xff]
    %v1452 = vld [vmem:[%s5 + $0x1220] sm:$0xff]
    %v1453 = vld [vmem:[%s5 + $0x1228] sm:$0xff]
    %v1454 = vld [vmem:[%s5 + $0x1230] sm:$0xff]
    %v1455 = vld [vmem:[%s5 + $0x1238] sm:$0xff]
    %v1456 = vld [vmem:[%s5 + $0x1240] sm:$0xff]
    %v1457 = vld [vmem:[%s5 + $0x1248] sm:$0xff]
    %v1458 = vld [vmem:[%s5 + $0x1250] sm:$0xff]
    %v1459 = vld [vmem:[%s5 + $0x1258] sm:$0xff]
    %v1460 = vld [vmem:[%s5 + $0x1260] sm:$0xff]
    %v1461 = vld [vmem:[%s5 + $0x1268] sm:$0xff]
    %v1462 = vld [vmem:[%s5 + $0x1270] sm:$0xff]
    %v1463 = vld [vmem:[%s5 + $0x1278] sm:$0xff]
    %v1464 = vld [vmem:[%s5 + $0x1280] sm:$0xff]
    %v1465 = vld [vmem:[%s5 + $0x1288] sm:$0xff]
    %v1466 = vld [vmem:[%s5 + $0x1290] sm:$0xff]
    %v1467 = vld [vmem:[%s5 + $0x1298] sm:$0xff]
    %v1468 = vld [vmem:[%s5 + $0x12a0] sm:$0xff]
    %v1469 = vld [vmem:[%s5 + $0x12a8] sm:$0xff]
    %v1470 = vld [vmem:[%s5 + $0x12b0] sm:$0xff]
    %v1471 = vld [vmem:[%s5 + $0x12b8] sm:$0xff]
    %v1472 = vld [vmem:[%s5 + $0x12c0] sm:$0xff]
    %v1473 = vld [vmem:[%s5 + $0x12c8] sm:$0xff]
    %v1474 = vld [vmem:[%s5 + $0x12d0] sm:$0xff]
    %v1475 = vld [vmem:[%s5 + $0x12d8] sm:$0xff]
    %v1476 = vld [vmem:[%s5 + $0x12e0] sm:$0xff]
    %v1477 = vld [vmem:[%s5 + $0x12e8] sm:$0xff]
    %v1478 = vld [vmem:[%s5 + $0x12f0] sm:$0xff]
    %v1479 = vld [vmem:[%s5 + $0x12f8] sm:$0xff]
    %v1480 = vld [vmem:[%s5 + $0x1300] sm:$0xff]
    %v1481 = vld [vmem:[%s5 + $0x1308] sm:$0xff]
    %v1482 = vld [vmem:[%s5 + $0x1310] sm:$0xff]
    %v1483 = vld [vmem:[%s5 + $0x1318] sm:$0xff]
    %v1484 = vld [vmem:[%s5 + $0x1320] sm:$0xff]
    %v1485 = vld [vmem:[%s5 + $0x1328] sm:$0xff]
    %v1486 = vld [vmem:[%s5 + $0x1330] sm:$0xff]
    %v1487 = vld [vmem:[%s5 + $0x1338] sm:$0xff]
    %v1488 = vld [vmem:[%s5 + $0x1340] sm:$0xff]
    %v1489 = vld [vmem:[%s5 + $0x1348] sm:$0xff]
    %v1490 = vld [vmem:[%s5 + $0x1350] sm:$0xff]
    %v1491 = vld [vmem:[%s5 + $0x1358] sm:$0xff]
    %v1492 = vld [vmem:[%s5 + $0x1360] sm:$0xff]
    %v1493 = vld [vmem:[%s5 + $0x1368] sm:$0xff]
    %v1494 = vld [vmem:[%s5 + $0x1370] sm:$0xff]
    %v1495 = vld [vmem:[%s5 + $0x1378] sm:$0xff]
    %v1496 = vld [vmem:[%s5 + $0x1380] sm:$0xff]
    %v1497 = vld [vmem:[%s5 + $0x1388] sm:$0xff]
    %v1498 = vld [vmem:[%s5 + $0x1390] sm:$0xff]
    %v1499 = vld [vmem:[%s5 + $0x1398] sm:$0xff]
    %v1500 = vld [vmem:[%s5 + $0x13a0] sm:$0xff]
    %v1501 = vld [vmem:[%s5 + $0x13a8] sm:$0xff]
    %v1502 = vld [vmem:[%s5 + $0x13b0] sm:$0xff]
    %v1503 = vld [vmem:[%s5 + $0x13b8] sm:$0xff]
    %v1504 = vld [vmem:[%s5 + $0x13c0] sm:$0xff]
    %v1505 = vld [vmem:[%s5 + $0x13c8] sm:$0xff]
    %v1506 = vld [vmem:[%s5 + $0x13d0] sm:$0xff]
    %v1507 = vld [vmem:[%s5 + $0x13d8] sm:$0xff]
    %v1508 = vld [vmem:[%s5 + $0x13e0] sm:$0xff]
    %v1509 = vld [vmem:[%s5 + $0x13e8] sm:$0xff]
    %v1510 = vld [vmem:[%s5 + $0x13f0] sm:$0xff]
    %v1511 = vld [vmem:[%s5 + $0x13f8] sm:$0xff]
    %v1512 = vld [vmem:[%s5 + $0x1400] sm:$0xff]
    %v1513 = vld [vmem:[%s5 + $0x1408] sm:$0xff]
    %v1514 = vld [vmem:[%s5 + $0x1410] sm:$0xff]
    %v1515 = vld [vmem:[%s5 + $0x1418] sm:$0xff]
    %v1516 = vld [vmem:[%s5 + $0x1420] sm:$0xff]
    %v1517 = vld [vmem:[%s5 + $0x1428] sm:$0xff]
    %v1518 = vld [vmem:[%s5 + $0x1430] sm:$0xff]
    %v1519 = vld [vmem:[%s5 + $0x1438] sm:$0xff]
    %v1520 = vld [vmem:[%s5 + $0x1440] sm:$0xff]
    %v1521 = vld [vmem:[%s5 + $0x1448] sm:$0xff]
    %v1522 = vld [vmem:[%s5 + $0x1450] sm:$0xff]
    %v1523 = vld [vmem:[%s5 + $0x1458] sm:$0xff]
    %v1524 = vld [vmem:[%s5 + $0x1460] sm:$0xff]
    %v1525 = vld [vmem:[%s5 + $0x1468] sm:$0xff]
    %v1526 = vld [vmem:[%s5 + $0x1470] sm:$0xff]
    %v1527 = vld [vmem:[%s5 + $0x1478] sm:$0xff]
    %v1528 = vld [vmem:[%s5 + $0x1480] sm:$0xff]
    %v1529 = vld [vmem:[%s5 + $0x1488] sm:$0xff]
    %v1530 = vld [vmem:[%s5 + $0x1490] sm:$0xff]
    %v1531 = vld [vmem:[%s5 + $0x1498] sm:$0xff]
    %v1532 = vld [vmem:[%s5 + $0x14a0] sm:$0xff]
    %v1533 = vld [vmem:[%s5 + $0x14a8] sm:$0xff]
    %v1534 = vld [vmem:[%s5 + $0x14b0] sm:$0xff]
    %v1535 = vld [vmem:[%s5 + $0x14b8] sm:$0xff]
    %v1536 = vld [vmem:[%s5 + $0x14c0] sm:$0xff]
    %v1537 = vld [vmem:[%s5 + $0x14c8] sm:$0xff]
    %v1538 = vld [vmem:[%s5 + $0x14d0] sm:$0xff]
    %v1539 = vld [vmem:[%s5 + $0x14d8] sm:$0xff]
    %v1540 = vld [vmem:[%s5 + $0x14e0] sm:$0xff]
    %v1541 = vld [vmem:[%s5 + $0x14e8] sm:$0xff]
    %v1542 = vld [vmem:[%s5 + $0x14f0] sm:$0xff]
    %v1543 = vld [vmem:[%s5 + $0x14f8] sm:$0xff]
    %v1544 = vld [vmem:[%s5 + $0x1500] sm:$0xff]
    %v1545 = vld [vmem:[%s5 + $0x1508] sm:$0xff]
    %v1546 = vld [vmem:[%s5 + $0x1510] sm:$0xff]
    %v1547 = vld [vmem:[%s5 + $0x1518] sm:$0xff]
    %v1548 = vld [vmem:[%s5 + $0x1520] sm:$0xff]
    %v1549 = vld [vmem:[%s5 + $0x1528] sm:$0xff]
    %v1550 = vld [vmem:[%s5 + $0x1530] sm:$0xff]
    %v1551 = vld [vmem:[%s5 + $0x1538] sm:$0xff]
    %v1552 = vld [vmem:[%s5 + $0x1540] sm:$0xff]
    %v1553 = vld [vmem:[%s5 + $0x1548] sm:$0xff]
    %v1554 = vld [vmem:[%s5 + $0x1550] sm:$0xff]
    %v1555 = vld [vmem:[%s5 + $0x1558] sm:$0xff]
    %v1556 = vld [vmem:[%s5 + $0x1560] sm:$0xff]
    %v1557 = vld [vmem:[%s5 + $0x1568] sm:$0xff]
    %v1558 = vld [vmem:[%s5 + $0x1570] sm:$0xff]
    %v1559 = vld [vmem:[%s5 + $0x1578] sm:$0xff]
    %v1560 = vld [vmem:[%s5 + $0x1580] sm:$0xff]
    %v1561 = vld [vmem:[%s5 + $0x1588] sm:$0xff]
    %v1562 = vld [vmem:[%s5 + $0x1590] sm:$0xff]
    %v1563 = vld [vmem:[%s5 + $0x1598] sm:$0xff]
    %v1564 = vld [vmem:[%s5 + $0x15a0] sm:$0xff]
    %v1565 = vld [vmem:[%s5 + $0x15a8] sm:$0xff]
    %v1566 = vld [vmem:[%s5 + $0x15b0] sm:$0xff]
    %v1567 = vld [vmem:[%s5 + $0x15b8] sm:$0xff]
    %v1568 = vld [vmem:[%s5 + $0x15c0] sm:$0xff]
    %v1569 = vld [vmem:[%s5 + $0x15c8] sm:$0xff]
    %v1570 = vld [vmem:[%s5 + $0x15d0] sm:$0xff]
    %v1571 = vld [vmem:[%s5 + $0x15d8] sm:$0xff]
    %v1572 = vld [vmem:[%s5 + $0x15e0] sm:$0xff]
    %v1573 = vld [vmem:[%s5 + $0x15e8] sm:$0xff]
    %v1574 = vld [vmem:[%s5 + $0x15f0] sm:$0xff]
    %v1575 = vld [vmem:[%s5 + $0x15f8] sm:$0xff]
    %v1576 = vld [vmem:[%s5 + $0x1600] sm:$0xff]
    %v1577 = vld [vmem:[%s5 + $0x1608] sm:$0xff]
    %v1578 = vld [vmem:[%s5 + $0x1610] sm:$0xff]
    %v1579 = vld [vmem:[%s5 + $0x1618] sm:$0xff]
    %v1580 = vld [vmem:[%s5 + $0x1620] sm:$0xff]
    %v1581 = vld [vmem:[%s5 + $0x1628] sm:$0xff]
    %v1582 = vld [vmem:[%s5 + $0x1630] sm:$0xff]
    %v1583 = vld [vmem:[%s5 + $0x1638] sm:$0xff]
    %v1584 = vld [vmem:[%s5 + $0x1640] sm:$0xff]
    %v1585 = vld [vmem:[%s5 + $0x1648] sm:$0xff]
    %v1586 = vld [vmem:[%s5 + $0x1650] sm:$0xff]
    %v1587 = vld [vmem:[%s5 + $0x1658] sm:$0xff]
    %v1588 = vld [vmem:[%s5 + $0x1660] sm:$0xff]
    %v1589 = vld [vmem:[%s5 + $0x1668] sm:$0xff]
    %v1590 = vld [vmem:[%s5 + $0x1670] sm:$0xff]
    %v1591 = vld [vmem:[%s5 + $0x1678] sm:$0xff]
    %v1592 = vld [vmem:[%s5 + $0x1680] sm:$0xff]
    %v1593 = vld [vmem:[%s5 + $0x1688] sm:$0xff]
    %v1594 = vld [vmem:[%s5 + $0x1690] sm:$0xff]
    %v1595 = vld [vmem:[%s5 + $0x1698] sm:$0xff]
    %v1596 = vld [vmem:[%s5 + $0x16a0] sm:$0xff]
    %v1597 = vld [vmem:[%s5 + $0x16a8] sm:$0xff]
    %v1598 = vld [vmem:[%s5 + $0x16b0] sm:$0xff]
    %v1599 = vld [vmem:[%s5 + $0x16b8] sm:$0xff]
    %v1600 = vld [vmem:[%s5 + $0x16c0] sm:$0xff]
    %v1601 = vld [vmem:[%s5 + $0x16c8] sm:$0xff]
    %v1602 = vld [vmem:[%s5 + $0x16d0] sm:$0xff]
    %v1603 = vld [vmem:[%s5 + $0x16d8] sm:$0xff]
    %v1604 = vld [vmem:[%s5 + $0x16e0] sm:$0xff]
    %v1605 = vld [vmem:[%s5 + $0x16e8] sm:$0xff]
    %v1606 = vld [vmem:[%s5 + $0x16f0] sm:$0xff]
    %v1607 = vld [vmem:[%s5 + $0x16f8] sm:$0xff]
    %v1608 = vld [vmem:[%s5 + $0x1700] sm:$0xff]
    %v1609 = vld [vmem:[%s5 + $0x1708] sm:$0xff]
    %v1610 = vld [vmem:[%s5 + $0x1710] sm:$0xff]
    %v1611 = vld [vmem:[%s5 + $0x1718] sm:$0xff]
    %v1612 = vld [vmem:[%s5 + $0x1720] sm:$0xff]
    %v1613 = vld [vmem:[%s5 + $0x1728] sm:$0xff]
    %v1614 = vld [vmem:[%s5 + $0x1730] sm:$0xff]
    %v1615 = vld [vmem:[%s5 + $0x1738] sm:$0xff]
    %v1616 = vld [vmem:[%s5 + $0x1740] sm:$0xff]
    %v1617 = vld [vmem:[%s5 + $0x1748] sm:$0xff]
    %v1618 = vld [vmem:[%s5 + $0x1750] sm:$0xff]
    %v1619 = vld [vmem:[%s5 + $0x1758] sm:$0xff]
    %v1620 = vld [vmem:[%s5 + $0x1760] sm:$0xff]
    %v1621 = vld [vmem:[%s5 + $0x1768] sm:$0xff]
    %v1622 = vld [vmem:[%s5 + $0x1770] sm:$0xff]
    %v1623 = vld [vmem:[%s5 + $0x1778] sm:$0xff]
    %v1624 = vld [vmem:[%s5 + $0x1780] sm:$0xff]
    %v1625 = vld [vmem:[%s5 + $0x1788] sm:$0xff]
    %v1626 = vld [vmem:[%s5 + $0x1790] sm:$0xff]
    %v1627 = vld [vmem:[%s5 + $0x1798] sm:$0xff]
    %v1628 = vld [vmem:[%s5 + $0x17a0] sm:$0xff]
    %v1629 = vld [vmem:[%s5 + $0x17a8] sm:$0xff]
    %v1630 = vld [vmem:[%s5 + $0x17b0] sm:$0xff]
    %v1631 = vld [vmem:[%s5 + $0x17b8] sm:$0xff]
    %v1632 = vld [vmem:[%s5 + $0x17c0] sm:$0xff]
    %v1633 = vld [vmem:[%s5 + $0x17c8] sm:$0xff]
    %v1634 = vld [vmem:[%s5 + $0x17d0] sm:$0xff]
    %v1635 = vld [vmem:[%s5 + $0x17d8] sm:$0xff]
    %v1636 = vld [vmem:[%s5 + $0x17e0] sm:$0xff]
    %v1637 = vld [vmem:[%s5 + $0x17e8] sm:$0xff]
    %v1638 = vld [vmem:[%s5 + $0x17f0] sm:$0xff]
    %v1639 = vld [vmem:[%s5 + $0x17f8] sm:$0xff]
    %v1640 = vld [vmem:[%s5 + $0x1800] sm:$0xff]
    %v1641 = vld [vmem:[%s5 + $0x1808] sm:$0xff]
    %v1642 = vld [vmem:[%s5 + $0x1810] sm:$0xff]
    %v1643 = vld [vmem:[%s5 + $0x1818] sm:$0xff]
    %v1644 = vld [vmem:[%s5 + $0x1820] sm:$0xff]
    %v1645 = vld [vmem:[%s5 + $0x1828] sm:$0xff]
    %v1646 = vld [vmem:[%s5 + $0x1830] sm:$0xff]
    %v1647 = vld [vmem:[%s5 + $0x1838] sm:$0xff]
    %v1648 = vld [vmem:[%s5 + $0x1840] sm:$0xff]
    %v1649 = vld [vmem:[%s5 + $0x1848] sm:$0xff]
    %v1650 = vld [vmem:[%s5 + $0x1850] sm:$0xff]
    %v1651 = vld [vmem:[%s5 + $0x1858] sm:$0xff]
    %v1652 = vld [vmem:[%s5 + $0x1860] sm:$0xff]
    %v1653 = vld [vmem:[%s5 + $0x1868] sm:$0xff]
    %v1654 = vld [vmem:[%s5 + $0x1870] sm:$0xff]
    %v1655 = vld [vmem:[%s5 + $0x1878] sm:$0xff]
    %v1656 = vld [vmem:[%s5 + $0x1880] sm:$0xff]
    %v1657 = vld [vmem:[%s5 + $0x1888] sm:$0xff]
    %v1658 = vld [vmem:[%s5 + $0x1890] sm:$0xff]
    %v1659 = vld [vmem:[%s5 + $0x1898] sm:$0xff]
    %v1660 = vld [vmem:[%s5 + $0x18a0] sm:$0xff]
    %v1661 = vld [vmem:[%s5 + $0x18a8] sm:$0xff]
    %v1662 = vld [vmem:[%s5 + $0x18b0] sm:$0xff]
    %v1663 = vld [vmem:[%s5 + $0x18b8] sm:$0xff]
    %v1664 = vld [vmem:[%s5 + $0x18c0] sm:$0xff]
    %v1665 = vld [vmem:[%s5 + $0x18c8] sm:$0xff]
    %v1666 = vld [vmem:[%s5 + $0x18d0] sm:$0xff]
    %v1667 = vld [vmem:[%s5 + $0x18d8] sm:$0xff]
    %v1668 = vld [vmem:[%s5 + $0x18e0] sm:$0xff]
    %v1669 = vld [vmem:[%s5 + $0x18e8] sm:$0xff]
    %v1670 = vld [vmem:[%s5 + $0x18f0] sm:$0xff]
    %v1671 = vld [vmem:[%s5 + $0x18f8] sm:$0xff]
    %v1672 = vld [vmem:[%s5 + $0x1900] sm:$0xff]
    %v1673 = vld [vmem:[%s5 + $0x1908] sm:$0xff]
    %v1674 = vld [vmem:[%s5 + $0x1910] sm:$0xff]
    %v1675 = vld [vmem:[%s5 + $0x1918] sm:$0xff]
    %v1676 = vld [vmem:[%s5 + $0x1920] sm:$0xff]
    %v1677 = vld [vmem:[%s5 + $0x1928] sm:$0xff]
    %v1678 = vld [vmem:[%s5 + $0x1930] sm:$0xff]
    %v1679 = vld [vmem:[%s5 + $0x1938] sm:$0xff]
    %v1680 = vld [vmem:[%s5 + $0x1940] sm:$0xff]
    %v1681 = vld [vmem:[%s5 + $0x1948] sm:$0xff]
    %v1682 = vld [vmem:[%s5 + $0x1950] sm:$0xff]
    %v1683 = vld [vmem:[%s5 + $0x1958] sm:$0xff]
    %v1684 = vld [vmem:[%s5 + $0x1960] sm:$0xff]
    %v1685 = vld [vmem:[%s5 + $0x1968] sm:$0xff]
    %v1686 = vld [vmem:[%s5 + $0x1970] sm:$0xff]
    %v1687 = vld [vmem:[%s5 + $0x1978] sm:$0xff]
    %v1688 = vld [vmem:[%s5 + $0x1980] sm:$0xff]
    %v1689 = vld [vmem:[%s5 + $0x1988] sm:$0xff]
    %v1690 = vld [vmem:[%s5 + $0x1990] sm:$0xff]
    %v1691 = vld [vmem:[%s5 + $0x1998] sm:$0xff]
    %v1692 = vld [vmem:[%s5 + $0x19a0] sm:$0xff]
    %v1693 = vld [vmem:[%s5 + $0x19a8] sm:$0xff]
    %v1694 = vld [vmem:[%s5 + $0x19b0] sm:$0xff]
    %v1695 = vld [vmem:[%s5 + $0x19b8] sm:$0xff]
    %v1696 = vld [vmem:[%s5 + $0x19c0] sm:$0xff]
    %v1697 = vld [vmem:[%s5 + $0x19c8] sm:$0xff]
    %v1698 = vld [vmem:[%s5 + $0x19d0] sm:$0xff]
    %v1699 = vld [vmem:[%s5 + $0x19d8] sm:$0xff]
    %v1700 = vld [vmem:[%s5 + $0x19e0] sm:$0xff]
    %v1701 = vld [vmem:[%s5 + $0x19e8] sm:$0xff]
    %v1702 = vld [vmem:[%s5 + $0x19f0] sm:$0xff]
    %v1703 = vld [vmem:[%s5 + $0x19f8] sm:$0xff]
    %v1704 = vld [vmem:[%s5 + $0x1a00] sm:$0xff]
    %v1705 = vld [vmem:[%s5 + $0x1a08] sm:$0xff]
    %v1706 = vld [vmem:[%s5 + $0x1a10] sm:$0xff]
    %v1707 = vld [vmem:[%s5 + $0x1a18] sm:$0xff]
    %v1708 = vld [vmem:[%s5 + $0x1a20] sm:$0xff]
    %v1709 = vld [vmem:[%s5 + $0x1a28] sm:$0xff]
    %v1710 = vld [vmem:[%s5 + $0x1a30] sm:$0xff]
    %v1711 = vld [vmem:[%s5 + $0x1a38] sm:$0xff]
    %v1712 = vld [vmem:[%s5 + $0x1a40] sm:$0xff]
    %v1713 = vld [vmem:[%s5 + $0x1a48] sm:$0xff]
    %v1714 = vld [vmem:[%s5 + $0x1a50] sm:$0xff]
    %v1715 = vld [vmem:[%s5 + $0x1a58] sm:$0xff]
    %v1716 = vld [vmem:[%s5 + $0x1a60] sm:$0xff]
    %v1717 = vld [vmem:[%s5 + $0x1a68] sm:$0xff]
    %v1718 = vld [vmem:[%s5 + $0x1a70] sm:$0xff]
    %v1719 = vld [vmem:[%s5 + $0x1a78] sm:$0xff]
    %v1720 = vld [vmem:[%s5 + $0x1a80] sm:$0xff]
    %v1721 = vld [vmem:[%s5 + $0x1a88] sm:$0xff]
    %v1722 = vld [vmem:[%s5 + $0x1a90] sm:$0xff]
    %v1723 = vld [vmem:[%s5 + $0x1a98] sm:$0xff]
    %v1724 = vld [vmem:[%s5 + $0x1aa0] sm:$0xff]
    %v1725 = vld [vmem:[%s5 + $0x1aa8] sm:$0xff]
    %v1726 = vld [vmem:[%s5 + $0x1ab0] sm:$0xff]
    %v1727 = vld [vmem:[%s5 + $0x1ab8] sm:$0xff]
    %v1728 = vld [vmem:[%s5 + $0x1ac0] sm:$0xff]
    %v1729 = vld [vmem:[%s5 + $0x1ac8] sm:$0xff]
    %v1730 = vld [vmem:[%s5 + $0x1ad0] sm:$0xff]
    %v1731 = vld [vmem:[%s5 + $0x1ad8] sm:$0xff]
    %v1732 = vld [vmem:[%s5 + $0x1ae0] sm:$0xff]
    %v1733 = vld [vmem:[%s5 + $0x1ae8] sm:$0xff]
    %v1734 = vld [vmem:[%s5 + $0x1af0] sm:$0xff]
    %v1735 = vld [vmem:[%s5 + $0x1af8] sm:$0xff]
    %v1736 = vld [vmem:[%s5 + $0x1b00] sm:$0xff]
    %v1737 = vld [vmem:[%s5 + $0x1b08] sm:$0xff]
    %v1738 = vld [vmem:[%s5 + $0x1b10] sm:$0xff]
    %v1739 = vld [vmem:[%s5 + $0x1b18] sm:$0xff]
    %v1740 = vld [vmem:[%s5 + $0x1b20] sm:$0xff]
    %v1741 = vld [vmem:[%s5 + $0x1b28] sm:$0xff]
    %v1742 = vld [vmem:[%s5 + $0x1b30] sm:$0xff]
    %v1743 = vld [vmem:[%s5 + $0x1b38] sm:$0xff]
    %v1744 = vld [vmem:[%s5 + $0x1b40] sm:$0xff]
    %v1745 = vld [vmem:[%s5 + $0x1b48] sm:$0xff]
    %v1746 = vld [vmem:[%s5 + $0x1b50] sm:$0xff]
    %v1747 = vld [vmem:[%s5 + $0x1b58] sm:$0xff]
    %v1748 = vld [vmem:[%s5 + $0x1b60] sm:$0xff]
    %v1749 = vld [vmem:[%s5 + $0x1b68] sm:$0xff]
    %v1750 = vld [vmem:[%s5 + $0x1b70] sm:$0xff]
    %v1751 = vld [vmem:[%s5 + $0x1b78] sm:$0xff]
    %v1752 = vld [vmem:[%s5 + $0x1b80] sm:$0xff]
    %v1753 = vld [vmem:[%s5 + $0x1b88] sm:$0xff]
    %v1754 = vld [vmem:[%s5 + $0x1b90] sm:$0xff]
    %v1755 = vld [vmem:[%s5 + $0x1b98] sm:$0xff]
    %v1756 = vld [vmem:[%s5 + $0x1ba0] sm:$0xff]
    %v1757 = vld [vmem:[%s5 + $0x1ba8] sm:$0xff]
    %v1758 = vld [vmem:[%s5 + $0x1bb0] sm:$0xff]
    %v1759 = vld [vmem:[%s5 + $0x1bb8] sm:$0xff]
    %v1760 = vld [vmem:[%s5 + $0x1bc0] sm:$0xff]
    %v1761 = vld [vmem:[%s5 + $0x1bc8] sm:$0xff]
    %v1762 = vld [vmem:[%s5 + $0x1bd0] sm:$0xff]
    %v1763 = vld [vmem:[%s5 + $0x1bd8] sm:$0xff]
    %v1764 = vld [vmem:[%s5 + $0x1be0] sm:$0xff]
    %v1765 = vld [vmem:[%s5 + $0x1be8] sm:$0xff]
    %v1766 = vld [vmem:[%s5 + $0x1bf0] sm:$0xff]
    %v1767 = vld [vmem:[%s5 + $0x1bf8] sm:$0xff]
    %v1768 = vld [vmem:[%s5 + $0x1c00] sm:$0xff]
    %v1769 = vld [vmem:[%s5 + $0x1c08] sm:$0xff]
    %v1770 = vld [vmem:[%s5 + $0x1c10] sm:$0xff]
    %v1771 = vld [vmem:[%s5 + $0x1c18] sm:$0xff]
    %v1772 = vld [vmem:[%s5 + $0x1c20] sm:$0xff]
    %v1773 = vld [vmem:[%s5 + $0x1c28] sm:$0xff]
    %v1774 = vld [vmem:[%s5 + $0x1c30] sm:$0xff]
    %v1775 = vld [vmem:[%s5 + $0x1c38] sm:$0xff]
    %v1776 = vld [vmem:[%s5 + $0x1c40] sm:$0xff]
    %v1777 = vld [vmem:[%s5 + $0x1c48] sm:$0xff]
    %v1778 = vld [vmem:[%s5 + $0x1c50] sm:$0xff]
    %v1779 = vld [vmem:[%s5 + $0x1c58] sm:$0xff]
    %v1780 = vld [vmem:[%s5 + $0x1c60] sm:$0xff]
    %v1781 = vld [vmem:[%s5 + $0x1c68] sm:$0xff]
    %v1782 = vld [vmem:[%s5 + $0x1c70] sm:$0xff]
    %v1783 = vld [vmem:[%s5 + $0x1c78] sm:$0xff]
    %v1784 = vld [vmem:[%s5 + $0x1c80] sm:$0xff]
    %v1785 = vld [vmem:[%s5 + $0x1c88] sm:$0xff]
    %v1786 = vld [vmem:[%s5 + $0x1c90] sm:$0xff]
    %v1787 = vld [vmem:[%s5 + $0x1c98] sm:$0xff]
    %v1788 = vld [vmem:[%s5 + $0x1ca0] sm:$0xff]
    %v1789 = vld [vmem:[%s5 + $0x1ca8] sm:$0xff]
    %v1790 = vld [vmem:[%s5 + $0x1cb0] sm:$0xff]
    %v1791 = vld [vmem:[%s5 + $0x1cb8] sm:$0xff]
    %v1792 = vld [vmem:[%s5 + $0x1cc0] sm:$0xff]
    %v1793 = vld [vmem:[%s5 + $0x1cc8] sm:$0xff]
    %v1794 = vld [vmem:[%s5 + $0x1cd0] sm:$0xff]
    %v1795 = vld [vmem:[%s5 + $0x1cd8] sm:$0xff]
    %v1796 = vld [vmem:[%s5 + $0x1ce0] sm:$0xff]
    %v1797 = vld [vmem:[%s5 + $0x1ce8] sm:$0xff]
    %v1798 = vld [vmem:[%s5 + $0x1cf0] sm:$0xff]
    %v1799 = vld [vmem:[%s5 + $0x1cf8] sm:$0xff]
    %v1800 = vld [vmem:[%s5 + $0x1d00] sm:$0xff]
    %v1801 = vld [vmem:[%s5 + $0x1d08] sm:$0xff]
    %v1802 = vld [vmem:[%s5 + $0x1d10] sm:$0xff]
    %v1803 = vld [vmem:[%s5 + $0x1d18] sm:$0xff]
    %v1804 = vld [vmem:[%s5 + $0x1d20] sm:$0xff]
    %v1805 = vld [vmem:[%s5 + $0x1d28] sm:$0xff]
    %v1806 = vld [vmem:[%s5 + $0x1d30] sm:$0xff]
    %v1807 = vld [vmem:[%s5 + $0x1d38] sm:$0xff]
    %v1808 = vld [vmem:[%s5 + $0x1d40] sm:$0xff]
    %v1809 = vld [vmem:[%s5 + $0x1d48] sm:$0xff]
    %v1810 = vld [vmem:[%s5 + $0x1d50] sm:$0xff]
    %v1811 = vld [vmem:[%s5 + $0x1d58] sm:$0xff]
    %v1812 = vld [vmem:[%s5 + $0x1d60] sm:$0xff]
    %v1813 = vld [vmem:[%s5 + $0x1d68] sm:$0xff]
    %v1814 = vld [vmem:[%s5 + $0x1d70] sm:$0xff]
    %v1815 = vld [vmem:[%s5 + $0x1d78] sm:$0xff]
    %v1816 = vld [vmem:[%s5 + $0x1d80] sm:$0xff]
    %v1817 = vld [vmem:[%s5 + $0x1d88] sm:$0xff]
    %v1818 = vld [vmem:[%s5 + $0x1d90] sm:$0xff]
    %v1819 = vld [vmem:[%s5 + $0x1d98] sm:$0xff]
    %v1820 = vld [vmem:[%s5 + $0x1da0] sm:$0xff]
    %v1821 = vld [vmem:[%s5 + $0x1da8] sm:$0xff]
    %v1822 = vld [vmem:[%s5 + $0x1db0] sm:$0xff]
    %v1823 = vld [vmem:[%s5 + $0x1db8] sm:$0xff]
    %v1824 = vld [vmem:[%s5 + $0x1dc0] sm:$0xff]
    %v1825 = vld [vmem:[%s5 + $0x1dc8] sm:$0xff]
    %v1826 = vld [vmem:[%s5 + $0x1dd0] sm:$0xff]
    %v1827 = vld [vmem:[%s5 + $0x1dd8] sm:$0xff]
    %v1828 = vld [vmem:[%s5 + $0x1de0] sm:$0xff]
    %v1829 = vld [vmem:[%s5 + $0x1de8] sm:$0xff]
    %v1830 = vld [vmem:[%s5 + $0x1df0] sm:$0xff]
    %v1831 = vld [vmem:[%s5 + $0x1df8] sm:$0xff]
    %v1832 = vld [vmem:[%s5 + $0x1e00] sm:$0xff]
    %v1833 = vld [vmem:[%s5 + $0x1e08] sm:$0xff]
    %v1834 = vld [vmem:[%s5 + $0x1e10] sm:$0xff]
    %v1835 = vld [vmem:[%s5 + $0x1e18] sm:$0xff]
    %v1836 = vld [vmem:[%s5 + $0x1e20] sm:$0xff]
    %v1837 = vld [vmem:[%s5 + $0x1e28] sm:$0xff]
    %v1838 = vld [vmem:[%s5 + $0x1e30] sm:$0xff]
    %v1839 = vld [vmem:[%s5 + $0x1e38] sm:$0xff]
    %v1840 = vld [vmem:[%s5 + $0x1e40] sm:$0xff]
    %v1841 = vld [vmem:[%s5 + $0x1e48] sm:$0xff]
    %v1842 = vld [vmem:[%s5 + $0x1e50] sm:$0xff]
    %v1843 = vld [vmem:[%s5 + $0x1e58] sm:$0xff]
    %v1844 = vld [vmem:[%s5 + $0x1e60] sm:$0xff]
    %v1845 = vld [vmem:[%s5 + $0x1e68] sm:$0xff]
    %v1846 = vld [vmem:[%s5 + $0x1e70] sm:$0xff]
    %v1847 = vld [vmem:[%s5 + $0x1e78] sm:$0xff]
    %v1848 = vld [vmem:[%s5 + $0x1e80] sm:$0xff]
    %v1849 = vld [vmem:[%s5 + $0x1e88] sm:$0xff]
    %v1850 = vld [vmem:[%s5 + $0x1e90] sm:$0xff]
    %v1851 = vld [vmem:[%s5 + $0x1e98] sm:$0xff]
    %v1852 = vld [vmem:[%s5 + $0x1ea0] sm:$0xff]
    %v1853 = vld [vmem:[%s5 + $0x1ea8] sm:$0xff]
    %v1854 = vld [vmem:[%s5 + $0x1eb0] sm:$0xff]
    %v1855 = vld [vmem:[%s5 + $0x1eb8] sm:$0xff]
    %v1856 = vld [vmem:[%s5 + $0x1ec0] sm:$0xff]
    %v1857 = vld [vmem:[%s5 + $0x1ec8] sm:$0xff]
    %v1858 = vld [vmem:[%s5 + $0x1ed0] sm:$0xff]
    %v1859 = vld [vmem:[%s5 + $0x1ed8] sm:$0xff]
    %v1860 = vld [vmem:[%s5 + $0x1ee0] sm:$0xff]
    %v1861 = vld [vmem:[%s5 + $0x1ee8] sm:$0xff]
    %v1862 = vld [vmem:[%s5 + $0x1ef0] sm:$0xff]
    %v1863 = vld [vmem:[%s5 + $0x1ef8] sm:$0xff]
    %v1864 = vld [vmem:[%s5 + $0x1f00] sm:$0xff]
    %v1865 = vld [vmem:[%s5 + $0x1f08] sm:$0xff]
    %v1866 = vld [vmem:[%s5 + $0x1f10] sm:$0xff]
    %v1867 = vld [vmem:[%s5 + $0x1f18] sm:$0xff]
    %v1868 = vld [vmem:[%s5 + $0x1f20] sm:$0xff]
    %v1869 = vld [vmem:[%s5 + $0x1f28] sm:$0xff]
    %v1870 = vld [vmem:[%s5 + $0x1f30] sm:$0xff]
    %v1871 = vld [vmem:[%s5 + $0x1f38] sm:$0xff]
    %v1872 = vld [vmem:[%s5 + $0x1f40] sm:$0xff]
    %v1873 = vld [vmem:[%s5 + $0x1f48] sm:$0xff]
    %v1874 = vld [vmem:[%s5 + $0x1f50] sm:$0xff]
    %v1875 = vld [vmem:[%s5 + $0x1f58] sm:$0xff]
    %v1876 = vld [vmem:[%s5 + $0x1f60] sm:$0xff]
    %v1877 = vld [vmem:[%s5 + $0x1f68] sm:$0xff]
    %v1878 = vld [vmem:[%s5 + $0x1f70] sm:$0xff]
    %v1879 = vld [vmem:[%s5 + $0x1f78] sm:$0xff]
    %v1880 = vld [vmem:[%s5 + $0x1f80] sm:$0xff]
    %v1881 = vld [vmem:[%s5 + $0x1f88] sm:$0xff]
    %v1882 = vld [vmem:[%s5 + $0x1f90] sm:$0xff]
    %v1883 = vld [vmem:[%s5 + $0x1f98] sm:$0xff]
    %v1884 = vld [vmem:[%s5 + $0x1fa0] sm:$0xff]
    %v1885 = vld [vmem:[%s5 + $0x1fa8] sm:$0xff]
    %v1886 = vld [vmem:[%s5 + $0x1fb0] sm:$0xff]
    %v1887 = vld [vmem:[%s5 + $0x1fb8] sm:$0xff]
    %v1888 = vld [vmem:[%s5 + $0x1fc0] sm:$0xff]
    %v1889 = vld [vmem:[%s5 + $0x1fc8] sm:$0xff]
    %v1890 = vld [vmem:[%s5 + $0x1fd0] sm:$0xff]
    %v1891 = vld [vmem:[%s5 + $0x1fd8] sm:$0xff]
    %v1892 = vld [vmem:[%s5 + $0x1fe0] sm:$0xff]
    %v1893 = vld [vmem:[%s5 + $0x1fe8] sm:$0xff]
    %v1894 = vld [vmem:[%s5 + $0x1ff0] sm:$0xff]
    %v1895 = vld [vmem:[%s5 + $0x1ff8] sm:$0xff]
    %v1896 = vld [vmem:[%s6] sm:$0xff]
    %v1898 = vlaneseq
    %v1899 = vshrl.u32 %v1898, 7
    %v1900 = vsub.s32 0, %v1899
    %v1901 = vrot.slane %v1896, %v1900
    %v1902 = vlaneseq
    %v1903 = vshrl.u32 %v1902, 7
    %v1904 = vsub.s32 1, %v1903
    %v1905 = vrot.slane %v1896, %v1904
    %v1906 = vlaneseq
    %v1907 = vshrl.u32 %v1906, 7
    %v1908 = vsub.s32 2, %v1907
    %v1909 = vrot.slane %v1896, %v1908
    %v1910 = vlaneseq
    %v1911 = vshrl.u32 %v1910, 7
    %v1912 = vsub.s32 3, %v1911
    %v1913 = vrot.slane %v1896, %v1912
    %v1914 = vlaneseq
    %v1915 = vshrl.u32 %v1914, 7
    %v1916 = vsub.s32 4, %v1915
    %v1917 = vrot.slane %v1896, %v1916
    %v1918 = vlaneseq
    %v1919 = vshrl.u32 %v1918, 7
    %v1920 = vsub.s32 5, %v1919
    %v1921 = vrot.slane %v1896, %v1920
    %v1922 = vlaneseq
    %v1923 = vshrl.u32 %v1922, 7
    %v1924 = vsub.s32 6, %v1923
    %v1925 = vrot.slane %v1896, %v1924
    %v1926 = vlaneseq
    %v1927 = vshrl.u32 %v1926, 7
    %v1928 = vsub.s32 7, %v1927
    %v1929 = vrot.slane %v1896, %v1928
    %v2962 = vunpack.c.l.b16 %v872
    %v2963 = vunpack.c.h.b16 %v872
    %v2964 = vunpack.c.l.b16 %v873
    %v2965 = vunpack.c.h.b16 %v873
    %v2966 = vunpack.c.l.b16 %v874
    %v2967 = vunpack.c.h.b16 %v874
    %v2968 = vunpack.c.l.b16 %v875
    %v2969 = vunpack.c.h.b16 %v875
    %v2970 = vunpack.c.l.b16 %v876
    %v2971 = vunpack.c.h.b16 %v876
    %v2972 = vunpack.c.l.b16 %v877
    %v2973 = vunpack.c.h.b16 %v877
    %v2974 = vunpack.c.l.b16 %v878
    %v2975 = vunpack.c.h.b16 %v878
    %v2976 = vunpack.c.l.b16 %v879
    %v2977 = vunpack.c.h.b16 %v879
    %v2978 = vunpack.c.l.b16 %v880
    %v2979 = vunpack.c.h.b16 %v880
    %v2980 = vunpack.c.l.b16 %v881
    %v2981 = vunpack.c.h.b16 %v881
    %v2982 = vunpack.c.l.b16 %v882
    %v2983 = vunpack.c.h.b16 %v882
    %v2984 = vunpack.c.l.b16 %v883
    %v2985 = vunpack.c.h.b16 %v883
    %v2986 = vunpack.c.l.b16 %v884
    %v2987 = vunpack.c.h.b16 %v884
    %v2988 = vunpack.c.l.b16 %v885
    %v2989 = vunpack.c.h.b16 %v885
    %v2990 = vunpack.c.l.b16 %v886
    %v2991 = vunpack.c.h.b16 %v886
    %v2992 = vunpack.c.l.b16 %v887
    %v2993 = vunpack.c.h.b16 %v887
    %v2994 = vunpack.c.l.b16 %v888
    %v2995 = vunpack.c.h.b16 %v888
    %v2996 = vunpack.c.l.b16 %v889
    %v2997 = vunpack.c.h.b16 %v889
    %v2998 = vunpack.c.l.b16 %v890
    %v2999 = vunpack.c.h.b16 %v890
    %v3000 = vunpack.c.l.b16 %v891
    %v3001 = vunpack.c.h.b16 %v891
    %v3002 = vunpack.c.l.b16 %v892
    %v3003 = vunpack.c.h.b16 %v892
    %v3004 = vunpack.c.l.b16 %v893
    %v3005 = vunpack.c.h.b16 %v893
    %v3006 = vunpack.c.l.b16 %v894
    %v3007 = vunpack.c.h.b16 %v894
    %v3008 = vunpack.c.l.b16 %v895
    %v3009 = vunpack.c.h.b16 %v895
    %v3010 = vunpack.c.l.b16 %v896
    %v3011 = vunpack.c.h.b16 %v896
    %v3012 = vunpack.c.l.b16 %v897
    %v3013 = vunpack.c.h.b16 %v897
    %v3014 = vunpack.c.l.b16 %v898
    %v3015 = vunpack.c.h.b16 %v898
    %v3016 = vunpack.c.l.b16 %v899
    %v3017 = vunpack.c.h.b16 %v899
    %v3018 = vunpack.c.l.b16 %v900
    %v3019 = vunpack.c.h.b16 %v900
    %v3020 = vunpack.c.l.b16 %v901
    %v3021 = vunpack.c.h.b16 %v901
    %v3022 = vunpack.c.l.b16 %v902
    %v3023 = vunpack.c.h.b16 %v902
    %v3024 = vunpack.c.l.b16 %v903
    %v3025 = vunpack.c.h.b16 %v903
    %v3026 = vunpack.c.l.b16 %v904
    %v3027 = vunpack.c.h.b16 %v904
    %v3028 = vunpack.c.l.b16 %v905
    %v3029 = vunpack.c.h.b16 %v905
    %v3030 = vunpack.c.l.b16 %v906
    %v3031 = vunpack.c.h.b16 %v906
    %v3032 = vunpack.c.l.b16 %v907
    %v3033 = vunpack.c.h.b16 %v907
    %v3034 = vunpack.c.l.b16 %v908
    %v3035 = vunpack.c.h.b16 %v908
    %v3036 = vunpack.c.l.b16 %v909
    %v3037 = vunpack.c.h.b16 %v909
    %v3038 = vunpack.c.l.b16 %v910
    %v3039 = vunpack.c.h.b16 %v910
    %v3040 = vunpack.c.l.b16 %v911
    %v3041 = vunpack.c.h.b16 %v911
    %v3042 = vunpack.c.l.b16 %v912
    %v3043 = vunpack.c.h.b16 %v912
    %v3044 = vunpack.c.l.b16 %v913
    %v3045 = vunpack.c.h.b16 %v913
    %v3046 = vunpack.c.l.b16 %v914
    %v3047 = vunpack.c.h.b16 %v914
    %v3048 = vunpack.c.l.b16 %v915
    %v3049 = vunpack.c.h.b16 %v915
    %v3050 = vunpack.c.l.b16 %v916
    %v3051 = vunpack.c.h.b16 %v916
    %v3052 = vunpack.c.l.b16 %v917
    %v3053 = vunpack.c.h.b16 %v917
    %v3054 = vunpack.c.l.b16 %v918
    %v3055 = vunpack.c.h.b16 %v918
    %v3056 = vunpack.c.l.b16 %v919
    %v3057 = vunpack.c.h.b16 %v919
    %v3058 = vunpack.c.l.b16 %v920
    %v3059 = vunpack.c.h.b16 %v920
    %v3060 = vunpack.c.l.b16 %v921
    %v3061 = vunpack.c.h.b16 %v921
    %v3062 = vunpack.c.l.b16 %v922
    %v3063 = vunpack.c.h.b16 %v922
    %v3064 = vunpack.c.l.b16 %v923
    %v3065 = vunpack.c.h.b16 %v923
    %v3066 = vunpack.c.l.b16 %v924
    %v3067 = vunpack.c.h.b16 %v924
    %v3068 = vunpack.c.l.b16 %v925
    %v3069 = vunpack.c.h.b16 %v925
    %v3070 = vunpack.c.l.b16 %v926
    %v3071 = vunpack.c.h.b16 %v926
    %v3072 = vunpack.c.l.b16 %v927
    %v3073 = vunpack.c.h.b16 %v927
    %v3074 = vunpack.c.l.b16 %v928
    %v3075 = vunpack.c.h.b16 %v928
    %v3076 = vunpack.c.l.b16 %v929
    %v3077 = vunpack.c.h.b16 %v929
    %v3078 = vunpack.c.l.b16 %v930
    %v3079 = vunpack.c.h.b16 %v930
    %v3080 = vunpack.c.l.b16 %v931
    %v3081 = vunpack.c.h.b16 %v931
    %v3082 = vunpack.c.l.b16 %v932
    %v3083 = vunpack.c.h.b16 %v932
    %v3084 = vunpack.c.l.b16 %v933
    %v3085 = vunpack.c.h.b16 %v933
    %v3086 = vunpack.c.l.b16 %v934
    %v3087 = vunpack.c.h.b16 %v934
    %v3088 = vunpack.c.l.b16 %v935
    %v3089 = vunpack.c.h.b16 %v935
    %v3090 = vunpack.c.l.b16 %v936
    %v3091 = vunpack.c.h.b16 %v936
    %v3092 = vunpack.c.l.b16 %v937
    %v3093 = vunpack.c.h.b16 %v937
    %v3094 = vunpack.c.l.b16 %v938
    %v3095 = vunpack.c.h.b16 %v938
    %v3096 = vunpack.c.l.b16 %v939
    %v3097 = vunpack.c.h.b16 %v939
    %v3098 = vunpack.c.l.b16 %v940
    %v3099 = vunpack.c.h.b16 %v940
    %v3100 = vunpack.c.l.b16 %v941
    %v3101 = vunpack.c.h.b16 %v941
    %v3102 = vunpack.c.l.b16 %v942
    %v3103 = vunpack.c.h.b16 %v942
    %v3104 = vunpack.c.l.b16 %v943
    %v3105 = vunpack.c.h.b16 %v943
    %v3106 = vunpack.c.l.b16 %v944
    %v3107 = vunpack.c.h.b16 %v944
    %v3108 = vunpack.c.l.b16 %v945
    %v3109 = vunpack.c.h.b16 %v945
    %v3110 = vunpack.c.l.b16 %v946
    %v3111 = vunpack.c.h.b16 %v946
    %v3112 = vunpack.c.l.b16 %v947
    %v3113 = vunpack.c.h.b16 %v947
    %v3114 = vunpack.c.l.b16 %v948
    %v3115 = vunpack.c.h.b16 %v948
    %v3116 = vunpack.c.l.b16 %v949
    %v3117 = vunpack.c.h.b16 %v949
    %v3118 = vunpack.c.l.b16 %v950
    %v3119 = vunpack.c.h.b16 %v950
    %v3120 = vunpack.c.l.b16 %v951
    %v3121 = vunpack.c.h.b16 %v951
    %v3122 = vunpack.c.l.b16 %v952
    %v3123 = vunpack.c.h.b16 %v952
    %v3124 = vunpack.c.l.b16 %v953
    %v3125 = vunpack.c.h.b16 %v953
    %v3126 = vunpack.c.l.b16 %v954
    %v3127 = vunpack.c.h.b16 %v954
    %v3128 = vunpack.c.l.b16 %v955
    %v3129 = vunpack.c.h.b16 %v955
    %v3130 = vunpack.c.l.b16 %v956
    %v3131 = vunpack.c.h.b16 %v956
    %v3132 = vunpack.c.l.b16 %v957
    %v3133 = vunpack.c.h.b16 %v957
    %v3134 = vunpack.c.l.b16 %v958
    %v3135 = vunpack.c.h.b16 %v958
    %v3136 = vunpack.c.l.b16 %v959
    %v3137 = vunpack.c.h.b16 %v959
    %v3138 = vunpack.c.l.b16 %v960
    %v3139 = vunpack.c.h.b16 %v960
    %v3140 = vunpack.c.l.b16 %v961
    %v3141 = vunpack.c.h.b16 %v961
    %v3142 = vunpack.c.l.b16 %v962
    %v3143 = vunpack.c.h.b16 %v962
    %v3144 = vunpack.c.l.b16 %v963
    %v3145 = vunpack.c.h.b16 %v963
    %v3146 = vunpack.c.l.b16 %v964
    %v3147 = vunpack.c.h.b16 %v964
    %v3148 = vunpack.c.l.b16 %v965
    %v3149 = vunpack.c.h.b16 %v965
    %v3150 = vunpack.c.l.b16 %v966
    %v3151 = vunpack.c.h.b16 %v966
    %v3152 = vunpack.c.l.b16 %v967
    %v3153 = vunpack.c.h.b16 %v967
    %v3154 = vunpack.c.l.b16 %v968
    %v3155 = vunpack.c.h.b16 %v968
    %v3156 = vunpack.c.l.b16 %v969
    %v3157 = vunpack.c.h.b16 %v969
    %v3158 = vunpack.c.l.b16 %v970
    %v3159 = vunpack.c.h.b16 %v970
    %v3160 = vunpack.c.l.b16 %v971
    %v3161 = vunpack.c.h.b16 %v971
    %v3162 = vunpack.c.l.b16 %v972
    %v3163 = vunpack.c.h.b16 %v972
    %v3164 = vunpack.c.l.b16 %v973
    %v3165 = vunpack.c.h.b16 %v973
    %v3166 = vunpack.c.l.b16 %v974
    %v3167 = vunpack.c.h.b16 %v974
    %v3168 = vunpack.c.l.b16 %v975
    %v3169 = vunpack.c.h.b16 %v975
    %v3170 = vunpack.c.l.b16 %v976
    %v3171 = vunpack.c.h.b16 %v976
    %v3172 = vunpack.c.l.b16 %v977
    %v3173 = vunpack.c.h.b16 %v977
    %v3174 = vunpack.c.l.b16 %v978
    %v3175 = vunpack.c.h.b16 %v978
    %v3176 = vunpack.c.l.b16 %v979
    %v3177 = vunpack.c.h.b16 %v979
    %v3178 = vunpack.c.l.b16 %v980
    %v3179 = vunpack.c.h.b16 %v980
    %v3180 = vunpack.c.l.b16 %v981
    %v3181 = vunpack.c.h.b16 %v981
    %v3182 = vunpack.c.l.b16 %v982
    %v3183 = vunpack.c.h.b16 %v982
    %v3184 = vunpack.c.l.b16 %v983
    %v3185 = vunpack.c.h.b16 %v983
    %v3186 = vunpack.c.l.b16 %v984
    %v3187 = vunpack.c.h.b16 %v984
    %v3188 = vunpack.c.l.b16 %v985
    %v3189 = vunpack.c.h.b16 %v985
    %v3190 = vunpack.c.l.b16 %v986
    %v3191 = vunpack.c.h.b16 %v986
    %v3192 = vunpack.c.l.b16 %v987
    %v3193 = vunpack.c.h.b16 %v987
    %v3194 = vunpack.c.l.b16 %v988
    %v3195 = vunpack.c.h.b16 %v988
    %v3196 = vunpack.c.l.b16 %v989
    %v3197 = vunpack.c.h.b16 %v989
    %v3198 = vunpack.c.l.b16 %v990
    %v3199 = vunpack.c.h.b16 %v990
    %v3200 = vunpack.c.l.b16 %v991
    %v3201 = vunpack.c.h.b16 %v991
    %v3202 = vunpack.c.l.b16 %v992
    %v3203 = vunpack.c.h.b16 %v992
    %v3204 = vunpack.c.l.b16 %v993
    %v3205 = vunpack.c.h.b16 %v993
    %v3206 = vunpack.c.l.b16 %v994
    %v3207 = vunpack.c.h.b16 %v994
    %v3208 = vunpack.c.l.b16 %v995
    %v3209 = vunpack.c.h.b16 %v995
    %v3210 = vunpack.c.l.b16 %v996
    %v3211 = vunpack.c.h.b16 %v996
    %v3212 = vunpack.c.l.b16 %v997
    %v3213 = vunpack.c.h.b16 %v997
    %v3214 = vunpack.c.l.b16 %v998
    %v3215 = vunpack.c.h.b16 %v998
    %v3216 = vunpack.c.l.b16 %v999
    %v3217 = vunpack.c.h.b16 %v999
    %v3218 = vunpack.c.l.b16 %v1000
    %v3219 = vunpack.c.h.b16 %v1000
    %v3220 = vunpack.c.l.b16 %v1001
    %v3221 = vunpack.c.h.b16 %v1001
    %v3222 = vunpack.c.l.b16 %v1002
    %v3223 = vunpack.c.h.b16 %v1002
    %v3224 = vunpack.c.l.b16 %v1003
    %v3225 = vunpack.c.h.b16 %v1003
    %v3226 = vunpack.c.l.b16 %v1004
    %v3227 = vunpack.c.h.b16 %v1004
    %v3228 = vunpack.c.l.b16 %v1005
    %v3229 = vunpack.c.h.b16 %v1005
    %v3230 = vunpack.c.l.b16 %v1006
    %v3231 = vunpack.c.h.b16 %v1006
    %v3232 = vunpack.c.l.b16 %v1007
    %v3233 = vunpack.c.h.b16 %v1007
    %v3234 = vunpack.c.l.b16 %v1008
    %v3235 = vunpack.c.h.b16 %v1008
    %v3236 = vunpack.c.l.b16 %v1009
    %v3237 = vunpack.c.h.b16 %v1009
    %v3238 = vunpack.c.l.b16 %v1010
    %v3239 = vunpack.c.h.b16 %v1010
    %v3240 = vunpack.c.l.b16 %v1011
    %v3241 = vunpack.c.h.b16 %v1011
    %v3242 = vunpack.c.l.b16 %v1012
    %v3243 = vunpack.c.h.b16 %v1012
    %v3244 = vunpack.c.l.b16 %v1013
    %v3245 = vunpack.c.h.b16 %v1013
    %v3246 = vunpack.c.l.b16 %v1014
    %v3247 = vunpack.c.h.b16 %v1014
    %v3248 = vunpack.c.l.b16 %v1015
    %v3249 = vunpack.c.h.b16 %v1015
    %v3250 = vunpack.c.l.b16 %v1016
    %v3251 = vunpack.c.h.b16 %v1016
    %v3252 = vunpack.c.l.b16 %v1017
    %v3253 = vunpack.c.h.b16 %v1017
    %v3254 = vunpack.c.l.b16 %v1018
    %v3255 = vunpack.c.h.b16 %v1018
    %v3256 = vunpack.c.l.b16 %v1019
    %v3257 = vunpack.c.h.b16 %v1019
    %v3258 = vunpack.c.l.b16 %v1020
    %v3259 = vunpack.c.h.b16 %v1020
    %v3260 = vunpack.c.l.b16 %v1021
    %v3261 = vunpack.c.h.b16 %v1021
    %v3262 = vunpack.c.l.b16 %v1022
    %v3263 = vunpack.c.h.b16 %v1022
    %v3264 = vunpack.c.l.b16 %v1023
    %v3265 = vunpack.c.h.b16 %v1023
    %v3266 = vunpack.c.l.b16 %v1024
    %v3267 = vunpack.c.h.b16 %v1024
    %v3268 = vunpack.c.l.b16 %v1025
    %v3269 = vunpack.c.h.b16 %v1025
    %v3270 = vunpack.c.l.b16 %v1026
    %v3271 = vunpack.c.h.b16 %v1026
    %v3272 = vunpack.c.l.b16 %v1027
    %v3273 = vunpack.c.h.b16 %v1027
    %v3274 = vunpack.c.l.b16 %v1028
    %v3275 = vunpack.c.h.b16 %v1028
    %v3276 = vunpack.c.l.b16 %v1029
    %v3277 = vunpack.c.h.b16 %v1029
    %v3278 = vunpack.c.l.b16 %v1030
    %v3279 = vunpack.c.h.b16 %v1030
    %v3280 = vunpack.c.l.b16 %v1031
    %v3281 = vunpack.c.h.b16 %v1031
    %v3282 = vunpack.c.l.b16 %v1032
    %v3283 = vunpack.c.h.b16 %v1032
    %v3284 = vunpack.c.l.b16 %v1033
    %v3285 = vunpack.c.h.b16 %v1033
    %v3286 = vunpack.c.l.b16 %v1034
    %v3287 = vunpack.c.h.b16 %v1034
    %v3288 = vunpack.c.l.b16 %v1035
    %v3289 = vunpack.c.h.b16 %v1035
    %v3290 = vunpack.c.l.b16 %v1036
    %v3291 = vunpack.c.h.b16 %v1036
    %v3292 = vunpack.c.l.b16 %v1037
    %v3293 = vunpack.c.h.b16 %v1037
    %v3294 = vunpack.c.l.b16 %v1038
    %v3295 = vunpack.c.h.b16 %v1038
    %v3296 = vunpack.c.l.b16 %v1039
    %v3297 = vunpack.c.h.b16 %v1039
    %v3298 = vunpack.c.l.b16 %v1040
    %v3299 = vunpack.c.h.b16 %v1040
    %v3300 = vunpack.c.l.b16 %v1041
    %v3301 = vunpack.c.h.b16 %v1041
    %v3302 = vunpack.c.l.b16 %v1042
    %v3303 = vunpack.c.h.b16 %v1042
    %v3304 = vunpack.c.l.b16 %v1043
    %v3305 = vunpack.c.h.b16 %v1043
    %v3306 = vunpack.c.l.b16 %v1044
    %v3307 = vunpack.c.h.b16 %v1044
    %v3308 = vunpack.c.l.b16 %v1045
    %v3309 = vunpack.c.h.b16 %v1045
    %v3310 = vunpack.c.l.b16 %v1046
    %v3311 = vunpack.c.h.b16 %v1046
    %v3312 = vunpack.c.l.b16 %v1047
    %v3313 = vunpack.c.h.b16 %v1047
    %v3314 = vunpack.c.l.b16 %v1048
    %v3315 = vunpack.c.h.b16 %v1048
    %v3316 = vunpack.c.l.b16 %v1049
    %v3317 = vunpack.c.h.b16 %v1049
    %v3318 = vunpack.c.l.b16 %v1050
    %v3319 = vunpack.c.h.b16 %v1050
    %v3320 = vunpack.c.l.b16 %v1051
    %v3321 = vunpack.c.h.b16 %v1051
    %v3322 = vunpack.c.l.b16 %v1052
    %v3323 = vunpack.c.h.b16 %v1052
    %v3324 = vunpack.c.l.b16 %v1053
    %v3325 = vunpack.c.h.b16 %v1053
    %v3326 = vunpack.c.l.b16 %v1054
    %v3327 = vunpack.c.h.b16 %v1054
    %v3328 = vunpack.c.l.b16 %v1055
    %v3329 = vunpack.c.h.b16 %v1055
    %v3330 = vunpack.c.l.b16 %v1056
    %v3331 = vunpack.c.h.b16 %v1056
    %v3332 = vunpack.c.l.b16 %v1057
    %v3333 = vunpack.c.h.b16 %v1057
    %v3334 = vunpack.c.l.b16 %v1058
    %v3335 = vunpack.c.h.b16 %v1058
    %v3336 = vunpack.c.l.b16 %v1059
    %v3337 = vunpack.c.h.b16 %v1059
    %v3338 = vunpack.c.l.b16 %v1060
    %v3339 = vunpack.c.h.b16 %v1060
    %v3340 = vunpack.c.l.b16 %v1061
    %v3341 = vunpack.c.h.b16 %v1061
    %v3342 = vunpack.c.l.b16 %v1062
    %v3343 = vunpack.c.h.b16 %v1062
    %v3344 = vunpack.c.l.b16 %v1063
    %v3345 = vunpack.c.h.b16 %v1063
    %v3346 = vunpack.c.l.b16 %v1064
    %v3347 = vunpack.c.h.b16 %v1064
    %v3348 = vunpack.c.l.b16 %v1065
    %v3349 = vunpack.c.h.b16 %v1065
    %v3350 = vunpack.c.l.b16 %v1066
    %v3351 = vunpack.c.h.b16 %v1066
    %v3352 = vunpack.c.l.b16 %v1067
    %v3353 = vunpack.c.h.b16 %v1067
    %v3354 = vunpack.c.l.b16 %v1068
    %v3355 = vunpack.c.h.b16 %v1068
    %v3356 = vunpack.c.l.b16 %v1069
    %v3357 = vunpack.c.h.b16 %v1069
    %v3358 = vunpack.c.l.b16 %v1070
    %v3359 = vunpack.c.h.b16 %v1070
    %v3360 = vunpack.c.l.b16 %v1071
    %v3361 = vunpack.c.h.b16 %v1071
    %v3362 = vunpack.c.l.b16 %v1072
    %v3363 = vunpack.c.h.b16 %v1072
    %v3364 = vunpack.c.l.b16 %v1073
    %v3365 = vunpack.c.h.b16 %v1073
    %v3366 = vunpack.c.l.b16 %v1074
    %v3367 = vunpack.c.h.b16 %v1074
    %v3368 = vunpack.c.l.b16 %v1075
    %v3369 = vunpack.c.h.b16 %v1075
    %v3370 = vunpack.c.l.b16 %v1076
    %v3371 = vunpack.c.h.b16 %v1076
    %v3372 = vunpack.c.l.b16 %v1077
    %v3373 = vunpack.c.h.b16 %v1077
    %v3374 = vunpack.c.l.b16 %v1078
    %v3375 = vunpack.c.h.b16 %v1078
    %v3376 = vunpack.c.l.b16 %v1079
    %v3377 = vunpack.c.h.b16 %v1079
    %v3378 = vunpack.c.l.b16 %v1080
    %v3379 = vunpack.c.h.b16 %v1080
    %v3380 = vunpack.c.l.b16 %v1081
    %v3381 = vunpack.c.h.b16 %v1081
    %v3382 = vunpack.c.l.b16 %v1082
    %v3383 = vunpack.c.h.b16 %v1082
    %v3384 = vunpack.c.l.b16 %v1083
    %v3385 = vunpack.c.h.b16 %v1083
    %v3386 = vunpack.c.l.b16 %v1084
    %v3387 = vunpack.c.h.b16 %v1084
    %v3388 = vunpack.c.l.b16 %v1085
    %v3389 = vunpack.c.h.b16 %v1085
    %v3390 = vunpack.c.l.b16 %v1086
    %v3391 = vunpack.c.h.b16 %v1086
    %v3392 = vunpack.c.l.b16 %v1087
    %v3393 = vunpack.c.h.b16 %v1087
    %v3394 = vunpack.c.l.b16 %v1088
    %v3395 = vunpack.c.h.b16 %v1088
    %v3396 = vunpack.c.l.b16 %v1089
    %v3397 = vunpack.c.h.b16 %v1089
    %v3398 = vunpack.c.l.b16 %v1090
    %v3399 = vunpack.c.h.b16 %v1090
    %v3400 = vunpack.c.l.b16 %v1091
    %v3401 = vunpack.c.h.b16 %v1091
    %v3402 = vunpack.c.l.b16 %v1092
    %v3403 = vunpack.c.h.b16 %v1092
    %v3404 = vunpack.c.l.b16 %v1093
    %v3405 = vunpack.c.h.b16 %v1093
    %v3406 = vunpack.c.l.b16 %v1094
    %v3407 = vunpack.c.h.b16 %v1094
    %v3408 = vunpack.c.l.b16 %v1095
    %v3409 = vunpack.c.h.b16 %v1095
    %v3410 = vunpack.c.l.b16 %v1096
    %v3411 = vunpack.c.h.b16 %v1096
    %v3412 = vunpack.c.l.b16 %v1097
    %v3413 = vunpack.c.h.b16 %v1097
    %v3414 = vunpack.c.l.b16 %v1098
    %v3415 = vunpack.c.h.b16 %v1098
    %v3416 = vunpack.c.l.b16 %v1099
    %v3417 = vunpack.c.h.b16 %v1099
    %v3418 = vunpack.c.l.b16 %v1100
    %v3419 = vunpack.c.h.b16 %v1100
    %v3420 = vunpack.c.l.b16 %v1101
    %v3421 = vunpack.c.h.b16 %v1101
    %v3422 = vunpack.c.l.b16 %v1102
    %v3423 = vunpack.c.h.b16 %v1102
    %v3424 = vunpack.c.l.b16 %v1103
    %v3425 = vunpack.c.h.b16 %v1103
    %v3426 = vunpack.c.l.b16 %v1104
    %v3427 = vunpack.c.h.b16 %v1104
    %v3428 = vunpack.c.l.b16 %v1105
    %v3429 = vunpack.c.h.b16 %v1105
    %v3430 = vunpack.c.l.b16 %v1106
    %v3431 = vunpack.c.h.b16 %v1106
    %v3432 = vunpack.c.l.b16 %v1107
    %v3433 = vunpack.c.h.b16 %v1107
    %v3434 = vunpack.c.l.b16 %v1108
    %v3435 = vunpack.c.h.b16 %v1108
    %v3436 = vunpack.c.l.b16 %v1109
    %v3437 = vunpack.c.h.b16 %v1109
    %v3438 = vunpack.c.l.b16 %v1110
    %v3439 = vunpack.c.h.b16 %v1110
    %v3440 = vunpack.c.l.b16 %v1111
    %v3441 = vunpack.c.h.b16 %v1111
    %v3442 = vunpack.c.l.b16 %v1112
    %v3443 = vunpack.c.h.b16 %v1112
    %v3444 = vunpack.c.l.b16 %v1113
    %v3445 = vunpack.c.h.b16 %v1113
    %v3446 = vunpack.c.l.b16 %v1114
    %v3447 = vunpack.c.h.b16 %v1114
    %v3448 = vunpack.c.l.b16 %v1115
    %v3449 = vunpack.c.h.b16 %v1115
    %v3450 = vunpack.c.l.b16 %v1116
    %v3451 = vunpack.c.h.b16 %v1116
    %v3452 = vunpack.c.l.b16 %v1117
    %v3453 = vunpack.c.h.b16 %v1117
    %v3454 = vunpack.c.l.b16 %v1118
    %v3455 = vunpack.c.h.b16 %v1118
    %v3456 = vunpack.c.l.b16 %v1119
    %v3457 = vunpack.c.h.b16 %v1119
    %v3458 = vunpack.c.l.b16 %v1120
    %v3459 = vunpack.c.h.b16 %v1120
    %v3460 = vunpack.c.l.b16 %v1121
    %v3461 = vunpack.c.h.b16 %v1121
    %v3462 = vunpack.c.l.b16 %v1122
    %v3463 = vunpack.c.h.b16 %v1122
    %v3464 = vunpack.c.l.b16 %v1123
    %v3465 = vunpack.c.h.b16 %v1123
    %v3466 = vunpack.c.l.b16 %v1124
    %v3467 = vunpack.c.h.b16 %v1124
    %v3468 = vunpack.c.l.b16 %v1125
    %v3469 = vunpack.c.h.b16 %v1125
    %v3470 = vunpack.c.l.b16 %v1126
    %v3471 = vunpack.c.h.b16 %v1126
    %v3472 = vunpack.c.l.b16 %v1127
    %v3473 = vunpack.c.h.b16 %v1127
    %v3474 = vunpack.c.l.b16 %v1128
    %v3475 = vunpack.c.h.b16 %v1128
    %v3476 = vunpack.c.l.b16 %v1129
    %v3477 = vunpack.c.h.b16 %v1129
    %v3478 = vunpack.c.l.b16 %v1130
    %v3479 = vunpack.c.h.b16 %v1130
    %v3480 = vunpack.c.l.b16 %v1131
    %v3481 = vunpack.c.h.b16 %v1131
    %v3482 = vunpack.c.l.b16 %v1132
    %v3483 = vunpack.c.h.b16 %v1132
    %v3484 = vunpack.c.l.b16 %v1133
    %v3485 = vunpack.c.h.b16 %v1133
    %v3486 = vunpack.c.l.b16 %v1134
    %v3487 = vunpack.c.h.b16 %v1134
    %v3488 = vunpack.c.l.b16 %v1135
    %v3489 = vunpack.c.h.b16 %v1135
    %v3490 = vunpack.c.l.b16 %v1136
    %v3491 = vunpack.c.h.b16 %v1136
    %v3492 = vunpack.c.l.b16 %v1137
    %v3493 = vunpack.c.h.b16 %v1137
    %v3494 = vunpack.c.l.b16 %v1138
    %v3495 = vunpack.c.h.b16 %v1138
    %v3496 = vunpack.c.l.b16 %v1139
    %v3497 = vunpack.c.h.b16 %v1139
    %v3498 = vunpack.c.l.b16 %v1140
    %v3499 = vunpack.c.h.b16 %v1140
    %v3500 = vunpack.c.l.b16 %v1141
    %v3501 = vunpack.c.h.b16 %v1141
    %v3502 = vunpack.c.l.b16 %v1142
    %v3503 = vunpack.c.h.b16 %v1142
    %v3504 = vunpack.c.l.b16 %v1143
    %v3505 = vunpack.c.h.b16 %v1143
    %v3506 = vunpack.c.l.b16 %v1144
    %v3507 = vunpack.c.h.b16 %v1144
    %v3508 = vunpack.c.l.b16 %v1145
    %v3509 = vunpack.c.h.b16 %v1145
    %v3510 = vunpack.c.l.b16 %v1146
    %v3511 = vunpack.c.h.b16 %v1146
    %v3512 = vunpack.c.l.b16 %v1147
    %v3513 = vunpack.c.h.b16 %v1147
    %v3514 = vunpack.c.l.b16 %v1148
    %v3515 = vunpack.c.h.b16 %v1148
    %v3516 = vunpack.c.l.b16 %v1149
    %v3517 = vunpack.c.h.b16 %v1149
    %v3518 = vunpack.c.l.b16 %v1150
    %v3519 = vunpack.c.h.b16 %v1150
    %v3520 = vunpack.c.l.b16 %v1151
    %v3521 = vunpack.c.h.b16 %v1151
    %v3522 = vunpack.c.l.b16 %v1152
    %v3523 = vunpack.c.h.b16 %v1152
    %v3524 = vunpack.c.l.b16 %v1153
    %v3525 = vunpack.c.h.b16 %v1153
    %v3526 = vunpack.c.l.b16 %v1154
    %v3527 = vunpack.c.h.b16 %v1154
    %v3528 = vunpack.c.l.b16 %v1155
    %v3529 = vunpack.c.h.b16 %v1155
    %v3530 = vunpack.c.l.b16 %v1156
    %v3531 = vunpack.c.h.b16 %v1156
    %v3532 = vunpack.c.l.b16 %v1157
    %v3533 = vunpack.c.h.b16 %v1157
    %v3534 = vunpack.c.l.b16 %v1158
    %v3535 = vunpack.c.h.b16 %v1158
    %v3536 = vunpack.c.l.b16 %v1159
    %v3537 = vunpack.c.h.b16 %v1159
    %v3538 = vunpack.c.l.b16 %v1160
    %v3539 = vunpack.c.h.b16 %v1160
    %v3540 = vunpack.c.l.b16 %v1161
    %v3541 = vunpack.c.h.b16 %v1161
    %v3542 = vunpack.c.l.b16 %v1162
    %v3543 = vunpack.c.h.b16 %v1162
    %v3544 = vunpack.c.l.b16 %v1163
    %v3545 = vunpack.c.h.b16 %v1163
    %v3546 = vunpack.c.l.b16 %v1164
    %v3547 = vunpack.c.h.b16 %v1164
    %v3548 = vunpack.c.l.b16 %v1165
    %v3549 = vunpack.c.h.b16 %v1165
    %v3550 = vunpack.c.l.b16 %v1166
    %v3551 = vunpack.c.h.b16 %v1166
    %v3552 = vunpack.c.l.b16 %v1167
    %v3553 = vunpack.c.h.b16 %v1167
    %v3554 = vunpack.c.l.b16 %v1168
    %v3555 = vunpack.c.h.b16 %v1168
    %v3556 = vunpack.c.l.b16 %v1169
    %v3557 = vunpack.c.h.b16 %v1169
    %v3558 = vunpack.c.l.b16 %v1170
    %v3559 = vunpack.c.h.b16 %v1170
    %v3560 = vunpack.c.l.b16 %v1171
    %v3561 = vunpack.c.h.b16 %v1171
    %v3562 = vunpack.c.l.b16 %v1172
    %v3563 = vunpack.c.h.b16 %v1172
    %v3564 = vunpack.c.l.b16 %v1173
    %v3565 = vunpack.c.h.b16 %v1173
    %v3566 = vunpack.c.l.b16 %v1174
    %v3567 = vunpack.c.h.b16 %v1174
    %v3568 = vunpack.c.l.b16 %v1175
    %v3569 = vunpack.c.h.b16 %v1175
    %v3570 = vunpack.c.l.b16 %v1176
    %v3571 = vunpack.c.h.b16 %v1176
    %v3572 = vunpack.c.l.b16 %v1177
    %v3573 = vunpack.c.h.b16 %v1177
    %v3574 = vunpack.c.l.b16 %v1178
    %v3575 = vunpack.c.h.b16 %v1178
    %v3576 = vunpack.c.l.b16 %v1179
    %v3577 = vunpack.c.h.b16 %v1179
    %v3578 = vunpack.c.l.b16 %v1180
    %v3579 = vunpack.c.h.b16 %v1180
    %v3580 = vunpack.c.l.b16 %v1181
    %v3581 = vunpack.c.h.b16 %v1181
    %v3582 = vunpack.c.l.b16 %v1182
    %v3583 = vunpack.c.h.b16 %v1182
    %v3584 = vunpack.c.l.b16 %v1183
    %v3585 = vunpack.c.h.b16 %v1183
    %v3586 = vunpack.c.l.b16 %v1184
    %v3587 = vunpack.c.h.b16 %v1184
    %v3588 = vunpack.c.l.b16 %v1185
    %v3589 = vunpack.c.h.b16 %v1185
    %v3590 = vunpack.c.l.b16 %v1186
    %v3591 = vunpack.c.h.b16 %v1186
    %v3592 = vunpack.c.l.b16 %v1187
    %v3593 = vunpack.c.h.b16 %v1187
    %v3594 = vunpack.c.l.b16 %v1188
    %v3595 = vunpack.c.h.b16 %v1188
    %v3596 = vunpack.c.l.b16 %v1189
    %v3597 = vunpack.c.h.b16 %v1189
    %v3598 = vunpack.c.l.b16 %v1190
    %v3599 = vunpack.c.h.b16 %v1190
    %v3600 = vunpack.c.l.b16 %v1191
    %v3601 = vunpack.c.h.b16 %v1191
    %v3602 = vunpack.c.l.b16 %v1192
    %v3603 = vunpack.c.h.b16 %v1192
    %v3604 = vunpack.c.l.b16 %v1193
    %v3605 = vunpack.c.h.b16 %v1193
    %v3606 = vunpack.c.l.b16 %v1194
    %v3607 = vunpack.c.h.b16 %v1194
    %v3608 = vunpack.c.l.b16 %v1195
    %v3609 = vunpack.c.h.b16 %v1195
    %v3610 = vunpack.c.l.b16 %v1196
    %v3611 = vunpack.c.h.b16 %v1196
    %v3612 = vunpack.c.l.b16 %v1197
    %v3613 = vunpack.c.h.b16 %v1197
    %v3614 = vunpack.c.l.b16 %v1198
    %v3615 = vunpack.c.h.b16 %v1198
    %v3616 = vunpack.c.l.b16 %v1199
    %v3617 = vunpack.c.h.b16 %v1199
    %v3618 = vunpack.c.l.b16 %v1200
    %v3619 = vunpack.c.h.b16 %v1200
    %v3620 = vunpack.c.l.b16 %v1201
    %v3621 = vunpack.c.h.b16 %v1201
    %v3622 = vunpack.c.l.b16 %v1202
    %v3623 = vunpack.c.h.b16 %v1202
    %v3624 = vunpack.c.l.b16 %v1203
    %v3625 = vunpack.c.h.b16 %v1203
    %v3626 = vunpack.c.l.b16 %v1204
    %v3627 = vunpack.c.h.b16 %v1204
    %v3628 = vunpack.c.l.b16 %v1205
    %v3629 = vunpack.c.h.b16 %v1205
    %v3630 = vunpack.c.l.b16 %v1206
    %v3631 = vunpack.c.h.b16 %v1206
    %v3632 = vunpack.c.l.b16 %v1207
    %v3633 = vunpack.c.h.b16 %v1207
    %v3634 = vunpack.c.l.b16 %v1208
    %v3635 = vunpack.c.h.b16 %v1208
    %v3636 = vunpack.c.l.b16 %v1209
    %v3637 = vunpack.c.h.b16 %v1209
    %v3638 = vunpack.c.l.b16 %v1210
    %v3639 = vunpack.c.h.b16 %v1210
    %v3640 = vunpack.c.l.b16 %v1211
    %v3641 = vunpack.c.h.b16 %v1211
    %v3642 = vunpack.c.l.b16 %v1212
    %v3643 = vunpack.c.h.b16 %v1212
    %v3644 = vunpack.c.l.b16 %v1213
    %v3645 = vunpack.c.h.b16 %v1213
    %v3646 = vunpack.c.l.b16 %v1214
    %v3647 = vunpack.c.h.b16 %v1214
    %v3648 = vunpack.c.l.b16 %v1215
    %v3649 = vunpack.c.h.b16 %v1215
    %v3650 = vunpack.c.l.b16 %v1216
    %v3651 = vunpack.c.h.b16 %v1216
    %v3652 = vunpack.c.l.b16 %v1217
    %v3653 = vunpack.c.h.b16 %v1217
    %v3654 = vunpack.c.l.b16 %v1218
    %v3655 = vunpack.c.h.b16 %v1218
    %v3656 = vunpack.c.l.b16 %v1219
    %v3657 = vunpack.c.h.b16 %v1219
    %v3658 = vunpack.c.l.b16 %v1220
    %v3659 = vunpack.c.h.b16 %v1220
    %v3660 = vunpack.c.l.b16 %v1221
    %v3661 = vunpack.c.h.b16 %v1221
    %v3662 = vunpack.c.l.b16 %v1222
    %v3663 = vunpack.c.h.b16 %v1222
    %v3664 = vunpack.c.l.b16 %v1223
    %v3665 = vunpack.c.h.b16 %v1223
    %v3666 = vunpack.c.l.b16 %v1224
    %v3667 = vunpack.c.h.b16 %v1224
    %v3668 = vunpack.c.l.b16 %v1225
    %v3669 = vunpack.c.h.b16 %v1225
    %v3670 = vunpack.c.l.b16 %v1226
    %v3671 = vunpack.c.h.b16 %v1226
    %v3672 = vunpack.c.l.b16 %v1227
    %v3673 = vunpack.c.h.b16 %v1227
    %v3674 = vunpack.c.l.b16 %v1228
    %v3675 = vunpack.c.h.b16 %v1228
    %v3676 = vunpack.c.l.b16 %v1229
    %v3677 = vunpack.c.h.b16 %v1229
    %v3678 = vunpack.c.l.b16 %v1230
    %v3679 = vunpack.c.h.b16 %v1230
    %v3680 = vunpack.c.l.b16 %v1231
    %v3681 = vunpack.c.h.b16 %v1231
    %v3682 = vunpack.c.l.b16 %v1232
    %v3683 = vunpack.c.h.b16 %v1232
    %v3684 = vunpack.c.l.b16 %v1233
    %v3685 = vunpack.c.h.b16 %v1233
    %v3686 = vunpack.c.l.b16 %v1234
    %v3687 = vunpack.c.h.b16 %v1234
    %v3688 = vunpack.c.l.b16 %v1235
    %v3689 = vunpack.c.h.b16 %v1235
    %v3690 = vunpack.c.l.b16 %v1236
    %v3691 = vunpack.c.h.b16 %v1236
    %v3692 = vunpack.c.l.b16 %v1237
    %v3693 = vunpack.c.h.b16 %v1237
    %v3694 = vunpack.c.l.b16 %v1238
    %v3695 = vunpack.c.h.b16 %v1238
    %v3696 = vunpack.c.l.b16 %v1239
    %v3697 = vunpack.c.h.b16 %v1239
    %v3698 = vunpack.c.l.b16 %v1240
    %v3699 = vunpack.c.h.b16 %v1240
    %v3700 = vunpack.c.l.b16 %v1241
    %v3701 = vunpack.c.h.b16 %v1241
    %v3702 = vunpack.c.l.b16 %v1242
    %v3703 = vunpack.c.h.b16 %v1242
    %v3704 = vunpack.c.l.b16 %v1243
    %v3705 = vunpack.c.h.b16 %v1243
    %v3706 = vunpack.c.l.b16 %v1244
    %v3707 = vunpack.c.h.b16 %v1244
    %v3708 = vunpack.c.l.b16 %v1245
    %v3709 = vunpack.c.h.b16 %v1245
    %v3710 = vunpack.c.l.b16 %v1246
    %v3711 = vunpack.c.h.b16 %v1246
    %v3712 = vunpack.c.l.b16 %v1247
    %v3713 = vunpack.c.h.b16 %v1247
    %v3714 = vunpack.c.l.b16 %v1248
    %v3715 = vunpack.c.h.b16 %v1248
    %v3716 = vunpack.c.l.b16 %v1249
    %v3717 = vunpack.c.h.b16 %v1249
    %v3718 = vunpack.c.l.b16 %v1250
    %v3719 = vunpack.c.h.b16 %v1250
    %v3720 = vunpack.c.l.b16 %v1251
    %v3721 = vunpack.c.h.b16 %v1251
    %v3722 = vunpack.c.l.b16 %v1252
    %v3723 = vunpack.c.h.b16 %v1252
    %v3724 = vunpack.c.l.b16 %v1253
    %v3725 = vunpack.c.h.b16 %v1253
    %v3726 = vunpack.c.l.b16 %v1254
    %v3727 = vunpack.c.h.b16 %v1254
    %v3728 = vunpack.c.l.b16 %v1255
    %v3729 = vunpack.c.h.b16 %v1255
    %v3730 = vunpack.c.l.b16 %v1256
    %v3731 = vunpack.c.h.b16 %v1256
    %v3732 = vunpack.c.l.b16 %v1257
    %v3733 = vunpack.c.h.b16 %v1257
    %v3734 = vunpack.c.l.b16 %v1258
    %v3735 = vunpack.c.h.b16 %v1258
    %v3736 = vunpack.c.l.b16 %v1259
    %v3737 = vunpack.c.h.b16 %v1259
    %v3738 = vunpack.c.l.b16 %v1260
    %v3739 = vunpack.c.h.b16 %v1260
    %v3740 = vunpack.c.l.b16 %v1261
    %v3741 = vunpack.c.h.b16 %v1261
    %v3742 = vunpack.c.l.b16 %v1262
    %v3743 = vunpack.c.h.b16 %v1262
    %v3744 = vunpack.c.l.b16 %v1263
    %v3745 = vunpack.c.h.b16 %v1263
    %v3746 = vunpack.c.l.b16 %v1264
    %v3747 = vunpack.c.h.b16 %v1264
    %v3748 = vunpack.c.l.b16 %v1265
    %v3749 = vunpack.c.h.b16 %v1265
    %v3750 = vunpack.c.l.b16 %v1266
    %v3751 = vunpack.c.h.b16 %v1266
    %v3752 = vunpack.c.l.b16 %v1267
    %v3753 = vunpack.c.h.b16 %v1267
    %v3754 = vunpack.c.l.b16 %v1268
    %v3755 = vunpack.c.h.b16 %v1268
    %v3756 = vunpack.c.l.b16 %v1269
    %v3757 = vunpack.c.h.b16 %v1269
    %v3758 = vunpack.c.l.b16 %v1270
    %v3759 = vunpack.c.h.b16 %v1270
    %v3760 = vunpack.c.l.b16 %v1271
    %v3761 = vunpack.c.h.b16 %v1271
    %v3762 = vunpack.c.l.b16 %v1272
    %v3763 = vunpack.c.h.b16 %v1272
    %v3764 = vunpack.c.l.b16 %v1273
    %v3765 = vunpack.c.h.b16 %v1273
    %v3766 = vunpack.c.l.b16 %v1274
    %v3767 = vunpack.c.h.b16 %v1274
    %v3768 = vunpack.c.l.b16 %v1275
    %v3769 = vunpack.c.h.b16 %v1275
    %v3770 = vunpack.c.l.b16 %v1276
    %v3771 = vunpack.c.h.b16 %v1276
    %v3772 = vunpack.c.l.b16 %v1277
    %v3773 = vunpack.c.h.b16 %v1277
    %v3774 = vunpack.c.l.b16 %v1278
    %v3775 = vunpack.c.h.b16 %v1278
    %v3776 = vunpack.c.l.b16 %v1279
    %v3777 = vunpack.c.h.b16 %v1279
    %v3778 = vunpack.c.l.b16 %v1280
    %v3779 = vunpack.c.h.b16 %v1280
    %v3780 = vunpack.c.l.b16 %v1281
    %v3781 = vunpack.c.h.b16 %v1281
    %v3782 = vunpack.c.l.b16 %v1282
    %v3783 = vunpack.c.h.b16 %v1282
    %v3784 = vunpack.c.l.b16 %v1283
    %v3785 = vunpack.c.h.b16 %v1283
    %v3786 = vunpack.c.l.b16 %v1284
    %v3787 = vunpack.c.h.b16 %v1284
    %v3788 = vunpack.c.l.b16 %v1285
    %v3789 = vunpack.c.h.b16 %v1285
    %v3790 = vunpack.c.l.b16 %v1286
    %v3791 = vunpack.c.h.b16 %v1286
    %v3792 = vunpack.c.l.b16 %v1287
    %v3793 = vunpack.c.h.b16 %v1287
    %v3794 = vunpack.c.l.b16 %v1288
    %v3795 = vunpack.c.h.b16 %v1288
    %v3796 = vunpack.c.l.b16 %v1289
    %v3797 = vunpack.c.h.b16 %v1289
    %v3798 = vunpack.c.l.b16 %v1290
    %v3799 = vunpack.c.h.b16 %v1290
    %v3800 = vunpack.c.l.b16 %v1291
    %v3801 = vunpack.c.h.b16 %v1291
    %v3802 = vunpack.c.l.b16 %v1292
    %v3803 = vunpack.c.h.b16 %v1292
    %v3804 = vunpack.c.l.b16 %v1293
    %v3805 = vunpack.c.h.b16 %v1293
    %v3806 = vunpack.c.l.b16 %v1294
    %v3807 = vunpack.c.h.b16 %v1294
    %v3808 = vunpack.c.l.b16 %v1295
    %v3809 = vunpack.c.h.b16 %v1295
    %v3810 = vunpack.c.l.b16 %v1296
    %v3811 = vunpack.c.h.b16 %v1296
    %v3812 = vunpack.c.l.b16 %v1297
    %v3813 = vunpack.c.h.b16 %v1297
    %v3814 = vunpack.c.l.b16 %v1298
    %v3815 = vunpack.c.h.b16 %v1298
    %v3816 = vunpack.c.l.b16 %v1299
    %v3817 = vunpack.c.h.b16 %v1299
    %v3818 = vunpack.c.l.b16 %v1300
    %v3819 = vunpack.c.h.b16 %v1300
    %v3820 = vunpack.c.l.b16 %v1301
    %v3821 = vunpack.c.h.b16 %v1301
    %v3822 = vunpack.c.l.b16 %v1302
    %v3823 = vunpack.c.h.b16 %v1302
    %v3824 = vunpack.c.l.b16 %v1303
    %v3825 = vunpack.c.h.b16 %v1303
    %v3826 = vunpack.c.l.b16 %v1304
    %v3827 = vunpack.c.h.b16 %v1304
    %v3828 = vunpack.c.l.b16 %v1305
    %v3829 = vunpack.c.h.b16 %v1305
    %v3830 = vunpack.c.l.b16 %v1306
    %v3831 = vunpack.c.h.b16 %v1306
    %v3832 = vunpack.c.l.b16 %v1307
    %v3833 = vunpack.c.h.b16 %v1307
    %v3834 = vunpack.c.l.b16 %v1308
    %v3835 = vunpack.c.h.b16 %v1308
    %v3836 = vunpack.c.l.b16 %v1309
    %v3837 = vunpack.c.h.b16 %v1309
    %v3838 = vunpack.c.l.b16 %v1310
    %v3839 = vunpack.c.h.b16 %v1310
    %v3840 = vunpack.c.l.b16 %v1311
    %v3841 = vunpack.c.h.b16 %v1311
    %v3842 = vunpack.c.l.b16 %v1312
    %v3843 = vunpack.c.h.b16 %v1312
    %v3844 = vunpack.c.l.b16 %v1313
    %v3845 = vunpack.c.h.b16 %v1313
    %v3846 = vunpack.c.l.b16 %v1314
    %v3847 = vunpack.c.h.b16 %v1314
    %v3848 = vunpack.c.l.b16 %v1315
    %v3849 = vunpack.c.h.b16 %v1315
    %v3850 = vunpack.c.l.b16 %v1316
    %v3851 = vunpack.c.h.b16 %v1316
    %v3852 = vunpack.c.l.b16 %v1317
    %v3853 = vunpack.c.h.b16 %v1317
    %v3854 = vunpack.c.l.b16 %v1318
    %v3855 = vunpack.c.h.b16 %v1318
    %v3856 = vunpack.c.l.b16 %v1319
    %v3857 = vunpack.c.h.b16 %v1319
    %v3858 = vunpack.c.l.b16 %v1320
    %v3859 = vunpack.c.h.b16 %v1320
    %v3860 = vunpack.c.l.b16 %v1321
    %v3861 = vunpack.c.h.b16 %v1321
    %v3862 = vunpack.c.l.b16 %v1322
    %v3863 = vunpack.c.h.b16 %v1322
    %v3864 = vunpack.c.l.b16 %v1323
    %v3865 = vunpack.c.h.b16 %v1323
    %v3866 = vunpack.c.l.b16 %v1324
    %v3867 = vunpack.c.h.b16 %v1324
    %v3868 = vunpack.c.l.b16 %v1325
    %v3869 = vunpack.c.h.b16 %v1325
    %v3870 = vunpack.c.l.b16 %v1326
    %v3871 = vunpack.c.h.b16 %v1326
    %v3872 = vunpack.c.l.b16 %v1327
    %v3873 = vunpack.c.h.b16 %v1327
    %v3874 = vunpack.c.l.b16 %v1328
    %v3875 = vunpack.c.h.b16 %v1328
    %v3876 = vunpack.c.l.b16 %v1329
    %v3877 = vunpack.c.h.b16 %v1329
    %v3878 = vunpack.c.l.b16 %v1330
    %v3879 = vunpack.c.h.b16 %v1330
    %v3880 = vunpack.c.l.b16 %v1331
    %v3881 = vunpack.c.h.b16 %v1331
    %v3882 = vunpack.c.l.b16 %v1332
    %v3883 = vunpack.c.h.b16 %v1332
    %v3884 = vunpack.c.l.b16 %v1333
    %v3885 = vunpack.c.h.b16 %v1333
    %v3886 = vunpack.c.l.b16 %v1334
    %v3887 = vunpack.c.h.b16 %v1334
    %v3888 = vunpack.c.l.b16 %v1335
    %v3889 = vunpack.c.h.b16 %v1335
    %v3890 = vunpack.c.l.b16 %v1336
    %v3891 = vunpack.c.h.b16 %v1336
    %v3892 = vunpack.c.l.b16 %v1337
    %v3893 = vunpack.c.h.b16 %v1337
    %v3894 = vunpack.c.l.b16 %v1338
    %v3895 = vunpack.c.h.b16 %v1338
    %v3896 = vunpack.c.l.b16 %v1339
    %v3897 = vunpack.c.h.b16 %v1339
    %v3898 = vunpack.c.l.b16 %v1340
    %v3899 = vunpack.c.h.b16 %v1340
    %v3900 = vunpack.c.l.b16 %v1341
    %v3901 = vunpack.c.h.b16 %v1341
    %v3902 = vunpack.c.l.b16 %v1342
    %v3903 = vunpack.c.h.b16 %v1342
    %v3904 = vunpack.c.l.b16 %v1343
    %v3905 = vunpack.c.h.b16 %v1343
    %v3906 = vunpack.c.l.b16 %v1344
    %v3907 = vunpack.c.h.b16 %v1344
    %v3908 = vunpack.c.l.b16 %v1345
    %v3909 = vunpack.c.h.b16 %v1345
    %v3910 = vunpack.c.l.b16 %v1346
    %v3911 = vunpack.c.h.b16 %v1346
    %v3912 = vunpack.c.l.b16 %v1347
    %v3913 = vunpack.c.h.b16 %v1347
    %v3914 = vunpack.c.l.b16 %v1348
    %v3915 = vunpack.c.h.b16 %v1348
    %v3916 = vunpack.c.l.b16 %v1349
    %v3917 = vunpack.c.h.b16 %v1349
    %v3918 = vunpack.c.l.b16 %v1350
    %v3919 = vunpack.c.h.b16 %v1350
    %v3920 = vunpack.c.l.b16 %v1351
    %v3921 = vunpack.c.h.b16 %v1351
    %v3922 = vunpack.c.l.b16 %v1352
    %v3923 = vunpack.c.h.b16 %v1352
    %v3924 = vunpack.c.l.b16 %v1353
    %v3925 = vunpack.c.h.b16 %v1353
    %v3926 = vunpack.c.l.b16 %v1354
    %v3927 = vunpack.c.h.b16 %v1354
    %v3928 = vunpack.c.l.b16 %v1355
    %v3929 = vunpack.c.h.b16 %v1355
    %v3930 = vunpack.c.l.b16 %v1356
    %v3931 = vunpack.c.h.b16 %v1356
    %v3932 = vunpack.c.l.b16 %v1357
    %v3933 = vunpack.c.h.b16 %v1357
    %v3934 = vunpack.c.l.b16 %v1358
    %v3935 = vunpack.c.h.b16 %v1358
    %v3936 = vunpack.c.l.b16 %v1359
    %v3937 = vunpack.c.h.b16 %v1359
    %v3938 = vunpack.c.l.b16 %v1360
    %v3939 = vunpack.c.h.b16 %v1360
    %v3940 = vunpack.c.l.b16 %v1361
    %v3941 = vunpack.c.h.b16 %v1361
    %v3942 = vunpack.c.l.b16 %v1362
    %v3943 = vunpack.c.h.b16 %v1362
    %v3944 = vunpack.c.l.b16 %v1363
    %v3945 = vunpack.c.h.b16 %v1363
    %v3946 = vunpack.c.l.b16 %v1364
    %v3947 = vunpack.c.h.b16 %v1364
    %v3948 = vunpack.c.l.b16 %v1365
    %v3949 = vunpack.c.h.b16 %v1365
    %v3950 = vunpack.c.l.b16 %v1366
    %v3951 = vunpack.c.h.b16 %v1366
    %v3952 = vunpack.c.l.b16 %v1367
    %v3953 = vunpack.c.h.b16 %v1367
    %v3954 = vunpack.c.l.b16 %v1368
    %v3955 = vunpack.c.h.b16 %v1368
    %v3956 = vunpack.c.l.b16 %v1369
    %v3957 = vunpack.c.h.b16 %v1369
    %v3958 = vunpack.c.l.b16 %v1370
    %v3959 = vunpack.c.h.b16 %v1370
    %v3960 = vunpack.c.l.b16 %v1371
    %v3961 = vunpack.c.h.b16 %v1371
    %v3962 = vunpack.c.l.b16 %v1372
    %v3963 = vunpack.c.h.b16 %v1372
    %v3964 = vunpack.c.l.b16 %v1373
    %v3965 = vunpack.c.h.b16 %v1373
    %v3966 = vunpack.c.l.b16 %v1374
    %v3967 = vunpack.c.h.b16 %v1374
    %v3968 = vunpack.c.l.b16 %v1375
    %v3969 = vunpack.c.h.b16 %v1375
    %v3970 = vunpack.c.l.b16 %v1376
    %v3971 = vunpack.c.h.b16 %v1376
    %v3972 = vunpack.c.l.b16 %v1377
    %v3973 = vunpack.c.h.b16 %v1377
    %v3974 = vunpack.c.l.b16 %v1378
    %v3975 = vunpack.c.h.b16 %v1378
    %v3976 = vunpack.c.l.b16 %v1379
    %v3977 = vunpack.c.h.b16 %v1379
    %v3978 = vunpack.c.l.b16 %v1380
    %v3979 = vunpack.c.h.b16 %v1380
    %v3980 = vunpack.c.l.b16 %v1381
    %v3981 = vunpack.c.h.b16 %v1381
    %v3982 = vunpack.c.l.b16 %v1382
    %v3983 = vunpack.c.h.b16 %v1382
    %v3984 = vunpack.c.l.b16 %v1383
    %v3985 = vunpack.c.h.b16 %v1383
    %v3986 = vunpack.c.l.b16 %v1384
    %v3987 = vunpack.c.h.b16 %v1384
    %v3988 = vunpack.c.l.b16 %v1385
    %v3989 = vunpack.c.h.b16 %v1385
    %v3990 = vunpack.c.l.b16 %v1386
    %v3991 = vunpack.c.h.b16 %v1386
    %v3992 = vunpack.c.l.b16 %v1387
    %v3993 = vunpack.c.h.b16 %v1387
    %v3994 = vunpack.c.l.b16 %v1388
    %v3995 = vunpack.c.h.b16 %v1388
    %v3996 = vunpack.c.l.b16 %v1389
    %v3997 = vunpack.c.h.b16 %v1389
    %v3998 = vunpack.c.l.b16 %v1390
    %v3999 = vunpack.c.h.b16 %v1390
    %v4000 = vunpack.c.l.b16 %v1391
    %v4001 = vunpack.c.h.b16 %v1391
    %v4002 = vunpack.c.l.b16 %v1392
    %v4003 = vunpack.c.h.b16 %v1392
    %v4004 = vunpack.c.l.b16 %v1393
    %v4005 = vunpack.c.h.b16 %v1393
    %v4006 = vunpack.c.l.b16 %v1394
    %v4007 = vunpack.c.h.b16 %v1394
    %v4008 = vunpack.c.l.b16 %v1395
    %v4009 = vunpack.c.h.b16 %v1395
    %v4010 = vunpack.c.l.b16 %v1396
    %v4011 = vunpack.c.h.b16 %v1396
    %v4012 = vunpack.c.l.b16 %v1397
    %v4013 = vunpack.c.h.b16 %v1397
    %v4014 = vunpack.c.l.b16 %v1398
    %v4015 = vunpack.c.h.b16 %v1398
    %v4016 = vunpack.c.l.b16 %v1399
    %v4017 = vunpack.c.h.b16 %v1399
    %v4018 = vunpack.c.l.b16 %v1400
    %v4019 = vunpack.c.h.b16 %v1400
    %v4020 = vunpack.c.l.b16 %v1401
    %v4021 = vunpack.c.h.b16 %v1401
    %v4022 = vunpack.c.l.b16 %v1402
    %v4023 = vunpack.c.h.b16 %v1402
    %v4024 = vunpack.c.l.b16 %v1403
    %v4025 = vunpack.c.h.b16 %v1403
    %v4026 = vunpack.c.l.b16 %v1404
    %v4027 = vunpack.c.h.b16 %v1404
    %v4028 = vunpack.c.l.b16 %v1405
    %v4029 = vunpack.c.h.b16 %v1405
    %v4030 = vunpack.c.l.b16 %v1406
    %v4031 = vunpack.c.h.b16 %v1406
    %v4032 = vunpack.c.l.b16 %v1407
    %v4033 = vunpack.c.h.b16 %v1407
    %v4034 = vunpack.c.l.b16 %v1408
    %v4035 = vunpack.c.h.b16 %v1408
    %v4036 = vunpack.c.l.b16 %v1409
    %v4037 = vunpack.c.h.b16 %v1409
    %v4038 = vunpack.c.l.b16 %v1410
    %v4039 = vunpack.c.h.b16 %v1410
    %v4040 = vunpack.c.l.b16 %v1411
    %v4041 = vunpack.c.h.b16 %v1411
    %v4042 = vunpack.c.l.b16 %v1412
    %v4043 = vunpack.c.h.b16 %v1412
    %v4044 = vunpack.c.l.b16 %v1413
    %v4045 = vunpack.c.h.b16 %v1413
    %v4046 = vunpack.c.l.b16 %v1414
    %v4047 = vunpack.c.h.b16 %v1414
    %v4048 = vunpack.c.l.b16 %v1415
    %v4049 = vunpack.c.h.b16 %v1415
    %v4050 = vunpack.c.l.b16 %v1416
    %v4051 = vunpack.c.h.b16 %v1416
    %v4052 = vunpack.c.l.b16 %v1417
    %v4053 = vunpack.c.h.b16 %v1417
    %v4054 = vunpack.c.l.b16 %v1418
    %v4055 = vunpack.c.h.b16 %v1418
    %v4056 = vunpack.c.l.b16 %v1419
    %v4057 = vunpack.c.h.b16 %v1419
    %v4058 = vunpack.c.l.b16 %v1420
    %v4059 = vunpack.c.h.b16 %v1420
    %v4060 = vunpack.c.l.b16 %v1421
    %v4061 = vunpack.c.h.b16 %v1421
    %v4062 = vunpack.c.l.b16 %v1422
    %v4063 = vunpack.c.h.b16 %v1422
    %v4064 = vunpack.c.l.b16 %v1423
    %v4065 = vunpack.c.h.b16 %v1423
    %v4066 = vunpack.c.l.b16 %v1424
    %v4067 = vunpack.c.h.b16 %v1424
    %v4068 = vunpack.c.l.b16 %v1425
    %v4069 = vunpack.c.h.b16 %v1425
    %v4070 = vunpack.c.l.b16 %v1426
    %v4071 = vunpack.c.h.b16 %v1426
    %v4072 = vunpack.c.l.b16 %v1427
    %v4073 = vunpack.c.h.b16 %v1427
    %v4074 = vunpack.c.l.b16 %v1428
    %v4075 = vunpack.c.h.b16 %v1428
    %v4076 = vunpack.c.l.b16 %v1429
    %v4077 = vunpack.c.h.b16 %v1429
    %v4078 = vunpack.c.l.b16 %v1430
    %v4079 = vunpack.c.h.b16 %v1430
    %v4080 = vunpack.c.l.b16 %v1431
    %v4081 = vunpack.c.h.b16 %v1431
    %v4082 = vunpack.c.l.b16 %v1432
    %v4083 = vunpack.c.h.b16 %v1432
    %v4084 = vunpack.c.l.b16 %v1433
    %v4085 = vunpack.c.h.b16 %v1433
    %v4086 = vunpack.c.l.b16 %v1434
    %v4087 = vunpack.c.h.b16 %v1434
    %v4088 = vunpack.c.l.b16 %v1435
    %v4089 = vunpack.c.h.b16 %v1435
    %v4090 = vunpack.c.l.b16 %v1436
    %v4091 = vunpack.c.h.b16 %v1436
    %v4092 = vunpack.c.l.b16 %v1437
    %v4093 = vunpack.c.h.b16 %v1437
    %v4094 = vunpack.c.l.b16 %v1438
    %v4095 = vunpack.c.h.b16 %v1438
    %v4096 = vunpack.c.l.b16 %v1439
    %v4097 = vunpack.c.h.b16 %v1439
    %v4098 = vunpack.c.l.b16 %v1440
    %v4099 = vunpack.c.h.b16 %v1440
    %v4100 = vunpack.c.l.b16 %v1441
    %v4101 = vunpack.c.h.b16 %v1441
    %v4102 = vunpack.c.l.b16 %v1442
    %v4103 = vunpack.c.h.b16 %v1442
    %v4104 = vunpack.c.l.b16 %v1443
    %v4105 = vunpack.c.h.b16 %v1443
    %v4106 = vunpack.c.l.b16 %v1444
    %v4107 = vunpack.c.h.b16 %v1444
    %v4108 = vunpack.c.l.b16 %v1445
    %v4109 = vunpack.c.h.b16 %v1445
    %v4110 = vunpack.c.l.b16 %v1446
    %v4111 = vunpack.c.h.b16 %v1446
    %v4112 = vunpack.c.l.b16 %v1447
    %v4113 = vunpack.c.h.b16 %v1447
    %v4114 = vunpack.c.l.b16 %v1448
    %v4115 = vunpack.c.h.b16 %v1448
    %v4116 = vunpack.c.l.b16 %v1449
    %v4117 = vunpack.c.h.b16 %v1449
    %v4118 = vunpack.c.l.b16 %v1450
    %v4119 = vunpack.c.h.b16 %v1450
    %v4120 = vunpack.c.l.b16 %v1451
    %v4121 = vunpack.c.h.b16 %v1451
    %v4122 = vunpack.c.l.b16 %v1452
    %v4123 = vunpack.c.h.b16 %v1452
    %v4124 = vunpack.c.l.b16 %v1453
    %v4125 = vunpack.c.h.b16 %v1453
    %v4126 = vunpack.c.l.b16 %v1454
    %v4127 = vunpack.c.h.b16 %v1454
    %v4128 = vunpack.c.l.b16 %v1455
    %v4129 = vunpack.c.h.b16 %v1455
    %v4130 = vunpack.c.l.b16 %v1456
    %v4131 = vunpack.c.h.b16 %v1456
    %v4132 = vunpack.c.l.b16 %v1457
    %v4133 = vunpack.c.h.b16 %v1457
    %v4134 = vunpack.c.l.b16 %v1458
    %v4135 = vunpack.c.h.b16 %v1458
    %v4136 = vunpack.c.l.b16 %v1459
    %v4137 = vunpack.c.h.b16 %v1459
    %v4138 = vunpack.c.l.b16 %v1460
    %v4139 = vunpack.c.h.b16 %v1460
    %v4140 = vunpack.c.l.b16 %v1461
    %v4141 = vunpack.c.h.b16 %v1461
    %v4142 = vunpack.c.l.b16 %v1462
    %v4143 = vunpack.c.h.b16 %v1462
    %v4144 = vunpack.c.l.b16 %v1463
    %v4145 = vunpack.c.h.b16 %v1463
    %v4146 = vunpack.c.l.b16 %v1464
    %v4147 = vunpack.c.h.b16 %v1464
    %v4148 = vunpack.c.l.b16 %v1465
    %v4149 = vunpack.c.h.b16 %v1465
    %v4150 = vunpack.c.l.b16 %v1466
    %v4151 = vunpack.c.h.b16 %v1466
    %v4152 = vunpack.c.l.b16 %v1467
    %v4153 = vunpack.c.h.b16 %v1467
    %v4154 = vunpack.c.l.b16 %v1468
    %v4155 = vunpack.c.h.b16 %v1468
    %v4156 = vunpack.c.l.b16 %v1469
    %v4157 = vunpack.c.h.b16 %v1469
    %v4158 = vunpack.c.l.b16 %v1470
    %v4159 = vunpack.c.h.b16 %v1470
    %v4160 = vunpack.c.l.b16 %v1471
    %v4161 = vunpack.c.h.b16 %v1471
    %v4162 = vunpack.c.l.b16 %v1472
    %v4163 = vunpack.c.h.b16 %v1472
    %v4164 = vunpack.c.l.b16 %v1473
    %v4165 = vunpack.c.h.b16 %v1473
    %v4166 = vunpack.c.l.b16 %v1474
    %v4167 = vunpack.c.h.b16 %v1474
    %v4168 = vunpack.c.l.b16 %v1475
    %v4169 = vunpack.c.h.b16 %v1475
    %v4170 = vunpack.c.l.b16 %v1476
    %v4171 = vunpack.c.h.b16 %v1476
    %v4172 = vunpack.c.l.b16 %v1477
    %v4173 = vunpack.c.h.b16 %v1477
    %v4174 = vunpack.c.l.b16 %v1478
    %v4175 = vunpack.c.h.b16 %v1478
    %v4176 = vunpack.c.l.b16 %v1479
    %v4177 = vunpack.c.h.b16 %v1479
    %v4178 = vunpack.c.l.b16 %v1480
    %v4179 = vunpack.c.h.b16 %v1480
    %v4180 = vunpack.c.l.b16 %v1481
    %v4181 = vunpack.c.h.b16 %v1481
    %v4182 = vunpack.c.l.b16 %v1482
    %v4183 = vunpack.c.h.b16 %v1482
    %v4184 = vunpack.c.l.b16 %v1483
    %v4185 = vunpack.c.h.b16 %v1483
    %v4186 = vunpack.c.l.b16 %v1484
    %v4187 = vunpack.c.h.b16 %v1484
    %v4188 = vunpack.c.l.b16 %v1485
    %v4189 = vunpack.c.h.b16 %v1485
    %v4190 = vunpack.c.l.b16 %v1486
    %v4191 = vunpack.c.h.b16 %v1486
    %v4192 = vunpack.c.l.b16 %v1487
    %v4193 = vunpack.c.h.b16 %v1487
    %v4194 = vunpack.c.l.b16 %v1488
    %v4195 = vunpack.c.h.b16 %v1488
    %v4196 = vunpack.c.l.b16 %v1489
    %v4197 = vunpack.c.h.b16 %v1489
    %v4198 = vunpack.c.l.b16 %v1490
    %v4199 = vunpack.c.h.b16 %v1490
    %v4200 = vunpack.c.l.b16 %v1491
    %v4201 = vunpack.c.h.b16 %v1491
    %v4202 = vunpack.c.l.b16 %v1492
    %v4203 = vunpack.c.h.b16 %v1492
    %v4204 = vunpack.c.l.b16 %v1493
    %v4205 = vunpack.c.h.b16 %v1493
    %v4206 = vunpack.c.l.b16 %v1494
    %v4207 = vunpack.c.h.b16 %v1494
    %v4208 = vunpack.c.l.b16 %v1495
    %v4209 = vunpack.c.h.b16 %v1495
    %v4210 = vunpack.c.l.b16 %v1496
    %v4211 = vunpack.c.h.b16 %v1496
    %v4212 = vunpack.c.l.b16 %v1497
    %v4213 = vunpack.c.h.b16 %v1497
    %v4214 = vunpack.c.l.b16 %v1498
    %v4215 = vunpack.c.h.b16 %v1498
    %v4216 = vunpack.c.l.b16 %v1499
    %v4217 = vunpack.c.h.b16 %v1499
    %v4218 = vunpack.c.l.b16 %v1500
    %v4219 = vunpack.c.h.b16 %v1500
    %v4220 = vunpack.c.l.b16 %v1501
    %v4221 = vunpack.c.h.b16 %v1501
    %v4222 = vunpack.c.l.b16 %v1502
    %v4223 = vunpack.c.h.b16 %v1502
    %v4224 = vunpack.c.l.b16 %v1503
    %v4225 = vunpack.c.h.b16 %v1503
    %v4226 = vunpack.c.l.b16 %v1504
    %v4227 = vunpack.c.h.b16 %v1504
    %v4228 = vunpack.c.l.b16 %v1505
    %v4229 = vunpack.c.h.b16 %v1505
    %v4230 = vunpack.c.l.b16 %v1506
    %v4231 = vunpack.c.h.b16 %v1506
    %v4232 = vunpack.c.l.b16 %v1507
    %v4233 = vunpack.c.h.b16 %v1507
    %v4234 = vunpack.c.l.b16 %v1508
    %v4235 = vunpack.c.h.b16 %v1508
    %v4236 = vunpack.c.l.b16 %v1509
    %v4237 = vunpack.c.h.b16 %v1509
    %v4238 = vunpack.c.l.b16 %v1510
    %v4239 = vunpack.c.h.b16 %v1510
    %v4240 = vunpack.c.l.b16 %v1511
    %v4241 = vunpack.c.h.b16 %v1511
    %v4242 = vunpack.c.l.b16 %v1512
    %v4243 = vunpack.c.h.b16 %v1512
    %v4244 = vunpack.c.l.b16 %v1513
    %v4245 = vunpack.c.h.b16 %v1513
    %v4246 = vunpack.c.l.b16 %v1514
    %v4247 = vunpack.c.h.b16 %v1514
    %v4248 = vunpack.c.l.b16 %v1515
    %v4249 = vunpack.c.h.b16 %v1515
    %v4250 = vunpack.c.l.b16 %v1516
    %v4251 = vunpack.c.h.b16 %v1516
    %v4252 = vunpack.c.l.b16 %v1517
    %v4253 = vunpack.c.h.b16 %v1517
    %v4254 = vunpack.c.l.b16 %v1518
    %v4255 = vunpack.c.h.b16 %v1518
    %v4256 = vunpack.c.l.b16 %v1519
    %v4257 = vunpack.c.h.b16 %v1519
    %v4258 = vunpack.c.l.b16 %v1520
    %v4259 = vunpack.c.h.b16 %v1520
    %v4260 = vunpack.c.l.b16 %v1521
    %v4261 = vunpack.c.h.b16 %v1521
    %v4262 = vunpack.c.l.b16 %v1522
    %v4263 = vunpack.c.h.b16 %v1522
    %v4264 = vunpack.c.l.b16 %v1523
    %v4265 = vunpack.c.h.b16 %v1523
    %v4266 = vunpack.c.l.b16 %v1524
    %v4267 = vunpack.c.h.b16 %v1524
    %v4268 = vunpack.c.l.b16 %v1525
    %v4269 = vunpack.c.h.b16 %v1525
    %v4270 = vunpack.c.l.b16 %v1526
    %v4271 = vunpack.c.h.b16 %v1526
    %v4272 = vunpack.c.l.b16 %v1527
    %v4273 = vunpack.c.h.b16 %v1527
    %v4274 = vunpack.c.l.b16 %v1528
    %v4275 = vunpack.c.h.b16 %v1528
    %v4276 = vunpack.c.l.b16 %v1529
    %v4277 = vunpack.c.h.b16 %v1529
    %v4278 = vunpack.c.l.b16 %v1530
    %v4279 = vunpack.c.h.b16 %v1530
    %v4280 = vunpack.c.l.b16 %v1531
    %v4281 = vunpack.c.h.b16 %v1531
    %v4282 = vunpack.c.l.b16 %v1532
    %v4283 = vunpack.c.h.b16 %v1532
    %v4284 = vunpack.c.l.b16 %v1533
    %v4285 = vunpack.c.h.b16 %v1533
    %v4286 = vunpack.c.l.b16 %v1534
    %v4287 = vunpack.c.h.b16 %v1534
    %v4288 = vunpack.c.l.b16 %v1535
    %v4289 = vunpack.c.h.b16 %v1535
    %v4290 = vunpack.c.l.b16 %v1536
    %v4291 = vunpack.c.h.b16 %v1536
    %v4292 = vunpack.c.l.b16 %v1537
    %v4293 = vunpack.c.h.b16 %v1537
    %v4294 = vunpack.c.l.b16 %v1538
    %v4295 = vunpack.c.h.b16 %v1538
    %v4296 = vunpack.c.l.b16 %v1539
    %v4297 = vunpack.c.h.b16 %v1539
    %v4298 = vunpack.c.l.b16 %v1540
    %v4299 = vunpack.c.h.b16 %v1540
    %v4300 = vunpack.c.l.b16 %v1541
    %v4301 = vunpack.c.h.b16 %v1541
    %v4302 = vunpack.c.l.b16 %v1542
    %v4303 = vunpack.c.h.b16 %v1542
    %v4304 = vunpack.c.l.b16 %v1543
    %v4305 = vunpack.c.h.b16 %v1543
    %v4306 = vunpack.c.l.b16 %v1544
    %v4307 = vunpack.c.h.b16 %v1544
    %v4308 = vunpack.c.l.b16 %v1545
    %v4309 = vunpack.c.h.b16 %v1545
    %v4310 = vunpack.c.l.b16 %v1546
    %v4311 = vunpack.c.h.b16 %v1546
    %v4312 = vunpack.c.l.b16 %v1547
    %v4313 = vunpack.c.h.b16 %v1547
    %v4314 = vunpack.c.l.b16 %v1548
    %v4315 = vunpack.c.h.b16 %v1548
    %v4316 = vunpack.c.l.b16 %v1549
    %v4317 = vunpack.c.h.b16 %v1549
    %v4318 = vunpack.c.l.b16 %v1550
    %v4319 = vunpack.c.h.b16 %v1550
    %v4320 = vunpack.c.l.b16 %v1551
    %v4321 = vunpack.c.h.b16 %v1551
    %v4322 = vunpack.c.l.b16 %v1552
    %v4323 = vunpack.c.h.b16 %v1552
    %v4324 = vunpack.c.l.b16 %v1553
    %v4325 = vunpack.c.h.b16 %v1553
    %v4326 = vunpack.c.l.b16 %v1554
    %v4327 = vunpack.c.h.b16 %v1554
    %v4328 = vunpack.c.l.b16 %v1555
    %v4329 = vunpack.c.h.b16 %v1555
    %v4330 = vunpack.c.l.b16 %v1556
    %v4331 = vunpack.c.h.b16 %v1556
    %v4332 = vunpack.c.l.b16 %v1557
    %v4333 = vunpack.c.h.b16 %v1557
    %v4334 = vunpack.c.l.b16 %v1558
    %v4335 = vunpack.c.h.b16 %v1558
    %v4336 = vunpack.c.l.b16 %v1559
    %v4337 = vunpack.c.h.b16 %v1559
    %v4338 = vunpack.c.l.b16 %v1560
    %v4339 = vunpack.c.h.b16 %v1560
    %v4340 = vunpack.c.l.b16 %v1561
    %v4341 = vunpack.c.h.b16 %v1561
    %v4342 = vunpack.c.l.b16 %v1562
    %v4343 = vunpack.c.h.b16 %v1562
    %v4344 = vunpack.c.l.b16 %v1563
    %v4345 = vunpack.c.h.b16 %v1563
    %v4346 = vunpack.c.l.b16 %v1564
    %v4347 = vunpack.c.h.b16 %v1564
    %v4348 = vunpack.c.l.b16 %v1565
    %v4349 = vunpack.c.h.b16 %v1565
    %v4350 = vunpack.c.l.b16 %v1566
    %v4351 = vunpack.c.h.b16 %v1566
    %v4352 = vunpack.c.l.b16 %v1567
    %v4353 = vunpack.c.h.b16 %v1567
    %v4354 = vunpack.c.l.b16 %v1568
    %v4355 = vunpack.c.h.b16 %v1568
    %v4356 = vunpack.c.l.b16 %v1569
    %v4357 = vunpack.c.h.b16 %v1569
    %v4358 = vunpack.c.l.b16 %v1570
    %v4359 = vunpack.c.h.b16 %v1570
    %v4360 = vunpack.c.l.b16 %v1571
    %v4361 = vunpack.c.h.b16 %v1571
    %v4362 = vunpack.c.l.b16 %v1572
    %v4363 = vunpack.c.h.b16 %v1572
    %v4364 = vunpack.c.l.b16 %v1573
    %v4365 = vunpack.c.h.b16 %v1573
    %v4366 = vunpack.c.l.b16 %v1574
    %v4367 = vunpack.c.h.b16 %v1574
    %v4368 = vunpack.c.l.b16 %v1575
    %v4369 = vunpack.c.h.b16 %v1575
    %v4370 = vunpack.c.l.b16 %v1576
    %v4371 = vunpack.c.h.b16 %v1576
    %v4372 = vunpack.c.l.b16 %v1577
    %v4373 = vunpack.c.h.b16 %v1577
    %v4374 = vunpack.c.l.b16 %v1578
    %v4375 = vunpack.c.h.b16 %v1578
    %v4376 = vunpack.c.l.b16 %v1579
    %v4377 = vunpack.c.h.b16 %v1579
    %v4378 = vunpack.c.l.b16 %v1580
    %v4379 = vunpack.c.h.b16 %v1580
    %v4380 = vunpack.c.l.b16 %v1581
    %v4381 = vunpack.c.h.b16 %v1581
    %v4382 = vunpack.c.l.b16 %v1582
    %v4383 = vunpack.c.h.b16 %v1582
    %v4384 = vunpack.c.l.b16 %v1583
    %v4385 = vunpack.c.h.b16 %v1583
    %v4386 = vunpack.c.l.b16 %v1584
    %v4387 = vunpack.c.h.b16 %v1584
    %v4388 = vunpack.c.l.b16 %v1585
    %v4389 = vunpack.c.h.b16 %v1585
    %v4390 = vunpack.c.l.b16 %v1586
    %v4391 = vunpack.c.h.b16 %v1586
    %v4392 = vunpack.c.l.b16 %v1587
    %v4393 = vunpack.c.h.b16 %v1587
    %v4394 = vunpack.c.l.b16 %v1588
    %v4395 = vunpack.c.h.b16 %v1588
    %v4396 = vunpack.c.l.b16 %v1589
    %v4397 = vunpack.c.h.b16 %v1589
    %v4398 = vunpack.c.l.b16 %v1590
    %v4399 = vunpack.c.h.b16 %v1590
    %v4400 = vunpack.c.l.b16 %v1591
    %v4401 = vunpack.c.h.b16 %v1591
    %v4402 = vunpack.c.l.b16 %v1592
    %v4403 = vunpack.c.h.b16 %v1592
    %v4404 = vunpack.c.l.b16 %v1593
    %v4405 = vunpack.c.h.b16 %v1593
    %v4406 = vunpack.c.l.b16 %v1594
    %v4407 = vunpack.c.h.b16 %v1594
    %v4408 = vunpack.c.l.b16 %v1595
    %v4409 = vunpack.c.h.b16 %v1595
    %v4410 = vunpack.c.l.b16 %v1596
    %v4411 = vunpack.c.h.b16 %v1596
    %v4412 = vunpack.c.l.b16 %v1597
    %v4413 = vunpack.c.h.b16 %v1597
    %v4414 = vunpack.c.l.b16 %v1598
    %v4415 = vunpack.c.h.b16 %v1598
    %v4416 = vunpack.c.l.b16 %v1599
    %v4417 = vunpack.c.h.b16 %v1599
    %v4418 = vunpack.c.l.b16 %v1600
    %v4419 = vunpack.c.h.b16 %v1600
    %v4420 = vunpack.c.l.b16 %v1601
    %v4421 = vunpack.c.h.b16 %v1601
    %v4422 = vunpack.c.l.b16 %v1602
    %v4423 = vunpack.c.h.b16 %v1602
    %v4424 = vunpack.c.l.b16 %v1603
    %v4425 = vunpack.c.h.b16 %v1603
    %v4426 = vunpack.c.l.b16 %v1604
    %v4427 = vunpack.c.h.b16 %v1604
    %v4428 = vunpack.c.l.b16 %v1605
    %v4429 = vunpack.c.h.b16 %v1605
    %v4430 = vunpack.c.l.b16 %v1606
    %v4431 = vunpack.c.h.b16 %v1606
    %v4432 = vunpack.c.l.b16 %v1607
    %v4433 = vunpack.c.h.b16 %v1607
    %v4434 = vunpack.c.l.b16 %v1608
    %v4435 = vunpack.c.h.b16 %v1608
    %v4436 = vunpack.c.l.b16 %v1609
    %v4437 = vunpack.c.h.b16 %v1609
    %v4438 = vunpack.c.l.b16 %v1610
    %v4439 = vunpack.c.h.b16 %v1610
    %v4440 = vunpack.c.l.b16 %v1611
    %v4441 = vunpack.c.h.b16 %v1611
    %v4442 = vunpack.c.l.b16 %v1612
    %v4443 = vunpack.c.h.b16 %v1612
    %v4444 = vunpack.c.l.b16 %v1613
    %v4445 = vunpack.c.h.b16 %v1613
    %v4446 = vunpack.c.l.b16 %v1614
    %v4447 = vunpack.c.h.b16 %v1614
    %v4448 = vunpack.c.l.b16 %v1615
    %v4449 = vunpack.c.h.b16 %v1615
    %v4450 = vunpack.c.l.b16 %v1616
    %v4451 = vunpack.c.h.b16 %v1616
    %v4452 = vunpack.c.l.b16 %v1617
    %v4453 = vunpack.c.h.b16 %v1617
    %v4454 = vunpack.c.l.b16 %v1618
    %v4455 = vunpack.c.h.b16 %v1618
    %v4456 = vunpack.c.l.b16 %v1619
    %v4457 = vunpack.c.h.b16 %v1619
    %v4458 = vunpack.c.l.b16 %v1620
    %v4459 = vunpack.c.h.b16 %v1620
    %v4460 = vunpack.c.l.b16 %v1621
    %v4461 = vunpack.c.h.b16 %v1621
    %v4462 = vunpack.c.l.b16 %v1622
    %v4463 = vunpack.c.h.b16 %v1622
    %v4464 = vunpack.c.l.b16 %v1623
    %v4465 = vunpack.c.h.b16 %v1623
    %v4466 = vunpack.c.l.b16 %v1624
    %v4467 = vunpack.c.h.b16 %v1624
    %v4468 = vunpack.c.l.b16 %v1625
    %v4469 = vunpack.c.h.b16 %v1625
    %v4470 = vunpack.c.l.b16 %v1626
    %v4471 = vunpack.c.h.b16 %v1626
    %v4472 = vunpack.c.l.b16 %v1627
    %v4473 = vunpack.c.h.b16 %v1627
    %v4474 = vunpack.c.l.b16 %v1628
    %v4475 = vunpack.c.h.b16 %v1628
    %v4476 = vunpack.c.l.b16 %v1629
    %v4477 = vunpack.c.h.b16 %v1629
    %v4478 = vunpack.c.l.b16 %v1630
    %v4479 = vunpack.c.h.b16 %v1630
    %v4480 = vunpack.c.l.b16 %v1631
    %v4481 = vunpack.c.h.b16 %v1631
    %v4482 = vunpack.c.l.b16 %v1632
    %v4483 = vunpack.c.h.b16 %v1632
    %v4484 = vunpack.c.l.b16 %v1633
    %v4485 = vunpack.c.h.b16 %v1633
    %v4486 = vunpack.c.l.b16 %v1634
    %v4487 = vunpack.c.h.b16 %v1634
    %v4488 = vunpack.c.l.b16 %v1635
    %v4489 = vunpack.c.h.b16 %v1635
    %v4490 = vunpack.c.l.b16 %v1636
    %v4491 = vunpack.c.h.b16 %v1636
    %v4492 = vunpack.c.l.b16 %v1637
    %v4493 = vunpack.c.h.b16 %v1637
    %v4494 = vunpack.c.l.b16 %v1638
    %v4495 = vunpack.c.h.b16 %v1638
    %v4496 = vunpack.c.l.b16 %v1639
    %v4497 = vunpack.c.h.b16 %v1639
    %v4498 = vunpack.c.l.b16 %v1640
    %v4499 = vunpack.c.h.b16 %v1640
    %v4500 = vunpack.c.l.b16 %v1641
    %v4501 = vunpack.c.h.b16 %v1641
    %v4502 = vunpack.c.l.b16 %v1642
    %v4503 = vunpack.c.h.b16 %v1642
    %v4504 = vunpack.c.l.b16 %v1643
    %v4505 = vunpack.c.h.b16 %v1643
    %v4506 = vunpack.c.l.b16 %v1644
    %v4507 = vunpack.c.h.b16 %v1644
    %v4508 = vunpack.c.l.b16 %v1645
    %v4509 = vunpack.c.h.b16 %v1645
    %v4510 = vunpack.c.l.b16 %v1646
    %v4511 = vunpack.c.h.b16 %v1646
    %v4512 = vunpack.c.l.b16 %v1647
    %v4513 = vunpack.c.h.b16 %v1647
    %v4514 = vunpack.c.l.b16 %v1648
    %v4515 = vunpack.c.h.b16 %v1648
    %v4516 = vunpack.c.l.b16 %v1649
    %v4517 = vunpack.c.h.b16 %v1649
    %v4518 = vunpack.c.l.b16 %v1650
    %v4519 = vunpack.c.h.b16 %v1650
    %v4520 = vunpack.c.l.b16 %v1651
    %v4521 = vunpack.c.h.b16 %v1651
    %v4522 = vunpack.c.l.b16 %v1652
    %v4523 = vunpack.c.h.b16 %v1652
    %v4524 = vunpack.c.l.b16 %v1653
    %v4525 = vunpack.c.h.b16 %v1653
    %v4526 = vunpack.c.l.b16 %v1654
    %v4527 = vunpack.c.h.b16 %v1654
    %v4528 = vunpack.c.l.b16 %v1655
    %v4529 = vunpack.c.h.b16 %v1655
    %v4530 = vunpack.c.l.b16 %v1656
    %v4531 = vunpack.c.h.b16 %v1656
    %v4532 = vunpack.c.l.b16 %v1657
    %v4533 = vunpack.c.h.b16 %v1657
    %v4534 = vunpack.c.l.b16 %v1658
    %v4535 = vunpack.c.h.b16 %v1658
    %v4536 = vunpack.c.l.b16 %v1659
    %v4537 = vunpack.c.h.b16 %v1659
    %v4538 = vunpack.c.l.b16 %v1660
    %v4539 = vunpack.c.h.b16 %v1660
    %v4540 = vunpack.c.l.b16 %v1661
    %v4541 = vunpack.c.h.b16 %v1661
    %v4542 = vunpack.c.l.b16 %v1662
    %v4543 = vunpack.c.h.b16 %v1662
    %v4544 = vunpack.c.l.b16 %v1663
    %v4545 = vunpack.c.h.b16 %v1663
    %v4546 = vunpack.c.l.b16 %v1664
    %v4547 = vunpack.c.h.b16 %v1664
    %v4548 = vunpack.c.l.b16 %v1665
    %v4549 = vunpack.c.h.b16 %v1665
    %v4550 = vunpack.c.l.b16 %v1666
    %v4551 = vunpack.c.h.b16 %v1666
    %v4552 = vunpack.c.l.b16 %v1667
    %v4553 = vunpack.c.h.b16 %v1667
    %v4554 = vunpack.c.l.b16 %v1668
    %v4555 = vunpack.c.h.b16 %v1668
    %v4556 = vunpack.c.l.b16 %v1669
    %v4557 = vunpack.c.h.b16 %v1669
    %v4558 = vunpack.c.l.b16 %v1670
    %v4559 = vunpack.c.h.b16 %v1670
    %v4560 = vunpack.c.l.b16 %v1671
    %v4561 = vunpack.c.h.b16 %v1671
    %v4562 = vunpack.c.l.b16 %v1672
    %v4563 = vunpack.c.h.b16 %v1672
    %v4564 = vunpack.c.l.b16 %v1673
    %v4565 = vunpack.c.h.b16 %v1673
    %v4566 = vunpack.c.l.b16 %v1674
    %v4567 = vunpack.c.h.b16 %v1674
    %v4568 = vunpack.c.l.b16 %v1675
    %v4569 = vunpack.c.h.b16 %v1675
    %v4570 = vunpack.c.l.b16 %v1676
    %v4571 = vunpack.c.h.b16 %v1676
    %v4572 = vunpack.c.l.b16 %v1677
    %v4573 = vunpack.c.h.b16 %v1677
    %v4574 = vunpack.c.l.b16 %v1678
    %v4575 = vunpack.c.h.b16 %v1678
    %v4576 = vunpack.c.l.b16 %v1679
    %v4577 = vunpack.c.h.b16 %v1679
    %v4578 = vunpack.c.l.b16 %v1680
    %v4579 = vunpack.c.h.b16 %v1680
    %v4580 = vunpack.c.l.b16 %v1681
    %v4581 = vunpack.c.h.b16 %v1681
    %v4582 = vunpack.c.l.b16 %v1682
    %v4583 = vunpack.c.h.b16 %v1682
    %v4584 = vunpack.c.l.b16 %v1683
    %v4585 = vunpack.c.h.b16 %v1683
    %v4586 = vunpack.c.l.b16 %v1684
    %v4587 = vunpack.c.h.b16 %v1684
    %v4588 = vunpack.c.l.b16 %v1685
    %v4589 = vunpack.c.h.b16 %v1685
    %v4590 = vunpack.c.l.b16 %v1686
    %v4591 = vunpack.c.h.b16 %v1686
    %v4592 = vunpack.c.l.b16 %v1687
    %v4593 = vunpack.c.h.b16 %v1687
    %v4594 = vunpack.c.l.b16 %v1688
    %v4595 = vunpack.c.h.b16 %v1688
    %v4596 = vunpack.c.l.b16 %v1689
    %v4597 = vunpack.c.h.b16 %v1689
    %v4598 = vunpack.c.l.b16 %v1690
    %v4599 = vunpack.c.h.b16 %v1690
    %v4600 = vunpack.c.l.b16 %v1691
    %v4601 = vunpack.c.h.b16 %v1691
    %v4602 = vunpack.c.l.b16 %v1692
    %v4603 = vunpack.c.h.b16 %v1692
    %v4604 = vunpack.c.l.b16 %v1693
    %v4605 = vunpack.c.h.b16 %v1693
    %v4606 = vunpack.c.l.b16 %v1694
    %v4607 = vunpack.c.h.b16 %v1694
    %v4608 = vunpack.c.l.b16 %v1695
    %v4609 = vunpack.c.h.b16 %v1695
    %v4610 = vunpack.c.l.b16 %v1696
    %v4611 = vunpack.c.h.b16 %v1696
    %v4612 = vunpack.c.l.b16 %v1697
    %v4613 = vunpack.c.h.b16 %v1697
    %v4614 = vunpack.c.l.b16 %v1698
    %v4615 = vunpack.c.h.b16 %v1698
    %v4616 = vunpack.c.l.b16 %v1699
    %v4617 = vunpack.c.h.b16 %v1699
    %v4618 = vunpack.c.l.b16 %v1700
    %v4619 = vunpack.c.h.b16 %v1700
    %v4620 = vunpack.c.l.b16 %v1701
    %v4621 = vunpack.c.h.b16 %v1701
    %v4622 = vunpack.c.l.b16 %v1702
    %v4623 = vunpack.c.h.b16 %v1702
    %v4624 = vunpack.c.l.b16 %v1703
    %v4625 = vunpack.c.h.b16 %v1703
    %v4626 = vunpack.c.l.b16 %v1704
    %v4627 = vunpack.c.h.b16 %v1704
    %v4628 = vunpack.c.l.b16 %v1705
    %v4629 = vunpack.c.h.b16 %v1705
    %v4630 = vunpack.c.l.b16 %v1706
    %v4631 = vunpack.c.h.b16 %v1706
    %v4632 = vunpack.c.l.b16 %v1707
    %v4633 = vunpack.c.h.b16 %v1707
    %v4634 = vunpack.c.l.b16 %v1708
    %v4635 = vunpack.c.h.b16 %v1708
    %v4636 = vunpack.c.l.b16 %v1709
    %v4637 = vunpack.c.h.b16 %v1709
    %v4638 = vunpack.c.l.b16 %v1710
    %v4639 = vunpack.c.h.b16 %v1710
    %v4640 = vunpack.c.l.b16 %v1711
    %v4641 = vunpack.c.h.b16 %v1711
    %v4642 = vunpack.c.l.b16 %v1712
    %v4643 = vunpack.c.h.b16 %v1712
    %v4644 = vunpack.c.l.b16 %v1713
    %v4645 = vunpack.c.h.b16 %v1713
    %v4646 = vunpack.c.l.b16 %v1714
    %v4647 = vunpack.c.h.b16 %v1714
    %v4648 = vunpack.c.l.b16 %v1715
    %v4649 = vunpack.c.h.b16 %v1715
    %v4650 = vunpack.c.l.b16 %v1716
    %v4651 = vunpack.c.h.b16 %v1716
    %v4652 = vunpack.c.l.b16 %v1717
    %v4653 = vunpack.c.h.b16 %v1717
    %v4654 = vunpack.c.l.b16 %v1718
    %v4655 = vunpack.c.h.b16 %v1718
    %v4656 = vunpack.c.l.b16 %v1719
    %v4657 = vunpack.c.h.b16 %v1719
    %v4658 = vunpack.c.l.b16 %v1720
    %v4659 = vunpack.c.h.b16 %v1720
    %v4660 = vunpack.c.l.b16 %v1721
    %v4661 = vunpack.c.h.b16 %v1721
    %v4662 = vunpack.c.l.b16 %v1722
    %v4663 = vunpack.c.h.b16 %v1722
    %v4664 = vunpack.c.l.b16 %v1723
    %v4665 = vunpack.c.h.b16 %v1723
    %v4666 = vunpack.c.l.b16 %v1724
    %v4667 = vunpack.c.h.b16 %v1724
    %v4668 = vunpack.c.l.b16 %v1725
    %v4669 = vunpack.c.h.b16 %v1725
    %v4670 = vunpack.c.l.b16 %v1726
    %v4671 = vunpack.c.h.b16 %v1726
    %v4672 = vunpack.c.l.b16 %v1727
    %v4673 = vunpack.c.h.b16 %v1727
    %v4674 = vunpack.c.l.b16 %v1728
    %v4675 = vunpack.c.h.b16 %v1728
    %v4676 = vunpack.c.l.b16 %v1729
    %v4677 = vunpack.c.h.b16 %v1729
    %v4678 = vunpack.c.l.b16 %v1730
    %v4679 = vunpack.c.h.b16 %v1730
    %v4680 = vunpack.c.l.b16 %v1731
    %v4681 = vunpack.c.h.b16 %v1731
    %v4682 = vunpack.c.l.b16 %v1732
    %v4683 = vunpack.c.h.b16 %v1732
    %v4684 = vunpack.c.l.b16 %v1733
    %v4685 = vunpack.c.h.b16 %v1733
    %v4686 = vunpack.c.l.b16 %v1734
    %v4687 = vunpack.c.h.b16 %v1734
    %v4688 = vunpack.c.l.b16 %v1735
    %v4689 = vunpack.c.h.b16 %v1735
    %v4690 = vunpack.c.l.b16 %v1736
    %v4691 = vunpack.c.h.b16 %v1736
    %v4692 = vunpack.c.l.b16 %v1737
    %v4693 = vunpack.c.h.b16 %v1737
    %v4694 = vunpack.c.l.b16 %v1738
    %v4695 = vunpack.c.h.b16 %v1738
    %v4696 = vunpack.c.l.b16 %v1739
    %v4697 = vunpack.c.h.b16 %v1739
    %v4698 = vunpack.c.l.b16 %v1740
    %v4699 = vunpack.c.h.b16 %v1740
    %v4700 = vunpack.c.l.b16 %v1741
    %v4701 = vunpack.c.h.b16 %v1741
    %v4702 = vunpack.c.l.b16 %v1742
    %v4703 = vunpack.c.h.b16 %v1742
    %v4704 = vunpack.c.l.b16 %v1743
    %v4705 = vunpack.c.h.b16 %v1743
    %v4706 = vunpack.c.l.b16 %v1744
    %v4707 = vunpack.c.h.b16 %v1744
    %v4708 = vunpack.c.l.b16 %v1745
    %v4709 = vunpack.c.h.b16 %v1745
    %v4710 = vunpack.c.l.b16 %v1746
    %v4711 = vunpack.c.h.b16 %v1746
    %v4712 = vunpack.c.l.b16 %v1747
    %v4713 = vunpack.c.h.b16 %v1747
    %v4714 = vunpack.c.l.b16 %v1748
    %v4715 = vunpack.c.h.b16 %v1748
    %v4716 = vunpack.c.l.b16 %v1749
    %v4717 = vunpack.c.h.b16 %v1749
    %v4718 = vunpack.c.l.b16 %v1750
    %v4719 = vunpack.c.h.b16 %v1750
    %v4720 = vunpack.c.l.b16 %v1751
    %v4721 = vunpack.c.h.b16 %v1751
    %v4722 = vunpack.c.l.b16 %v1752
    %v4723 = vunpack.c.h.b16 %v1752
    %v4724 = vunpack.c.l.b16 %v1753
    %v4725 = vunpack.c.h.b16 %v1753
    %v4726 = vunpack.c.l.b16 %v1754
    %v4727 = vunpack.c.h.b16 %v1754
    %v4728 = vunpack.c.l.b16 %v1755
    %v4729 = vunpack.c.h.b16 %v1755
    %v4730 = vunpack.c.l.b16 %v1756
    %v4731 = vunpack.c.h.b16 %v1756
    %v4732 = vunpack.c.l.b16 %v1757
    %v4733 = vunpack.c.h.b16 %v1757
    %v4734 = vunpack.c.l.b16 %v1758
    %v4735 = vunpack.c.h.b16 %v1758
    %v4736 = vunpack.c.l.b16 %v1759
    %v4737 = vunpack.c.h.b16 %v1759
    %v4738 = vunpack.c.l.b16 %v1760
    %v4739 = vunpack.c.h.b16 %v1760
    %v4740 = vunpack.c.l.b16 %v1761
    %v4741 = vunpack.c.h.b16 %v1761
    %v4742 = vunpack.c.l.b16 %v1762
    %v4743 = vunpack.c.h.b16 %v1762
    %v4744 = vunpack.c.l.b16 %v1763
    %v4745 = vunpack.c.h.b16 %v1763
    %v4746 = vunpack.c.l.b16 %v1764
    %v4747 = vunpack.c.h.b16 %v1764
    %v4748 = vunpack.c.l.b16 %v1765
    %v4749 = vunpack.c.h.b16 %v1765
    %v4750 = vunpack.c.l.b16 %v1766
    %v4751 = vunpack.c.h.b16 %v1766
    %v4752 = vunpack.c.l.b16 %v1767
    %v4753 = vunpack.c.h.b16 %v1767
    %v4754 = vunpack.c.l.b16 %v1768
    %v4755 = vunpack.c.h.b16 %v1768
    %v4756 = vunpack.c.l.b16 %v1769
    %v4757 = vunpack.c.h.b16 %v1769
    %v4758 = vunpack.c.l.b16 %v1770
    %v4759 = vunpack.c.h.b16 %v1770
    %v4760 = vunpack.c.l.b16 %v1771
    %v4761 = vunpack.c.h.b16 %v1771
    %v4762 = vunpack.c.l.b16 %v1772
    %v4763 = vunpack.c.h.b16 %v1772
    %v4764 = vunpack.c.l.b16 %v1773
    %v4765 = vunpack.c.h.b16 %v1773
    %v4766 = vunpack.c.l.b16 %v1774
    %v4767 = vunpack.c.h.b16 %v1774
    %v4768 = vunpack.c.l.b16 %v1775
    %v4769 = vunpack.c.h.b16 %v1775
    %v4770 = vunpack.c.l.b16 %v1776
    %v4771 = vunpack.c.h.b16 %v1776
    %v4772 = vunpack.c.l.b16 %v1777
    %v4773 = vunpack.c.h.b16 %v1777
    %v4774 = vunpack.c.l.b16 %v1778
    %v4775 = vunpack.c.h.b16 %v1778
    %v4776 = vunpack.c.l.b16 %v1779
    %v4777 = vunpack.c.h.b16 %v1779
    %v4778 = vunpack.c.l.b16 %v1780
    %v4779 = vunpack.c.h.b16 %v1780
    %v4780 = vunpack.c.l.b16 %v1781
    %v4781 = vunpack.c.h.b16 %v1781
    %v4782 = vunpack.c.l.b16 %v1782
    %v4783 = vunpack.c.h.b16 %v1782
    %v4784 = vunpack.c.l.b16 %v1783
    %v4785 = vunpack.c.h.b16 %v1783
    %v4786 = vunpack.c.l.b16 %v1784
    %v4787 = vunpack.c.h.b16 %v1784
    %v4788 = vunpack.c.l.b16 %v1785
    %v4789 = vunpack.c.h.b16 %v1785
    %v4790 = vunpack.c.l.b16 %v1786
    %v4791 = vunpack.c.h.b16 %v1786
    %v4792 = vunpack.c.l.b16 %v1787
    %v4793 = vunpack.c.h.b16 %v1787
    %v4794 = vunpack.c.l.b16 %v1788
    %v4795 = vunpack.c.h.b16 %v1788
    %v4796 = vunpack.c.l.b16 %v1789
    %v4797 = vunpack.c.h.b16 %v1789
    %v4798 = vunpack.c.l.b16 %v1790
    %v4799 = vunpack.c.h.b16 %v1790
    %v4800 = vunpack.c.l.b16 %v1791
    %v4801 = vunpack.c.h.b16 %v1791
    %v4802 = vunpack.c.l.b16 %v1792
    %v4803 = vunpack.c.h.b16 %v1792
    %v4804 = vunpack.c.l.b16 %v1793
    %v4805 = vunpack.c.h.b16 %v1793
    %v4806 = vunpack.c.l.b16 %v1794
    %v4807 = vunpack.c.h.b16 %v1794
    %v4808 = vunpack.c.l.b16 %v1795
    %v4809 = vunpack.c.h.b16 %v1795
    %v4810 = vunpack.c.l.b16 %v1796
    %v4811 = vunpack.c.h.b16 %v1796
    %v4812 = vunpack.c.l.b16 %v1797
    %v4813 = vunpack.c.h.b16 %v1797
    %v4814 = vunpack.c.l.b16 %v1798
    %v4815 = vunpack.c.h.b16 %v1798
    %v4816 = vunpack.c.l.b16 %v1799
    %v4817 = vunpack.c.h.b16 %v1799
    %v4818 = vunpack.c.l.b16 %v1800
    %v4819 = vunpack.c.h.b16 %v1800
    %v4820 = vunpack.c.l.b16 %v1801
    %v4821 = vunpack.c.h.b16 %v1801
    %v4822 = vunpack.c.l.b16 %v1802
    %v4823 = vunpack.c.h.b16 %v1802
    %v4824 = vunpack.c.l.b16 %v1803
    %v4825 = vunpack.c.h.b16 %v1803
    %v4826 = vunpack.c.l.b16 %v1804
    %v4827 = vunpack.c.h.b16 %v1804
    %v4828 = vunpack.c.l.b16 %v1805
    %v4829 = vunpack.c.h.b16 %v1805
    %v4830 = vunpack.c.l.b16 %v1806
    %v4831 = vunpack.c.h.b16 %v1806
    %v4832 = vunpack.c.l.b16 %v1807
    %v4833 = vunpack.c.h.b16 %v1807
    %v4834 = vunpack.c.l.b16 %v1808
    %v4835 = vunpack.c.h.b16 %v1808
    %v4836 = vunpack.c.l.b16 %v1809
    %v4837 = vunpack.c.h.b16 %v1809
    %v4838 = vunpack.c.l.b16 %v1810
    %v4839 = vunpack.c.h.b16 %v1810
    %v4840 = vunpack.c.l.b16 %v1811
    %v4841 = vunpack.c.h.b16 %v1811
    %v4842 = vunpack.c.l.b16 %v1812
    %v4843 = vunpack.c.h.b16 %v1812
    %v4844 = vunpack.c.l.b16 %v1813
    %v4845 = vunpack.c.h.b16 %v1813
    %v4846 = vunpack.c.l.b16 %v1814
    %v4847 = vunpack.c.h.b16 %v1814
    %v4848 = vunpack.c.l.b16 %v1815
    %v4849 = vunpack.c.h.b16 %v1815
    %v4850 = vunpack.c.l.b16 %v1816
    %v4851 = vunpack.c.h.b16 %v1816
    %v4852 = vunpack.c.l.b16 %v1817
    %v4853 = vunpack.c.h.b16 %v1817
    %v4854 = vunpack.c.l.b16 %v1818
    %v4855 = vunpack.c.h.b16 %v1818
    %v4856 = vunpack.c.l.b16 %v1819
    %v4857 = vunpack.c.h.b16 %v1819
    %v4858 = vunpack.c.l.b16 %v1820
    %v4859 = vunpack.c.h.b16 %v1820
    %v4860 = vunpack.c.l.b16 %v1821
    %v4861 = vunpack.c.h.b16 %v1821
    %v4862 = vunpack.c.l.b16 %v1822
    %v4863 = vunpack.c.h.b16 %v1822
    %v4864 = vunpack.c.l.b16 %v1823
    %v4865 = vunpack.c.h.b16 %v1823
    %v4866 = vunpack.c.l.b16 %v1824
    %v4867 = vunpack.c.h.b16 %v1824
    %v4868 = vunpack.c.l.b16 %v1825
    %v4869 = vunpack.c.h.b16 %v1825
    %v4870 = vunpack.c.l.b16 %v1826
    %v4871 = vunpack.c.h.b16 %v1826
    %v4872 = vunpack.c.l.b16 %v1827
    %v4873 = vunpack.c.h.b16 %v1827
    %v4874 = vunpack.c.l.b16 %v1828
    %v4875 = vunpack.c.h.b16 %v1828
    %v4876 = vunpack.c.l.b16 %v1829
    %v4877 = vunpack.c.h.b16 %v1829
    %v4878 = vunpack.c.l.b16 %v1830
    %v4879 = vunpack.c.h.b16 %v1830
    %v4880 = vunpack.c.l.b16 %v1831
    %v4881 = vunpack.c.h.b16 %v1831
    %v4882 = vunpack.c.l.b16 %v1832
    %v4883 = vunpack.c.h.b16 %v1832
    %v4884 = vunpack.c.l.b16 %v1833
    %v4885 = vunpack.c.h.b16 %v1833
    %v4886 = vunpack.c.l.b16 %v1834
    %v4887 = vunpack.c.h.b16 %v1834
    %v4888 = vunpack.c.l.b16 %v1835
    %v4889 = vunpack.c.h.b16 %v1835
    %v4890 = vunpack.c.l.b16 %v1836
    %v4891 = vunpack.c.h.b16 %v1836
    %v4892 = vunpack.c.l.b16 %v1837
    %v4893 = vunpack.c.h.b16 %v1837
    %v4894 = vunpack.c.l.b16 %v1838
    %v4895 = vunpack.c.h.b16 %v1838
    %v4896 = vunpack.c.l.b16 %v1839
    %v4897 = vunpack.c.h.b16 %v1839
    %v4898 = vunpack.c.l.b16 %v1840
    %v4899 = vunpack.c.h.b16 %v1840
    %v4900 = vunpack.c.l.b16 %v1841
    %v4901 = vunpack.c.h.b16 %v1841
    %v4902 = vunpack.c.l.b16 %v1842
    %v4903 = vunpack.c.h.b16 %v1842
    %v4904 = vunpack.c.l.b16 %v1843
    %v4905 = vunpack.c.h.b16 %v1843
    %v4906 = vunpack.c.l.b16 %v1844
    %v4907 = vunpack.c.h.b16 %v1844
    %v4908 = vunpack.c.l.b16 %v1845
    %v4909 = vunpack.c.h.b16 %v1845
    %v4910 = vunpack.c.l.b16 %v1846
    %v4911 = vunpack.c.h.b16 %v1846
    %v4912 = vunpack.c.l.b16 %v1847
    %v4913 = vunpack.c.h.b16 %v1847
    %v4914 = vunpack.c.l.b16 %v1848
    %v4915 = vunpack.c.h.b16 %v1848
    %v4916 = vunpack.c.l.b16 %v1849
    %v4917 = vunpack.c.h.b16 %v1849
    %v4918 = vunpack.c.l.b16 %v1850
    %v4919 = vunpack.c.h.b16 %v1850
    %v4920 = vunpack.c.l.b16 %v1851
    %v4921 = vunpack.c.h.b16 %v1851
    %v4922 = vunpack.c.l.b16 %v1852
    %v4923 = vunpack.c.h.b16 %v1852
    %v4924 = vunpack.c.l.b16 %v1853
    %v4925 = vunpack.c.h.b16 %v1853
    %v4926 = vunpack.c.l.b16 %v1854
    %v4927 = vunpack.c.h.b16 %v1854
    %v4928 = vunpack.c.l.b16 %v1855
    %v4929 = vunpack.c.h.b16 %v1855
    %v4930 = vunpack.c.l.b16 %v1856
    %v4931 = vunpack.c.h.b16 %v1856
    %v4932 = vunpack.c.l.b16 %v1857
    %v4933 = vunpack.c.h.b16 %v1857
    %v4934 = vunpack.c.l.b16 %v1858
    %v4935 = vunpack.c.h.b16 %v1858
    %v4936 = vunpack.c.l.b16 %v1859
    %v4937 = vunpack.c.h.b16 %v1859
    %v4938 = vunpack.c.l.b16 %v1860
    %v4939 = vunpack.c.h.b16 %v1860
    %v4940 = vunpack.c.l.b16 %v1861
    %v4941 = vunpack.c.h.b16 %v1861
    %v4942 = vunpack.c.l.b16 %v1862
    %v4943 = vunpack.c.h.b16 %v1862
    %v4944 = vunpack.c.l.b16 %v1863
    %v4945 = vunpack.c.h.b16 %v1863
    %v4946 = vunpack.c.l.b16 %v1864
    %v4947 = vunpack.c.h.b16 %v1864
    %v4948 = vunpack.c.l.b16 %v1865
    %v4949 = vunpack.c.h.b16 %v1865
    %v4950 = vunpack.c.l.b16 %v1866
    %v4951 = vunpack.c.h.b16 %v1866
    %v4952 = vunpack.c.l.b16 %v1867
    %v4953 = vunpack.c.h.b16 %v1867
    %v4954 = vunpack.c.l.b16 %v1868
    %v4955 = vunpack.c.h.b16 %v1868
    %v4956 = vunpack.c.l.b16 %v1869
    %v4957 = vunpack.c.h.b16 %v1869
    %v4958 = vunpack.c.l.b16 %v1870
    %v4959 = vunpack.c.h.b16 %v1870
    %v4960 = vunpack.c.l.b16 %v1871
    %v4961 = vunpack.c.h.b16 %v1871
    %v4962 = vunpack.c.l.b16 %v1872
    %v4963 = vunpack.c.h.b16 %v1872
    %v4964 = vunpack.c.l.b16 %v1873
    %v4965 = vunpack.c.h.b16 %v1873
    %v4966 = vunpack.c.l.b16 %v1874
    %v4967 = vunpack.c.h.b16 %v1874
    %v4968 = vunpack.c.l.b16 %v1875
    %v4969 = vunpack.c.h.b16 %v1875
    %v4970 = vunpack.c.l.b16 %v1876
    %v4971 = vunpack.c.h.b16 %v1876
    %v4972 = vunpack.c.l.b16 %v1877
    %v4973 = vunpack.c.h.b16 %v1877
    %v4974 = vunpack.c.l.b16 %v1878
    %v4975 = vunpack.c.h.b16 %v1878
    %v4976 = vunpack.c.l.b16 %v1879
    %v4977 = vunpack.c.h.b16 %v1879
    %v4978 = vunpack.c.l.b16 %v1880
    %v4979 = vunpack.c.h.b16 %v1880
    %v4980 = vunpack.c.l.b16 %v1881
    %v4981 = vunpack.c.h.b16 %v1881
    %v4982 = vunpack.c.l.b16 %v1882
    %v4983 = vunpack.c.h.b16 %v1882
    %v4984 = vunpack.c.l.b16 %v1883
    %v4985 = vunpack.c.h.b16 %v1883
    %v4986 = vunpack.c.l.b16 %v1884
    %v4987 = vunpack.c.h.b16 %v1884
    %v4988 = vunpack.c.l.b16 %v1885
    %v4989 = vunpack.c.h.b16 %v1885
    %v4990 = vunpack.c.l.b16 %v1886
    %v4991 = vunpack.c.h.b16 %v1886
    %v4992 = vunpack.c.l.b16 %v1887
    %v4993 = vunpack.c.h.b16 %v1887
    %v4994 = vunpack.c.l.b16 %v1888
    %v4995 = vunpack.c.h.b16 %v1888
    %v4996 = vunpack.c.l.b16 %v1889
    %v4997 = vunpack.c.h.b16 %v1889
    %v4998 = vunpack.c.l.b16 %v1890
    %v4999 = vunpack.c.h.b16 %v1890
    %v5000 = vunpack.c.l.b16 %v1891
    %v5001 = vunpack.c.h.b16 %v1891
    %v5002 = vunpack.c.l.b16 %v1892
    %v5003 = vunpack.c.h.b16 %v1892
    %v5004 = vunpack.c.l.b16 %v1893
    %v5005 = vunpack.c.h.b16 %v1893
    %v5006 = vunpack.c.l.b16 %v1894
    %v5007 = vunpack.c.h.b16 %v1894
    %v5008 = vunpack.c.l.b16 %v1895
    %v5009 = vunpack.c.h.b16 %v1895
    %v5010 = vpack.c.b16 %v2970, %v2962
    %v5011 = vpack.c.b16 %v2971, %v2963
    %v5012 = vpack.c.b16 %v2972, %v2964
    %v5013 = vpack.c.b16 %v2973, %v2965
    %v5014 = vpack.c.b16 %v2974, %v2966
    %v5015 = vpack.c.b16 %v2975, %v2967
    %v5016 = vpack.c.b16 %v2976, %v2968
    %v5017 = vpack.c.b16 %v2977, %v2969
    %v5018 = vpack.c.b16 %v2986, %v2978
    %v5019 = vpack.c.b16 %v2987, %v2979
    %v5020 = vpack.c.b16 %v2988, %v2980
    %v5021 = vpack.c.b16 %v2989, %v2981
    %v5022 = vpack.c.b16 %v2990, %v2982
    %v5023 = vpack.c.b16 %v2991, %v2983
    %v5024 = vpack.c.b16 %v2992, %v2984
    %v5025 = vpack.c.b16 %v2993, %v2985
    %v5026 = vpack.c.b16 %v3002, %v2994
    %v5027 = vpack.c.b16 %v3003, %v2995
    %v5028 = vpack.c.b16 %v3004, %v2996
    %v5029 = vpack.c.b16 %v3005, %v2997
    %v5030 = vpack.c.b16 %v3006, %v2998
    %v5031 = vpack.c.b16 %v3007, %v2999
    %v5032 = vpack.c.b16 %v3008, %v3000
    %v5033 = vpack.c.b16 %v3009, %v3001
    %v5034 = vpack.c.b16 %v3018, %v3010
    %v5035 = vpack.c.b16 %v3019, %v3011
    %v5036 = vpack.c.b16 %v3020, %v3012
    %v5037 = vpack.c.b16 %v3021, %v3013
    %v5038 = vpack.c.b16 %v3022, %v3014
    %v5039 = vpack.c.b16 %v3023, %v3015
    %v5040 = vpack.c.b16 %v3024, %v3016
    %v5041 = vpack.c.b16 %v3025, %v3017
    %v5042 = vpack.c.b16 %v3034, %v3026
    %v5043 = vpack.c.b16 %v3035, %v3027
    %v5044 = vpack.c.b16 %v3036, %v3028
    %v5045 = vpack.c.b16 %v3037, %v3029
    %v5046 = vpack.c.b16 %v3038, %v3030
    %v5047 = vpack.c.b16 %v3039, %v3031
    %v5048 = vpack.c.b16 %v3040, %v3032
    %v5049 = vpack.c.b16 %v3041, %v3033
    %v5050 = vpack.c.b16 %v3050, %v3042
    %v5051 = vpack.c.b16 %v3051, %v3043
    %v5052 = vpack.c.b16 %v3052, %v3044
    %v5053 = vpack.c.b16 %v3053, %v3045
    %v5054 = vpack.c.b16 %v3054, %v3046
    %v5055 = vpack.c.b16 %v3055, %v3047
    %v5056 = vpack.c.b16 %v3056, %v3048
    %v5057 = vpack.c.b16 %v3057, %v3049
    %v5058 = vpack.c.b16 %v3066, %v3058
    %v5059 = vpack.c.b16 %v3067, %v3059
    %v5060 = vpack.c.b16 %v3068, %v3060
    %v5061 = vpack.c.b16 %v3069, %v3061
    %v5062 = vpack.c.b16 %v3070, %v3062
    %v5063 = vpack.c.b16 %v3071, %v3063
    %v5064 = vpack.c.b16 %v3072, %v3064
    %v5065 = vpack.c.b16 %v3073, %v3065
    %v5066 = vpack.c.b16 %v3082, %v3074
    %v5067 = vpack.c.b16 %v3083, %v3075
    %v5068 = vpack.c.b16 %v3084, %v3076
    %v5069 = vpack.c.b16 %v3085, %v3077
    %v5070 = vpack.c.b16 %v3086, %v3078
    %v5071 = vpack.c.b16 %v3087, %v3079
    %v5072 = vpack.c.b16 %v3088, %v3080
    %v5073 = vpack.c.b16 %v3089, %v3081
    %v5074 = vpack.c.b16 %v3098, %v3090
    %v5075 = vpack.c.b16 %v3099, %v3091
    %v5076 = vpack.c.b16 %v3100, %v3092
    %v5077 = vpack.c.b16 %v3101, %v3093
    %v5078 = vpack.c.b16 %v3102, %v3094
    %v5079 = vpack.c.b16 %v3103, %v3095
    %v5080 = vpack.c.b16 %v3104, %v3096
    %v5081 = vpack.c.b16 %v3105, %v3097
    %v5082 = vpack.c.b16 %v3114, %v3106
    %v5083 = vpack.c.b16 %v3115, %v3107
    %v5084 = vpack.c.b16 %v3116, %v3108
    %v5085 = vpack.c.b16 %v3117, %v3109
    %v5086 = vpack.c.b16 %v3118, %v3110
    %v5087 = vpack.c.b16 %v3119, %v3111
    %v5088 = vpack.c.b16 %v3120, %v3112
    %v5089 = vpack.c.b16 %v3121, %v3113
    %v5090 = vpack.c.b16 %v3130, %v3122
    %v5091 = vpack.c.b16 %v3131, %v3123
    %v5092 = vpack.c.b16 %v3132, %v3124
    %v5093 = vpack.c.b16 %v3133, %v3125
    %v5094 = vpack.c.b16 %v3134, %v3126
    %v5095 = vpack.c.b16 %v3135, %v3127
    %v5096 = vpack.c.b16 %v3136, %v3128
    %v5097 = vpack.c.b16 %v3137, %v3129
    %v5098 = vpack.c.b16 %v3146, %v3138
    %v5099 = vpack.c.b16 %v3147, %v3139
    %v5100 = vpack.c.b16 %v3148, %v3140
    %v5101 = vpack.c.b16 %v3149, %v3141
    %v5102 = vpack.c.b16 %v3150, %v3142
    %v5103 = vpack.c.b16 %v3151, %v3143
    %v5104 = vpack.c.b16 %v3152, %v3144
    %v5105 = vpack.c.b16 %v3153, %v3145
    %v5106 = vpack.c.b16 %v3162, %v3154
    %v5107 = vpack.c.b16 %v3163, %v3155
    %v5108 = vpack.c.b16 %v3164, %v3156
    %v5109 = vpack.c.b16 %v3165, %v3157
    %v5110 = vpack.c.b16 %v3166, %v3158
    %v5111 = vpack.c.b16 %v3167, %v3159
    %v5112 = vpack.c.b16 %v3168, %v3160
    %v5113 = vpack.c.b16 %v3169, %v3161
    %v5114 = vpack.c.b16 %v3178, %v3170
    %v5115 = vpack.c.b16 %v3179, %v3171
    %v5116 = vpack.c.b16 %v3180, %v3172
    %v5117 = vpack.c.b16 %v3181, %v3173
    %v5118 = vpack.c.b16 %v3182, %v3174
    %v5119 = vpack.c.b16 %v3183, %v3175
    %v5120 = vpack.c.b16 %v3184, %v3176
    %v5121 = vpack.c.b16 %v3185, %v3177
    %v5122 = vpack.c.b16 %v3194, %v3186
    %v5123 = vpack.c.b16 %v3195, %v3187
    %v5124 = vpack.c.b16 %v3196, %v3188
    %v5125 = vpack.c.b16 %v3197, %v3189
    %v5126 = vpack.c.b16 %v3198, %v3190
    %v5127 = vpack.c.b16 %v3199, %v3191
    %v5128 = vpack.c.b16 %v3200, %v3192
    %v5129 = vpack.c.b16 %v3201, %v3193
    %v5130 = vpack.c.b16 %v3210, %v3202
    %v5131 = vpack.c.b16 %v3211, %v3203
    %v5132 = vpack.c.b16 %v3212, %v3204
    %v5133 = vpack.c.b16 %v3213, %v3205
    %v5134 = vpack.c.b16 %v3214, %v3206
    %v5135 = vpack.c.b16 %v3215, %v3207
    %v5136 = vpack.c.b16 %v3216, %v3208
    %v5137 = vpack.c.b16 %v3217, %v3209
    %v5138 = vpack.c.b16 %v3226, %v3218
    %v5139 = vpack.c.b16 %v3227, %v3219
    %v5140 = vpack.c.b16 %v3228, %v3220
    %v5141 = vpack.c.b16 %v3229, %v3221
    %v5142 = vpack.c.b16 %v3230, %v3222
    %v5143 = vpack.c.b16 %v3231, %v3223
    %v5144 = vpack.c.b16 %v3232, %v3224
    %v5145 = vpack.c.b16 %v3233, %v3225
    %v5146 = vpack.c.b16 %v3242, %v3234
    %v5147 = vpack.c.b16 %v3243, %v3235
    %v5148 = vpack.c.b16 %v3244, %v3236
    %v5149 = vpack.c.b16 %v3245, %v3237
    %v5150 = vpack.c.b16 %v3246, %v3238
    %v5151 = vpack.c.b16 %v3247, %v3239
    %v5152 = vpack.c.b16 %v3248, %v3240
    %v5153 = vpack.c.b16 %v3249, %v3241
    %v5154 = vpack.c.b16 %v3258, %v3250
    %v5155 = vpack.c.b16 %v3259, %v3251
    %v5156 = vpack.c.b16 %v3260, %v3252
    %v5157 = vpack.c.b16 %v3261, %v3253
    %v5158 = vpack.c.b16 %v3262, %v3254
    %v5159 = vpack.c.b16 %v3263, %v3255
    %v5160 = vpack.c.b16 %v3264, %v3256
    %v5161 = vpack.c.b16 %v3265, %v3257
    %v5162 = vpack.c.b16 %v3274, %v3266
    %v5163 = vpack.c.b16 %v3275, %v3267
    %v5164 = vpack.c.b16 %v3276, %v3268
    %v5165 = vpack.c.b16 %v3277, %v3269
    %v5166 = vpack.c.b16 %v3278, %v3270
    %v5167 = vpack.c.b16 %v3279, %v3271
    %v5168 = vpack.c.b16 %v3280, %v3272
    %v5169 = vpack.c.b16 %v3281, %v3273
    %v5170 = vpack.c.b16 %v3290, %v3282
    %v5171 = vpack.c.b16 %v3291, %v3283
    %v5172 = vpack.c.b16 %v3292, %v3284
    %v5173 = vpack.c.b16 %v3293, %v3285
    %v5174 = vpack.c.b16 %v3294, %v3286
    %v5175 = vpack.c.b16 %v3295, %v3287
    %v5176 = vpack.c.b16 %v3296, %v3288
    %v5177 = vpack.c.b16 %v3297, %v3289
    %v5178 = vpack.c.b16 %v3306, %v3298
    %v5179 = vpack.c.b16 %v3307, %v3299
    %v5180 = vpack.c.b16 %v3308, %v3300
    %v5181 = vpack.c.b16 %v3309, %v3301
    %v5182 = vpack.c.b16 %v3310, %v3302
    %v5183 = vpack.c.b16 %v3311, %v3303
    %v5184 = vpack.c.b16 %v3312, %v3304
    %v5185 = vpack.c.b16 %v3313, %v3305
    %v5186 = vpack.c.b16 %v3322, %v3314
    %v5187 = vpack.c.b16 %v3323, %v3315
    %v5188 = vpack.c.b16 %v3324, %v3316
    %v5189 = vpack.c.b16 %v3325, %v3317
    %v5190 = vpack.c.b16 %v3326, %v3318
    %v5191 = vpack.c.b16 %v3327, %v3319
    %v5192 = vpack.c.b16 %v3328, %v3320
    %v5193 = vpack.c.b16 %v3329, %v3321
    %v5194 = vpack.c.b16 %v3338, %v3330
    %v5195 = vpack.c.b16 %v3339, %v3331
    %v5196 = vpack.c.b16 %v3340, %v3332
    %v5197 = vpack.c.b16 %v3341, %v3333
    %v5198 = vpack.c.b16 %v3342, %v3334
    %v5199 = vpack.c.b16 %v3343, %v3335
    %v5200 = vpack.c.b16 %v3344, %v3336
    %v5201 = vpack.c.b16 %v3345, %v3337
    %v5202 = vpack.c.b16 %v3354, %v3346
    %v5203 = vpack.c.b16 %v3355, %v3347
    %v5204 = vpack.c.b16 %v3356, %v3348
    %v5205 = vpack.c.b16 %v3357, %v3349
    %v5206 = vpack.c.b16 %v3358, %v3350
    %v5207 = vpack.c.b16 %v3359, %v3351
    %v5208 = vpack.c.b16 %v3360, %v3352
    %v5209 = vpack.c.b16 %v3361, %v3353
    %v5210 = vpack.c.b16 %v3370, %v3362
    %v5211 = vpack.c.b16 %v3371, %v3363
    %v5212 = vpack.c.b16 %v3372, %v3364
    %v5213 = vpack.c.b16 %v3373, %v3365
    %v5214 = vpack.c.b16 %v3374, %v3366
    %v5215 = vpack.c.b16 %v3375, %v3367
    %v5216 = vpack.c.b16 %v3376, %v3368
    %v5217 = vpack.c.b16 %v3377, %v3369
    %v5218 = vpack.c.b16 %v3386, %v3378
    %v5219 = vpack.c.b16 %v3387, %v3379
    %v5220 = vpack.c.b16 %v3388, %v3380
    %v5221 = vpack.c.b16 %v3389, %v3381
    %v5222 = vpack.c.b16 %v3390, %v3382
    %v5223 = vpack.c.b16 %v3391, %v3383
    %v5224 = vpack.c.b16 %v3392, %v3384
    %v5225 = vpack.c.b16 %v3393, %v3385
    %v5226 = vpack.c.b16 %v3402, %v3394
    %v5227 = vpack.c.b16 %v3403, %v3395
    %v5228 = vpack.c.b16 %v3404, %v3396
    %v5229 = vpack.c.b16 %v3405, %v3397
    %v5230 = vpack.c.b16 %v3406, %v3398
    %v5231 = vpack.c.b16 %v3407, %v3399
    %v5232 = vpack.c.b16 %v3408, %v3400
    %v5233 = vpack.c.b16 %v3409, %v3401
    %v5234 = vpack.c.b16 %v3418, %v3410
    %v5235 = vpack.c.b16 %v3419, %v3411
    %v5236 = vpack.c.b16 %v3420, %v3412
    %v5237 = vpack.c.b16 %v3421, %v3413
    %v5238 = vpack.c.b16 %v3422, %v3414
    %v5239 = vpack.c.b16 %v3423, %v3415
    %v5240 = vpack.c.b16 %v3424, %v3416
    %v5241 = vpack.c.b16 %v3425, %v3417
    %v5242 = vpack.c.b16 %v3434, %v3426
    %v5243 = vpack.c.b16 %v3435, %v3427
    %v5244 = vpack.c.b16 %v3436, %v3428
    %v5245 = vpack.c.b16 %v3437, %v3429
    %v5246 = vpack.c.b16 %v3438, %v3430
    %v5247 = vpack.c.b16 %v3439, %v3431
    %v5248 = vpack.c.b16 %v3440, %v3432
    %v5249 = vpack.c.b16 %v3441, %v3433
    %v5250 = vpack.c.b16 %v3450, %v3442
    %v5251 = vpack.c.b16 %v3451, %v3443
    %v5252 = vpack.c.b16 %v3452, %v3444
    %v5253 = vpack.c.b16 %v3453, %v3445
    %v5254 = vpack.c.b16 %v3454, %v3446
    %v5255 = vpack.c.b16 %v3455, %v3447
    %v5256 = vpack.c.b16 %v3456, %v3448
    %v5257 = vpack.c.b16 %v3457, %v3449
    %v5258 = vpack.c.b16 %v3466, %v3458
    %v5259 = vpack.c.b16 %v3467, %v3459
    %v5260 = vpack.c.b16 %v3468, %v3460
    %v5261 = vpack.c.b16 %v3469, %v3461
    %v5262 = vpack.c.b16 %v3470, %v3462
    %v5263 = vpack.c.b16 %v3471, %v3463
    %v5264 = vpack.c.b16 %v3472, %v3464
    %v5265 = vpack.c.b16 %v3473, %v3465
    %v5266 = vpack.c.b16 %v3482, %v3474
    %v5267 = vpack.c.b16 %v3483, %v3475
    %v5268 = vpack.c.b16 %v3484, %v3476
    %v5269 = vpack.c.b16 %v3485, %v3477
    %v5270 = vpack.c.b16 %v3486, %v3478
    %v5271 = vpack.c.b16 %v3487, %v3479
    %v5272 = vpack.c.b16 %v3488, %v3480
    %v5273 = vpack.c.b16 %v3489, %v3481
    %v5274 = vpack.c.b16 %v3498, %v3490
    %v5275 = vpack.c.b16 %v3499, %v3491
    %v5276 = vpack.c.b16 %v3500, %v3492
    %v5277 = vpack.c.b16 %v3501, %v3493
    %v5278 = vpack.c.b16 %v3502, %v3494
    %v5279 = vpack.c.b16 %v3503, %v3495
    %v5280 = vpack.c.b16 %v3504, %v3496
    %v5281 = vpack.c.b16 %v3505, %v3497
    %v5282 = vpack.c.b16 %v3514, %v3506
    %v5283 = vpack.c.b16 %v3515, %v3507
    %v5284 = vpack.c.b16 %v3516, %v3508
    %v5285 = vpack.c.b16 %v3517, %v3509
    %v5286 = vpack.c.b16 %v3518, %v3510
    %v5287 = vpack.c.b16 %v3519, %v3511
    %v5288 = vpack.c.b16 %v3520, %v3512
    %v5289 = vpack.c.b16 %v3521, %v3513
    %v5290 = vpack.c.b16 %v3530, %v3522
    %v5291 = vpack.c.b16 %v3531, %v3523
    %v5292 = vpack.c.b16 %v3532, %v3524
    %v5293 = vpack.c.b16 %v3533, %v3525
    %v5294 = vpack.c.b16 %v3534, %v3526
    %v5295 = vpack.c.b16 %v3535, %v3527
    %v5296 = vpack.c.b16 %v3536, %v3528
    %v5297 = vpack.c.b16 %v3537, %v3529
    %v5298 = vpack.c.b16 %v3546, %v3538
    %v5299 = vpack.c.b16 %v3547, %v3539
    %v5300 = vpack.c.b16 %v3548, %v3540
    %v5301 = vpack.c.b16 %v3549, %v3541
    %v5302 = vpack.c.b16 %v3550, %v3542
    %v5303 = vpack.c.b16 %v3551, %v3543
    %v5304 = vpack.c.b16 %v3552, %v3544
    %v5305 = vpack.c.b16 %v3553, %v3545
    %v5306 = vpack.c.b16 %v3562, %v3554
    %v5307 = vpack.c.b16 %v3563, %v3555
    %v5308 = vpack.c.b16 %v3564, %v3556
    %v5309 = vpack.c.b16 %v3565, %v3557
    %v5310 = vpack.c.b16 %v3566, %v3558
    %v5311 = vpack.c.b16 %v3567, %v3559
    %v5312 = vpack.c.b16 %v3568, %v3560
    %v5313 = vpack.c.b16 %v3569, %v3561
    %v5314 = vpack.c.b16 %v3578, %v3570
    %v5315 = vpack.c.b16 %v3579, %v3571
    %v5316 = vpack.c.b16 %v3580, %v3572
    %v5317 = vpack.c.b16 %v3581, %v3573
    %v5318 = vpack.c.b16 %v3582, %v3574
    %v5319 = vpack.c.b16 %v3583, %v3575
    %v5320 = vpack.c.b16 %v3584, %v3576
    %v5321 = vpack.c.b16 %v3585, %v3577
    %v5322 = vpack.c.b16 %v3594, %v3586
    %v5323 = vpack.c.b16 %v3595, %v3587
    %v5324 = vpack.c.b16 %v3596, %v3588
    %v5325 = vpack.c.b16 %v3597, %v3589
    %v5326 = vpack.c.b16 %v3598, %v3590
    %v5327 = vpack.c.b16 %v3599, %v3591
    %v5328 = vpack.c.b16 %v3600, %v3592
    %v5329 = vpack.c.b16 %v3601, %v3593
    %v5330 = vpack.c.b16 %v3610, %v3602
    %v5331 = vpack.c.b16 %v3611, %v3603
    %v5332 = vpack.c.b16 %v3612, %v3604
    %v5333 = vpack.c.b16 %v3613, %v3605
    %v5334 = vpack.c.b16 %v3614, %v3606
    %v5335 = vpack.c.b16 %v3615, %v3607
    %v5336 = vpack.c.b16 %v3616, %v3608
    %v5337 = vpack.c.b16 %v3617, %v3609
    %v5338 = vpack.c.b16 %v3626, %v3618
    %v5339 = vpack.c.b16 %v3627, %v3619
    %v5340 = vpack.c.b16 %v3628, %v3620
    %v5341 = vpack.c.b16 %v3629, %v3621
    %v5342 = vpack.c.b16 %v3630, %v3622
    %v5343 = vpack.c.b16 %v3631, %v3623
    %v5344 = vpack.c.b16 %v3632, %v3624
    %v5345 = vpack.c.b16 %v3633, %v3625
    %v5346 = vpack.c.b16 %v3642, %v3634
    %v5347 = vpack.c.b16 %v3643, %v3635
    %v5348 = vpack.c.b16 %v3644, %v3636
    %v5349 = vpack.c.b16 %v3645, %v3637
    %v5350 = vpack.c.b16 %v3646, %v3638
    %v5351 = vpack.c.b16 %v3647, %v3639
    %v5352 = vpack.c.b16 %v3648, %v3640
    %v5353 = vpack.c.b16 %v3649, %v3641
    %v5354 = vpack.c.b16 %v3658, %v3650
    %v5355 = vpack.c.b16 %v3659, %v3651
    %v5356 = vpack.c.b16 %v3660, %v3652
    %v5357 = vpack.c.b16 %v3661, %v3653
    %v5358 = vpack.c.b16 %v3662, %v3654
    %v5359 = vpack.c.b16 %v3663, %v3655
    %v5360 = vpack.c.b16 %v3664, %v3656
    %v5361 = vpack.c.b16 %v3665, %v3657
    %v5362 = vpack.c.b16 %v3674, %v3666
    %v5363 = vpack.c.b16 %v3675, %v3667
    %v5364 = vpack.c.b16 %v3676, %v3668
    %v5365 = vpack.c.b16 %v3677, %v3669
    %v5366 = vpack.c.b16 %v3678, %v3670
    %v5367 = vpack.c.b16 %v3679, %v3671
    %v5368 = vpack.c.b16 %v3680, %v3672
    %v5369 = vpack.c.b16 %v3681, %v3673
    %v5370 = vpack.c.b16 %v3690, %v3682
    %v5371 = vpack.c.b16 %v3691, %v3683
    %v5372 = vpack.c.b16 %v3692, %v3684
    %v5373 = vpack.c.b16 %v3693, %v3685
    %v5374 = vpack.c.b16 %v3694, %v3686
    %v5375 = vpack.c.b16 %v3695, %v3687
    %v5376 = vpack.c.b16 %v3696, %v3688
    %v5377 = vpack.c.b16 %v3697, %v3689
    %v5378 = vpack.c.b16 %v3706, %v3698
    %v5379 = vpack.c.b16 %v3707, %v3699
    %v5380 = vpack.c.b16 %v3708, %v3700
    %v5381 = vpack.c.b16 %v3709, %v3701
    %v5382 = vpack.c.b16 %v3710, %v3702
    %v5383 = vpack.c.b16 %v3711, %v3703
    %v5384 = vpack.c.b16 %v3712, %v3704
    %v5385 = vpack.c.b16 %v3713, %v3705
    %v5386 = vpack.c.b16 %v3722, %v3714
    %v5387 = vpack.c.b16 %v3723, %v3715
    %v5388 = vpack.c.b16 %v3724, %v3716
    %v5389 = vpack.c.b16 %v3725, %v3717
    %v5390 = vpack.c.b16 %v3726, %v3718
    %v5391 = vpack.c.b16 %v3727, %v3719
    %v5392 = vpack.c.b16 %v3728, %v3720
    %v5393 = vpack.c.b16 %v3729, %v3721
    %v5394 = vpack.c.b16 %v3738, %v3730
    %v5395 = vpack.c.b16 %v3739, %v3731
    %v5396 = vpack.c.b16 %v3740, %v3732
    %v5397 = vpack.c.b16 %v3741, %v3733
    %v5398 = vpack.c.b16 %v3742, %v3734
    %v5399 = vpack.c.b16 %v3743, %v3735
    %v5400 = vpack.c.b16 %v3744, %v3736
    %v5401 = vpack.c.b16 %v3745, %v3737
    %v5402 = vpack.c.b16 %v3754, %v3746
    %v5403 = vpack.c.b16 %v3755, %v3747
    %v5404 = vpack.c.b16 %v3756, %v3748
    %v5405 = vpack.c.b16 %v3757, %v3749
    %v5406 = vpack.c.b16 %v3758, %v3750
    %v5407 = vpack.c.b16 %v3759, %v3751
    %v5408 = vpack.c.b16 %v3760, %v3752
    %v5409 = vpack.c.b16 %v3761, %v3753
    %v5410 = vpack.c.b16 %v3770, %v3762
    %v5411 = vpack.c.b16 %v3771, %v3763
    %v5412 = vpack.c.b16 %v3772, %v3764
    %v5413 = vpack.c.b16 %v3773, %v3765
    %v5414 = vpack.c.b16 %v3774, %v3766
    %v5415 = vpack.c.b16 %v3775, %v3767
    %v5416 = vpack.c.b16 %v3776, %v3768
    %v5417 = vpack.c.b16 %v3777, %v3769
    %v5418 = vpack.c.b16 %v3786, %v3778
    %v5419 = vpack.c.b16 %v3787, %v3779
    %v5420 = vpack.c.b16 %v3788, %v3780
    %v5421 = vpack.c.b16 %v3789, %v3781
    %v5422 = vpack.c.b16 %v3790, %v3782
    %v5423 = vpack.c.b16 %v3791, %v3783
    %v5424 = vpack.c.b16 %v3792, %v3784
    %v5425 = vpack.c.b16 %v3793, %v3785
    %v5426 = vpack.c.b16 %v3802, %v3794
    %v5427 = vpack.c.b16 %v3803, %v3795
    %v5428 = vpack.c.b16 %v3804, %v3796
    %v5429 = vpack.c.b16 %v3805, %v3797
    %v5430 = vpack.c.b16 %v3806, %v3798
    %v5431 = vpack.c.b16 %v3807, %v3799
    %v5432 = vpack.c.b16 %v3808, %v3800
    %v5433 = vpack.c.b16 %v3809, %v3801
    %v5434 = vpack.c.b16 %v3818, %v3810
    %v5435 = vpack.c.b16 %v3819, %v3811
    %v5436 = vpack.c.b16 %v3820, %v3812
    %v5437 = vpack.c.b16 %v3821, %v3813
    %v5438 = vpack.c.b16 %v3822, %v3814
    %v5439 = vpack.c.b16 %v3823, %v3815
    %v5440 = vpack.c.b16 %v3824, %v3816
    %v5441 = vpack.c.b16 %v3825, %v3817
    %v5442 = vpack.c.b16 %v3834, %v3826
    %v5443 = vpack.c.b16 %v3835, %v3827
    %v5444 = vpack.c.b16 %v3836, %v3828
    %v5445 = vpack.c.b16 %v3837, %v3829
    %v5446 = vpack.c.b16 %v3838, %v3830
    %v5447 = vpack.c.b16 %v3839, %v3831
    %v5448 = vpack.c.b16 %v3840, %v3832
    %v5449 = vpack.c.b16 %v3841, %v3833
    %v5450 = vpack.c.b16 %v3850, %v3842
    %v5451 = vpack.c.b16 %v3851, %v3843
    %v5452 = vpack.c.b16 %v3852, %v3844
    %v5453 = vpack.c.b16 %v3853, %v3845
    %v5454 = vpack.c.b16 %v3854, %v3846
    %v5455 = vpack.c.b16 %v3855, %v3847
    %v5456 = vpack.c.b16 %v3856, %v3848
    %v5457 = vpack.c.b16 %v3857, %v3849
    %v5458 = vpack.c.b16 %v3866, %v3858
    %v5459 = vpack.c.b16 %v3867, %v3859
    %v5460 = vpack.c.b16 %v3868, %v3860
    %v5461 = vpack.c.b16 %v3869, %v3861
    %v5462 = vpack.c.b16 %v3870, %v3862
    %v5463 = vpack.c.b16 %v3871, %v3863
    %v5464 = vpack.c.b16 %v3872, %v3864
    %v5465 = vpack.c.b16 %v3873, %v3865
    %v5466 = vpack.c.b16 %v3882, %v3874
    %v5467 = vpack.c.b16 %v3883, %v3875
    %v5468 = vpack.c.b16 %v3884, %v3876
    %v5469 = vpack.c.b16 %v3885, %v3877
    %v5470 = vpack.c.b16 %v3886, %v3878
    %v5471 = vpack.c.b16 %v3887, %v3879
    %v5472 = vpack.c.b16 %v3888, %v3880
    %v5473 = vpack.c.b16 %v3889, %v3881
    %v5474 = vpack.c.b16 %v3898, %v3890
    %v5475 = vpack.c.b16 %v3899, %v3891
    %v5476 = vpack.c.b16 %v3900, %v3892
    %v5477 = vpack.c.b16 %v3901, %v3893
    %v5478 = vpack.c.b16 %v3902, %v3894
    %v5479 = vpack.c.b16 %v3903, %v3895
    %v5480 = vpack.c.b16 %v3904, %v3896
    %v5481 = vpack.c.b16 %v3905, %v3897
    %v5482 = vpack.c.b16 %v3914, %v3906
    %v5483 = vpack.c.b16 %v3915, %v3907
    %v5484 = vpack.c.b16 %v3916, %v3908
    %v5485 = vpack.c.b16 %v3917, %v3909
    %v5486 = vpack.c.b16 %v3918, %v3910
    %v5487 = vpack.c.b16 %v3919, %v3911
    %v5488 = vpack.c.b16 %v3920, %v3912
    %v5489 = vpack.c.b16 %v3921, %v3913
    %v5490 = vpack.c.b16 %v3930, %v3922
    %v5491 = vpack.c.b16 %v3931, %v3923
    %v5492 = vpack.c.b16 %v3932, %v3924
    %v5493 = vpack.c.b16 %v3933, %v3925
    %v5494 = vpack.c.b16 %v3934, %v3926
    %v5495 = vpack.c.b16 %v3935, %v3927
    %v5496 = vpack.c.b16 %v3936, %v3928
    %v5497 = vpack.c.b16 %v3937, %v3929
    %v5498 = vpack.c.b16 %v3946, %v3938
    %v5499 = vpack.c.b16 %v3947, %v3939
    %v5500 = vpack.c.b16 %v3948, %v3940
    %v5501 = vpack.c.b16 %v3949, %v3941
    %v5502 = vpack.c.b16 %v3950, %v3942
    %v5503 = vpack.c.b16 %v3951, %v3943
    %v5504 = vpack.c.b16 %v3952, %v3944
    %v5505 = vpack.c.b16 %v3953, %v3945
    %v5506 = vpack.c.b16 %v3962, %v3954
    %v5507 = vpack.c.b16 %v3963, %v3955
    %v5508 = vpack.c.b16 %v3964, %v3956
    %v5509 = vpack.c.b16 %v3965, %v3957
    %v5510 = vpack.c.b16 %v3966, %v3958
    %v5511 = vpack.c.b16 %v3967, %v3959
    %v5512 = vpack.c.b16 %v3968, %v3960
    %v5513 = vpack.c.b16 %v3969, %v3961
    %v5514 = vpack.c.b16 %v3978, %v3970
    %v5515 = vpack.c.b16 %v3979, %v3971
    %v5516 = vpack.c.b16 %v3980, %v3972
    %v5517 = vpack.c.b16 %v3981, %v3973
    %v5518 = vpack.c.b16 %v3982, %v3974
    %v5519 = vpack.c.b16 %v3983, %v3975
    %v5520 = vpack.c.b16 %v3984, %v3976
    %v5521 = vpack.c.b16 %v3985, %v3977
    %v5522 = vpack.c.b16 %v3994, %v3986
    %v5523 = vpack.c.b16 %v3995, %v3987
    %v5524 = vpack.c.b16 %v3996, %v3988
    %v5525 = vpack.c.b16 %v3997, %v3989
    %v5526 = vpack.c.b16 %v3998, %v3990
    %v5527 = vpack.c.b16 %v3999, %v3991
    %v5528 = vpack.c.b16 %v4000, %v3992
    %v5529 = vpack.c.b16 %v4001, %v3993
    %v5530 = vpack.c.b16 %v4010, %v4002
    %v5531 = vpack.c.b16 %v4011, %v4003
    %v5532 = vpack.c.b16 %v4012, %v4004
    %v5533 = vpack.c.b16 %v4013, %v4005
    %v5534 = vpack.c.b16 %v4014, %v4006
    %v5535 = vpack.c.b16 %v4015, %v4007
    %v5536 = vpack.c.b16 %v4016, %v4008
    %v5537 = vpack.c.b16 %v4017, %v4009
    %v5538 = vpack.c.b16 %v4026, %v4018
    %v5539 = vpack.c.b16 %v4027, %v4019
    %v5540 = vpack.c.b16 %v4028, %v4020
    %v5541 = vpack.c.b16 %v4029, %v4021
    %v5542 = vpack.c.b16 %v4030, %v4022
    %v5543 = vpack.c.b16 %v4031, %v4023
    %v5544 = vpack.c.b16 %v4032, %v4024
    %v5545 = vpack.c.b16 %v4033, %v4025
    %v5546 = vpack.c.b16 %v4042, %v4034
    %v5547 = vpack.c.b16 %v4043, %v4035
    %v5548 = vpack.c.b16 %v4044, %v4036
    %v5549 = vpack.c.b16 %v4045, %v4037
    %v5550 = vpack.c.b16 %v4046, %v4038
    %v5551 = vpack.c.b16 %v4047, %v4039
    %v5552 = vpack.c.b16 %v4048, %v4040
    %v5553 = vpack.c.b16 %v4049, %v4041
    %v5554 = vpack.c.b16 %v4058, %v4050
    %v5555 = vpack.c.b16 %v4059, %v4051
    %v5556 = vpack.c.b16 %v4060, %v4052
    %v5557 = vpack.c.b16 %v4061, %v4053
    %v5558 = vpack.c.b16 %v4062, %v4054
    %v5559 = vpack.c.b16 %v4063, %v4055
    %v5560 = vpack.c.b16 %v4064, %v4056
    %v5561 = vpack.c.b16 %v4065, %v4057
    %v5562 = vpack.c.b16 %v4074, %v4066
    %v5563 = vpack.c.b16 %v4075, %v4067
    %v5564 = vpack.c.b16 %v4076, %v4068
    %v5565 = vpack.c.b16 %v4077, %v4069
    %v5566 = vpack.c.b16 %v4078, %v4070
    %v5567 = vpack.c.b16 %v4079, %v4071
    %v5568 = vpack.c.b16 %v4080, %v4072
    %v5569 = vpack.c.b16 %v4081, %v4073
    %v5570 = vpack.c.b16 %v4090, %v4082
    %v5571 = vpack.c.b16 %v4091, %v4083
    %v5572 = vpack.c.b16 %v4092, %v4084
    %v5573 = vpack.c.b16 %v4093, %v4085
    %v5574 = vpack.c.b16 %v4094, %v4086
    %v5575 = vpack.c.b16 %v4095, %v4087
    %v5576 = vpack.c.b16 %v4096, %v4088
    %v5577 = vpack.c.b16 %v4097, %v4089
    %v5578 = vpack.c.b16 %v4106, %v4098
    %v5579 = vpack.c.b16 %v4107, %v4099
    %v5580 = vpack.c.b16 %v4108, %v4100
    %v5581 = vpack.c.b16 %v4109, %v4101
    %v5582 = vpack.c.b16 %v4110, %v4102
    %v5583 = vpack.c.b16 %v4111, %v4103
    %v5584 = vpack.c.b16 %v4112, %v4104
    %v5585 = vpack.c.b16 %v4113, %v4105
    %v5586 = vpack.c.b16 %v4122, %v4114
    %v5587 = vpack.c.b16 %v4123, %v4115
    %v5588 = vpack.c.b16 %v4124, %v4116
    %v5589 = vpack.c.b16 %v4125, %v4117
    %v5590 = vpack.c.b16 %v4126, %v4118
    %v5591 = vpack.c.b16 %v4127, %v4119
    %v5592 = vpack.c.b16 %v4128, %v4120
    %v5593 = vpack.c.b16 %v4129, %v4121
    %v5594 = vpack.c.b16 %v4138, %v4130
    %v5595 = vpack.c.b16 %v4139, %v4131
    %v5596 = vpack.c.b16 %v4140, %v4132
    %v5597 = vpack.c.b16 %v4141, %v4133
    %v5598 = vpack.c.b16 %v4142, %v4134
    %v5599 = vpack.c.b16 %v4143, %v4135
    %v5600 = vpack.c.b16 %v4144, %v4136
    %v5601 = vpack.c.b16 %v4145, %v4137
    %v5602 = vpack.c.b16 %v4154, %v4146
    %v5603 = vpack.c.b16 %v4155, %v4147
    %v5604 = vpack.c.b16 %v4156, %v4148
    %v5605 = vpack.c.b16 %v4157, %v4149
    %v5606 = vpack.c.b16 %v4158, %v4150
    %v5607 = vpack.c.b16 %v4159, %v4151
    %v5608 = vpack.c.b16 %v4160, %v4152
    %v5609 = vpack.c.b16 %v4161, %v4153
    %v5610 = vpack.c.b16 %v4170, %v4162
    %v5611 = vpack.c.b16 %v4171, %v4163
    %v5612 = vpack.c.b16 %v4172, %v4164
    %v5613 = vpack.c.b16 %v4173, %v4165
    %v5614 = vpack.c.b16 %v4174, %v4166
    %v5615 = vpack.c.b16 %v4175, %v4167
    %v5616 = vpack.c.b16 %v4176, %v4168
    %v5617 = vpack.c.b16 %v4177, %v4169
    %v5618 = vpack.c.b16 %v4186, %v4178
    %v5619 = vpack.c.b16 %v4187, %v4179
    %v5620 = vpack.c.b16 %v4188, %v4180
    %v5621 = vpack.c.b16 %v4189, %v4181
    %v5622 = vpack.c.b16 %v4190, %v4182
    %v5623 = vpack.c.b16 %v4191, %v4183
    %v5624 = vpack.c.b16 %v4192, %v4184
    %v5625 = vpack.c.b16 %v4193, %v4185
    %v5626 = vpack.c.b16 %v4202, %v4194
    %v5627 = vpack.c.b16 %v4203, %v4195
    %v5628 = vpack.c.b16 %v4204, %v4196
    %v5629 = vpack.c.b16 %v4205, %v4197
    %v5630 = vpack.c.b16 %v4206, %v4198
    %v5631 = vpack.c.b16 %v4207, %v4199
    %v5632 = vpack.c.b16 %v4208, %v4200
    %v5633 = vpack.c.b16 %v4209, %v4201
    %v5634 = vpack.c.b16 %v4218, %v4210
    %v5635 = vpack.c.b16 %v4219, %v4211
    %v5636 = vpack.c.b16 %v4220, %v4212
    %v5637 = vpack.c.b16 %v4221, %v4213
    %v5638 = vpack.c.b16 %v4222, %v4214
    %v5639 = vpack.c.b16 %v4223, %v4215
    %v5640 = vpack.c.b16 %v4224, %v4216
    %v5641 = vpack.c.b16 %v4225, %v4217
    %v5642 = vpack.c.b16 %v4234, %v4226
    %v5643 = vpack.c.b16 %v4235, %v4227
    %v5644 = vpack.c.b16 %v4236, %v4228
    %v5645 = vpack.c.b16 %v4237, %v4229
    %v5646 = vpack.c.b16 %v4238, %v4230
    %v5647 = vpack.c.b16 %v4239, %v4231
    %v5648 = vpack.c.b16 %v4240, %v4232
    %v5649 = vpack.c.b16 %v4241, %v4233
    %v5650 = vpack.c.b16 %v4250, %v4242
    %v5651 = vpack.c.b16 %v4251, %v4243
    %v5652 = vpack.c.b16 %v4252, %v4244
    %v5653 = vpack.c.b16 %v4253, %v4245
    %v5654 = vpack.c.b16 %v4254, %v4246
    %v5655 = vpack.c.b16 %v4255, %v4247
    %v5656 = vpack.c.b16 %v4256, %v4248
    %v5657 = vpack.c.b16 %v4257, %v4249
    %v5658 = vpack.c.b16 %v4266, %v4258
    %v5659 = vpack.c.b16 %v4267, %v4259
    %v5660 = vpack.c.b16 %v4268, %v4260
    %v5661 = vpack.c.b16 %v4269, %v4261
    %v5662 = vpack.c.b16 %v4270, %v4262
    %v5663 = vpack.c.b16 %v4271, %v4263
    %v5664 = vpack.c.b16 %v4272, %v4264
    %v5665 = vpack.c.b16 %v4273, %v4265
    %v5666 = vpack.c.b16 %v4282, %v4274
    %v5667 = vpack.c.b16 %v4283, %v4275
    %v5668 = vpack.c.b16 %v4284, %v4276
    %v5669 = vpack.c.b16 %v4285, %v4277
    %v5670 = vpack.c.b16 %v4286, %v4278
    %v5671 = vpack.c.b16 %v4287, %v4279
    %v5672 = vpack.c.b16 %v4288, %v4280
    %v5673 = vpack.c.b16 %v4289, %v4281
    %v5674 = vpack.c.b16 %v4298, %v4290
    %v5675 = vpack.c.b16 %v4299, %v4291
    %v5676 = vpack.c.b16 %v4300, %v4292
    %v5677 = vpack.c.b16 %v4301, %v4293
    %v5678 = vpack.c.b16 %v4302, %v4294
    %v5679 = vpack.c.b16 %v4303, %v4295
    %v5680 = vpack.c.b16 %v4304, %v4296
    %v5681 = vpack.c.b16 %v4305, %v4297
    %v5682 = vpack.c.b16 %v4314, %v4306
    %v5683 = vpack.c.b16 %v4315, %v4307
    %v5684 = vpack.c.b16 %v4316, %v4308
    %v5685 = vpack.c.b16 %v4317, %v4309
    %v5686 = vpack.c.b16 %v4318, %v4310
    %v5687 = vpack.c.b16 %v4319, %v4311
    %v5688 = vpack.c.b16 %v4320, %v4312
    %v5689 = vpack.c.b16 %v4321, %v4313
    %v5690 = vpack.c.b16 %v4330, %v4322
    %v5691 = vpack.c.b16 %v4331, %v4323
    %v5692 = vpack.c.b16 %v4332, %v4324
    %v5693 = vpack.c.b16 %v4333, %v4325
    %v5694 = vpack.c.b16 %v4334, %v4326
    %v5695 = vpack.c.b16 %v4335, %v4327
    %v5696 = vpack.c.b16 %v4336, %v4328
    %v5697 = vpack.c.b16 %v4337, %v4329
    %v5698 = vpack.c.b16 %v4346, %v4338
    %v5699 = vpack.c.b16 %v4347, %v4339
    %v5700 = vpack.c.b16 %v4348, %v4340
    %v5701 = vpack.c.b16 %v4349, %v4341
    %v5702 = vpack.c.b16 %v4350, %v4342
    %v5703 = vpack.c.b16 %v4351, %v4343
    %v5704 = vpack.c.b16 %v4352, %v4344
    %v5705 = vpack.c.b16 %v4353, %v4345
    %v5706 = vpack.c.b16 %v4362, %v4354
    %v5707 = vpack.c.b16 %v4363, %v4355
    %v5708 = vpack.c.b16 %v4364, %v4356
    %v5709 = vpack.c.b16 %v4365, %v4357
    %v5710 = vpack.c.b16 %v4366, %v4358
    %v5711 = vpack.c.b16 %v4367, %v4359
    %v5712 = vpack.c.b16 %v4368, %v4360
    %v5713 = vpack.c.b16 %v4369, %v4361
    %v5714 = vpack.c.b16 %v4378, %v4370
    %v5715 = vpack.c.b16 %v4379, %v4371
    %v5716 = vpack.c.b16 %v4380, %v4372
    %v5717 = vpack.c.b16 %v4381, %v4373
    %v5718 = vpack.c.b16 %v4382, %v4374
    %v5719 = vpack.c.b16 %v4383, %v4375
    %v5720 = vpack.c.b16 %v4384, %v4376
    %v5721 = vpack.c.b16 %v4385, %v4377
    %v5722 = vpack.c.b16 %v4394, %v4386
    %v5723 = vpack.c.b16 %v4395, %v4387
    %v5724 = vpack.c.b16 %v4396, %v4388
    %v5725 = vpack.c.b16 %v4397, %v4389
    %v5726 = vpack.c.b16 %v4398, %v4390
    %v5727 = vpack.c.b16 %v4399, %v4391
    %v5728 = vpack.c.b16 %v4400, %v4392
    %v5729 = vpack.c.b16 %v4401, %v4393
    %v5730 = vpack.c.b16 %v4410, %v4402
    %v5731 = vpack.c.b16 %v4411, %v4403
    %v5732 = vpack.c.b16 %v4412, %v4404
    %v5733 = vpack.c.b16 %v4413, %v4405
    %v5734 = vpack.c.b16 %v4414, %v4406
    %v5735 = vpack.c.b16 %v4415, %v4407
    %v5736 = vpack.c.b16 %v4416, %v4408
    %v5737 = vpack.c.b16 %v4417, %v4409
    %v5738 = vpack.c.b16 %v4426, %v4418
    %v5739 = vpack.c.b16 %v4427, %v4419
    %v5740 = vpack.c.b16 %v4428, %v4420
    %v5741 = vpack.c.b16 %v4429, %v4421
    %v5742 = vpack.c.b16 %v4430, %v4422
    %v5743 = vpack.c.b16 %v4431, %v4423
    %v5744 = vpack.c.b16 %v4432, %v4424
    %v5745 = vpack.c.b16 %v4433, %v4425
    %v5746 = vpack.c.b16 %v4442, %v4434
    %v5747 = vpack.c.b16 %v4443, %v4435
    %v5748 = vpack.c.b16 %v4444, %v4436
    %v5749 = vpack.c.b16 %v4445, %v4437
    %v5750 = vpack.c.b16 %v4446, %v4438
    %v5751 = vpack.c.b16 %v4447, %v4439
    %v5752 = vpack.c.b16 %v4448, %v4440
    %v5753 = vpack.c.b16 %v4449, %v4441
    %v5754 = vpack.c.b16 %v4458, %v4450
    %v5755 = vpack.c.b16 %v4459, %v4451
    %v5756 = vpack.c.b16 %v4460, %v4452
    %v5757 = vpack.c.b16 %v4461, %v4453
    %v5758 = vpack.c.b16 %v4462, %v4454
    %v5759 = vpack.c.b16 %v4463, %v4455
    %v5760 = vpack.c.b16 %v4464, %v4456
    %v5761 = vpack.c.b16 %v4465, %v4457
    %v5762 = vpack.c.b16 %v4474, %v4466
    %v5763 = vpack.c.b16 %v4475, %v4467
    %v5764 = vpack.c.b16 %v4476, %v4468
    %v5765 = vpack.c.b16 %v4477, %v4469
    %v5766 = vpack.c.b16 %v4478, %v4470
    %v5767 = vpack.c.b16 %v4479, %v4471
    %v5768 = vpack.c.b16 %v4480, %v4472
    %v5769 = vpack.c.b16 %v4481, %v4473
    %v5770 = vpack.c.b16 %v4490, %v4482
    %v5771 = vpack.c.b16 %v4491, %v4483
    %v5772 = vpack.c.b16 %v4492, %v4484
    %v5773 = vpack.c.b16 %v4493, %v4485
    %v5774 = vpack.c.b16 %v4494, %v4486
    %v5775 = vpack.c.b16 %v4495, %v4487
    %v5776 = vpack.c.b16 %v4496, %v4488
    %v5777 = vpack.c.b16 %v4497, %v4489
    %v5778 = vpack.c.b16 %v4506, %v4498
    %v5779 = vpack.c.b16 %v4507, %v4499
    %v5780 = vpack.c.b16 %v4508, %v4500
    %v5781 = vpack.c.b16 %v4509, %v4501
    %v5782 = vpack.c.b16 %v4510, %v4502
    %v5783 = vpack.c.b16 %v4511, %v4503
    %v5784 = vpack.c.b16 %v4512, %v4504
    %v5785 = vpack.c.b16 %v4513, %v4505
    %v5786 = vpack.c.b16 %v4522, %v4514
    %v5787 = vpack.c.b16 %v4523, %v4515
    %v5788 = vpack.c.b16 %v4524, %v4516
    %v5789 = vpack.c.b16 %v4525, %v4517
    %v5790 = vpack.c.b16 %v4526, %v4518
    %v5791 = vpack.c.b16 %v4527, %v4519
    %v5792 = vpack.c.b16 %v4528, %v4520
    %v5793 = vpack.c.b16 %v4529, %v4521
    %v5794 = vpack.c.b16 %v4538, %v4530
    %v5795 = vpack.c.b16 %v4539, %v4531
    %v5796 = vpack.c.b16 %v4540, %v4532
    %v5797 = vpack.c.b16 %v4541, %v4533
    %v5798 = vpack.c.b16 %v4542, %v4534
    %v5799 = vpack.c.b16 %v4543, %v4535
    %v5800 = vpack.c.b16 %v4544, %v4536
    %v5801 = vpack.c.b16 %v4545, %v4537
    %v5802 = vpack.c.b16 %v4554, %v4546
    %v5803 = vpack.c.b16 %v4555, %v4547
    %v5804 = vpack.c.b16 %v4556, %v4548
    %v5805 = vpack.c.b16 %v4557, %v4549
    %v5806 = vpack.c.b16 %v4558, %v4550
    %v5807 = vpack.c.b16 %v4559, %v4551
    %v5808 = vpack.c.b16 %v4560, %v4552
    %v5809 = vpack.c.b16 %v4561, %v4553
    %v5810 = vpack.c.b16 %v4570, %v4562
    %v5811 = vpack.c.b16 %v4571, %v4563
    %v5812 = vpack.c.b16 %v4572, %v4564
    %v5813 = vpack.c.b16 %v4573, %v4565
    %v5814 = vpack.c.b16 %v4574, %v4566
    %v5815 = vpack.c.b16 %v4575, %v4567
    %v5816 = vpack.c.b16 %v4576, %v4568
    %v5817 = vpack.c.b16 %v4577, %v4569
    %v5818 = vpack.c.b16 %v4586, %v4578
    %v5819 = vpack.c.b16 %v4587, %v4579
    %v5820 = vpack.c.b16 %v4588, %v4580
    %v5821 = vpack.c.b16 %v4589, %v4581
    %v5822 = vpack.c.b16 %v4590, %v4582
    %v5823 = vpack.c.b16 %v4591, %v4583
    %v5824 = vpack.c.b16 %v4592, %v4584
    %v5825 = vpack.c.b16 %v4593, %v4585
    %v5826 = vpack.c.b16 %v4602, %v4594
    %v5827 = vpack.c.b16 %v4603, %v4595
    %v5828 = vpack.c.b16 %v4604, %v4596
    %v5829 = vpack.c.b16 %v4605, %v4597
    %v5830 = vpack.c.b16 %v4606, %v4598
    %v5831 = vpack.c.b16 %v4607, %v4599
    %v5832 = vpack.c.b16 %v4608, %v4600
    %v5833 = vpack.c.b16 %v4609, %v4601
    %v5834 = vpack.c.b16 %v4618, %v4610
    %v5835 = vpack.c.b16 %v4619, %v4611
    %v5836 = vpack.c.b16 %v4620, %v4612
    %v5837 = vpack.c.b16 %v4621, %v4613
    %v5838 = vpack.c.b16 %v4622, %v4614
    %v5839 = vpack.c.b16 %v4623, %v4615
    %v5840 = vpack.c.b16 %v4624, %v4616
    %v5841 = vpack.c.b16 %v4625, %v4617
    %v5842 = vpack.c.b16 %v4634, %v4626
    %v5843 = vpack.c.b16 %v4635, %v4627
    %v5844 = vpack.c.b16 %v4636, %v4628
    %v5845 = vpack.c.b16 %v4637, %v4629
    %v5846 = vpack.c.b16 %v4638, %v4630
    %v5847 = vpack.c.b16 %v4639, %v4631
    %v5848 = vpack.c.b16 %v4640, %v4632
    %v5849 = vpack.c.b16 %v4641, %v4633
    %v5850 = vpack.c.b16 %v4650, %v4642
    %v5851 = vpack.c.b16 %v4651, %v4643
    %v5852 = vpack.c.b16 %v4652, %v4644
    %v5853 = vpack.c.b16 %v4653, %v4645
    %v5854 = vpack.c.b16 %v4654, %v4646
    %v5855 = vpack.c.b16 %v4655, %v4647
    %v5856 = vpack.c.b16 %v4656, %v4648
    %v5857 = vpack.c.b16 %v4657, %v4649
    %v5858 = vpack.c.b16 %v4666, %v4658
    %v5859 = vpack.c.b16 %v4667, %v4659
    %v5860 = vpack.c.b16 %v4668, %v4660
    %v5861 = vpack.c.b16 %v4669, %v4661
    %v5862 = vpack.c.b16 %v4670, %v4662
    %v5863 = vpack.c.b16 %v4671, %v4663
    %v5864 = vpack.c.b16 %v4672, %v4664
    %v5865 = vpack.c.b16 %v4673, %v4665
    %v5866 = vpack.c.b16 %v4682, %v4674
    %v5867 = vpack.c.b16 %v4683, %v4675
    %v5868 = vpack.c.b16 %v4684, %v4676
    %v5869 = vpack.c.b16 %v4685, %v4677
    %v5870 = vpack.c.b16 %v4686, %v4678
    %v5871 = vpack.c.b16 %v4687, %v4679
    %v5872 = vpack.c.b16 %v4688, %v4680
    %v5873 = vpack.c.b16 %v4689, %v4681
    %v5874 = vpack.c.b16 %v4698, %v4690
    %v5875 = vpack.c.b16 %v4699, %v4691
    %v5876 = vpack.c.b16 %v4700, %v4692
    %v5877 = vpack.c.b16 %v4701, %v4693
    %v5878 = vpack.c.b16 %v4702, %v4694
    %v5879 = vpack.c.b16 %v4703, %v4695
    %v5880 = vpack.c.b16 %v4704, %v4696
    %v5881 = vpack.c.b16 %v4705, %v4697
    %v5882 = vpack.c.b16 %v4714, %v4706
    %v5883 = vpack.c.b16 %v4715, %v4707
    %v5884 = vpack.c.b16 %v4716, %v4708
    %v5885 = vpack.c.b16 %v4717, %v4709
    %v5886 = vpack.c.b16 %v4718, %v4710
    %v5887 = vpack.c.b16 %v4719, %v4711
    %v5888 = vpack.c.b16 %v4720, %v4712
    %v5889 = vpack.c.b16 %v4721, %v4713
    %v5890 = vpack.c.b16 %v4730, %v4722
    %v5891 = vpack.c.b16 %v4731, %v4723
    %v5892 = vpack.c.b16 %v4732, %v4724
    %v5893 = vpack.c.b16 %v4733, %v4725
    %v5894 = vpack.c.b16 %v4734, %v4726
    %v5895 = vpack.c.b16 %v4735, %v4727
    %v5896 = vpack.c.b16 %v4736, %v4728
    %v5897 = vpack.c.b16 %v4737, %v4729
    %v5898 = vpack.c.b16 %v4746, %v4738
    %v5899 = vpack.c.b16 %v4747, %v4739
    %v5900 = vpack.c.b16 %v4748, %v4740
    %v5901 = vpack.c.b16 %v4749, %v4741
    %v5902 = vpack.c.b16 %v4750, %v4742
    %v5903 = vpack.c.b16 %v4751, %v4743
    %v5904 = vpack.c.b16 %v4752, %v4744
    %v5905 = vpack.c.b16 %v4753, %v4745
    %v5906 = vpack.c.b16 %v4762, %v4754
    %v5907 = vpack.c.b16 %v4763, %v4755
    %v5908 = vpack.c.b16 %v4764, %v4756
    %v5909 = vpack.c.b16 %v4765, %v4757
    %v5910 = vpack.c.b16 %v4766, %v4758
    %v5911 = vpack.c.b16 %v4767, %v4759
    %v5912 = vpack.c.b16 %v4768, %v4760
    %v5913 = vpack.c.b16 %v4769, %v4761
    %v5914 = vpack.c.b16 %v4778, %v4770
    %v5915 = vpack.c.b16 %v4779, %v4771
    %v5916 = vpack.c.b16 %v4780, %v4772
    %v5917 = vpack.c.b16 %v4781, %v4773
    %v5918 = vpack.c.b16 %v4782, %v4774
    %v5919 = vpack.c.b16 %v4783, %v4775
    %v5920 = vpack.c.b16 %v4784, %v4776
    %v5921 = vpack.c.b16 %v4785, %v4777
    %v5922 = vpack.c.b16 %v4794, %v4786
    %v5923 = vpack.c.b16 %v4795, %v4787
    %v5924 = vpack.c.b16 %v4796, %v4788
    %v5925 = vpack.c.b16 %v4797, %v4789
    %v5926 = vpack.c.b16 %v4798, %v4790
    %v5927 = vpack.c.b16 %v4799, %v4791
    %v5928 = vpack.c.b16 %v4800, %v4792
    %v5929 = vpack.c.b16 %v4801, %v4793
    %v5930 = vpack.c.b16 %v4810, %v4802
    %v5931 = vpack.c.b16 %v4811, %v4803
    %v5932 = vpack.c.b16 %v4812, %v4804
    %v5933 = vpack.c.b16 %v4813, %v4805
    %v5934 = vpack.c.b16 %v4814, %v4806
    %v5935 = vpack.c.b16 %v4815, %v4807
    %v5936 = vpack.c.b16 %v4816, %v4808
    %v5937 = vpack.c.b16 %v4817, %v4809
    %v5938 = vpack.c.b16 %v4826, %v4818
    %v5939 = vpack.c.b16 %v4827, %v4819
    %v5940 = vpack.c.b16 %v4828, %v4820
    %v5941 = vpack.c.b16 %v4829, %v4821
    %v5942 = vpack.c.b16 %v4830, %v4822
    %v5943 = vpack.c.b16 %v4831, %v4823
    %v5944 = vpack.c.b16 %v4832, %v4824
    %v5945 = vpack.c.b16 %v4833, %v4825
    %v5946 = vpack.c.b16 %v4842, %v4834
    %v5947 = vpack.c.b16 %v4843, %v4835
    %v5948 = vpack.c.b16 %v4844, %v4836
    %v5949 = vpack.c.b16 %v4845, %v4837
    %v5950 = vpack.c.b16 %v4846, %v4838
    %v5951 = vpack.c.b16 %v4847, %v4839
    %v5952 = vpack.c.b16 %v4848, %v4840
    %v5953 = vpack.c.b16 %v4849, %v4841
    %v5954 = vpack.c.b16 %v4858, %v4850
    %v5955 = vpack.c.b16 %v4859, %v4851
    %v5956 = vpack.c.b16 %v4860, %v4852
    %v5957 = vpack.c.b16 %v4861, %v4853
    %v5958 = vpack.c.b16 %v4862, %v4854
    %v5959 = vpack.c.b16 %v4863, %v4855
    %v5960 = vpack.c.b16 %v4864, %v4856
    %v5961 = vpack.c.b16 %v4865, %v4857
    %v5962 = vpack.c.b16 %v4874, %v4866
    %v5963 = vpack.c.b16 %v4875, %v4867
    %v5964 = vpack.c.b16 %v4876, %v4868
    %v5965 = vpack.c.b16 %v4877, %v4869
    %v5966 = vpack.c.b16 %v4878, %v4870
    %v5967 = vpack.c.b16 %v4879, %v4871
    %v5968 = vpack.c.b16 %v4880, %v4872
    %v5969 = vpack.c.b16 %v4881, %v4873
    %v5970 = vpack.c.b16 %v4890, %v4882
    %v5971 = vpack.c.b16 %v4891, %v4883
    %v5972 = vpack.c.b16 %v4892, %v4884
    %v5973 = vpack.c.b16 %v4893, %v4885
    %v5974 = vpack.c.b16 %v4894, %v4886
    %v5975 = vpack.c.b16 %v4895, %v4887
    %v5976 = vpack.c.b16 %v4896, %v4888
    %v5977 = vpack.c.b16 %v4897, %v4889
    %v5978 = vpack.c.b16 %v4906, %v4898
    %v5979 = vpack.c.b16 %v4907, %v4899
    %v5980 = vpack.c.b16 %v4908, %v4900
    %v5981 = vpack.c.b16 %v4909, %v4901
    %v5982 = vpack.c.b16 %v4910, %v4902
    %v5983 = vpack.c.b16 %v4911, %v4903
    %v5984 = vpack.c.b16 %v4912, %v4904
    %v5985 = vpack.c.b16 %v4913, %v4905
    %v5986 = vpack.c.b16 %v4922, %v4914
    %v5987 = vpack.c.b16 %v4923, %v4915
    %v5988 = vpack.c.b16 %v4924, %v4916
    %v5989 = vpack.c.b16 %v4925, %v4917
    %v5990 = vpack.c.b16 %v4926, %v4918
    %v5991 = vpack.c.b16 %v4927, %v4919
    %v5992 = vpack.c.b16 %v4928, %v4920
    %v5993 = vpack.c.b16 %v4929, %v4921
    %v5994 = vpack.c.b16 %v4938, %v4930
    %v5995 = vpack.c.b16 %v4939, %v4931
    %v5996 = vpack.c.b16 %v4940, %v4932
    %v5997 = vpack.c.b16 %v4941, %v4933
    %v5998 = vpack.c.b16 %v4942, %v4934
    %v5999 = vpack.c.b16 %v4943, %v4935
    %v6000 = vpack.c.b16 %v4944, %v4936
    %v6001 = vpack.c.b16 %v4945, %v4937
    %v6002 = vpack.c.b16 %v4954, %v4946
    %v6003 = vpack.c.b16 %v4955, %v4947
    %v6004 = vpack.c.b16 %v4956, %v4948
    %v6005 = vpack.c.b16 %v4957, %v4949
    %v6006 = vpack.c.b16 %v4958, %v4950
    %v6007 = vpack.c.b16 %v4959, %v4951
    %v6008 = vpack.c.b16 %v4960, %v4952
    %v6009 = vpack.c.b16 %v4961, %v4953
    %v6010 = vpack.c.b16 %v4970, %v4962
    %v6011 = vpack.c.b16 %v4971, %v4963
    %v6012 = vpack.c.b16 %v4972, %v4964
    %v6013 = vpack.c.b16 %v4973, %v4965
    %v6014 = vpack.c.b16 %v4974, %v4966
    %v6015 = vpack.c.b16 %v4975, %v4967
    %v6016 = vpack.c.b16 %v4976, %v4968
    %v6017 = vpack.c.b16 %v4977, %v4969
    %v6018 = vpack.c.b16 %v4986, %v4978
    %v6019 = vpack.c.b16 %v4987, %v4979
    %v6020 = vpack.c.b16 %v4988, %v4980
    %v6021 = vpack.c.b16 %v4989, %v4981
    %v6022 = vpack.c.b16 %v4990, %v4982
    %v6023 = vpack.c.b16 %v4991, %v4983
    %v6024 = vpack.c.b16 %v4992, %v4984
    %v6025 = vpack.c.b16 %v4993, %v4985
    %v6026 = vpack.c.b16 %v5002, %v4994
    %v6027 = vpack.c.b16 %v5003, %v4995
    %v6028 = vpack.c.b16 %v5004, %v4996
    %v6029 = vpack.c.b16 %v5005, %v4997
    %v6030 = vpack.c.b16 %v5006, %v4998
    %v6031 = vpack.c.b16 %v5007, %v4999
    %v6032 = vpack.c.b16 %v5008, %v5000
    %v6033 = vpack.c.b16 %v5009, %v5001
    %7058 = vmatprep.subr.bf16.mxu0 %v5067
    %7059 = vmatpush1.bf16.msra.mxu0 %v5066
    %7060 = vmatprep.subr.bf16.mxu0 %v5059
    %7061 = vmatpush1.bf16.msra.mxu0 %v5058
    %7062 = vmatprep.subr.bf16.mxu0 %v5051
    %7063 = vmatpush1.bf16.msra.mxu0 %v5050
    %7064 = vmatprep.subr.bf16.mxu0 %v5043
    %7065 = vmatpush1.bf16.msra.mxu0 %v5042
    %7066 = vmatprep.subr.bf16.mxu0 %v5035
    %7067 = vmatpush1.bf16.msra.mxu0 %v5034
    %7068 = vmatprep.subr.bf16.mxu0 %v5027
    %7069 = vmatpush1.bf16.msra.mxu0 %v5026
    %7070 = vmatprep.subr.bf16.mxu0 %v5019
    %7071 = vmatpush1.bf16.msra.mxu0 %v5018
    %7072 = vmatprep.subr.bf16.mxu0 %v5011
    %7073 = vmatpush1.bf16.msra.mxu0 %v5010
    %7074 = vmatprep.subr.bf16.mxu0 %v5131
    %7075 = vmatpush2.bf16.msra.mxu0 %v5130
    %7076 = vmatprep.subr.bf16.mxu0 %v5123
    %7077 = vmatpush2.bf16.msra.mxu0 %v5122
    %7078 = vmatprep.subr.bf16.mxu0 %v5115
    %7079 = vmatpush2.bf16.msra.mxu0 %v5114
    %7080 = vmatprep.subr.bf16.mxu0 %v5107
    %7081 = vmatpush2.bf16.msra.mxu0 %v5106
    %7082 = vmatprep.subr.bf16.mxu0 %v5099
    %7083 = vmatpush2.bf16.msra.mxu0 %v5098
    %7084 = vmatprep.subr.bf16.mxu0 %v5091
    %7085 = vmatpush2.bf16.msra.mxu0 %v5090
    %7086 = vmatprep.subr.bf16.mxu0 %v5083
    %7087 = vmatpush2.bf16.msra.mxu0 %v5082
    %7088 = vmatprep.subr.bf16.mxu0 %v5075
    %7089 = vmatpush2.bf16.msra.mxu0 %v5074
    %7090 = vmatprep.mubr.bf16.mxu0 %v857
    %7091 = vmatmul.mubr.bf16.gmra.mxu0 %v856
    %v7092 = vpop.f32.mrf.mxu0
    %v7093 = vadd.f32 %v1901, %v7092
    %v7094 = vpop.f32.mrf.mxu0
    %v7095 = vadd.f32 %v1905, %v7094
    %v7096 = vpop.f32.mrf.mxu0
    %v7097 = vpop.f32.mrf.mxu0
    %7098 = vdwg.mxu0
    %7099 = vmatprep.subr.bf16.mxu0 %v5195
    %7100 = vmatpush1.bf16.msra.mxu0 %v5194
    %7101 = vmatprep.subr.bf16.mxu0 %v5187
    %7102 = vmatpush1.bf16.msra.mxu0 %v5186
    %7103 = vmatprep.subr.bf16.mxu0 %v5179
    %7104 = vmatpush1.bf16.msra.mxu0 %v5178
    %7105 = vmatprep.subr.bf16.mxu0 %v5171
    %7106 = vmatpush1.bf16.msra.mxu0 %v5170
    %7107 = vmatprep.subr.bf16.mxu0 %v5163
    %7108 = vmatpush1.bf16.msra.mxu0 %v5162
    %7109 = vmatprep.subr.bf16.mxu0 %v5155
    %7110 = vmatpush1.bf16.msra.mxu0 %v5154
    %7111 = vmatprep.subr.bf16.mxu0 %v5147
    %7112 = vmatpush1.bf16.msra.mxu0 %v5146
    %7113 = vmatprep.subr.bf16.mxu0 %v5139
    %7114 = vmatpush1.bf16.msra.mxu0 %v5138
    %7115 = vmatprep.subr.bf16.mxu0 %v5259
    %7116 = vmatpush2.bf16.msra.mxu0 %v5258
    %7117 = vmatprep.subr.bf16.mxu0 %v5251
    %7118 = vmatpush2.bf16.msra.mxu0 %v5250
    %7119 = vmatprep.subr.bf16.mxu0 %v5243
    %7120 = vmatpush2.bf16.msra.mxu0 %v5242
    %7121 = vmatprep.subr.bf16.mxu0 %v5235
    %7122 = vmatpush2.bf16.msra.mxu0 %v5234
    %7123 = vmatprep.subr.bf16.mxu0 %v5227
    %7124 = vmatpush2.bf16.msra.mxu0 %v5226
    %7125 = vmatprep.subr.bf16.mxu0 %v5219
    %7126 = vmatpush2.bf16.msra.mxu0 %v5218
    %7127 = vmatprep.subr.bf16.mxu0 %v5211
    %7128 = vmatpush2.bf16.msra.mxu0 %v5210
    %7129 = vmatprep.subr.bf16.mxu0 %v5203
    %7130 = vmatpush2.bf16.msra.mxu0 %v5202
    %7131 = vmatprep.mubr.bf16.mxu0 %v859
    %7132 = vmatmul.mubr.bf16.gmra.mxu0 %v858
    %v7133 = vpop.f32.mrf.mxu0
    %v7134 = vadd.f32 %v7093, %v7133
    %v7135 = vpop.f32.mrf.mxu0
    %v7136 = vadd.f32 %v7095, %v7135
    %v7137 = vpop.f32.mrf.mxu0
    %v7138 = vpop.f32.mrf.mxu0
    %7139 = vdwg.mxu0
    %7140 = vmatprep.subr.bf16.mxu0 %v5323
    %7141 = vmatpush1.bf16.msra.mxu0 %v5322
    %7142 = vmatprep.subr.bf16.mxu0 %v5315
    %7143 = vmatpush1.bf16.msra.mxu0 %v5314
    %7144 = vmatprep.subr.bf16.mxu0 %v5307
    %7145 = vmatpush1.bf16.msra.mxu0 %v5306
    %7146 = vmatprep.subr.bf16.mxu0 %v5299
    %7147 = vmatpush1.bf16.msra.mxu0 %v5298
    %7148 = vmatprep.subr.bf16.mxu0 %v5291
    %7149 = vmatpush1.bf16.msra.mxu0 %v5290
    %7150 = vmatprep.subr.bf16.mxu0 %v5283
    %7151 = vmatpush1.bf16.msra.mxu0 %v5282
    %7152 = vmatprep.subr.bf16.mxu0 %v5275
    %7153 = vmatpush1.bf16.msra.mxu0 %v5274
    %7154 = vmatprep.subr.bf16.mxu0 %v5267
    %7155 = vmatpush1.bf16.msra.mxu0 %v5266
    %7156 = vmatprep.subr.bf16.mxu0 %v5387
    %7157 = vmatpush2.bf16.msra.mxu0 %v5386
    %7158 = vmatprep.subr.bf16.mxu0 %v5379
    %7159 = vmatpush2.bf16.msra.mxu0 %v5378
    %7160 = vmatprep.subr.bf16.mxu0 %v5371
    %7161 = vmatpush2.bf16.msra.mxu0 %v5370
    %7162 = vmatprep.subr.bf16.mxu0 %v5363
    %7163 = vmatpush2.bf16.msra.mxu0 %v5362
    %7164 = vmatprep.subr.bf16.mxu0 %v5355
    %7165 = vmatpush2.bf16.msra.mxu0 %v5354
    %7166 = vmatprep.subr.bf16.mxu0 %v5347
    %7167 = vmatpush2.bf16.msra.mxu0 %v5346
    %7168 = vmatprep.subr.bf16.mxu0 %v5339
    %7169 = vmatpush2.bf16.msra.mxu0 %v5338
    %7170 = vmatprep.subr.bf16.mxu0 %v5331
    %7171 = vmatpush2.bf16.msra.mxu0 %v5330
    %7172 = vmatprep.mubr.bf16.mxu0 %v861
    %7173 = vmatmul.mubr.bf16.gmra.mxu0 %v860
    %v7174 = vpop.f32.mrf.mxu0
    %v7175 = vadd.f32 %v7134, %v7174
    %v7176 = vpop.f32.mrf.mxu0
    %v7177 = vadd.f32 %v7136, %v7176
    %v7178 = vpop.f32.mrf.mxu0
    %v7179 = vpop.f32.mrf.mxu0
    %7180 = vdwg.mxu0
    %7181 = vmatprep.subr.bf16.mxu0 %v5451
    %7182 = vmatpush1.bf16.msra.mxu0 %v5450
    %7183 = vmatprep.subr.bf16.mxu0 %v5443
    %7184 = vmatpush1.bf16.msra.mxu0 %v5442
    %7185 = vmatprep.subr.bf16.mxu0 %v5435
    %7186 = vmatpush1.bf16.msra.mxu0 %v5434
    %7187 = vmatprep.subr.bf16.mxu0 %v5427
    %7188 = vmatpush1.bf16.msra.mxu0 %v5426
    %7189 = vmatprep.subr.bf16.mxu0 %v5419
    %7190 = vmatpush1.bf16.msra.mxu0 %v5418
    %7191 = vmatprep.subr.bf16.mxu0 %v5411
    %7192 = vmatpush1.bf16.msra.mxu0 %v5410
    %7193 = vmatprep.subr.bf16.mxu0 %v5403
    %7194 = vmatpush1.bf16.msra.mxu0 %v5402
    %7195 = vmatprep.subr.bf16.mxu0 %v5395
    %7196 = vmatpush1.bf16.msra.mxu0 %v5394
    %7197 = vmatprep.subr.bf16.mxu0 %v5515
    %7198 = vmatpush2.bf16.msra.mxu0 %v5514
    %7199 = vmatprep.subr.bf16.mxu0 %v5507
    %7200 = vmatpush2.bf16.msra.mxu0 %v5506
    %7201 = vmatprep.subr.bf16.mxu0 %v5499
    %7202 = vmatpush2.bf16.msra.mxu0 %v5498
    %7203 = vmatprep.subr.bf16.mxu0 %v5491
    %7204 = vmatpush2.bf16.msra.mxu0 %v5490
    %7205 = vmatprep.subr.bf16.mxu0 %v5483
    %7206 = vmatpush2.bf16.msra.mxu0 %v5482
    %7207 = vmatprep.subr.bf16.mxu0 %v5475
    %7208 = vmatpush2.bf16.msra.mxu0 %v5474
    %7209 = vmatprep.subr.bf16.mxu0 %v5467
    %7210 = vmatpush2.bf16.msra.mxu0 %v5466
    %7211 = vmatprep.subr.bf16.mxu0 %v5459
    %7212 = vmatpush2.bf16.msra.mxu0 %v5458
    %7213 = vmatprep.mubr.bf16.mxu0 %v863
    %7214 = vmatmul.mubr.bf16.gmra.mxu0 %v862
    %v7215 = vpop.f32.mrf.mxu0
    %v7216 = vadd.f32 %v7175, %v7215
    %v7217 = vpop.f32.mrf.mxu0
    %v7218 = vadd.f32 %v7177, %v7217
    %v7219 = vpop.f32.mrf.mxu0
    %v7220 = vpop.f32.mrf.mxu0
    %7221 = vdwg.mxu0
    %7222 = vmatprep.subr.bf16.mxu0 %v5579
    %7223 = vmatpush1.bf16.msra.mxu0 %v5578
    %7224 = vmatprep.subr.bf16.mxu0 %v5571
    %7225 = vmatpush1.bf16.msra.mxu0 %v5570
    %7226 = vmatprep.subr.bf16.mxu0 %v5563
    %7227 = vmatpush1.bf16.msra.mxu0 %v5562
    %7228 = vmatprep.subr.bf16.mxu0 %v5555
    %7229 = vmatpush1.bf16.msra.mxu0 %v5554
    %7230 = vmatprep.subr.bf16.mxu0 %v5547
    %7231 = vmatpush1.bf16.msra.mxu0 %v5546
    %7232 = vmatprep.subr.bf16.mxu0 %v5539
    %7233 = vmatpush1.bf16.msra.mxu0 %v5538
    %7234 = vmatprep.subr.bf16.mxu0 %v5531
    %7235 = vmatpush1.bf16.msra.mxu0 %v5530
    %7236 = vmatprep.subr.bf16.mxu0 %v5523
    %7237 = vmatpush1.bf16.msra.mxu0 %v5522
    %7238 = vmatprep.subr.bf16.mxu0 %v5643
    %7239 = vmatpush2.bf16.msra.mxu0 %v5642
    %7240 = vmatprep.subr.bf16.mxu0 %v5635
    %7241 = vmatpush2.bf16.msra.mxu0 %v5634
    %7242 = vmatprep.subr.bf16.mxu0 %v5627
    %7243 = vmatpush2.bf16.msra.mxu0 %v5626
    %7244 = vmatprep.subr.bf16.mxu0 %v5619
    %7245 = vmatpush2.bf16.msra.mxu0 %v5618
    %7246 = vmatprep.subr.bf16.mxu0 %v5611
    %7247 = vmatpush2.bf16.msra.mxu0 %v5610
    %7248 = vmatprep.subr.bf16.mxu0 %v5603
    %7249 = vmatpush2.bf16.msra.mxu0 %v5602
    %7250 = vmatprep.subr.bf16.mxu0 %v5595
    %7251 = vmatpush2.bf16.msra.mxu0 %v5594
    %7252 = vmatprep.subr.bf16.mxu0 %v5587
    %7253 = vmatpush2.bf16.msra.mxu0 %v5586
    %7254 = vmatprep.mubr.bf16.mxu0 %v865
    %7255 = vmatmul.mubr.bf16.gmra.mxu0 %v864
    %v7256 = vpop.f32.mrf.mxu0
    %v7257 = vadd.f32 %v7216, %v7256
    %v7258 = vpop.f32.mrf.mxu0
    %v7259 = vadd.f32 %v7218, %v7258
    %v7260 = vpop.f32.mrf.mxu0
    %v7261 = vpop.f32.mrf.mxu0
    %7262 = vdwg.mxu0
    %7263 = vmatprep.subr.bf16.mxu0 %v5707
    %7264 = vmatpush1.bf16.msra.mxu0 %v5706
    %7265 = vmatprep.subr.bf16.mxu0 %v5699
    %7266 = vmatpush1.bf16.msra.mxu0 %v5698
    %7267 = vmatprep.subr.bf16.mxu0 %v5691
    %7268 = vmatpush1.bf16.msra.mxu0 %v5690
    %7269 = vmatprep.subr.bf16.mxu0 %v5683
    %7270 = vmatpush1.bf16.msra.mxu0 %v5682
    %7271 = vmatprep.subr.bf16.mxu0 %v5675
    %7272 = vmatpush1.bf16.msra.mxu0 %v5674
    %7273 = vmatprep.subr.bf16.mxu0 %v5667
    %7274 = vmatpush1.bf16.msra.mxu0 %v5666
    %7275 = vmatprep.subr.bf16.mxu0 %v5659
    %7276 = vmatpush1.bf16.msra.mxu0 %v5658
    %7277 = vmatprep.subr.bf16.mxu0 %v5651
    %7278 = vmatpush1.bf16.msra.mxu0 %v5650
    %7279 = vmatprep.subr.bf16.mxu0 %v5771
    %7280 = vmatpush2.bf16.msra.mxu0 %v5770
    %7281 = vmatprep.subr.bf16.mxu0 %v5763
    %7282 = vmatpush2.bf16.msra.mxu0 %v5762
    %7283 = vmatprep.subr.bf16.mxu0 %v5755
    %7284 = vmatpush2.bf16.msra.mxu0 %v5754
    %7285 = vmatprep.subr.bf16.mxu0 %v5747
    %7286 = vmatpush2.bf16.msra.mxu0 %v5746
    %7287 = vmatprep.subr.bf16.mxu0 %v5739
    %7288 = vmatpush2.bf16.msra.mxu0 %v5738
    %7289 = vmatprep.subr.bf16.mxu0 %v5731
    %7290 = vmatpush2.bf16.msra.mxu0 %v5730
    %7291 = vmatprep.subr.bf16.mxu0 %v5723
    %7292 = vmatpush2.bf16.msra.mxu0 %v5722
    %7293 = vmatprep.subr.bf16.mxu0 %v5715
    %7294 = vmatpush2.bf16.msra.mxu0 %v5714
    %7295 = vmatprep.mubr.bf16.mxu0 %v867
    %7296 = vmatmul.mubr.bf16.gmra.mxu0 %v866
    %v7297 = vpop.f32.mrf.mxu0
    %v7298 = vadd.f32 %v7257, %v7297
    %v7299 = vpop.f32.mrf.mxu0
    %v7300 = vadd.f32 %v7259, %v7299
    %v7301 = vpop.f32.mrf.mxu0
    %v7302 = vpop.f32.mrf.mxu0
    %7303 = vdwg.mxu0
    %7304 = vmatprep.subr.bf16.mxu0 %v5835
    %7305 = vmatpush1.bf16.msra.mxu0 %v5834
    %7306 = vmatprep.subr.bf16.mxu0 %v5827
    %7307 = vmatpush1.bf16.msra.mxu0 %v5826
    %7308 = vmatprep.subr.bf16.mxu0 %v5819
    %7309 = vmatpush1.bf16.msra.mxu0 %v5818
    %7310 = vmatprep.subr.bf16.mxu0 %v5811
    %7311 = vmatpush1.bf16.msra.mxu0 %v5810
    %7312 = vmatprep.subr.bf16.mxu0 %v5803
    %7313 = vmatpush1.bf16.msra.mxu0 %v5802
    %7314 = vmatprep.subr.bf16.mxu0 %v5795
    %7315 = vmatpush1.bf16.msra.mxu0 %v5794
    %7316 = vmatprep.subr.bf16.mxu0 %v5787
    %7317 = vmatpush1.bf16.msra.mxu0 %v5786
    %7318 = vmatprep.subr.bf16.mxu0 %v5779
    %7319 = vmatpush1.bf16.msra.mxu0 %v5778
    %7320 = vmatprep.subr.bf16.mxu0 %v5899
    %7321 = vmatpush2.bf16.msra.mxu0 %v5898
    %7322 = vmatprep.subr.bf16.mxu0 %v5891
    %7323 = vmatpush2.bf16.msra.mxu0 %v5890
    %7324 = vmatprep.subr.bf16.mxu0 %v5883
    %7325 = vmatpush2.bf16.msra.mxu0 %v5882
    %7326 = vmatprep.subr.bf16.mxu0 %v5875
    %7327 = vmatpush2.bf16.msra.mxu0 %v5874
    %7328 = vmatprep.subr.bf16.mxu0 %v5867
    %7329 = vmatpush2.bf16.msra.mxu0 %v5866
    %7330 = vmatprep.subr.bf16.mxu0 %v5859
    %7331 = vmatpush2.bf16.msra.mxu0 %v5858
    %7332 = vmatprep.subr.bf16.mxu0 %v5851
    %7333 = vmatpush2.bf16.msra.mxu0 %v5850
    %7334 = vmatprep.subr.bf16.mxu0 %v5843
    %7335 = vmatpush2.bf16.msra.mxu0 %v5842
    %7336 = vmatprep.mubr.bf16.mxu0 %v869
    %7337 = vmatmul.mubr.bf16.gmra.mxu0 %v868
    %v7338 = vpop.f32.mrf.mxu0
    %v7339 = vadd.f32 %v7298, %v7338
    %v7340 = vpop.f32.mrf.mxu0
    %v7341 = vadd.f32 %v7300, %v7340
    %v7342 = vpop.f32.mrf.mxu0
    %v7343 = vpop.f32.mrf.mxu0
    %7344 = vdwg.mxu0
    %7345 = vmatprep.subr.bf16.mxu0 %v5963
    %7346 = vmatpush1.bf16.msra.mxu0 %v5962
    %7347 = vmatprep.subr.bf16.mxu0 %v5955
    %7348 = vmatpush1.bf16.msra.mxu0 %v5954
    %7349 = vmatprep.subr.bf16.mxu0 %v5947
    %7350 = vmatpush1.bf16.msra.mxu0 %v5946
    %7351 = vmatprep.subr.bf16.mxu0 %v5939
    %7352 = vmatpush1.bf16.msra.mxu0 %v5938
    %7353 = vmatprep.subr.bf16.mxu0 %v5931
    %7354 = vmatpush1.bf16.msra.mxu0 %v5930
    %7355 = vmatprep.subr.bf16.mxu0 %v5923
    %7356 = vmatpush1.bf16.msra.mxu0 %v5922
    %7357 = vmatprep.subr.bf16.mxu0 %v5915
    %7358 = vmatpush1.bf16.msra.mxu0 %v5914
    %7359 = vmatprep.subr.bf16.mxu0 %v5907
    %7360 = vmatpush1.bf16.msra.mxu0 %v5906
    %7361 = vmatprep.subr.bf16.mxu0 %v6027
    %7362 = vmatpush2.bf16.msra.mxu0 %v6026
    %7363 = vmatprep.subr.bf16.mxu0 %v6019
    %7364 = vmatpush2.bf16.msra.mxu0 %v6018
    %7365 = vmatprep.subr.bf16.mxu0 %v6011
    %7366 = vmatpush2.bf16.msra.mxu0 %v6010
    %7367 = vmatprep.subr.bf16.mxu0 %v6003
    %7368 = vmatpush2.bf16.msra.mxu0 %v6002
    %7369 = vmatprep.subr.bf16.mxu0 %v5995
    %7370 = vmatpush2.bf16.msra.mxu0 %v5994
    %7371 = vmatprep.subr.bf16.mxu0 %v5987
    %7372 = vmatpush2.bf16.msra.mxu0 %v5986
    %7373 = vmatprep.subr.bf16.mxu0 %v5979
    %7374 = vmatpush2.bf16.msra.mxu0 %v5978
    %7375 = vmatprep.subr.bf16.mxu0 %v5971
    %7376 = vmatpush2.bf16.msra.mxu0 %v5970
    %7377 = vmatprep.mubr.bf16.mxu0 %v871
    %7378 = vmatmul.mubr.bf16.gmra.mxu0 %v870
    %v7379 = vpop.f32.mrf.mxu0
    %v7380 = vadd.f32 %v7339, %v7379
    %v7381 = vpop.f32.mrf.mxu0
    %v7382 = vadd.f32 %v7341, %v7381
    %v7383 = vpop.f32.mrf.mxu0
    %v7384 = vpop.f32.mrf.mxu0
    %7385 = vdwg.mxu0
    %7386 = vmatprep.subr.bf16.mxu0 %v5069
    %7387 = vmatpush1.bf16.msra.mxu0 %v5068
    %7388 = vmatprep.subr.bf16.mxu0 %v5061
    %7389 = vmatpush1.bf16.msra.mxu0 %v5060
    %7390 = vmatprep.subr.bf16.mxu0 %v5053
    %7391 = vmatpush1.bf16.msra.mxu0 %v5052
    %7392 = vmatprep.subr.bf16.mxu0 %v5045
    %7393 = vmatpush1.bf16.msra.mxu0 %v5044
    %7394 = vmatprep.subr.bf16.mxu0 %v5037
    %7395 = vmatpush1.bf16.msra.mxu0 %v5036
    %7396 = vmatprep.subr.bf16.mxu0 %v5029
    %7397 = vmatpush1.bf16.msra.mxu0 %v5028
    %7398 = vmatprep.subr.bf16.mxu0 %v5021
    %7399 = vmatpush1.bf16.msra.mxu0 %v5020
    %7400 = vmatprep.subr.bf16.mxu0 %v5013
    %7401 = vmatpush1.bf16.msra.mxu0 %v5012
    %7402 = vmatprep.subr.bf16.mxu0 %v5133
    %7403 = vmatpush2.bf16.msra.mxu0 %v5132
    %7404 = vmatprep.subr.bf16.mxu0 %v5125
    %7405 = vmatpush2.bf16.msra.mxu0 %v5124
    %7406 = vmatprep.subr.bf16.mxu0 %v5117
    %7407 = vmatpush2.bf16.msra.mxu0 %v5116
    %7408 = vmatprep.subr.bf16.mxu0 %v5109
    %7409 = vmatpush2.bf16.msra.mxu0 %v5108
    %7410 = vmatprep.subr.bf16.mxu0 %v5101
    %7411 = vmatpush2.bf16.msra.mxu0 %v5100
    %7412 = vmatprep.subr.bf16.mxu0 %v5093
    %7413 = vmatpush2.bf16.msra.mxu0 %v5092
    %7414 = vmatprep.subr.bf16.mxu0 %v5085
    %7415 = vmatpush2.bf16.msra.mxu0 %v5084
    %7416 = vmatprep.subr.bf16.mxu0 %v5077
    %7417 = vmatpush2.bf16.msra.mxu0 %v5076
    %7418 = vmatprep.mubr.bf16.mxu0 %v857
    %7419 = vmatmul.mubr.bf16.gmra.mxu0 %v856
    %v7420 = vpop.f32.mrf.mxu0
    %v7421 = vadd.f32 %v1909, %v7420
    %v7422 = vpop.f32.mrf.mxu0
    %v7423 = vadd.f32 %v1913, %v7422
    %v7424 = vpop.f32.mrf.mxu0
    %v7425 = vpop.f32.mrf.mxu0
    %7426 = vdwg.mxu0
    %7427 = vmatprep.subr.bf16.mxu0 %v5197
    %7428 = vmatpush1.bf16.msra.mxu0 %v5196
    %7429 = vmatprep.subr.bf16.mxu0 %v5189
    %7430 = vmatpush1.bf16.msra.mxu0 %v5188
    %7431 = vmatprep.subr.bf16.mxu0 %v5181
    %7432 = vmatpush1.bf16.msra.mxu0 %v5180
    %7433 = vmatprep.subr.bf16.mxu0 %v5173
    %7434 = vmatpush1.bf16.msra.mxu0 %v5172
    %7435 = vmatprep.subr.bf16.mxu0 %v5165
    %7436 = vmatpush1.bf16.msra.mxu0 %v5164
    %7437 = vmatprep.subr.bf16.mxu0 %v5157
    %7438 = vmatpush1.bf16.msra.mxu0 %v5156
    %7439 = vmatprep.subr.bf16.mxu0 %v5149
    %7440 = vmatpush1.bf16.msra.mxu0 %v5148
    %7441 = vmatprep.subr.bf16.mxu0 %v5141
    %7442 = vmatpush1.bf16.msra.mxu0 %v5140
    %7443 = vmatprep.subr.bf16.mxu0 %v5261
    %7444 = vmatpush2.bf16.msra.mxu0 %v5260
    %7445 = vmatprep.subr.bf16.mxu0 %v5253
    %7446 = vmatpush2.bf16.msra.mxu0 %v5252
    %7447 = vmatprep.subr.bf16.mxu0 %v5245
    %7448 = vmatpush2.bf16.msra.mxu0 %v5244
    %7449 = vmatprep.subr.bf16.mxu0 %v5237
    %7450 = vmatpush2.bf16.msra.mxu0 %v5236
    %7451 = vmatprep.subr.bf16.mxu0 %v5229
    %7452 = vmatpush2.bf16.msra.mxu0 %v5228
    %7453 = vmatprep.subr.bf16.mxu0 %v5221
    %7454 = vmatpush2.bf16.msra.mxu0 %v5220
    %7455 = vmatprep.subr.bf16.mxu0 %v5213
    %7456 = vmatpush2.bf16.msra.mxu0 %v5212
    %7457 = vmatprep.subr.bf16.mxu0 %v5205
    %7458 = vmatpush2.bf16.msra.mxu0 %v5204
    %7459 = vmatprep.mubr.bf16.mxu0 %v859
    %7460 = vmatmul.mubr.bf16.gmra.mxu0 %v858
    %v7461 = vpop.f32.mrf.mxu0
    %v7462 = vadd.f32 %v7421, %v7461
    %v7463 = vpop.f32.mrf.mxu0
    %v7464 = vadd.f32 %v7423, %v7463
    %v7465 = vpop.f32.mrf.mxu0
    %v7466 = vpop.f32.mrf.mxu0
    %7467 = vdwg.mxu0
    %7468 = vmatprep.subr.bf16.mxu0 %v5325
    %7469 = vmatpush1.bf16.msra.mxu0 %v5324
    %7470 = vmatprep.subr.bf16.mxu0 %v5317
    %7471 = vmatpush1.bf16.msra.mxu0 %v5316
    %7472 = vmatprep.subr.bf16.mxu0 %v5309
    %7473 = vmatpush1.bf16.msra.mxu0 %v5308
    %7474 = vmatprep.subr.bf16.mxu0 %v5301
    %7475 = vmatpush1.bf16.msra.mxu0 %v5300
    %7476 = vmatprep.subr.bf16.mxu0 %v5293
    %7477 = vmatpush1.bf16.msra.mxu0 %v5292
    %7478 = vmatprep.subr.bf16.mxu0 %v5285
    %7479 = vmatpush1.bf16.msra.mxu0 %v5284
    %7480 = vmatprep.subr.bf16.mxu0 %v5277
    %7481 = vmatpush1.bf16.msra.mxu0 %v5276
    %7482 = vmatprep.subr.bf16.mxu0 %v5269
    %7483 = vmatpush1.bf16.msra.mxu0 %v5268
    %7484 = vmatprep.subr.bf16.mxu0 %v5389
    %7485 = vmatpush2.bf16.msra.mxu0 %v5388
    %7486 = vmatprep.subr.bf16.mxu0 %v5381
    %7487 = vmatpush2.bf16.msra.mxu0 %v5380
    %7488 = vmatprep.subr.bf16.mxu0 %v5373
    %7489 = vmatpush2.bf16.msra.mxu0 %v5372
    %7490 = vmatprep.subr.bf16.mxu0 %v5365
    %7491 = vmatpush2.bf16.msra.mxu0 %v5364
    %7492 = vmatprep.subr.bf16.mxu0 %v5357
    %7493 = vmatpush2.bf16.msra.mxu0 %v5356
    %7494 = vmatprep.subr.bf16.mxu0 %v5349
    %7495 = vmatpush2.bf16.msra.mxu0 %v5348
    %7496 = vmatprep.subr.bf16.mxu0 %v5341
    %7497 = vmatpush2.bf16.msra.mxu0 %v5340
    %7498 = vmatprep.subr.bf16.mxu0 %v5333
    %7499 = vmatpush2.bf16.msra.mxu0 %v5332
    %7500 = vmatprep.mubr.bf16.mxu0 %v861
    %7501 = vmatmul.mubr.bf16.gmra.mxu0 %v860
    %v7502 = vpop.f32.mrf.mxu0
    %v7503 = vadd.f32 %v7462, %v7502
    %v7504 = vpop.f32.mrf.mxu0
    %v7505 = vadd.f32 %v7464, %v7504
    %v7506 = vpop.f32.mrf.mxu0
    %v7507 = vpop.f32.mrf.mxu0
    %7508 = vdwg.mxu0
    %7509 = vmatprep.subr.bf16.mxu0 %v5453
    %7510 = vmatpush1.bf16.msra.mxu0 %v5452
    %7511 = vmatprep.subr.bf16.mxu0 %v5445
    %7512 = vmatpush1.bf16.msra.mxu0 %v5444
    %7513 = vmatprep.subr.bf16.mxu0 %v5437
    %7514 = vmatpush1.bf16.msra.mxu0 %v5436
    %7515 = vmatprep.subr.bf16.mxu0 %v5429
    %7516 = vmatpush1.bf16.msra.mxu0 %v5428
    %7517 = vmatprep.subr.bf16.mxu0 %v5421
    %7518 = vmatpush1.bf16.msra.mxu0 %v5420
    %7519 = vmatprep.subr.bf16.mxu0 %v5413
    %7520 = vmatpush1.bf16.msra.mxu0 %v5412
    %7521 = vmatprep.subr.bf16.mxu0 %v5405
    %7522 = vmatpush1.bf16.msra.mxu0 %v5404
    %7523 = vmatprep.subr.bf16.mxu0 %v5397
    %7524 = vmatpush1.bf16.msra.mxu0 %v5396
    %7525 = vmatprep.subr.bf16.mxu0 %v5517
    %7526 = vmatpush2.bf16.msra.mxu0 %v5516
    %7527 = vmatprep.subr.bf16.mxu0 %v5509
    %7528 = vmatpush2.bf16.msra.mxu0 %v5508
    %7529 = vmatprep.subr.bf16.mxu0 %v5501
    %7530 = vmatpush2.bf16.msra.mxu0 %v5500
    %7531 = vmatprep.subr.bf16.mxu0 %v5493
    %7532 = vmatpush2.bf16.msra.mxu0 %v5492
    %7533 = vmatprep.subr.bf16.mxu0 %v5485
    %7534 = vmatpush2.bf16.msra.mxu0 %v5484
    %7535 = vmatprep.subr.bf16.mxu0 %v5477
    %7536 = vmatpush2.bf16.msra.mxu0 %v5476
    %7537 = vmatprep.subr.bf16.mxu0 %v5469
    %7538 = vmatpush2.bf16.msra.mxu0 %v5468
    %7539 = vmatprep.subr.bf16.mxu0 %v5461
    %7540 = vmatpush2.bf16.msra.mxu0 %v5460
    %7541 = vmatprep.mubr.bf16.mxu0 %v863
    %7542 = vmatmul.mubr.bf16.gmra.mxu0 %v862
    %v7543 = vpop.f32.mrf.mxu0
    %v7544 = vadd.f32 %v7503, %v7543
    %v7545 = vpop.f32.mrf.mxu0
    %v7546 = vadd.f32 %v7505, %v7545
    %v7547 = vpop.f32.mrf.mxu0
    %v7548 = vpop.f32.mrf.mxu0
    %7549 = vdwg.mxu0
    %7550 = vmatprep.subr.bf16.mxu0 %v5581
    %7551 = vmatpush1.bf16.msra.mxu0 %v5580
    %7552 = vmatprep.subr.bf16.mxu0 %v5573
    %7553 = vmatpush1.bf16.msra.mxu0 %v5572
    %7554 = vmatprep.subr.bf16.mxu0 %v5565
    %7555 = vmatpush1.bf16.msra.mxu0 %v5564
    %7556 = vmatprep.subr.bf16.mxu0 %v5557
    %7557 = vmatpush1.bf16.msra.mxu0 %v5556
    %7558 = vmatprep.subr.bf16.mxu0 %v5549
    %7559 = vmatpush1.bf16.msra.mxu0 %v5548
    %7560 = vmatprep.subr.bf16.mxu0 %v5541
    %7561 = vmatpush1.bf16.msra.mxu0 %v5540
    %7562 = vmatprep.subr.bf16.mxu0 %v5533
    %7563 = vmatpush1.bf16.msra.mxu0 %v5532
    %7564 = vmatprep.subr.bf16.mxu0 %v5525
    %7565 = vmatpush1.bf16.msra.mxu0 %v5524
    %7566 = vmatprep.subr.bf16.mxu0 %v5645
    %7567 = vmatpush2.bf16.msra.mxu0 %v5644
    %7568 = vmatprep.subr.bf16.mxu0 %v5637
    %7569 = vmatpush2.bf16.msra.mxu0 %v5636
    %7570 = vmatprep.subr.bf16.mxu0 %v5629
    %7571 = vmatpush2.bf16.msra.mxu0 %v5628
    %7572 = vmatprep.subr.bf16.mxu0 %v5621
    %7573 = vmatpush2.bf16.msra.mxu0 %v5620
    %7574 = vmatprep.subr.bf16.mxu0 %v5613
    %7575 = vmatpush2.bf16.msra.mxu0 %v5612
    %7576 = vmatprep.subr.bf16.mxu0 %v5605
    %7577 = vmatpush2.bf16.msra.mxu0 %v5604
    %7578 = vmatprep.subr.bf16.mxu0 %v5597
    %7579 = vmatpush2.bf16.msra.mxu0 %v5596
    %7580 = vmatprep.subr.bf16.mxu0 %v5589
    %7581 = vmatpush2.bf16.msra.mxu0 %v5588
    %7582 = vmatprep.mubr.bf16.mxu0 %v865
    %7583 = vmatmul.mubr.bf16.gmra.mxu0 %v864
    %v7584 = vpop.f32.mrf.mxu0
    %v7585 = vadd.f32 %v7544, %v7584
    %v7586 = vpop.f32.mrf.mxu0
    %v7587 = vadd.f32 %v7546, %v7586
    %v7588 = vpop.f32.mrf.mxu0
    %v7589 = vpop.f32.mrf.mxu0
    %7590 = vdwg.mxu0
    %7591 = vmatprep.subr.bf16.mxu0 %v5709
    %7592 = vmatpush1.bf16.msra.mxu0 %v5708
    %7593 = vmatprep.subr.bf16.mxu0 %v5701
    %7594 = vmatpush1.bf16.msra.mxu0 %v5700
    %7595 = vmatprep.subr.bf16.mxu0 %v5693
    %7596 = vmatpush1.bf16.msra.mxu0 %v5692
    %7597 = vmatprep.subr.bf16.mxu0 %v5685
    %7598 = vmatpush1.bf16.msra.mxu0 %v5684
    %7599 = vmatprep.subr.bf16.mxu0 %v5677
    %7600 = vmatpush1.bf16.msra.mxu0 %v5676
    %7601 = vmatprep.subr.bf16.mxu0 %v5669
    %7602 = vmatpush1.bf16.msra.mxu0 %v5668
    %7603 = vmatprep.subr.bf16.mxu0 %v5661
    %7604 = vmatpush1.bf16.msra.mxu0 %v5660
    %7605 = vmatprep.subr.bf16.mxu0 %v5653
    %7606 = vmatpush1.bf16.msra.mxu0 %v5652
    %7607 = vmatprep.subr.bf16.mxu0 %v5773
    %7608 = vmatpush2.bf16.msra.mxu0 %v5772
    %7609 = vmatprep.subr.bf16.mxu0 %v5765
    %7610 = vmatpush2.bf16.msra.mxu0 %v5764
    %7611 = vmatprep.subr.bf16.mxu0 %v5757
    %7612 = vmatpush2.bf16.msra.mxu0 %v5756
    %7613 = vmatprep.subr.bf16.mxu0 %v5749
    %7614 = vmatpush2.bf16.msra.mxu0 %v5748
    %7615 = vmatprep.subr.bf16.mxu0 %v5741
    %7616 = vmatpush2.bf16.msra.mxu0 %v5740
    %7617 = vmatprep.subr.bf16.mxu0 %v5733
    %7618 = vmatpush2.bf16.msra.mxu0 %v5732
    %7619 = vmatprep.subr.bf16.mxu0 %v5725
    %7620 = vmatpush2.bf16.msra.mxu0 %v5724
    %7621 = vmatprep.subr.bf16.mxu0 %v5717
    %7622 = vmatpush2.bf16.msra.mxu0 %v5716
    %7623 = vmatprep.mubr.bf16.mxu0 %v867
    %7624 = vmatmul.mubr.bf16.gmra.mxu0 %v866
    %v7625 = vpop.f32.mrf.mxu0
    %v7626 = vadd.f32 %v7585, %v7625
    %v7627 = vpop.f32.mrf.mxu0
    %v7628 = vadd.f32 %v7587, %v7627
    %v7629 = vpop.f32.mrf.mxu0
    %v7630 = vpop.f32.mrf.mxu0
    %7631 = vdwg.mxu0
    %7632 = vmatprep.subr.bf16.mxu0 %v5837
    %7633 = vmatpush1.bf16.msra.mxu0 %v5836
    %7634 = vmatprep.subr.bf16.mxu0 %v5829
    %7635 = vmatpush1.bf16.msra.mxu0 %v5828
    %7636 = vmatprep.subr.bf16.mxu0 %v5821
    %7637 = vmatpush1.bf16.msra.mxu0 %v5820
    %7638 = vmatprep.subr.bf16.mxu0 %v5813
    %7639 = vmatpush1.bf16.msra.mxu0 %v5812
    %7640 = vmatprep.subr.bf16.mxu0 %v5805
    %7641 = vmatpush1.bf16.msra.mxu0 %v5804
    %7642 = vmatprep.subr.bf16.mxu0 %v5797
    %7643 = vmatpush1.bf16.msra.mxu0 %v5796
    %7644 = vmatprep.subr.bf16.mxu0 %v5789
    %7645 = vmatpush1.bf16.msra.mxu0 %v5788
    %7646 = vmatprep.subr.bf16.mxu0 %v5781
    %7647 = vmatpush1.bf16.msra.mxu0 %v5780
    %7648 = vmatprep.subr.bf16.mxu0 %v5901
    %7649 = vmatpush2.bf16.msra.mxu0 %v5900
    %7650 = vmatprep.subr.bf16.mxu0 %v5893
    %7651 = vmatpush2.bf16.msra.mxu0 %v5892
    %7652 = vmatprep.subr.bf16.mxu0 %v5885
    %7653 = vmatpush2.bf16.msra.mxu0 %v5884
    %7654 = vmatprep.subr.bf16.mxu0 %v5877
    %7655 = vmatpush2.bf16.msra.mxu0 %v5876
    %7656 = vmatprep.subr.bf16.mxu0 %v5869
    %7657 = vmatpush2.bf16.msra.mxu0 %v5868
    %7658 = vmatprep.subr.bf16.mxu0 %v5861
    %7659 = vmatpush2.bf16.msra.mxu0 %v5860
    %7660 = vmatprep.subr.bf16.mxu0 %v5853
    %7661 = vmatpush2.bf16.msra.mxu0 %v5852
    %7662 = vmatprep.subr.bf16.mxu0 %v5845
    %7663 = vmatpush2.bf16.msra.mxu0 %v5844
    %7664 = vmatprep.mubr.bf16.mxu0 %v869
    %7665 = vmatmul.mubr.bf16.gmra.mxu0 %v868
    %v7666 = vpop.f32.mrf.mxu0
    %v7667 = vadd.f32 %v7626, %v7666
    %v7668 = vpop.f32.mrf.mxu0
    %v7669 = vadd.f32 %v7628, %v7668
    %v7670 = vpop.f32.mrf.mxu0
    %v7671 = vpop.f32.mrf.mxu0
    %7672 = vdwg.mxu0
    %7673 = vmatprep.subr.bf16.mxu0 %v5965
    %7674 = vmatpush1.bf16.msra.mxu0 %v5964
    %7675 = vmatprep.subr.bf16.mxu0 %v5957
    %7676 = vmatpush1.bf16.msra.mxu0 %v5956
    %7677 = vmatprep.subr.bf16.mxu0 %v5949
    %7678 = vmatpush1.bf16.msra.mxu0 %v5948
    %7679 = vmatprep.subr.bf16.mxu0 %v5941
    %7680 = vmatpush1.bf16.msra.mxu0 %v5940
    %7681 = vmatprep.subr.bf16.mxu0 %v5933
    %7682 = vmatpush1.bf16.msra.mxu0 %v5932
    %7683 = vmatprep.subr.bf16.mxu0 %v5925
    %7684 = vmatpush1.bf16.msra.mxu0 %v5924
    %7685 = vmatprep.subr.bf16.mxu0 %v5917
    %7686 = vmatpush1.bf16.msra.mxu0 %v5916
    %7687 = vmatprep.subr.bf16.mxu0 %v5909
    %7688 = vmatpush1.bf16.msra.mxu0 %v5908
    %7689 = vmatprep.subr.bf16.mxu0 %v6029
    %7690 = vmatpush2.bf16.msra.mxu0 %v6028
    %7691 = vmatprep.subr.bf16.mxu0 %v6021
    %7692 = vmatpush2.bf16.msra.mxu0 %v6020
    %7693 = vmatprep.subr.bf16.mxu0 %v6013
    %7694 = vmatpush2.bf16.msra.mxu0 %v6012
    %7695 = vmatprep.subr.bf16.mxu0 %v6005
    %7696 = vmatpush2.bf16.msra.mxu0 %v6004
    %7697 = vmatprep.subr.bf16.mxu0 %v5997
    %7698 = vmatpush2.bf16.msra.mxu0 %v5996
    %7699 = vmatprep.subr.bf16.mxu0 %v5989
    %7700 = vmatpush2.bf16.msra.mxu0 %v5988
    %7701 = vmatprep.subr.bf16.mxu0 %v5981
    %7702 = vmatpush2.bf16.msra.mxu0 %v5980
    %7703 = vmatprep.subr.bf16.mxu0 %v5973
    %7704 = vmatpush2.bf16.msra.mxu0 %v5972
    %7705 = vmatprep.mubr.bf16.mxu0 %v871
    %7706 = vmatmul.mubr.bf16.gmra.mxu0 %v870
    %v7707 = vpop.f32.mrf.mxu0
    %v7708 = vadd.f32 %v7667, %v7707
    %v7709 = vpop.f32.mrf.mxu0
    %v7710 = vadd.f32 %v7669, %v7709
    %v7711 = vpop.f32.mrf.mxu0
    %v7712 = vpop.f32.mrf.mxu0
    %7713 = vdwg.mxu0
    %7714 = vmatprep.subr.bf16.mxu0 %v5071
    %7715 = vmatpush1.bf16.msra.mxu0 %v5070
    %7716 = vmatprep.subr.bf16.mxu0 %v5063
    %7717 = vmatpush1.bf16.msra.mxu0 %v5062
    %7718 = vmatprep.subr.bf16.mxu0 %v5055
    %7719 = vmatpush1.bf16.msra.mxu0 %v5054
    %7720 = vmatprep.subr.bf16.mxu0 %v5047
    %7721 = vmatpush1.bf16.msra.mxu0 %v5046
    %7722 = vmatprep.subr.bf16.mxu0 %v5039
    %7723 = vmatpush1.bf16.msra.mxu0 %v5038
    %7724 = vmatprep.subr.bf16.mxu0 %v5031
    %7725 = vmatpush1.bf16.msra.mxu0 %v5030
    %7726 = vmatprep.subr.bf16.mxu0 %v5023
    %7727 = vmatpush1.bf16.msra.mxu0 %v5022
    %7728 = vmatprep.subr.bf16.mxu0 %v5015
    %7729 = vmatpush1.bf16.msra.mxu0 %v5014
    %7730 = vmatprep.subr.bf16.mxu0 %v5135
    %7731 = vmatpush2.bf16.msra.mxu0 %v5134
    %7732 = vmatprep.subr.bf16.mxu0 %v5127
    %7733 = vmatpush2.bf16.msra.mxu0 %v5126
    %7734 = vmatprep.subr.bf16.mxu0 %v5119
    %7735 = vmatpush2.bf16.msra.mxu0 %v5118
    %7736 = vmatprep.subr.bf16.mxu0 %v5111
    %7737 = vmatpush2.bf16.msra.mxu0 %v5110
    %7738 = vmatprep.subr.bf16.mxu0 %v5103
    %7739 = vmatpush2.bf16.msra.mxu0 %v5102
    %7740 = vmatprep.subr.bf16.mxu0 %v5095
    %7741 = vmatpush2.bf16.msra.mxu0 %v5094
    %7742 = vmatprep.subr.bf16.mxu0 %v5087
    %7743 = vmatpush2.bf16.msra.mxu0 %v5086
    %7744 = vmatprep.subr.bf16.mxu0 %v5079
    %7745 = vmatpush2.bf16.msra.mxu0 %v5078
    %7746 = vmatprep.mubr.bf16.mxu0 %v857
    %7747 = vmatmul.mubr.bf16.gmra.mxu0 %v856
    %v7748 = vpop.f32.mrf.mxu0
    %v7749 = vadd.f32 %v1917, %v7748
    %v7750 = vpop.f32.mrf.mxu0
    %v7751 = vadd.f32 %v1921, %v7750
    %v7752 = vpop.f32.mrf.mxu0
    %v7753 = vpop.f32.mrf.mxu0
    %7754 = vdwg.mxu0
    %7755 = vmatprep.subr.bf16.mxu0 %v5199
    %7756 = vmatpush1.bf16.msra.mxu0 %v5198
    %7757 = vmatprep.subr.bf16.mxu0 %v5191
    %7758 = vmatpush1.bf16.msra.mxu0 %v5190
    %7759 = vmatprep.subr.bf16.mxu0 %v5183
    %7760 = vmatpush1.bf16.msra.mxu0 %v5182
    %7761 = vmatprep.subr.bf16.mxu0 %v5175
    %7762 = vmatpush1.bf16.msra.mxu0 %v5174
    %7763 = vmatprep.subr.bf16.mxu0 %v5167
    %7764 = vmatpush1.bf16.msra.mxu0 %v5166
    %7765 = vmatprep.subr.bf16.mxu0 %v5159
    %7766 = vmatpush1.bf16.msra.mxu0 %v5158
    %7767 = vmatprep.subr.bf16.mxu0 %v5151
    %7768 = vmatpush1.bf16.msra.mxu0 %v5150
    %7769 = vmatprep.subr.bf16.mxu0 %v5143
    %7770 = vmatpush1.bf16.msra.mxu0 %v5142
    %7771 = vmatprep.subr.bf16.mxu0 %v5263
    %7772 = vmatpush2.bf16.msra.mxu0 %v5262
    %7773 = vmatprep.subr.bf16.mxu0 %v5255
    %7774 = vmatpush2.bf16.msra.mxu0 %v5254
    %7775 = vmatprep.subr.bf16.mxu0 %v5247
    %7776 = vmatpush2.bf16.msra.mxu0 %v5246
    %7777 = vmatprep.subr.bf16.mxu0 %v5239
    %7778 = vmatpush2.bf16.msra.mxu0 %v5238
    %7779 = vmatprep.subr.bf16.mxu0 %v5231
    %7780 = vmatpush2.bf16.msra.mxu0 %v5230
    %7781 = vmatprep.subr.bf16.mxu0 %v5223
    %7782 = vmatpush2.bf16.msra.mxu0 %v5222
    %7783 = vmatprep.subr.bf16.mxu0 %v5215
    %7784 = vmatpush2.bf16.msra.mxu0 %v5214
    %7785 = vmatprep.subr.bf16.mxu0 %v5207
    %7786 = vmatpush2.bf16.msra.mxu0 %v5206
    %7787 = vmatprep.mubr.bf16.mxu0 %v859
    %7788 = vmatmul.mubr.bf16.gmra.mxu0 %v858
    %v7789 = vpop.f32.mrf.mxu0
    %v7790 = vadd.f32 %v7749, %v7789
    %v7791 = vpop.f32.mrf.mxu0
    %v7792 = vadd.f32 %v7751, %v7791
    %v7793 = vpop.f32.mrf.mxu0
    %v7794 = vpop.f32.mrf.mxu0
    %7795 = vdwg.mxu0
    %7796 = vmatprep.subr.bf16.mxu0 %v5327
    %7797 = vmatpush1.bf16.msra.mxu0 %v5326
    %7798 = vmatprep.subr.bf16.mxu0 %v5319
    %7799 = vmatpush1.bf16.msra.mxu0 %v5318
    %7800 = vmatprep.subr.bf16.mxu0 %v5311
    %7801 = vmatpush1.bf16.msra.mxu0 %v5310
    %7802 = vmatprep.subr.bf16.mxu0 %v5303
    %7803 = vmatpush1.bf16.msra.mxu0 %v5302
    %7804 = vmatprep.subr.bf16.mxu0 %v5295
    %7805 = vmatpush1.bf16.msra.mxu0 %v5294
    %7806 = vmatprep.subr.bf16.mxu0 %v5287
    %7807 = vmatpush1.bf16.msra.mxu0 %v5286
    %7808 = vmatprep.subr.bf16.mxu0 %v5279
    %7809 = vmatpush1.bf16.msra.mxu0 %v5278
    %7810 = vmatprep.subr.bf16.mxu0 %v5271
    %7811 = vmatpush1.bf16.msra.mxu0 %v5270
    %7812 = vmatprep.subr.bf16.mxu0 %v5391
    %7813 = vmatpush2.bf16.msra.mxu0 %v5390
    %7814 = vmatprep.subr.bf16.mxu0 %v5383
    %7815 = vmatpush2.bf16.msra.mxu0 %v5382
    %7816 = vmatprep.subr.bf16.mxu0 %v5375
    %7817 = vmatpush2.bf16.msra.mxu0 %v5374
    %7818 = vmatprep.subr.bf16.mxu0 %v5367
    %7819 = vmatpush2.bf16.msra.mxu0 %v5366
    %7820 = vmatprep.subr.bf16.mxu0 %v5359
    %7821 = vmatpush2.bf16.msra.mxu0 %v5358
    %7822 = vmatprep.subr.bf16.mxu0 %v5351
    %7823 = vmatpush2.bf16.msra.mxu0 %v5350
    %7824 = vmatprep.subr.bf16.mxu0 %v5343
    %7825 = vmatpush2.bf16.msra.mxu0 %v5342
    %7826 = vmatprep.subr.bf16.mxu0 %v5335
    %7827 = vmatpush2.bf16.msra.mxu0 %v5334
    %7828 = vmatprep.mubr.bf16.mxu0 %v861
    %7829 = vmatmul.mubr.bf16.gmra.mxu0 %v860
    %v7830 = vpop.f32.mrf.mxu0
    %v7831 = vadd.f32 %v7790, %v7830
    %v7832 = vpop.f32.mrf.mxu0
    %v7833 = vadd.f32 %v7792, %v7832
    %v7834 = vpop.f32.mrf.mxu0
    %v7835 = vpop.f32.mrf.mxu0
    %7836 = vdwg.mxu0
    %7837 = vmatprep.subr.bf16.mxu0 %v5455
    %7838 = vmatpush1.bf16.msra.mxu0 %v5454
    %7839 = vmatprep.subr.bf16.mxu0 %v5447
    %7840 = vmatpush1.bf16.msra.mxu0 %v5446
    %7841 = vmatprep.subr.bf16.mxu0 %v5439
    %7842 = vmatpush1.bf16.msra.mxu0 %v5438
    %7843 = vmatprep.subr.bf16.mxu0 %v5431
    %7844 = vmatpush1.bf16.msra.mxu0 %v5430
    %7845 = vmatprep.subr.bf16.mxu0 %v5423
    %7846 = vmatpush1.bf16.msra.mxu0 %v5422
    %7847 = vmatprep.subr.bf16.mxu0 %v5415
    %7848 = vmatpush1.bf16.msra.mxu0 %v5414
    %7849 = vmatprep.subr.bf16.mxu0 %v5407
    %7850 = vmatpush1.bf16.msra.mxu0 %v5406
    %7851 = vmatprep.subr.bf16.mxu0 %v5399
    %7852 = vmatpush1.bf16.msra.mxu0 %v5398
    %7853 = vmatprep.subr.bf16.mxu0 %v5519
    %7854 = vmatpush2.bf16.msra.mxu0 %v5518
    %7855 = vmatprep.subr.bf16.mxu0 %v5511
    %7856 = vmatpush2.bf16.msra.mxu0 %v5510
    %7857 = vmatprep.subr.bf16.mxu0 %v5503
    %7858 = vmatpush2.bf16.msra.mxu0 %v5502
    %7859 = vmatprep.subr.bf16.mxu0 %v5495
    %7860 = vmatpush2.bf16.msra.mxu0 %v5494
    %7861 = vmatprep.subr.bf16.mxu0 %v5487
    %7862 = vmatpush2.bf16.msra.mxu0 %v5486
    %7863 = vmatprep.subr.bf16.mxu0 %v5479
    %7864 = vmatpush2.bf16.msra.mxu0 %v5478
    %7865 = vmatprep.subr.bf16.mxu0 %v5471
    %7866 = vmatpush2.bf16.msra.mxu0 %v5470
    %7867 = vmatprep.subr.bf16.mxu0 %v5463
    %7868 = vmatpush2.bf16.msra.mxu0 %v5462
    %7869 = vmatprep.mubr.bf16.mxu0 %v863
    %7870 = vmatmul.mubr.bf16.gmra.mxu0 %v862
    %v7871 = vpop.f32.mrf.mxu0
    %v7872 = vadd.f32 %v7831, %v7871
    %v7873 = vpop.f32.mrf.mxu0
    %v7874 = vadd.f32 %v7833, %v7873
    %v7875 = vpop.f32.mrf.mxu0
    %v7876 = vpop.f32.mrf.mxu0
    %7877 = vdwg.mxu0
    %7878 = vmatprep.subr.bf16.mxu0 %v5583
    %7879 = vmatpush1.bf16.msra.mxu0 %v5582
    %7880 = vmatprep.subr.bf16.mxu0 %v5575
    %7881 = vmatpush1.bf16.msra.mxu0 %v5574
    %7882 = vmatprep.subr.bf16.mxu0 %v5567
    %7883 = vmatpush1.bf16.msra.mxu0 %v5566
    %7884 = vmatprep.subr.bf16.mxu0 %v5559
    %7885 = vmatpush1.bf16.msra.mxu0 %v5558
    %7886 = vmatprep.subr.bf16.mxu0 %v5551
    %7887 = vmatpush1.bf16.msra.mxu0 %v5550
    %7888 = vmatprep.subr.bf16.mxu0 %v5543
    %7889 = vmatpush1.bf16.msra.mxu0 %v5542
    %7890 = vmatprep.subr.bf16.mxu0 %v5535
    %7891 = vmatpush1.bf16.msra.mxu0 %v5534
    %7892 = vmatprep.subr.bf16.mxu0 %v5527
    %7893 = vmatpush1.bf16.msra.mxu0 %v5526
    %7894 = vmatprep.subr.bf16.mxu0 %v5647
    %7895 = vmatpush2.bf16.msra.mxu0 %v5646
    %7896 = vmatprep.subr.bf16.mxu0 %v5639
    %7897 = vmatpush2.bf16.msra.mxu0 %v5638
    %7898 = vmatprep.subr.bf16.mxu0 %v5631
    %7899 = vmatpush2.bf16.msra.mxu0 %v5630
    %7900 = vmatprep.subr.bf16.mxu0 %v5623
    %7901 = vmatpush2.bf16.msra.mxu0 %v5622
    %7902 = vmatprep.subr.bf16.mxu0 %v5615
    %7903 = vmatpush2.bf16.msra.mxu0 %v5614
    %7904 = vmatprep.subr.bf16.mxu0 %v5607
    %7905 = vmatpush2.bf16.msra.mxu0 %v5606
    %7906 = vmatprep.subr.bf16.mxu0 %v5599
    %7907 = vmatpush2.bf16.msra.mxu0 %v5598
    %7908 = vmatprep.subr.bf16.mxu0 %v5591
    %7909 = vmatpush2.bf16.msra.mxu0 %v5590
    %7910 = vmatprep.mubr.bf16.mxu0 %v865
    %7911 = vmatmul.mubr.bf16.gmra.mxu0 %v864
    %v7912 = vpop.f32.mrf.mxu0
    %v7913 = vadd.f32 %v7872, %v7912
    %v7914 = vpop.f32.mrf.mxu0
    %v7915 = vadd.f32 %v7874, %v7914
    %v7916 = vpop.f32.mrf.mxu0
    %v7917 = vpop.f32.mrf.mxu0
    %7918 = vdwg.mxu0
    %7919 = vmatprep.subr.bf16.mxu0 %v5711
    %7920 = vmatpush1.bf16.msra.mxu0 %v5710
    %7921 = vmatprep.subr.bf16.mxu0 %v5703
    %7922 = vmatpush1.bf16.msra.mxu0 %v5702
    %7923 = vmatprep.subr.bf16.mxu0 %v5695
    %7924 = vmatpush1.bf16.msra.mxu0 %v5694
    %7925 = vmatprep.subr.bf16.mxu0 %v5687
    %7926 = vmatpush1.bf16.msra.mxu0 %v5686
    %7927 = vmatprep.subr.bf16.mxu0 %v5679
    %7928 = vmatpush1.bf16.msra.mxu0 %v5678
    %7929 = vmatprep.subr.bf16.mxu0 %v5671
    %7930 = vmatpush1.bf16.msra.mxu0 %v5670
    %7931 = vmatprep.subr.bf16.mxu0 %v5663
    %7932 = vmatpush1.bf16.msra.mxu0 %v5662
    %7933 = vmatprep.subr.bf16.mxu0 %v5655
    %7934 = vmatpush1.bf16.msra.mxu0 %v5654
    %7935 = vmatprep.subr.bf16.mxu0 %v5775
    %7936 = vmatpush2.bf16.msra.mxu0 %v5774
    %7937 = vmatprep.subr.bf16.mxu0 %v5767
    %7938 = vmatpush2.bf16.msra.mxu0 %v5766
    %7939 = vmatprep.subr.bf16.mxu0 %v5759
    %7940 = vmatpush2.bf16.msra.mxu0 %v5758
    %7941 = vmatprep.subr.bf16.mxu0 %v5751
    %7942 = vmatpush2.bf16.msra.mxu0 %v5750
    %7943 = vmatprep.subr.bf16.mxu0 %v5743
    %7944 = vmatpush2.bf16.msra.mxu0 %v5742
    %7945 = vmatprep.subr.bf16.mxu0 %v5735
    %7946 = vmatpush2.bf16.msra.mxu0 %v5734
    %7947 = vmatprep.subr.bf16.mxu0 %v5727
    %7948 = vmatpush2.bf16.msra.mxu0 %v5726
    %7949 = vmatprep.subr.bf16.mxu0 %v5719
    %7950 = vmatpush2.bf16.msra.mxu0 %v5718
    %7951 = vmatprep.mubr.bf16.mxu0 %v867
    %7952 = vmatmul.mubr.bf16.gmra.mxu0 %v866
    %v7953 = vpop.f32.mrf.mxu0
    %v7954 = vadd.f32 %v7913, %v7953
    %v7955 = vpop.f32.mrf.mxu0
    %v7956 = vadd.f32 %v7915, %v7955
    %v7957 = vpop.f32.mrf.mxu0
    %v7958 = vpop.f32.mrf.mxu0
    %7959 = vdwg.mxu0
    %7960 = vmatprep.subr.bf16.mxu0 %v5839
    %7961 = vmatpush1.bf16.msra.mxu0 %v5838
    %7962 = vmatprep.subr.bf16.mxu0 %v5831
    %7963 = vmatpush1.bf16.msra.mxu0 %v5830
    %7964 = vmatprep.subr.bf16.mxu0 %v5823
    %7965 = vmatpush1.bf16.msra.mxu0 %v5822
    %7966 = vmatprep.subr.bf16.mxu0 %v5815
    %7967 = vmatpush1.bf16.msra.mxu0 %v5814
    %7968 = vmatprep.subr.bf16.mxu0 %v5807
    %7969 = vmatpush1.bf16.msra.mxu0 %v5806
    %7970 = vmatprep.subr.bf16.mxu0 %v5799
    %7971 = vmatpush1.bf16.msra.mxu0 %v5798
    %7972 = vmatprep.subr.bf16.mxu0 %v5791
    %7973 = vmatpush1.bf16.msra.mxu0 %v5790
    %7974 = vmatprep.subr.bf16.mxu0 %v5783
    %7975 = vmatpush1.bf16.msra.mxu0 %v5782
    %7976 = vmatprep.subr.bf16.mxu0 %v5903
    %7977 = vmatpush2.bf16.msra.mxu0 %v5902
    %7978 = vmatprep.subr.bf16.mxu0 %v5895
    %7979 = vmatpush2.bf16.msra.mxu0 %v5894
    %7980 = vmatprep.subr.bf16.mxu0 %v5887
    %7981 = vmatpush2.bf16.msra.mxu0 %v5886
    %7982 = vmatprep.subr.bf16.mxu0 %v5879
    %7983 = vmatpush2.bf16.msra.mxu0 %v5878
    %7984 = vmatprep.subr.bf16.mxu0 %v5871
    %7985 = vmatpush2.bf16.msra.mxu0 %v5870
    %7986 = vmatprep.subr.bf16.mxu0 %v5863
    %7987 = vmatpush2.bf16.msra.mxu0 %v5862
    %7988 = vmatprep.subr.bf16.mxu0 %v5855
    %7989 = vmatpush2.bf16.msra.mxu0 %v5854
    %7990 = vmatprep.subr.bf16.mxu0 %v5847
    %7991 = vmatpush2.bf16.msra.mxu0 %v5846
    %7992 = vmatprep.mubr.bf16.mxu0 %v869
    %7993 = vmatmul.mubr.bf16.gmra.mxu0 %v868
    %v7994 = vpop.f32.mrf.mxu0
    %v7995 = vadd.f32 %v7954, %v7994
    %v7996 = vpop.f32.mrf.mxu0
    %v7997 = vadd.f32 %v7956, %v7996
    %v7998 = vpop.f32.mrf.mxu0
    %v7999 = vpop.f32.mrf.mxu0
    %8000 = vdwg.mxu0
    %8001 = vmatprep.subr.bf16.mxu0 %v5967
    %8002 = vmatpush1.bf16.msra.mxu0 %v5966
    %8003 = vmatprep.subr.bf16.mxu0 %v5959
    %8004 = vmatpush1.bf16.msra.mxu0 %v5958
    %8005 = vmatprep.subr.bf16.mxu0 %v5951
    %8006 = vmatpush1.bf16.msra.mxu0 %v5950
    %8007 = vmatprep.subr.bf16.mxu0 %v5943
    %8008 = vmatpush1.bf16.msra.mxu0 %v5942
    %8009 = vmatprep.subr.bf16.mxu0 %v5935
    %8010 = vmatpush1.bf16.msra.mxu0 %v5934
    %8011 = vmatprep.subr.bf16.mxu0 %v5927
    %8012 = vmatpush1.bf16.msra.mxu0 %v5926
    %8013 = vmatprep.subr.bf16.mxu0 %v5919
    %8014 = vmatpush1.bf16.msra.mxu0 %v5918
    %8015 = vmatprep.subr.bf16.mxu0 %v5911
    %8016 = vmatpush1.bf16.msra.mxu0 %v5910
    %8017 = vmatprep.subr.bf16.mxu0 %v6031
    %8018 = vmatpush2.bf16.msra.mxu0 %v6030
    %8019 = vmatprep.subr.bf16.mxu0 %v6023
    %8020 = vmatpush2.bf16.msra.mxu0 %v6022
    %8021 = vmatprep.subr.bf16.mxu0 %v6015
    %8022 = vmatpush2.bf16.msra.mxu0 %v6014
    %8023 = vmatprep.subr.bf16.mxu0 %v6007
    %8024 = vmatpush2.bf16.msra.mxu0 %v6006
    %8025 = vmatprep.subr.bf16.mxu0 %v5999
    %8026 = vmatpush2.bf16.msra.mxu0 %v5998
    %8027 = vmatprep.subr.bf16.mxu0 %v5991
    %8028 = vmatpush2.bf16.msra.mxu0 %v5990
    %8029 = vmatprep.subr.bf16.mxu0 %v5983
    %8030 = vmatpush2.bf16.msra.mxu0 %v5982
    %8031 = vmatprep.subr.bf16.mxu0 %v5975
    %8032 = vmatpush2.bf16.msra.mxu0 %v5974
    %8033 = vmatprep.mubr.bf16.mxu0 %v871
    %8034 = vmatmul.mubr.bf16.gmra.mxu0 %v870
    %v8035 = vpop.f32.mrf.mxu0
    %v8036 = vadd.f32 %v7995, %v8035
    %v8037 = vpop.f32.mrf.mxu0
    %v8038 = vadd.f32 %v7997, %v8037
    %v8039 = vpop.f32.mrf.mxu0
    %v8040 = vpop.f32.mrf.mxu0
    %8041 = vdwg.mxu0
    %8042 = vmatprep.subr.bf16.mxu0 %v5073
    %8043 = vmatpush1.bf16.msra.mxu0 %v5072
    %8044 = vmatprep.subr.bf16.mxu0 %v5065
    %8045 = vmatpush1.bf16.msra.mxu0 %v5064
    %8046 = vmatprep.subr.bf16.mxu0 %v5057
    %8047 = vmatpush1.bf16.msra.mxu0 %v5056
    %8048 = vmatprep.subr.bf16.mxu0 %v5049
    %8049 = vmatpush1.bf16.msra.mxu0 %v5048
    %8050 = vmatprep.subr.bf16.mxu0 %v5041
    %8051 = vmatpush1.bf16.msra.mxu0 %v5040
    %8052 = vmatprep.subr.bf16.mxu0 %v5033
    %8053 = vmatpush1.bf16.msra.mxu0 %v5032
    %8054 = vmatprep.subr.bf16.mxu0 %v5025
    %8055 = vmatpush1.bf16.msra.mxu0 %v5024
    %8056 = vmatprep.subr.bf16.mxu0 %v5017
    %8057 = vmatpush1.bf16.msra.mxu0 %v5016
    %8058 = vmatprep.subr.bf16.mxu0 %v5137
    %8059 = vmatpush2.bf16.msra.mxu0 %v5136
    %8060 = vmatprep.subr.bf16.mxu0 %v5129
    %8061 = vmatpush2.bf16.msra.mxu0 %v5128
    %8062 = vmatprep.subr.bf16.mxu0 %v5121
    %8063 = vmatpush2.bf16.msra.mxu0 %v5120
    %8064 = vmatprep.subr.bf16.mxu0 %v5113
    %8065 = vmatpush2.bf16.msra.mxu0 %v5112
    %8066 = vmatprep.subr.bf16.mxu0 %v5105
    %8067 = vmatpush2.bf16.msra.mxu0 %v5104
    %8068 = vmatprep.subr.bf16.mxu0 %v5097
    %8069 = vmatpush2.bf16.msra.mxu0 %v5096
    %8070 = vmatprep.subr.bf16.mxu0 %v5089
    %8071 = vmatpush2.bf16.msra.mxu0 %v5088
    %8072 = vmatprep.subr.bf16.mxu0 %v5081
    %8073 = vmatpush2.bf16.msra.mxu0 %v5080
    %8074 = vmatprep.mubr.bf16.mxu0 %v857
    %8075 = vmatmul.mubr.bf16.gmra.mxu0 %v856
    %v8076 = vpop.f32.mrf.mxu0
    %v8077 = vadd.f32 %v1925, %v8076
    %v8078 = vpop.f32.mrf.mxu0
    %v8079 = vadd.f32 %v1929, %v8078
    %v8080 = vpop.f32.mrf.mxu0
    %v8081 = vpop.f32.mrf.mxu0
    %8082 = vdwg.mxu0
    %8083 = vmatprep.subr.bf16.mxu0 %v5201
    %8084 = vmatpush1.bf16.msra.mxu0 %v5200
    %8085 = vmatprep.subr.bf16.mxu0 %v5193
    %8086 = vmatpush1.bf16.msra.mxu0 %v5192
    %8087 = vmatprep.subr.bf16.mxu0 %v5185
    %8088 = vmatpush1.bf16.msra.mxu0 %v5184
    %8089 = vmatprep.subr.bf16.mxu0 %v5177
    %8090 = vmatpush1.bf16.msra.mxu0 %v5176
    %8091 = vmatprep.subr.bf16.mxu0 %v5169
    %8092 = vmatpush1.bf16.msra.mxu0 %v5168
    %8093 = vmatprep.subr.bf16.mxu0 %v5161
    %8094 = vmatpush1.bf16.msra.mxu0 %v5160
    %8095 = vmatprep.subr.bf16.mxu0 %v5153
    %8096 = vmatpush1.bf16.msra.mxu0 %v5152
    %8097 = vmatprep.subr.bf16.mxu0 %v5145
    %8098 = vmatpush1.bf16.msra.mxu0 %v5144
    %8099 = vmatprep.subr.bf16.mxu0 %v5265
    %8100 = vmatpush2.bf16.msra.mxu0 %v5264
    %8101 = vmatprep.subr.bf16.mxu0 %v5257
    %8102 = vmatpush2.bf16.msra.mxu0 %v5256
    %8103 = vmatprep.subr.bf16.mxu0 %v5249
    %8104 = vmatpush2.bf16.msra.mxu0 %v5248
    %8105 = vmatprep.subr.bf16.mxu0 %v5241
    %8106 = vmatpush2.bf16.msra.mxu0 %v5240
    %8107 = vmatprep.subr.bf16.mxu0 %v5233
    %8108 = vmatpush2.bf16.msra.mxu0 %v5232
    %8109 = vmatprep.subr.bf16.mxu0 %v5225
    %8110 = vmatpush2.bf16.msra.mxu0 %v5224
    %8111 = vmatprep.subr.bf16.mxu0 %v5217
    %8112 = vmatpush2.bf16.msra.mxu0 %v5216
    %8113 = vmatprep.subr.bf16.mxu0 %v5209
    %8114 = vmatpush2.bf16.msra.mxu0 %v5208
    %8115 = vmatprep.mubr.bf16.mxu0 %v859
    %8116 = vmatmul.mubr.bf16.gmra.mxu0 %v858
    %v8117 = vpop.f32.mrf.mxu0
    %v8118 = vadd.f32 %v8077, %v8117
    %v8119 = vpop.f32.mrf.mxu0
    %v8120 = vadd.f32 %v8079, %v8119
    %v8121 = vpop.f32.mrf.mxu0
    %v8122 = vpop.f32.mrf.mxu0
    %8123 = vdwg.mxu0
    %8124 = vmatprep.subr.bf16.mxu0 %v5329
    %8125 = vmatpush1.bf16.msra.mxu0 %v5328
    %8126 = vmatprep.subr.bf16.mxu0 %v5321
    %8127 = vmatpush1.bf16.msra.mxu0 %v5320
    %8128 = vmatprep.subr.bf16.mxu0 %v5313
    %8129 = vmatpush1.bf16.msra.mxu0 %v5312
    %8130 = vmatprep.subr.bf16.mxu0 %v5305
    %8131 = vmatpush1.bf16.msra.mxu0 %v5304
    %8132 = vmatprep.subr.bf16.mxu0 %v5297
    %8133 = vmatpush1.bf16.msra.mxu0 %v5296
    %8134 = vmatprep.subr.bf16.mxu0 %v5289
    %8135 = vmatpush1.bf16.msra.mxu0 %v5288
    %8136 = vmatprep.subr.bf16.mxu0 %v5281
    %8137 = vmatpush1.bf16.msra.mxu0 %v5280
    %8138 = vmatprep.subr.bf16.mxu0 %v5273
    %8139 = vmatpush1.bf16.msra.mxu0 %v5272
    %8140 = vmatprep.subr.bf16.mxu0 %v5393
    %8141 = vmatpush2.bf16.msra.mxu0 %v5392
    %8142 = vmatprep.subr.bf16.mxu0 %v5385
    %8143 = vmatpush2.bf16.msra.mxu0 %v5384
    %8144 = vmatprep.subr.bf16.mxu0 %v5377
    %8145 = vmatpush2.bf16.msra.mxu0 %v5376
    %8146 = vmatprep.subr.bf16.mxu0 %v5369
    %8147 = vmatpush2.bf16.msra.mxu0 %v5368
    %8148 = vmatprep.subr.bf16.mxu0 %v5361
    %8149 = vmatpush2.bf16.msra.mxu0 %v5360
    %8150 = vmatprep.subr.bf16.mxu0 %v5353
    %8151 = vmatpush2.bf16.msra.mxu0 %v5352
    %8152 = vmatprep.subr.bf16.mxu0 %v5345
    %8153 = vmatpush2.bf16.msra.mxu0 %v5344
    %8154 = vmatprep.subr.bf16.mxu0 %v5337
    %8155 = vmatpush2.bf16.msra.mxu0 %v5336
    %8156 = vmatprep.mubr.bf16.mxu0 %v861
    %8157 = vmatmul.mubr.bf16.gmra.mxu0 %v860
    %v8158 = vpop.f32.mrf.mxu0
    %v8159 = vadd.f32 %v8118, %v8158
    %v8160 = vpop.f32.mrf.mxu0
    %v8161 = vadd.f32 %v8120, %v8160
    %v8162 = vpop.f32.mrf.mxu0
    %v8163 = vpop.f32.mrf.mxu0
    %8164 = vdwg.mxu0
    %8165 = vmatprep.subr.bf16.mxu0 %v5457
    %8166 = vmatpush1.bf16.msra.mxu0 %v5456
    %8167 = vmatprep.subr.bf16.mxu0 %v5449
    %8168 = vmatpush1.bf16.msra.mxu0 %v5448
    %8169 = vmatprep.subr.bf16.mxu0 %v5441
    %8170 = vmatpush1.bf16.msra.mxu0 %v5440
    %8171 = vmatprep.subr.bf16.mxu0 %v5433
    %8172 = vmatpush1.bf16.msra.mxu0 %v5432
    %8173 = vmatprep.subr.bf16.mxu0 %v5425
    %8174 = vmatpush1.bf16.msra.mxu0 %v5424
    %8175 = vmatprep.subr.bf16.mxu0 %v5417
    %8176 = vmatpush1.bf16.msra.mxu0 %v5416
    %8177 = vmatprep.subr.bf16.mxu0 %v5409
    %8178 = vmatpush1.bf16.msra.mxu0 %v5408
    %8179 = vmatprep.subr.bf16.mxu0 %v5401
    %8180 = vmatpush1.bf16.msra.mxu0 %v5400
    %8181 = vmatprep.subr.bf16.mxu0 %v5521
    %8182 = vmatpush2.bf16.msra.mxu0 %v5520
    %8183 = vmatprep.subr.bf16.mxu0 %v5513
    %8184 = vmatpush2.bf16.msra.mxu0 %v5512
    %8185 = vmatprep.subr.bf16.mxu0 %v5505
    %8186 = vmatpush2.bf16.msra.mxu0 %v5504
    %8187 = vmatprep.subr.bf16.mxu0 %v5497
    %8188 = vmatpush2.bf16.msra.mxu0 %v5496
    %8189 = vmatprep.subr.bf16.mxu0 %v5489
    %8190 = vmatpush2.bf16.msra.mxu0 %v5488
    %8191 = vmatprep.subr.bf16.mxu0 %v5481
    %8192 = vmatpush2.bf16.msra.mxu0 %v5480
    %8193 = vmatprep.subr.bf16.mxu0 %v5473
    %8194 = vmatpush2.bf16.msra.mxu0 %v5472
    %8195 = vmatprep.subr.bf16.mxu0 %v5465
    %8196 = vmatpush2.bf16.msra.mxu0 %v5464
    %8197 = vmatprep.mubr.bf16.mxu0 %v863
    %8198 = vmatmul.mubr.bf16.gmra.mxu0 %v862
    %v8199 = vpop.f32.mrf.mxu0
    %v8200 = vadd.f32 %v8159, %v8199
    %v8201 = vpop.f32.mrf.mxu0
    %v8202 = vadd.f32 %v8161, %v8201
    %v8203 = vpop.f32.mrf.mxu0
    %v8204 = vpop.f32.mrf.mxu0
    %8205 = vdwg.mxu0
    %8206 = vmatprep.subr.bf16.mxu0 %v5585
    %8207 = vmatpush1.bf16.msra.mxu0 %v5584
    %8208 = vmatprep.subr.bf16.mxu0 %v5577
    %8209 = vmatpush1.bf16.msra.mxu0 %v5576
    %8210 = vmatprep.subr.bf16.mxu0 %v5569
    %8211 = vmatpush1.bf16.msra.mxu0 %v5568
    %8212 = vmatprep.subr.bf16.mxu0 %v5561
    %8213 = vmatpush1.bf16.msra.mxu0 %v5560
    %8214 = vmatprep.subr.bf16.mxu0 %v5553
    %8215 = vmatpush1.bf16.msra.mxu0 %v5552
    %8216 = vmatprep.subr.bf16.mxu0 %v5545
    %8217 = vmatpush1.bf16.msra.mxu0 %v5544
    %8218 = vmatprep.subr.bf16.mxu0 %v5537
    %8219 = vmatpush1.bf16.msra.mxu0 %v5536
    %8220 = vmatprep.subr.bf16.mxu0 %v5529
    %8221 = vmatpush1.bf16.msra.mxu0 %v5528
    %8222 = vmatprep.subr.bf16.mxu0 %v5649
    %8223 = vmatpush2.bf16.msra.mxu0 %v5648
    %8224 = vmatprep.subr.bf16.mxu0 %v5641
    %8225 = vmatpush2.bf16.msra.mxu0 %v5640
    %8226 = vmatprep.subr.bf16.mxu0 %v5633
    %8227 = vmatpush2.bf16.msra.mxu0 %v5632
    %8228 = vmatprep.subr.bf16.mxu0 %v5625
    %8229 = vmatpush2.bf16.msra.mxu0 %v5624
    %8230 = vmatprep.subr.bf16.mxu0 %v5617
    %8231 = vmatpush2.bf16.msra.mxu0 %v5616
    %8232 = vmatprep.subr.bf16.mxu0 %v5609
    %8233 = vmatpush2.bf16.msra.mxu0 %v5608
    %8234 = vmatprep.subr.bf16.mxu0 %v5601
    %8235 = vmatpush2.bf16.msra.mxu0 %v5600
    %8236 = vmatprep.subr.bf16.mxu0 %v5593
    %8237 = vmatpush2.bf16.msra.mxu0 %v5592
    %8238 = vmatprep.mubr.bf16.mxu0 %v865
    %8239 = vmatmul.mubr.bf16.gmra.mxu0 %v864
    %v8240 = vpop.f32.mrf.mxu0
    %v8241 = vadd.f32 %v8200, %v8240
    %v8242 = vpop.f32.mrf.mxu0
    %v8243 = vadd.f32 %v8202, %v8242
    %v8244 = vpop.f32.mrf.mxu0
    %v8245 = vpop.f32.mrf.mxu0
    %8246 = vdwg.mxu0
    %8247 = vmatprep.subr.bf16.mxu0 %v5713
    %8248 = vmatpush1.bf16.msra.mxu0 %v5712
    %8249 = vmatprep.subr.bf16.mxu0 %v5705
    %8250 = vmatpush1.bf16.msra.mxu0 %v5704
    %8251 = vmatprep.subr.bf16.mxu0 %v5697
    %8252 = vmatpush1.bf16.msra.mxu0 %v5696
    %8253 = vmatprep.subr.bf16.mxu0 %v5689
    %8254 = vmatpush1.bf16.msra.mxu0 %v5688
    %8255 = vmatprep.subr.bf16.mxu0 %v5681
    %8256 = vmatpush1.bf16.msra.mxu0 %v5680
    %8257 = vmatprep.subr.bf16.mxu0 %v5673
    %8258 = vmatpush1.bf16.msra.mxu0 %v5672
    %8259 = vmatprep.subr.bf16.mxu0 %v5665
    %8260 = vmatpush1.bf16.msra.mxu0 %v5664
    %8261 = vmatprep.subr.bf16.mxu0 %v5657
    %8262 = vmatpush1.bf16.msra.mxu0 %v5656
    %8263 = vmatprep.subr.bf16.mxu0 %v5777
    %8264 = vmatpush2.bf16.msra.mxu0 %v5776
    %8265 = vmatprep.subr.bf16.mxu0 %v5769
    %8266 = vmatpush2.bf16.msra.mxu0 %v5768
    %8267 = vmatprep.subr.bf16.mxu0 %v5761
    %8268 = vmatpush2.bf16.msra.mxu0 %v5760
    %8269 = vmatprep.subr.bf16.mxu0 %v5753
    %8270 = vmatpush2.bf16.msra.mxu0 %v5752
    %8271 = vmatprep.subr.bf16.mxu0 %v5745
    %8272 = vmatpush2.bf16.msra.mxu0 %v5744
    %8273 = vmatprep.subr.bf16.mxu0 %v5737
    %8274 = vmatpush2.bf16.msra.mxu0 %v5736
    %8275 = vmatprep.subr.bf16.mxu0 %v5729
    %8276 = vmatpush2.bf16.msra.mxu0 %v5728
    %8277 = vmatprep.subr.bf16.mxu0 %v5721
    %8278 = vmatpush2.bf16.msra.mxu0 %v5720
    %8279 = vmatprep.mubr.bf16.mxu0 %v867
    %8280 = vmatmul.mubr.bf16.gmra.mxu0 %v866
    %v8281 = vpop.f32.mrf.mxu0
    %v8282 = vadd.f32 %v8241, %v8281
    %v8283 = vpop.f32.mrf.mxu0
    %v8284 = vadd.f32 %v8243, %v8283
    %v8285 = vpop.f32.mrf.mxu0
    %v8286 = vpop.f32.mrf.mxu0
    %8287 = vdwg.mxu0
    %8288 = vmatprep.subr.bf16.mxu0 %v5841
    %8289 = vmatpush1.bf16.msra.mxu0 %v5840
    %8290 = vmatprep.subr.bf16.mxu0 %v5833
    %8291 = vmatpush1.bf16.msra.mxu0 %v5832
    %8292 = vmatprep.subr.bf16.mxu0 %v5825
    %8293 = vmatpush1.bf16.msra.mxu0 %v5824
    %8294 = vmatprep.subr.bf16.mxu0 %v5817
    %8295 = vmatpush1.bf16.msra.mxu0 %v5816
    %8296 = vmatprep.subr.bf16.mxu0 %v5809
    %8297 = vmatpush1.bf16.msra.mxu0 %v5808
    %8298 = vmatprep.subr.bf16.mxu0 %v5801
    %8299 = vmatpush1.bf16.msra.mxu0 %v5800
    %8300 = vmatprep.subr.bf16.mxu0 %v5793
    %8301 = vmatpush1.bf16.msra.mxu0 %v5792
    %8302 = vmatprep.subr.bf16.mxu0 %v5785
    %8303 = vmatpush1.bf16.msra.mxu0 %v5784
    %8304 = vmatprep.subr.bf16.mxu0 %v5905
    %8305 = vmatpush2.bf16.msra.mxu0 %v5904
    %8306 = vmatprep.subr.bf16.mxu0 %v5897
    %8307 = vmatpush2.bf16.msra.mxu0 %v5896
    %8308 = vmatprep.subr.bf16.mxu0 %v5889
    %8309 = vmatpush2.bf16.msra.mxu0 %v5888
    %8310 = vmatprep.subr.bf16.mxu0 %v5881
    %8311 = vmatpush2.bf16.msra.mxu0 %v5880
    %8312 = vmatprep.subr.bf16.mxu0 %v5873
    %8313 = vmatpush2.bf16.msra.mxu0 %v5872
    %8314 = vmatprep.subr.bf16.mxu0 %v5865
    %8315 = vmatpush2.bf16.msra.mxu0 %v5864
    %8316 = vmatprep.subr.bf16.mxu0 %v5857
    %8317 = vmatpush2.bf16.msra.mxu0 %v5856
    %8318 = vmatprep.subr.bf16.mxu0 %v5849
    %8319 = vmatpush2.bf16.msra.mxu0 %v5848
    %8320 = vmatprep.mubr.bf16.mxu0 %v869
    %8321 = vmatmul.mubr.bf16.gmra.mxu0 %v868
    %v8322 = vpop.f32.mrf.mxu0
    %v8323 = vadd.f32 %v8282, %v8322
    %v8324 = vpop.f32.mrf.mxu0
    %v8325 = vadd.f32 %v8284, %v8324
    %v8326 = vpop.f32.mrf.mxu0
    %v8327 = vpop.f32.mrf.mxu0
    %8328 = vdwg.mxu0
    %8329 = vmatprep.subr.bf16.mxu0 %v5969
    %8330 = vmatpush1.bf16.msra.mxu0 %v5968
    %8331 = vmatprep.subr.bf16.mxu0 %v5961
    %8332 = vmatpush1.bf16.msra.mxu0 %v5960
    %8333 = vmatprep.subr.bf16.mxu0 %v5953
    %8334 = vmatpush1.bf16.msra.mxu0 %v5952
    %8335 = vmatprep.subr.bf16.mxu0 %v5945
    %8336 = vmatpush1.bf16.msra.mxu0 %v5944
    %8337 = vmatprep.subr.bf16.mxu0 %v5937
    %8338 = vmatpush1.bf16.msra.mxu0 %v5936
    %8339 = vmatprep.subr.bf16.mxu0 %v5929
    %8340 = vmatpush1.bf16.msra.mxu0 %v5928
    %8341 = vmatprep.subr.bf16.mxu0 %v5921
    %8342 = vmatpush1.bf16.msra.mxu0 %v5920
    %8343 = vmatprep.subr.bf16.mxu0 %v5913
    %8344 = vmatpush1.bf16.msra.mxu0 %v5912
    %8345 = vmatprep.subr.bf16.mxu0 %v6033
    %8346 = vmatpush2.bf16.msra.mxu0 %v6032
    %8347 = vmatprep.subr.bf16.mxu0 %v6025
    %8348 = vmatpush2.bf16.msra.mxu0 %v6024
    %8349 = vmatprep.subr.bf16.mxu0 %v6017
    %8350 = vmatpush2.bf16.msra.mxu0 %v6016
    %8351 = vmatprep.subr.bf16.mxu0 %v6009
    %8352 = vmatpush2.bf16.msra.mxu0 %v6008
    %8353 = vmatprep.subr.bf16.mxu0 %v6001
    %8354 = vmatpush2.bf16.msra.mxu0 %v6000
    %8355 = vmatprep.subr.bf16.mxu0 %v5993
    %8356 = vmatpush2.bf16.msra.mxu0 %v5992
    %8357 = vmatprep.subr.bf16.mxu0 %v5985
    %8358 = vmatpush2.bf16.msra.mxu0 %v5984
    %8359 = vmatprep.subr.bf16.mxu0 %v5977
    %8360 = vmatpush2.bf16.msra.mxu0 %v5976
    %8361 = vmatprep.mubr.bf16.mxu0 %v871
    %8362 = vmatmul.mubr.bf16.gmra.mxu0 %v870
    %v8363 = vpop.f32.mrf.mxu0
    %v8364 = vadd.f32 %v8323, %v8363
    %v8365 = vpop.f32.mrf.mxu0
    %v8366 = vadd.f32 %v8325, %v8365
    %v8367 = vpop.f32.mrf.mxu0
    %v8368 = vpop.f32.mrf.mxu0
    %8369 = vdwg.mxu0
    %vm8370 = vcmp.ge.f32.partialorder %v7380, 0.0
    %vm8371 = vcmp.ge.f32.partialorder %v7382, 0.0
    %vm8372 = vcmp.ge.f32.partialorder %v7708, 0.0
    %vm8373 = vcmp.ge.f32.partialorder %v7710, 0.0
    %vm8374 = vcmp.ge.f32.partialorder %v8036, 0.0
    %vm8375 = vcmp.ge.f32.partialorder %v8038, 0.0
    %vm8376 = vcmp.ge.f32.partialorder %v8364, 0.0
    %vm8377 = vcmp.ge.f32.partialorder %v8366, 0.0
    %v8378 = vmul.f32 %v7380, 0.2
    %v8379 = vmul.f32 %v7382, 0.2
    %v8380 = vmul.f32 %v7708, 0.2
    %v8381 = vmul.f32 %v7710, 0.2
    %v8382 = vmul.f32 %v8036, 0.2
    %v8383 = vmul.f32 %v8038, 0.2
    %v8384 = vmul.f32 %v8364, 0.2
    %v8385 = vmul.f32 %v8366, 0.2
    %v8386 = vsel %vm8370, %v7380, %v8378
    %v8387 = vsel %vm8371, %v7382, %v8379
    %v8388 = vsel %vm8372, %v7708, %v8380
    %v8389 = vsel %vm8373, %v7710, %v8381
    %v8390 = vsel %vm8374, %v8036, %v8382
    %v8391 = vsel %vm8375, %v8038, %v8383
    %v8392 = vsel %vm8376, %v8364, %v8384
    %v8393 = vsel %vm8377, %v8366, %v8385
    %v8394 = vpack.c.bf16 %v8386, %v8386
    %v8395 = vpack.c.bf16 %v8387, %v8387
    %v8396 = vpack.c.bf16 %v8388, %v8388
    %v8397 = vpack.c.bf16 %v8389, %v8389
    %v8398 = vpack.c.bf16 %v8390, %v8390
    %v8399 = vpack.c.bf16 %v8391, %v8391
    %v8400 = vpack.c.bf16 %v8392, %v8392
    %v8401 = vpack.c.bf16 %v8393, %v8393
    %v8402 = vld [vmem:[%s7] sm:$0xff]
    %v8403 = vld [vmem:[%s7 + $0x8] sm:$0xff]
    %v8404 = vld [vmem:[%s7 + $0x10] sm:$0xff]
    %v8405 = vld [vmem:[%s7 + $0x18] sm:$0xff]
    %v8406 = vld [vmem:[%s7 + $0x20] sm:$0xff]
    %v8407 = vld [vmem:[%s7 + $0x28] sm:$0xff]
    %v8408 = vld [vmem:[%s7 + $0x30] sm:$0xff]
    %v8409 = vld [vmem:[%s7 + $0x38] sm:$0xff]
    %v8410 = vld [vmem:[%s7 + $0x40] sm:$0xff]
    %v8411 = vld [vmem:[%s7 + $0x48] sm:$0xff]
    %v8412 = vld [vmem:[%s7 + $0x50] sm:$0xff]
    %v8413 = vld [vmem:[%s7 + $0x58] sm:$0xff]
    %v8414 = vld [vmem:[%s7 + $0x60] sm:$0xff]
    %v8415 = vld [vmem:[%s7 + $0x68] sm:$0xff]
    %v8416 = vld [vmem:[%s7 + $0x70] sm:$0xff]
    %v8417 = vld [vmem:[%s7 + $0x78] sm:$0xff]
    %v8418 = vld [vmem:[%s7 + $0x80] sm:$0xff]
    %v8419 = vld [vmem:[%s7 + $0x88] sm:$0xff]
    %v8420 = vld [vmem:[%s7 + $0x90] sm:$0xff]
    %v8421 = vld [vmem:[%s7 + $0x98] sm:$0xff]
    %v8422 = vld [vmem:[%s7 + $0xa0] sm:$0xff]
    %v8423 = vld [vmem:[%s7 + $0xa8] sm:$0xff]
    %v8424 = vld [vmem:[%s7 + $0xb0] sm:$0xff]
    %v8425 = vld [vmem:[%s7 + $0xb8] sm:$0xff]
    %v8426 = vld [vmem:[%s7 + $0xc0] sm:$0xff]
    %v8427 = vld [vmem:[%s7 + $0xc8] sm:$0xff]
    %v8428 = vld [vmem:[%s7 + $0xd0] sm:$0xff]
    %v8429 = vld [vmem:[%s7 + $0xd8] sm:$0xff]
    %v8430 = vld [vmem:[%s7 + $0xe0] sm:$0xff]
    %v8431 = vld [vmem:[%s7 + $0xe8] sm:$0xff]
    %v8432 = vld [vmem:[%s7 + $0xf0] sm:$0xff]
    %v8433 = vld [vmem:[%s7 + $0xf8] sm:$0xff]
    %v8434 = vld [vmem:[%s7 + $0x100] sm:$0xff]
    %v8435 = vld [vmem:[%s7 + $0x108] sm:$0xff]
    %v8436 = vld [vmem:[%s7 + $0x110] sm:$0xff]
    %v8437 = vld [vmem:[%s7 + $0x118] sm:$0xff]
    %v8438 = vld [vmem:[%s7 + $0x120] sm:$0xff]
    %v8439 = vld [vmem:[%s7 + $0x128] sm:$0xff]
    %v8440 = vld [vmem:[%s7 + $0x130] sm:$0xff]
    %v8441 = vld [vmem:[%s7 + $0x138] sm:$0xff]
    %v8442 = vld [vmem:[%s7 + $0x140] sm:$0xff]
    %v8443 = vld [vmem:[%s7 + $0x148] sm:$0xff]
    %v8444 = vld [vmem:[%s7 + $0x150] sm:$0xff]
    %v8445 = vld [vmem:[%s7 + $0x158] sm:$0xff]
    %v8446 = vld [vmem:[%s7 + $0x160] sm:$0xff]
    %v8447 = vld [vmem:[%s7 + $0x168] sm:$0xff]
    %v8448 = vld [vmem:[%s7 + $0x170] sm:$0xff]
    %v8449 = vld [vmem:[%s7 + $0x178] sm:$0xff]
    %v8450 = vld [vmem:[%s7 + $0x180] sm:$0xff]
    %v8451 = vld [vmem:[%s7 + $0x188] sm:$0xff]
    %v8452 = vld [vmem:[%s7 + $0x190] sm:$0xff]
    %v8453 = vld [vmem:[%s7 + $0x198] sm:$0xff]
    %v8454 = vld [vmem:[%s7 + $0x1a0] sm:$0xff]
    %v8455 = vld [vmem:[%s7 + $0x1a8] sm:$0xff]
    %v8456 = vld [vmem:[%s7 + $0x1b0] sm:$0xff]
    %v8457 = vld [vmem:[%s7 + $0x1b8] sm:$0xff]
    %v8458 = vld [vmem:[%s7 + $0x1c0] sm:$0xff]
    %v8459 = vld [vmem:[%s7 + $0x1c8] sm:$0xff]
    %v8460 = vld [vmem:[%s7 + $0x1d0] sm:$0xff]
    %v8461 = vld [vmem:[%s7 + $0x1d8] sm:$0xff]
    %v8462 = vld [vmem:[%s7 + $0x1e0] sm:$0xff]
    %v8463 = vld [vmem:[%s7 + $0x1e8] sm:$0xff]
    %v8464 = vld [vmem:[%s7 + $0x1f0] sm:$0xff]
    %v8465 = vld [vmem:[%s7 + $0x1f8] sm:$0xff]
    %v8466 = vld [vmem:[%s7 + $0x200] sm:$0xff]
    %v8467 = vld [vmem:[%s7 + $0x208] sm:$0xff]
    %v8468 = vld [vmem:[%s7 + $0x210] sm:$0xff]
    %v8469 = vld [vmem:[%s7 + $0x218] sm:$0xff]
    %v8470 = vld [vmem:[%s7 + $0x220] sm:$0xff]
    %v8471 = vld [vmem:[%s7 + $0x228] sm:$0xff]
    %v8472 = vld [vmem:[%s7 + $0x230] sm:$0xff]
    %v8473 = vld [vmem:[%s7 + $0x238] sm:$0xff]
    %v8474 = vld [vmem:[%s7 + $0x240] sm:$0xff]
    %v8475 = vld [vmem:[%s7 + $0x248] sm:$0xff]
    %v8476 = vld [vmem:[%s7 + $0x250] sm:$0xff]
    %v8477 = vld [vmem:[%s7 + $0x258] sm:$0xff]
    %v8478 = vld [vmem:[%s7 + $0x260] sm:$0xff]
    %v8479 = vld [vmem:[%s7 + $0x268] sm:$0xff]
    %v8480 = vld [vmem:[%s7 + $0x270] sm:$0xff]
    %v8481 = vld [vmem:[%s7 + $0x278] sm:$0xff]
    %v8482 = vld [vmem:[%s7 + $0x280] sm:$0xff]
    %v8483 = vld [vmem:[%s7 + $0x288] sm:$0xff]
    %v8484 = vld [vmem:[%s7 + $0x290] sm:$0xff]
    %v8485 = vld [vmem:[%s7 + $0x298] sm:$0xff]
    %v8486 = vld [vmem:[%s7 + $0x2a0] sm:$0xff]
    %v8487 = vld [vmem:[%s7 + $0x2a8] sm:$0xff]
    %v8488 = vld [vmem:[%s7 + $0x2b0] sm:$0xff]
    %v8489 = vld [vmem:[%s7 + $0x2b8] sm:$0xff]
    %v8490 = vld [vmem:[%s7 + $0x2c0] sm:$0xff]
    %v8491 = vld [vmem:[%s7 + $0x2c8] sm:$0xff]
    %v8492 = vld [vmem:[%s7 + $0x2d0] sm:$0xff]
    %v8493 = vld [vmem:[%s7 + $0x2d8] sm:$0xff]
    %v8494 = vld [vmem:[%s7 + $0x2e0] sm:$0xff]
    %v8495 = vld [vmem:[%s7 + $0x2e8] sm:$0xff]
    %v8496 = vld [vmem:[%s7 + $0x2f0] sm:$0xff]
    %v8497 = vld [vmem:[%s7 + $0x2f8] sm:$0xff]
    %v8498 = vld [vmem:[%s7 + $0x300] sm:$0xff]
    %v8499 = vld [vmem:[%s7 + $0x308] sm:$0xff]
    %v8500 = vld [vmem:[%s7 + $0x310] sm:$0xff]
    %v8501 = vld [vmem:[%s7 + $0x318] sm:$0xff]
    %v8502 = vld [vmem:[%s7 + $0x320] sm:$0xff]
    %v8503 = vld [vmem:[%s7 + $0x328] sm:$0xff]
    %v8504 = vld [vmem:[%s7 + $0x330] sm:$0xff]
    %v8505 = vld [vmem:[%s7 + $0x338] sm:$0xff]
    %v8506 = vld [vmem:[%s7 + $0x340] sm:$0xff]
    %v8507 = vld [vmem:[%s7 + $0x348] sm:$0xff]
    %v8508 = vld [vmem:[%s7 + $0x350] sm:$0xff]
    %v8509 = vld [vmem:[%s7 + $0x358] sm:$0xff]
    %v8510 = vld [vmem:[%s7 + $0x360] sm:$0xff]
    %v8511 = vld [vmem:[%s7 + $0x368] sm:$0xff]
    %v8512 = vld [vmem:[%s7 + $0x370] sm:$0xff]
    %v8513 = vld [vmem:[%s7 + $0x378] sm:$0xff]
    %v8514 = vld [vmem:[%s7 + $0x380] sm:$0xff]
    %v8515 = vld [vmem:[%s7 + $0x388] sm:$0xff]
    %v8516 = vld [vmem:[%s7 + $0x390] sm:$0xff]
    %v8517 = vld [vmem:[%s7 + $0x398] sm:$0xff]
    %v8518 = vld [vmem:[%s7 + $0x3a0] sm:$0xff]
    %v8519 = vld [vmem:[%s7 + $0x3a8] sm:$0xff]
    %v8520 = vld [vmem:[%s7 + $0x3b0] sm:$0xff]
    %v8521 = vld [vmem:[%s7 + $0x3b8] sm:$0xff]
    %v8522 = vld [vmem:[%s7 + $0x3c0] sm:$0xff]
    %v8523 = vld [vmem:[%s7 + $0x3c8] sm:$0xff]
    %v8524 = vld [vmem:[%s7 + $0x3d0] sm:$0xff]
    %v8525 = vld [vmem:[%s7 + $0x3d8] sm:$0xff]
    %v8526 = vld [vmem:[%s7 + $0x3e0] sm:$0xff]
    %v8527 = vld [vmem:[%s7 + $0x3e8] sm:$0xff]
    %v8528 = vld [vmem:[%s7 + $0x3f0] sm:$0xff]
    %v8529 = vld [vmem:[%s7 + $0x3f8] sm:$0xff]
    %v8530 = vld [vmem:[%s7 + $0x400] sm:$0xff]
    %v8531 = vld [vmem:[%s7 + $0x408] sm:$0xff]
    %v8532 = vld [vmem:[%s7 + $0x410] sm:$0xff]
    %v8533 = vld [vmem:[%s7 + $0x418] sm:$0xff]
    %v8534 = vld [vmem:[%s7 + $0x420] sm:$0xff]
    %v8535 = vld [vmem:[%s7 + $0x428] sm:$0xff]
    %v8536 = vld [vmem:[%s7 + $0x430] sm:$0xff]
    %v8537 = vld [vmem:[%s7 + $0x438] sm:$0xff]
    %v8538 = vld [vmem:[%s7 + $0x440] sm:$0xff]
    %v8539 = vld [vmem:[%s7 + $0x448] sm:$0xff]
    %v8540 = vld [vmem:[%s7 + $0x450] sm:$0xff]
    %v8541 = vld [vmem:[%s7 + $0x458] sm:$0xff]
    %v8542 = vld [vmem:[%s7 + $0x460] sm:$0xff]
    %v8543 = vld [vmem:[%s7 + $0x468] sm:$0xff]
    %v8544 = vld [vmem:[%s7 + $0x470] sm:$0xff]
    %v8545 = vld [vmem:[%s7 + $0x478] sm:$0xff]
    %v8546 = vld [vmem:[%s7 + $0x480] sm:$0xff]
    %v8547 = vld [vmem:[%s7 + $0x488] sm:$0xff]
    %v8548 = vld [vmem:[%s7 + $0x490] sm:$0xff]
    %v8549 = vld [vmem:[%s7 + $0x498] sm:$0xff]
    %v8550 = vld [vmem:[%s7 + $0x4a0] sm:$0xff]
    %v8551 = vld [vmem:[%s7 + $0x4a8] sm:$0xff]
    %v8552 = vld [vmem:[%s7 + $0x4b0] sm:$0xff]
    %v8553 = vld [vmem:[%s7 + $0x4b8] sm:$0xff]
    %v8554 = vld [vmem:[%s7 + $0x4c0] sm:$0xff]
    %v8555 = vld [vmem:[%s7 + $0x4c8] sm:$0xff]
    %v8556 = vld [vmem:[%s7 + $0x4d0] sm:$0xff]
    %v8557 = vld [vmem:[%s7 + $0x4d8] sm:$0xff]
    %v8558 = vld [vmem:[%s7 + $0x4e0] sm:$0xff]
    %v8559 = vld [vmem:[%s7 + $0x4e8] sm:$0xff]
    %v8560 = vld [vmem:[%s7 + $0x4f0] sm:$0xff]
    %v8561 = vld [vmem:[%s7 + $0x4f8] sm:$0xff]
    %v8562 = vld [vmem:[%s7 + $0x500] sm:$0xff]
    %v8563 = vld [vmem:[%s7 + $0x508] sm:$0xff]
    %v8564 = vld [vmem:[%s7 + $0x510] sm:$0xff]
    %v8565 = vld [vmem:[%s7 + $0x518] sm:$0xff]
    %v8566 = vld [vmem:[%s7 + $0x520] sm:$0xff]
    %v8567 = vld [vmem:[%s7 + $0x528] sm:$0xff]
    %v8568 = vld [vmem:[%s7 + $0x530] sm:$0xff]
    %v8569 = vld [vmem:[%s7 + $0x538] sm:$0xff]
    %v8570 = vld [vmem:[%s7 + $0x540] sm:$0xff]
    %v8571 = vld [vmem:[%s7 + $0x548] sm:$0xff]
    %v8572 = vld [vmem:[%s7 + $0x550] sm:$0xff]
    %v8573 = vld [vmem:[%s7 + $0x558] sm:$0xff]
    %v8574 = vld [vmem:[%s7 + $0x560] sm:$0xff]
    %v8575 = vld [vmem:[%s7 + $0x568] sm:$0xff]
    %v8576 = vld [vmem:[%s7 + $0x570] sm:$0xff]
    %v8577 = vld [vmem:[%s7 + $0x578] sm:$0xff]
    %v8578 = vld [vmem:[%s7 + $0x580] sm:$0xff]
    %v8579 = vld [vmem:[%s7 + $0x588] sm:$0xff]
    %v8580 = vld [vmem:[%s7 + $0x590] sm:$0xff]
    %v8581 = vld [vmem:[%s7 + $0x598] sm:$0xff]
    %v8582 = vld [vmem:[%s7 + $0x5a0] sm:$0xff]
    %v8583 = vld [vmem:[%s7 + $0x5a8] sm:$0xff]
    %v8584 = vld [vmem:[%s7 + $0x5b0] sm:$0xff]
    %v8585 = vld [vmem:[%s7 + $0x5b8] sm:$0xff]
    %v8586 = vld [vmem:[%s7 + $0x5c0] sm:$0xff]
    %v8587 = vld [vmem:[%s7 + $0x5c8] sm:$0xff]
    %v8588 = vld [vmem:[%s7 + $0x5d0] sm:$0xff]
    %v8589 = vld [vmem:[%s7 + $0x5d8] sm:$0xff]
    %v8590 = vld [vmem:[%s7 + $0x5e0] sm:$0xff]
    %v8591 = vld [vmem:[%s7 + $0x5e8] sm:$0xff]
    %v8592 = vld [vmem:[%s7 + $0x5f0] sm:$0xff]
    %v8593 = vld [vmem:[%s7 + $0x5f8] sm:$0xff]
    %v8594 = vld [vmem:[%s7 + $0x600] sm:$0xff]
    %v8595 = vld [vmem:[%s7 + $0x608] sm:$0xff]
    %v8596 = vld [vmem:[%s7 + $0x610] sm:$0xff]
    %v8597 = vld [vmem:[%s7 + $0x618] sm:$0xff]
    %v8598 = vld [vmem:[%s7 + $0x620] sm:$0xff]
    %v8599 = vld [vmem:[%s7 + $0x628] sm:$0xff]
    %v8600 = vld [vmem:[%s7 + $0x630] sm:$0xff]
    %v8601 = vld [vmem:[%s7 + $0x638] sm:$0xff]
    %v8602 = vld [vmem:[%s7 + $0x640] sm:$0xff]
    %v8603 = vld [vmem:[%s7 + $0x648] sm:$0xff]
    %v8604 = vld [vmem:[%s7 + $0x650] sm:$0xff]
    %v8605 = vld [vmem:[%s7 + $0x658] sm:$0xff]
    %v8606 = vld [vmem:[%s7 + $0x660] sm:$0xff]
    %v8607 = vld [vmem:[%s7 + $0x668] sm:$0xff]
    %v8608 = vld [vmem:[%s7 + $0x670] sm:$0xff]
    %v8609 = vld [vmem:[%s7 + $0x678] sm:$0xff]
    %v8610 = vld [vmem:[%s7 + $0x680] sm:$0xff]
    %v8611 = vld [vmem:[%s7 + $0x688] sm:$0xff]
    %v8612 = vld [vmem:[%s7 + $0x690] sm:$0xff]
    %v8613 = vld [vmem:[%s7 + $0x698] sm:$0xff]
    %v8614 = vld [vmem:[%s7 + $0x6a0] sm:$0xff]
    %v8615 = vld [vmem:[%s7 + $0x6a8] sm:$0xff]
    %v8616 = vld [vmem:[%s7 + $0x6b0] sm:$0xff]
    %v8617 = vld [vmem:[%s7 + $0x6b8] sm:$0xff]
    %v8618 = vld [vmem:[%s7 + $0x6c0] sm:$0xff]
    %v8619 = vld [vmem:[%s7 + $0x6c8] sm:$0xff]
    %v8620 = vld [vmem:[%s7 + $0x6d0] sm:$0xff]
    %v8621 = vld [vmem:[%s7 + $0x6d8] sm:$0xff]
    %v8622 = vld [vmem:[%s7 + $0x6e0] sm:$0xff]
    %v8623 = vld [vmem:[%s7 + $0x6e8] sm:$0xff]
    %v8624 = vld [vmem:[%s7 + $0x6f0] sm:$0xff]
    %v8625 = vld [vmem:[%s7 + $0x6f8] sm:$0xff]
    %v8626 = vld [vmem:[%s7 + $0x700] sm:$0xff]
    %v8627 = vld [vmem:[%s7 + $0x708] sm:$0xff]
    %v8628 = vld [vmem:[%s7 + $0x710] sm:$0xff]
    %v8629 = vld [vmem:[%s7 + $0x718] sm:$0xff]
    %v8630 = vld [vmem:[%s7 + $0x720] sm:$0xff]
    %v8631 = vld [vmem:[%s7 + $0x728] sm:$0xff]
    %v8632 = vld [vmem:[%s7 + $0x730] sm:$0xff]
    %v8633 = vld [vmem:[%s7 + $0x738] sm:$0xff]
    %v8634 = vld [vmem:[%s7 + $0x740] sm:$0xff]
    %v8635 = vld [vmem:[%s7 + $0x748] sm:$0xff]
    %v8636 = vld [vmem:[%s7 + $0x750] sm:$0xff]
    %v8637 = vld [vmem:[%s7 + $0x758] sm:$0xff]
    %v8638 = vld [vmem:[%s7 + $0x760] sm:$0xff]
    %v8639 = vld [vmem:[%s7 + $0x768] sm:$0xff]
    %v8640 = vld [vmem:[%s7 + $0x770] sm:$0xff]
    %v8641 = vld [vmem:[%s7 + $0x778] sm:$0xff]
    %v8642 = vld [vmem:[%s7 + $0x780] sm:$0xff]
    %v8643 = vld [vmem:[%s7 + $0x788] sm:$0xff]
    %v8644 = vld [vmem:[%s7 + $0x790] sm:$0xff]
    %v8645 = vld [vmem:[%s7 + $0x798] sm:$0xff]
    %v8646 = vld [vmem:[%s7 + $0x7a0] sm:$0xff]
    %v8647 = vld [vmem:[%s7 + $0x7a8] sm:$0xff]
    %v8648 = vld [vmem:[%s7 + $0x7b0] sm:$0xff]
    %v8649 = vld [vmem:[%s7 + $0x7b8] sm:$0xff]
    %v8650 = vld [vmem:[%s7 + $0x7c0] sm:$0xff]
    %v8651 = vld [vmem:[%s7 + $0x7c8] sm:$0xff]
    %v8652 = vld [vmem:[%s7 + $0x7d0] sm:$0xff]
    %v8653 = vld [vmem:[%s7 + $0x7d8] sm:$0xff]
    %v8654 = vld [vmem:[%s7 + $0x7e0] sm:$0xff]
    %v8655 = vld [vmem:[%s7 + $0x7e8] sm:$0xff]
    %v8656 = vld [vmem:[%s7 + $0x7f0] sm:$0xff]
    %v8657 = vld [vmem:[%s7 + $0x7f8] sm:$0xff]
    %v8658 = vld [vmem:[%s8] sm:$0xf]
    %v8660 = vlaneseq
    %v8661 = vshrl.u32 %v8660, 7
    %v8662 = vsub.s32 0, %v8661
    %v8663 = vrot.slane %v8658, %v8662
    %v8664 = vlaneseq
    %v8665 = vshrl.u32 %v8664, 7
    %v8666 = vsub.s32 1, %v8665
    %v8667 = vrot.slane %v8658, %v8666
    %v8668 = vlaneseq
    %v8669 = vshrl.u32 %v8668, 7
    %v8670 = vsub.s32 2, %v8669
    %v8671 = vrot.slane %v8658, %v8670
    %v8672 = vlaneseq
    %v8673 = vshrl.u32 %v8672, 7
    %v8674 = vsub.s32 3, %v8673
    %v8675 = vrot.slane %v8658, %v8674
    %v8936 = vunpack.c.l.b16 %v8402
    %v8937 = vunpack.c.h.b16 %v8402
    %v8938 = vunpack.c.l.b16 %v8403
    %v8939 = vunpack.c.h.b16 %v8403
    %v8940 = vunpack.c.l.b16 %v8404
    %v8941 = vunpack.c.h.b16 %v8404
    %v8942 = vunpack.c.l.b16 %v8405
    %v8943 = vunpack.c.h.b16 %v8405
    %v8944 = vunpack.c.l.b16 %v8406
    %v8945 = vunpack.c.h.b16 %v8406
    %v8946 = vunpack.c.l.b16 %v8407
    %v8947 = vunpack.c.h.b16 %v8407
    %v8948 = vunpack.c.l.b16 %v8408
    %v8949 = vunpack.c.h.b16 %v8408
    %v8950 = vunpack.c.l.b16 %v8409
    %v8951 = vunpack.c.h.b16 %v8409
    %v8952 = vunpack.c.l.b16 %v8410
    %v8953 = vunpack.c.h.b16 %v8410
    %v8954 = vunpack.c.l.b16 %v8411
    %v8955 = vunpack.c.h.b16 %v8411
    %v8956 = vunpack.c.l.b16 %v8412
    %v8957 = vunpack.c.h.b16 %v8412
    %v8958 = vunpack.c.l.b16 %v8413
    %v8959 = vunpack.c.h.b16 %v8413
    %v8960 = vunpack.c.l.b16 %v8414
    %v8961 = vunpack.c.h.b16 %v8414
    %v8962 = vunpack.c.l.b16 %v8415
    %v8963 = vunpack.c.h.b16 %v8415
    %v8964 = vunpack.c.l.b16 %v8416
    %v8965 = vunpack.c.h.b16 %v8416
    %v8966 = vunpack.c.l.b16 %v8417
    %v8967 = vunpack.c.h.b16 %v8417
    %v8968 = vunpack.c.l.b16 %v8418
    %v8969 = vunpack.c.h.b16 %v8418
    %v8970 = vunpack.c.l.b16 %v8419
    %v8971 = vunpack.c.h.b16 %v8419
    %v8972 = vunpack.c.l.b16 %v8420
    %v8973 = vunpack.c.h.b16 %v8420
    %v8974 = vunpack.c.l.b16 %v8421
    %v8975 = vunpack.c.h.b16 %v8421
    %v8976 = vunpack.c.l.b16 %v8422
    %v8977 = vunpack.c.h.b16 %v8422
    %v8978 = vunpack.c.l.b16 %v8423
    %v8979 = vunpack.c.h.b16 %v8423
    %v8980 = vunpack.c.l.b16 %v8424
    %v8981 = vunpack.c.h.b16 %v8424
    %v8982 = vunpack.c.l.b16 %v8425
    %v8983 = vunpack.c.h.b16 %v8425
    %v8984 = vunpack.c.l.b16 %v8426
    %v8985 = vunpack.c.h.b16 %v8426
    %v8986 = vunpack.c.l.b16 %v8427
    %v8987 = vunpack.c.h.b16 %v8427
    %v8988 = vunpack.c.l.b16 %v8428
    %v8989 = vunpack.c.h.b16 %v8428
    %v8990 = vunpack.c.l.b16 %v8429
    %v8991 = vunpack.c.h.b16 %v8429
    %v8992 = vunpack.c.l.b16 %v8430
    %v8993 = vunpack.c.h.b16 %v8430
    %v8994 = vunpack.c.l.b16 %v8431
    %v8995 = vunpack.c.h.b16 %v8431
    %v8996 = vunpack.c.l.b16 %v8432
    %v8997 = vunpack.c.h.b16 %v8432
    %v8998 = vunpack.c.l.b16 %v8433
    %v8999 = vunpack.c.h.b16 %v8433
    %v9000 = vunpack.c.l.b16 %v8434
    %v9001 = vunpack.c.h.b16 %v8434
    %v9002 = vunpack.c.l.b16 %v8435
    %v9003 = vunpack.c.h.b16 %v8435
    %v9004 = vunpack.c.l.b16 %v8436
    %v9005 = vunpack.c.h.b16 %v8436
    %v9006 = vunpack.c.l.b16 %v8437
    %v9007 = vunpack.c.h.b16 %v8437
    %v9008 = vunpack.c.l.b16 %v8438
    %v9009 = vunpack.c.h.b16 %v8438
    %v9010 = vunpack.c.l.b16 %v8439
    %v9011 = vunpack.c.h.b16 %v8439
    %v9012 = vunpack.c.l.b16 %v8440
    %v9013 = vunpack.c.h.b16 %v8440
    %v9014 = vunpack.c.l.b16 %v8441
    %v9015 = vunpack.c.h.b16 %v8441
    %v9016 = vunpack.c.l.b16 %v8442
    %v9017 = vunpack.c.h.b16 %v8442
    %v9018 = vunpack.c.l.b16 %v8443
    %v9019 = vunpack.c.h.b16 %v8443
    %v9020 = vunpack.c.l.b16 %v8444
    %v9021 = vunpack.c.h.b16 %v8444
    %v9022 = vunpack.c.l.b16 %v8445
    %v9023 = vunpack.c.h.b16 %v8445
    %v9024 = vunpack.c.l.b16 %v8446
    %v9025 = vunpack.c.h.b16 %v8446
    %v9026 = vunpack.c.l.b16 %v8447
    %v9027 = vunpack.c.h.b16 %v8447
    %v9028 = vunpack.c.l.b16 %v8448
    %v9029 = vunpack.c.h.b16 %v8448
    %v9030 = vunpack.c.l.b16 %v8449
    %v9031 = vunpack.c.h.b16 %v8449
    %v9032 = vunpack.c.l.b16 %v8450
    %v9033 = vunpack.c.h.b16 %v8450
    %v9034 = vunpack.c.l.b16 %v8451
    %v9035 = vunpack.c.h.b16 %v8451
    %v9036 = vunpack.c.l.b16 %v8452
    %v9037 = vunpack.c.h.b16 %v8452
    %v9038 = vunpack.c.l.b16 %v8453
    %v9039 = vunpack.c.h.b16 %v8453
    %v9040 = vunpack.c.l.b16 %v8454
    %v9041 = vunpack.c.h.b16 %v8454
    %v9042 = vunpack.c.l.b16 %v8455
    %v9043 = vunpack.c.h.b16 %v8455
    %v9044 = vunpack.c.l.b16 %v8456
    %v9045 = vunpack.c.h.b16 %v8456
    %v9046 = vunpack.c.l.b16 %v8457
    %v9047 = vunpack.c.h.b16 %v8457
    %v9048 = vunpack.c.l.b16 %v8458
    %v9049 = vunpack.c.h.b16 %v8458
    %v9050 = vunpack.c.l.b16 %v8459
    %v9051 = vunpack.c.h.b16 %v8459
    %v9052 = vunpack.c.l.b16 %v8460
    %v9053 = vunpack.c.h.b16 %v8460
    %v9054 = vunpack.c.l.b16 %v8461
    %v9055 = vunpack.c.h.b16 %v8461
    %v9056 = vunpack.c.l.b16 %v8462
    %v9057 = vunpack.c.h.b16 %v8462
    %v9058 = vunpack.c.l.b16 %v8463
    %v9059 = vunpack.c.h.b16 %v8463
    %v9060 = vunpack.c.l.b16 %v8464
    %v9061 = vunpack.c.h.b16 %v8464
    %v9062 = vunpack.c.l.b16 %v8465
    %v9063 = vunpack.c.h.b16 %v8465
    %v9064 = vunpack.c.l.b16 %v8466
    %v9065 = vunpack.c.h.b16 %v8466
    %v9066 = vunpack.c.l.b16 %v8467
    %v9067 = vunpack.c.h.b16 %v8467
    %v9068 = vunpack.c.l.b16 %v8468
    %v9069 = vunpack.c.h.b16 %v8468
    %v9070 = vunpack.c.l.b16 %v8469
    %v9071 = vunpack.c.h.b16 %v8469
    %v9072 = vunpack.c.l.b16 %v8470
    %v9073 = vunpack.c.h.b16 %v8470
    %v9074 = vunpack.c.l.b16 %v8471
    %v9075 = vunpack.c.h.b16 %v8471
    %v9076 = vunpack.c.l.b16 %v8472
    %v9077 = vunpack.c.h.b16 %v8472
    %v9078 = vunpack.c.l.b16 %v8473
    %v9079 = vunpack.c.h.b16 %v8473
    %v9080 = vunpack.c.l.b16 %v8474
    %v9081 = vunpack.c.h.b16 %v8474
    %v9082 = vunpack.c.l.b16 %v8475
    %v9083 = vunpack.c.h.b16 %v8475
    %v9084 = vunpack.c.l.b16 %v8476
    %v9085 = vunpack.c.h.b16 %v8476
    %v9086 = vunpack.c.l.b16 %v8477
    %v9087 = vunpack.c.h.b16 %v8477
    %v9088 = vunpack.c.l.b16 %v8478
    %v9089 = vunpack.c.h.b16 %v8478
    %v9090 = vunpack.c.l.b16 %v8479
    %v9091 = vunpack.c.h.b16 %v8479
    %v9092 = vunpack.c.l.b16 %v8480
    %v9093 = vunpack.c.h.b16 %v8480
    %v9094 = vunpack.c.l.b16 %v8481
    %v9095 = vunpack.c.h.b16 %v8481
    %v9096 = vunpack.c.l.b16 %v8482
    %v9097 = vunpack.c.h.b16 %v8482
    %v9098 = vunpack.c.l.b16 %v8483
    %v9099 = vunpack.c.h.b16 %v8483
    %v9100 = vunpack.c.l.b16 %v8484
    %v9101 = vunpack.c.h.b16 %v8484
    %v9102 = vunpack.c.l.b16 %v8485
    %v9103 = vunpack.c.h.b16 %v8485
    %v9104 = vunpack.c.l.b16 %v8486
    %v9105 = vunpack.c.h.b16 %v8486
    %v9106 = vunpack.c.l.b16 %v8487
    %v9107 = vunpack.c.h.b16 %v8487
    %v9108 = vunpack.c.l.b16 %v8488
    %v9109 = vunpack.c.h.b16 %v8488
    %v9110 = vunpack.c.l.b16 %v8489
    %v9111 = vunpack.c.h.b16 %v8489
    %v9112 = vunpack.c.l.b16 %v8490
    %v9113 = vunpack.c.h.b16 %v8490
    %v9114 = vunpack.c.l.b16 %v8491
    %v9115 = vunpack.c.h.b16 %v8491
    %v9116 = vunpack.c.l.b16 %v8492
    %v9117 = vunpack.c.h.b16 %v8492
    %v9118 = vunpack.c.l.b16 %v8493
    %v9119 = vunpack.c.h.b16 %v8493
    %v9120 = vunpack.c.l.b16 %v8494
    %v9121 = vunpack.c.h.b16 %v8494
    %v9122 = vunpack.c.l.b16 %v8495
    %v9123 = vunpack.c.h.b16 %v8495
    %v9124 = vunpack.c.l.b16 %v8496
    %v9125 = vunpack.c.h.b16 %v8496
    %v9126 = vunpack.c.l.b16 %v8497
    %v9127 = vunpack.c.h.b16 %v8497
    %v9128 = vunpack.c.l.b16 %v8498
    %v9129 = vunpack.c.h.b16 %v8498
    %v9130 = vunpack.c.l.b16 %v8499
    %v9131 = vunpack.c.h.b16 %v8499
    %v9132 = vunpack.c.l.b16 %v8500
    %v9133 = vunpack.c.h.b16 %v8500
    %v9134 = vunpack.c.l.b16 %v8501
    %v9135 = vunpack.c.h.b16 %v8501
    %v9136 = vunpack.c.l.b16 %v8502
    %v9137 = vunpack.c.h.b16 %v8502
    %v9138 = vunpack.c.l.b16 %v8503
    %v9139 = vunpack.c.h.b16 %v8503
    %v9140 = vunpack.c.l.b16 %v8504
    %v9141 = vunpack.c.h.b16 %v8504
    %v9142 = vunpack.c.l.b16 %v8505
    %v9143 = vunpack.c.h.b16 %v8505
    %v9144 = vunpack.c.l.b16 %v8506
    %v9145 = vunpack.c.h.b16 %v8506
    %v9146 = vunpack.c.l.b16 %v8507
    %v9147 = vunpack.c.h.b16 %v8507
    %v9148 = vunpack.c.l.b16 %v8508
    %v9149 = vunpack.c.h.b16 %v8508
    %v9150 = vunpack.c.l.b16 %v8509
    %v9151 = vunpack.c.h.b16 %v8509
    %v9152 = vunpack.c.l.b16 %v8510
    %v9153 = vunpack.c.h.b16 %v8510
    %v9154 = vunpack.c.l.b16 %v8511
    %v9155 = vunpack.c.h.b16 %v8511
    %v9156 = vunpack.c.l.b16 %v8512
    %v9157 = vunpack.c.h.b16 %v8512
    %v9158 = vunpack.c.l.b16 %v8513
    %v9159 = vunpack.c.h.b16 %v8513
    %v9160 = vunpack.c.l.b16 %v8514
    %v9161 = vunpack.c.h.b16 %v8514
    %v9162 = vunpack.c.l.b16 %v8515
    %v9163 = vunpack.c.h.b16 %v8515
    %v9164 = vunpack.c.l.b16 %v8516
    %v9165 = vunpack.c.h.b16 %v8516
    %v9166 = vunpack.c.l.b16 %v8517
    %v9167 = vunpack.c.h.b16 %v8517
    %v9168 = vunpack.c.l.b16 %v8518
    %v9169 = vunpack.c.h.b16 %v8518
    %v9170 = vunpack.c.l.b16 %v8519
    %v9171 = vunpack.c.h.b16 %v8519
    %v9172 = vunpack.c.l.b16 %v8520
    %v9173 = vunpack.c.h.b16 %v8520
    %v9174 = vunpack.c.l.b16 %v8521
    %v9175 = vunpack.c.h.b16 %v8521
    %v9176 = vunpack.c.l.b16 %v8522
    %v9177 = vunpack.c.h.b16 %v8522
    %v9178 = vunpack.c.l.b16 %v8523
    %v9179 = vunpack.c.h.b16 %v8523
    %v9180 = vunpack.c.l.b16 %v8524
    %v9181 = vunpack.c.h.b16 %v8524
    %v9182 = vunpack.c.l.b16 %v8525
    %v9183 = vunpack.c.h.b16 %v8525
    %v9184 = vunpack.c.l.b16 %v8526
    %v9185 = vunpack.c.h.b16 %v8526
    %v9186 = vunpack.c.l.b16 %v8527
    %v9187 = vunpack.c.h.b16 %v8527
    %v9188 = vunpack.c.l.b16 %v8528
    %v9189 = vunpack.c.h.b16 %v8528
    %v9190 = vunpack.c.l.b16 %v8529
    %v9191 = vunpack.c.h.b16 %v8529
    %v9192 = vunpack.c.l.b16 %v8530
    %v9193 = vunpack.c.h.b16 %v8530
    %v9194 = vunpack.c.l.b16 %v8531
    %v9195 = vunpack.c.h.b16 %v8531
    %v9196 = vunpack.c.l.b16 %v8532
    %v9197 = vunpack.c.h.b16 %v8532
    %v9198 = vunpack.c.l.b16 %v8533
    %v9199 = vunpack.c.h.b16 %v8533
    %v9200 = vunpack.c.l.b16 %v8534
    %v9201 = vunpack.c.h.b16 %v8534
    %v9202 = vunpack.c.l.b16 %v8535
    %v9203 = vunpack.c.h.b16 %v8535
    %v9204 = vunpack.c.l.b16 %v8536
    %v9205 = vunpack.c.h.b16 %v8536
    %v9206 = vunpack.c.l.b16 %v8537
    %v9207 = vunpack.c.h.b16 %v8537
    %v9208 = vunpack.c.l.b16 %v8538
    %v9209 = vunpack.c.h.b16 %v8538
    %v9210 = vunpack.c.l.b16 %v8539
    %v9211 = vunpack.c.h.b16 %v8539
    %v9212 = vunpack.c.l.b16 %v8540
    %v9213 = vunpack.c.h.b16 %v8540
    %v9214 = vunpack.c.l.b16 %v8541
    %v9215 = vunpack.c.h.b16 %v8541
    %v9216 = vunpack.c.l.b16 %v8542
    %v9217 = vunpack.c.h.b16 %v8542
    %v9218 = vunpack.c.l.b16 %v8543
    %v9219 = vunpack.c.h.b16 %v8543
    %v9220 = vunpack.c.l.b16 %v8544
    %v9221 = vunpack.c.h.b16 %v8544
    %v9222 = vunpack.c.l.b16 %v8545
    %v9223 = vunpack.c.h.b16 %v8545
    %v9224 = vunpack.c.l.b16 %v8546
    %v9225 = vunpack.c.h.b16 %v8546
    %v9226 = vunpack.c.l.b16 %v8547
    %v9227 = vunpack.c.h.b16 %v8547
    %v9228 = vunpack.c.l.b16 %v8548
    %v9229 = vunpack.c.h.b16 %v8548
    %v9230 = vunpack.c.l.b16 %v8549
    %v9231 = vunpack.c.h.b16 %v8549
    %v9232 = vunpack.c.l.b16 %v8550
    %v9233 = vunpack.c.h.b16 %v8550
    %v9234 = vunpack.c.l.b16 %v8551
    %v9235 = vunpack.c.h.b16 %v8551
    %v9236 = vunpack.c.l.b16 %v8552
    %v9237 = vunpack.c.h.b16 %v8552
    %v9238 = vunpack.c.l.b16 %v8553
    %v9239 = vunpack.c.h.b16 %v8553
    %v9240 = vunpack.c.l.b16 %v8554
    %v9241 = vunpack.c.h.b16 %v8554
    %v9242 = vunpack.c.l.b16 %v8555
    %v9243 = vunpack.c.h.b16 %v8555
    %v9244 = vunpack.c.l.b16 %v8556
    %v9245 = vunpack.c.h.b16 %v8556
    %v9246 = vunpack.c.l.b16 %v8557
    %v9247 = vunpack.c.h.b16 %v8557
    %v9248 = vunpack.c.l.b16 %v8558
    %v9249 = vunpack.c.h.b16 %v8558
    %v9250 = vunpack.c.l.b16 %v8559
    %v9251 = vunpack.c.h.b16 %v8559
    %v9252 = vunpack.c.l.b16 %v8560
    %v9253 = vunpack.c.h.b16 %v8560
    %v9254 = vunpack.c.l.b16 %v8561
    %v9255 = vunpack.c.h.b16 %v8561
    %v9256 = vunpack.c.l.b16 %v8562
    %v9257 = vunpack.c.h.b16 %v8562
    %v9258 = vunpack.c.l.b16 %v8563
    %v9259 = vunpack.c.h.b16 %v8563
    %v9260 = vunpack.c.l.b16 %v8564
    %v9261 = vunpack.c.h.b16 %v8564
    %v9262 = vunpack.c.l.b16 %v8565
    %v9263 = vunpack.c.h.b16 %v8565
    %v9264 = vunpack.c.l.b16 %v8566
    %v9265 = vunpack.c.h.b16 %v8566
    %v9266 = vunpack.c.l.b16 %v8567
    %v9267 = vunpack.c.h.b16 %v8567
    %v9268 = vunpack.c.l.b16 %v8568
    %v9269 = vunpack.c.h.b16 %v8568
    %v9270 = vunpack.c.l.b16 %v8569
    %v9271 = vunpack.c.h.b16 %v8569
    %v9272 = vunpack.c.l.b16 %v8570
    %v9273 = vunpack.c.h.b16 %v8570
    %v9274 = vunpack.c.l.b16 %v8571
    %v9275 = vunpack.c.h.b16 %v8571
    %v9276 = vunpack.c.l.b16 %v8572
    %v9277 = vunpack.c.h.b16 %v8572
    %v9278 = vunpack.c.l.b16 %v8573
    %v9279 = vunpack.c.h.b16 %v8573
    %v9280 = vunpack.c.l.b16 %v8574
    %v9281 = vunpack.c.h.b16 %v8574
    %v9282 = vunpack.c.l.b16 %v8575
    %v9283 = vunpack.c.h.b16 %v8575
    %v9284 = vunpack.c.l.b16 %v8576
    %v9285 = vunpack.c.h.b16 %v8576
    %v9286 = vunpack.c.l.b16 %v8577
    %v9287 = vunpack.c.h.b16 %v8577
    %v9288 = vunpack.c.l.b16 %v8578
    %v9289 = vunpack.c.h.b16 %v8578
    %v9290 = vunpack.c.l.b16 %v8579
    %v9291 = vunpack.c.h.b16 %v8579
    %v9292 = vunpack.c.l.b16 %v8580
    %v9293 = vunpack.c.h.b16 %v8580
    %v9294 = vunpack.c.l.b16 %v8581
    %v9295 = vunpack.c.h.b16 %v8581
    %v9296 = vunpack.c.l.b16 %v8582
    %v9297 = vunpack.c.h.b16 %v8582
    %v9298 = vunpack.c.l.b16 %v8583
    %v9299 = vunpack.c.h.b16 %v8583
    %v9300 = vunpack.c.l.b16 %v8584
    %v9301 = vunpack.c.h.b16 %v8584
    %v9302 = vunpack.c.l.b16 %v8585
    %v9303 = vunpack.c.h.b16 %v8585
    %v9304 = vunpack.c.l.b16 %v8586
    %v9305 = vunpack.c.h.b16 %v8586
    %v9306 = vunpack.c.l.b16 %v8587
    %v9307 = vunpack.c.h.b16 %v8587
    %v9308 = vunpack.c.l.b16 %v8588
    %v9309 = vunpack.c.h.b16 %v8588
    %v9310 = vunpack.c.l.b16 %v8589
    %v9311 = vunpack.c.h.b16 %v8589
    %v9312 = vunpack.c.l.b16 %v8590
    %v9313 = vunpack.c.h.b16 %v8590
    %v9314 = vunpack.c.l.b16 %v8591
    %v9315 = vunpack.c.h.b16 %v8591
    %v9316 = vunpack.c.l.b16 %v8592
    %v9317 = vunpack.c.h.b16 %v8592
    %v9318 = vunpack.c.l.b16 %v8593
    %v9319 = vunpack.c.h.b16 %v8593
    %v9320 = vunpack.c.l.b16 %v8594
    %v9321 = vunpack.c.h.b16 %v8594
    %v9322 = vunpack.c.l.b16 %v8595
    %v9323 = vunpack.c.h.b16 %v8595
    %v9324 = vunpack.c.l.b16 %v8596
    %v9325 = vunpack.c.h.b16 %v8596
    %v9326 = vunpack.c.l.b16 %v8597
    %v9327 = vunpack.c.h.b16 %v8597
    %v9328 = vunpack.c.l.b16 %v8598
    %v9329 = vunpack.c.h.b16 %v8598
    %v9330 = vunpack.c.l.b16 %v8599
    %v9331 = vunpack.c.h.b16 %v8599
    %v9332 = vunpack.c.l.b16 %v8600
    %v9333 = vunpack.c.h.b16 %v8600
    %v9334 = vunpack.c.l.b16 %v8601
    %v9335 = vunpack.c.h.b16 %v8601
    %v9336 = vunpack.c.l.b16 %v8602
    %v9337 = vunpack.c.h.b16 %v8602
    %v9338 = vunpack.c.l.b16 %v8603
    %v9339 = vunpack.c.h.b16 %v8603
    %v9340 = vunpack.c.l.b16 %v8604
    %v9341 = vunpack.c.h.b16 %v8604
    %v9342 = vunpack.c.l.b16 %v8605
    %v9343 = vunpack.c.h.b16 %v8605
    %v9344 = vunpack.c.l.b16 %v8606
    %v9345 = vunpack.c.h.b16 %v8606
    %v9346 = vunpack.c.l.b16 %v8607
    %v9347 = vunpack.c.h.b16 %v8607
    %v9348 = vunpack.c.l.b16 %v8608
    %v9349 = vunpack.c.h.b16 %v8608
    %v9350 = vunpack.c.l.b16 %v8609
    %v9351 = vunpack.c.h.b16 %v8609
    %v9352 = vunpack.c.l.b16 %v8610
    %v9353 = vunpack.c.h.b16 %v8610
    %v9354 = vunpack.c.l.b16 %v8611
    %v9355 = vunpack.c.h.b16 %v8611
    %v9356 = vunpack.c.l.b16 %v8612
    %v9357 = vunpack.c.h.b16 %v8612
    %v9358 = vunpack.c.l.b16 %v8613
    %v9359 = vunpack.c.h.b16 %v8613
    %v9360 = vunpack.c.l.b16 %v8614
    %v9361 = vunpack.c.h.b16 %v8614
    %v9362 = vunpack.c.l.b16 %v8615
    %v9363 = vunpack.c.h.b16 %v8615
    %v9364 = vunpack.c.l.b16 %v8616
    %v9365 = vunpack.c.h.b16 %v8616
    %v9366 = vunpack.c.l.b16 %v8617
    %v9367 = vunpack.c.h.b16 %v8617
    %v9368 = vunpack.c.l.b16 %v8618
    %v9369 = vunpack.c.h.b16 %v8618
    %v9370 = vunpack.c.l.b16 %v8619
    %v9371 = vunpack.c.h.b16 %v8619
    %v9372 = vunpack.c.l.b16 %v8620
    %v9373 = vunpack.c.h.b16 %v8620
    %v9374 = vunpack.c.l.b16 %v8621
    %v9375 = vunpack.c.h.b16 %v8621
    %v9376 = vunpack.c.l.b16 %v8622
    %v9377 = vunpack.c.h.b16 %v8622
    %v9378 = vunpack.c.l.b16 %v8623
    %v9379 = vunpack.c.h.b16 %v8623
    %v9380 = vunpack.c.l.b16 %v8624
    %v9381 = vunpack.c.h.b16 %v8624
    %v9382 = vunpack.c.l.b16 %v8625
    %v9383 = vunpack.c.h.b16 %v8625
    %v9384 = vunpack.c.l.b16 %v8626
    %v9385 = vunpack.c.h.b16 %v8626
    %v9386 = vunpack.c.l.b16 %v8627
    %v9387 = vunpack.c.h.b16 %v8627
    %v9388 = vunpack.c.l.b16 %v8628
    %v9389 = vunpack.c.h.b16 %v8628
    %v9390 = vunpack.c.l.b16 %v8629
    %v9391 = vunpack.c.h.b16 %v8629
    %v9392 = vunpack.c.l.b16 %v8630
    %v9393 = vunpack.c.h.b16 %v8630
    %v9394 = vunpack.c.l.b16 %v8631
    %v9395 = vunpack.c.h.b16 %v8631
    %v9396 = vunpack.c.l.b16 %v8632
    %v9397 = vunpack.c.h.b16 %v8632
    %v9398 = vunpack.c.l.b16 %v8633
    %v9399 = vunpack.c.h.b16 %v8633
    %v9400 = vunpack.c.l.b16 %v8634
    %v9401 = vunpack.c.h.b16 %v8634
    %v9402 = vunpack.c.l.b16 %v8635
    %v9403 = vunpack.c.h.b16 %v8635
    %v9404 = vunpack.c.l.b16 %v8636
    %v9405 = vunpack.c.h.b16 %v8636
    %v9406 = vunpack.c.l.b16 %v8637
    %v9407 = vunpack.c.h.b16 %v8637
    %v9408 = vunpack.c.l.b16 %v8638
    %v9409 = vunpack.c.h.b16 %v8638
    %v9410 = vunpack.c.l.b16 %v8639
    %v9411 = vunpack.c.h.b16 %v8639
    %v9412 = vunpack.c.l.b16 %v8640
    %v9413 = vunpack.c.h.b16 %v8640
    %v9414 = vunpack.c.l.b16 %v8641
    %v9415 = vunpack.c.h.b16 %v8641
    %v9416 = vunpack.c.l.b16 %v8642
    %v9417 = vunpack.c.h.b16 %v8642
    %v9418 = vunpack.c.l.b16 %v8643
    %v9419 = vunpack.c.h.b16 %v8643
    %v9420 = vunpack.c.l.b16 %v8644
    %v9421 = vunpack.c.h.b16 %v8644
    %v9422 = vunpack.c.l.b16 %v8645
    %v9423 = vunpack.c.h.b16 %v8645
    %v9424 = vunpack.c.l.b16 %v8646
    %v9425 = vunpack.c.h.b16 %v8646
    %v9426 = vunpack.c.l.b16 %v8647
    %v9427 = vunpack.c.h.b16 %v8647
    %v9428 = vunpack.c.l.b16 %v8648
    %v9429 = vunpack.c.h.b16 %v8648
    %v9430 = vunpack.c.l.b16 %v8649
    %v9431 = vunpack.c.h.b16 %v8649
    %v9432 = vunpack.c.l.b16 %v8650
    %v9433 = vunpack.c.h.b16 %v8650
    %v9434 = vunpack.c.l.b16 %v8651
    %v9435 = vunpack.c.h.b16 %v8651
    %v9436 = vunpack.c.l.b16 %v8652
    %v9437 = vunpack.c.h.b16 %v8652
    %v9438 = vunpack.c.l.b16 %v8653
    %v9439 = vunpack.c.h.b16 %v8653
    %v9440 = vunpack.c.l.b16 %v8654
    %v9441 = vunpack.c.h.b16 %v8654
    %v9442 = vunpack.c.l.b16 %v8655
    %v9443 = vunpack.c.h.b16 %v8655
    %v9444 = vunpack.c.l.b16 %v8656
    %v9445 = vunpack.c.h.b16 %v8656
    %v9446 = vunpack.c.l.b16 %v8657
    %v9447 = vunpack.c.h.b16 %v8657
    %v9448 = vpack.c.b16 %v8940, %v8936
    %v9449 = vpack.c.b16 %v8941, %v8937
    %v9450 = vpack.c.b16 %v8942, %v8938
    %v9451 = vpack.c.b16 %v8943, %v8939
    %v9452 = vpack.c.b16 %v8948, %v8944
    %v9453 = vpack.c.b16 %v8949, %v8945
    %v9454 = vpack.c.b16 %v8950, %v8946
    %v9455 = vpack.c.b16 %v8951, %v8947
    %v9456 = vpack.c.b16 %v8956, %v8952
    %v9457 = vpack.c.b16 %v8957, %v8953
    %v9458 = vpack.c.b16 %v8958, %v8954
    %v9459 = vpack.c.b16 %v8959, %v8955
    %v9460 = vpack.c.b16 %v8964, %v8960
    %v9461 = vpack.c.b16 %v8965, %v8961
    %v9462 = vpack.c.b16 %v8966, %v8962
    %v9463 = vpack.c.b16 %v8967, %v8963
    %v9464 = vpack.c.b16 %v8972, %v8968
    %v9465 = vpack.c.b16 %v8973, %v8969
    %v9466 = vpack.c.b16 %v8974, %v8970
    %v9467 = vpack.c.b16 %v8975, %v8971
    %v9468 = vpack.c.b16 %v8980, %v8976
    %v9469 = vpack.c.b16 %v8981, %v8977
    %v9470 = vpack.c.b16 %v8982, %v8978
    %v9471 = vpack.c.b16 %v8983, %v8979
    %v9472 = vpack.c.b16 %v8988, %v8984
    %v9473 = vpack.c.b16 %v8989, %v8985
    %v9474 = vpack.c.b16 %v8990, %v8986
    %v9475 = vpack.c.b16 %v8991, %v8987
    %v9476 = vpack.c.b16 %v8996, %v8992
    %v9477 = vpack.c.b16 %v8997, %v8993
    %v9478 = vpack.c.b16 %v8998, %v8994
    %v9479 = vpack.c.b16 %v8999, %v8995
    %v9480 = vpack.c.b16 %v9004, %v9000
    %v9481 = vpack.c.b16 %v9005, %v9001
    %v9482 = vpack.c.b16 %v9006, %v9002
    %v9483 = vpack.c.b16 %v9007, %v9003
    %v9484 = vpack.c.b16 %v9012, %v9008
    %v9485 = vpack.c.b16 %v9013, %v9009
    %v9486 = vpack.c.b16 %v9014, %v9010
    %v9487 = vpack.c.b16 %v9015, %v9011
    %v9488 = vpack.c.b16 %v9020, %v9016
    %v9489 = vpack.c.b16 %v9021, %v9017
    %v9490 = vpack.c.b16 %v9022, %v9018
    %v9491 = vpack.c.b16 %v9023, %v9019
    %v9492 = vpack.c.b16 %v9028, %v9024
    %v9493 = vpack.c.b16 %v9029, %v9025
    %v9494 = vpack.c.b16 %v9030, %v9026
    %v9495 = vpack.c.b16 %v9031, %v9027
    %v9496 = vpack.c.b16 %v9036, %v9032
    %v9497 = vpack.c.b16 %v9037, %v9033
    %v9498 = vpack.c.b16 %v9038, %v9034
    %v9499 = vpack.c.b16 %v9039, %v9035
    %v9500 = vpack.c.b16 %v9044, %v9040
    %v9501 = vpack.c.b16 %v9045, %v9041
    %v9502 = vpack.c.b16 %v9046, %v9042
    %v9503 = vpack.c.b16 %v9047, %v9043
    %v9504 = vpack.c.b16 %v9052, %v9048
    %v9505 = vpack.c.b16 %v9053, %v9049
    %v9506 = vpack.c.b16 %v9054, %v9050
    %v9507 = vpack.c.b16 %v9055, %v9051
    %v9508 = vpack.c.b16 %v9060, %v9056
    %v9509 = vpack.c.b16 %v9061, %v9057
    %v9510 = vpack.c.b16 %v9062, %v9058
    %v9511 = vpack.c.b16 %v9063, %v9059
    %v9512 = vpack.c.b16 %v9068, %v9064
    %v9513 = vpack.c.b16 %v9069, %v9065
    %v9514 = vpack.c.b16 %v9070, %v9066
    %v9515 = vpack.c.b16 %v9071, %v9067
    %v9516 = vpack.c.b16 %v9076, %v9072
    %v9517 = vpack.c.b16 %v9077, %v9073
    %v9518 = vpack.c.b16 %v9078, %v9074
    %v9519 = vpack.c.b16 %v9079, %v9075
    %v9520 = vpack.c.b16 %v9084, %v9080
    %v9521 = vpack.c.b16 %v9085, %v9081
    %v9522 = vpack.c.b16 %v9086, %v9082
    %v9523 = vpack.c.b16 %v9087, %v9083
    %v9524 = vpack.c.b16 %v9092, %v9088
    %v9525 = vpack.c.b16 %v9093, %v9089
    %v9526 = vpack.c.b16 %v9094, %v9090
    %v9527 = vpack.c.b16 %v9095, %v9091
    %v9528 = vpack.c.b16 %v9100, %v9096
    %v9529 = vpack.c.b16 %v9101, %v9097
    %v9530 = vpack.c.b16 %v9102, %v9098
    %v9531 = vpack.c.b16 %v9103, %v9099
    %v9532 = vpack.c.b16 %v9108, %v9104
    %v9533 = vpack.c.b16 %v9109, %v9105
    %v9534 = vpack.c.b16 %v9110, %v9106
    %v9535 = vpack.c.b16 %v9111, %v9107
    %v9536 = vpack.c.b16 %v9116, %v9112
    %v9537 = vpack.c.b16 %v9117, %v9113
    %v9538 = vpack.c.b16 %v9118, %v9114
    %v9539 = vpack.c.b16 %v9119, %v9115
    %v9540 = vpack.c.b16 %v9124, %v9120
    %v9541 = vpack.c.b16 %v9125, %v9121
    %v9542 = vpack.c.b16 %v9126, %v9122
    %v9543 = vpack.c.b16 %v9127, %v9123
    %v9544 = vpack.c.b16 %v9132, %v9128
    %v9545 = vpack.c.b16 %v9133, %v9129
    %v9546 = vpack.c.b16 %v9134, %v9130
    %v9547 = vpack.c.b16 %v9135, %v9131
    %v9548 = vpack.c.b16 %v9140, %v9136
    %v9549 = vpack.c.b16 %v9141, %v9137
    %v9550 = vpack.c.b16 %v9142, %v9138
    %v9551 = vpack.c.b16 %v9143, %v9139
    %v9552 = vpack.c.b16 %v9148, %v9144
    %v9553 = vpack.c.b16 %v9149, %v9145
    %v9554 = vpack.c.b16 %v9150, %v9146
    %v9555 = vpack.c.b16 %v9151, %v9147
    %v9556 = vpack.c.b16 %v9156, %v9152
    %v9557 = vpack.c.b16 %v9157, %v9153
    %v9558 = vpack.c.b16 %v9158, %v9154
    %v9559 = vpack.c.b16 %v9159, %v9155
    %v9560 = vpack.c.b16 %v9164, %v9160
    %v9561 = vpack.c.b16 %v9165, %v9161
    %v9562 = vpack.c.b16 %v9166, %v9162
    %v9563 = vpack.c.b16 %v9167, %v9163
    %v9564 = vpack.c.b16 %v9172, %v9168
    %v9565 = vpack.c.b16 %v9173, %v9169
    %v9566 = vpack.c.b16 %v9174, %v9170
    %v9567 = vpack.c.b16 %v9175, %v9171
    %v9568 = vpack.c.b16 %v9180, %v9176
    %v9569 = vpack.c.b16 %v9181, %v9177
    %v9570 = vpack.c.b16 %v9182, %v9178
    %v9571 = vpack.c.b16 %v9183, %v9179
    %v9572 = vpack.c.b16 %v9188, %v9184
    %v9573 = vpack.c.b16 %v9189, %v9185
    %v9574 = vpack.c.b16 %v9190, %v9186
    %v9575 = vpack.c.b16 %v9191, %v9187
    %v9576 = vpack.c.b16 %v9196, %v9192
    %v9577 = vpack.c.b16 %v9197, %v9193
    %v9578 = vpack.c.b16 %v9198, %v9194
    %v9579 = vpack.c.b16 %v9199, %v9195
    %v9580 = vpack.c.b16 %v9204, %v9200
    %v9581 = vpack.c.b16 %v9205, %v9201
    %v9582 = vpack.c.b16 %v9206, %v9202
    %v9583 = vpack.c.b16 %v9207, %v9203
    %v9584 = vpack.c.b16 %v9212, %v9208
    %v9585 = vpack.c.b16 %v9213, %v9209
    %v9586 = vpack.c.b16 %v9214, %v9210
    %v9587 = vpack.c.b16 %v9215, %v9211
    %v9588 = vpack.c.b16 %v9220, %v9216
    %v9589 = vpack.c.b16 %v9221, %v9217
    %v9590 = vpack.c.b16 %v9222, %v9218
    %v9591 = vpack.c.b16 %v9223, %v9219
    %v9592 = vpack.c.b16 %v9228, %v9224
    %v9593 = vpack.c.b16 %v9229, %v9225
    %v9594 = vpack.c.b16 %v9230, %v9226
    %v9595 = vpack.c.b16 %v9231, %v9227
    %v9596 = vpack.c.b16 %v9236, %v9232
    %v9597 = vpack.c.b16 %v9237, %v9233
    %v9598 = vpack.c.b16 %v9238, %v9234
    %v9599 = vpack.c.b16 %v9239, %v9235
    %v9600 = vpack.c.b16 %v9244, %v9240
    %v9601 = vpack.c.b16 %v9245, %v9241
    %v9602 = vpack.c.b16 %v9246, %v9242
    %v9603 = vpack.c.b16 %v9247, %v9243
    %v9604 = vpack.c.b16 %v9252, %v9248
    %v9605 = vpack.c.b16 %v9253, %v9249
    %v9606 = vpack.c.b16 %v9254, %v9250
    %v9607 = vpack.c.b16 %v9255, %v9251
    %v9608 = vpack.c.b16 %v9260, %v9256
    %v9609 = vpack.c.b16 %v9261, %v9257
    %v9610 = vpack.c.b16 %v9262, %v9258
    %v9611 = vpack.c.b16 %v9263, %v9259
    %v9612 = vpack.c.b16 %v9268, %v9264
    %v9613 = vpack.c.b16 %v9269, %v9265
    %v9614 = vpack.c.b16 %v9270, %v9266
    %v9615 = vpack.c.b16 %v9271, %v9267
    %v9616 = vpack.c.b16 %v9276, %v9272
    %v9617 = vpack.c.b16 %v9277, %v9273
    %v9618 = vpack.c.b16 %v9278, %v9274
    %v9619 = vpack.c.b16 %v9279, %v9275
    %v9620 = vpack.c.b16 %v9284, %v9280
    %v9621 = vpack.c.b16 %v9285, %v9281
    %v9622 = vpack.c.b16 %v9286, %v9282
    %v9623 = vpack.c.b16 %v9287, %v9283
    %v9624 = vpack.c.b16 %v9292, %v9288
    %v9625 = vpack.c.b16 %v9293, %v9289
    %v9626 = vpack.c.b16 %v9294, %v9290
    %v9627 = vpack.c.b16 %v9295, %v9291
    %v9628 = vpack.c.b16 %v9300, %v9296
    %v9629 = vpack.c.b16 %v9301, %v9297
    %v9630 = vpack.c.b16 %v9302, %v9298
    %v9631 = vpack.c.b16 %v9303, %v9299
    %v9632 = vpack.c.b16 %v9308, %v9304
    %v9633 = vpack.c.b16 %v9309, %v9305
    %v9634 = vpack.c.b16 %v9310, %v9306
    %v9635 = vpack.c.b16 %v9311, %v9307
    %v9636 = vpack.c.b16 %v9316, %v9312
    %v9637 = vpack.c.b16 %v9317, %v9313
    %v9638 = vpack.c.b16 %v9318, %v9314
    %v9639 = vpack.c.b16 %v9319, %v9315
    %v9640 = vpack.c.b16 %v9324, %v9320
    %v9641 = vpack.c.b16 %v9325, %v9321
    %v9642 = vpack.c.b16 %v9326, %v9322
    %v9643 = vpack.c.b16 %v9327, %v9323
    %v9644 = vpack.c.b16 %v9332, %v9328
    %v9645 = vpack.c.b16 %v9333, %v9329
    %v9646 = vpack.c.b16 %v9334, %v9330
    %v9647 = vpack.c.b16 %v9335, %v9331
    %v9648 = vpack.c.b16 %v9340, %v9336
    %v9649 = vpack.c.b16 %v9341, %v9337
    %v9650 = vpack.c.b16 %v9342, %v9338
    %v9651 = vpack.c.b16 %v9343, %v9339
    %v9652 = vpack.c.b16 %v9348, %v9344
    %v9653 = vpack.c.b16 %v9349, %v9345
    %v9654 = vpack.c.b16 %v9350, %v9346
    %v9655 = vpack.c.b16 %v9351, %v9347
    %v9656 = vpack.c.b16 %v9356, %v9352
    %v9657 = vpack.c.b16 %v9357, %v9353
    %v9658 = vpack.c.b16 %v9358, %v9354
    %v9659 = vpack.c.b16 %v9359, %v9355
    %v9660 = vpack.c.b16 %v9364, %v9360
    %v9661 = vpack.c.b16 %v9365, %v9361
    %v9662 = vpack.c.b16 %v9366, %v9362
    %v9663 = vpack.c.b16 %v9367, %v9363
    %v9664 = vpack.c.b16 %v9372, %v9368
    %v9665 = vpack.c.b16 %v9373, %v9369
    %v9666 = vpack.c.b16 %v9374, %v9370
    %v9667 = vpack.c.b16 %v9375, %v9371
    %v9668 = vpack.c.b16 %v9380, %v9376
    %v9669 = vpack.c.b16 %v9381, %v9377
    %v9670 = vpack.c.b16 %v9382, %v9378
    %v9671 = vpack.c.b16 %v9383, %v9379
    %v9672 = vpack.c.b16 %v9388, %v9384
    %v9673 = vpack.c.b16 %v9389, %v9385
    %v9674 = vpack.c.b16 %v9390, %v9386
    %v9675 = vpack.c.b16 %v9391, %v9387
    %v9676 = vpack.c.b16 %v9396, %v9392
    %v9677 = vpack.c.b16 %v9397, %v9393
    %v9678 = vpack.c.b16 %v9398, %v9394
    %v9679 = vpack.c.b16 %v9399, %v9395
    %v9680 = vpack.c.b16 %v9404, %v9400
    %v9681 = vpack.c.b16 %v9405, %v9401
    %v9682 = vpack.c.b16 %v9406, %v9402
    %v9683 = vpack.c.b16 %v9407, %v9403
    %v9684 = vpack.c.b16 %v9412, %v9408
    %v9685 = vpack.c.b16 %v9413, %v9409
    %v9686 = vpack.c.b16 %v9414, %v9410
    %v9687 = vpack.c.b16 %v9415, %v9411
    %v9688 = vpack.c.b16 %v9420, %v9416
    %v9689 = vpack.c.b16 %v9421, %v9417
    %v9690 = vpack.c.b16 %v9422, %v9418
    %v9691 = vpack.c.b16 %v9423, %v9419
    %v9692 = vpack.c.b16 %v9428, %v9424
    %v9693 = vpack.c.b16 %v9429, %v9425
    %v9694 = vpack.c.b16 %v9430, %v9426
    %v9695 = vpack.c.b16 %v9431, %v9427
    %v9696 = vpack.c.b16 %v9436, %v9432
    %v9697 = vpack.c.b16 %v9437, %v9433
    %v9698 = vpack.c.b16 %v9438, %v9434
    %v9699 = vpack.c.b16 %v9439, %v9435
    %v9700 = vpack.c.b16 %v9444, %v9440
    %v9701 = vpack.c.b16 %v9445, %v9441
    %v9702 = vpack.c.b16 %v9446, %v9442
    %v9703 = vpack.c.b16 %v9447, %v9443
    %9960 = vmatprep.subr.bf16.mxu0 %v9477
    %9961 = vmatpush1.bf16.msra.mxu0 %v9476
    %9962 = vmatprep.subr.bf16.mxu0 %v9473
    %9963 = vmatpush1.bf16.msra.mxu0 %v9472
    %9964 = vmatprep.subr.bf16.mxu0 %v9469
    %9965 = vmatpush1.bf16.msra.mxu0 %v9468
    %9966 = vmatprep.subr.bf16.mxu0 %v9465
    %9967 = vmatpush1.bf16.msra.mxu0 %v9464
    %9968 = vmatprep.subr.bf16.mxu0 %v9461
    %9969 = vmatpush1.bf16.msra.mxu0 %v9460
    %9970 = vmatprep.subr.bf16.mxu0 %v9457
    %9971 = vmatpush1.bf16.msra.mxu0 %v9456
    %9972 = vmatprep.subr.bf16.mxu0 %v9453
    %9973 = vmatpush1.bf16.msra.mxu0 %v9452
    %9974 = vmatprep.subr.bf16.mxu0 %v9449
    %9975 = vmatpush1.bf16.msra.mxu0 %v9448
    %9976 = vmatprep.subr.bf16.mxu0 %v9509
    %9977 = vmatpush2.bf16.msra.mxu0 %v9508
    %9978 = vmatprep.subr.bf16.mxu0 %v9505
    %9979 = vmatpush2.bf16.msra.mxu0 %v9504
    %9980 = vmatprep.subr.bf16.mxu0 %v9501
    %9981 = vmatpush2.bf16.msra.mxu0 %v9500
    %9982 = vmatprep.subr.bf16.mxu0 %v9497
    %9983 = vmatpush2.bf16.msra.mxu0 %v9496
    %9984 = vmatprep.subr.bf16.mxu0 %v9493
    %9985 = vmatpush2.bf16.msra.mxu0 %v9492
    %9986 = vmatprep.subr.bf16.mxu0 %v9489
    %9987 = vmatpush2.bf16.msra.mxu0 %v9488
    %9988 = vmatprep.subr.bf16.mxu0 %v9485
    %9989 = vmatpush2.bf16.msra.mxu0 %v9484
    %9990 = vmatprep.subr.bf16.mxu0 %v9481
    %9991 = vmatpush2.bf16.msra.mxu0 %v9480
    %9992 = vmatprep.mubr.bf16.mxu0 %v8395
    %9993 = vmatmul.mubr.bf16.gmra.mxu0 %v8394
    %v9994 = vpop.f32.mrf.mxu0
    %v9995 = vadd.f32 %v8663, %v9994
    %v9996 = vpop.f32.mrf.mxu0
    %v9997 = vadd.f32 %v8667, %v9996
    %v9998 = vpop.f32.mrf.mxu0
    %v9999 = vpop.f32.mrf.mxu0
    %10000 = vdwg.mxu0
    %10001 = vmatprep.subr.bf16.mxu0 %v9541
    %10002 = vmatpush1.bf16.msra.mxu0 %v9540
    %10003 = vmatprep.subr.bf16.mxu0 %v9537
    %10004 = vmatpush1.bf16.msra.mxu0 %v9536
    %10005 = vmatprep.subr.bf16.mxu0 %v9533
    %10006 = vmatpush1.bf16.msra.mxu0 %v9532
    %10007 = vmatprep.subr.bf16.mxu0 %v9529
    %10008 = vmatpush1.bf16.msra.mxu0 %v9528
    %10009 = vmatprep.subr.bf16.mxu0 %v9525
    %10010 = vmatpush1.bf16.msra.mxu0 %v9524
    %10011 = vmatprep.subr.bf16.mxu0 %v9521
    %10012 = vmatpush1.bf16.msra.mxu0 %v9520
    %10013 = vmatprep.subr.bf16.mxu0 %v9517
    %10014 = vmatpush1.bf16.msra.mxu0 %v9516
    %10015 = vmatprep.subr.bf16.mxu0 %v9513
    %10016 = vmatpush1.bf16.msra.mxu0 %v9512
    %10017 = vmatprep.subr.bf16.mxu0 %v9573
    %10018 = vmatpush2.bf16.msra.mxu0 %v9572
    %10019 = vmatprep.subr.bf16.mxu0 %v9569
    %10020 = vmatpush2.bf16.msra.mxu0 %v9568
    %10021 = vmatprep.subr.bf16.mxu0 %v9565
    %10022 = vmatpush2.bf16.msra.mxu0 %v9564
    %10023 = vmatprep.subr.bf16.mxu0 %v9561
    %10024 = vmatpush2.bf16.msra.mxu0 %v9560
    %10025 = vmatprep.subr.bf16.mxu0 %v9557
    %10026 = vmatpush2.bf16.msra.mxu0 %v9556
    %10027 = vmatprep.subr.bf16.mxu0 %v9553
    %10028 = vmatpush2.bf16.msra.mxu0 %v9552
    %10029 = vmatprep.subr.bf16.mxu0 %v9549
    %10030 = vmatpush2.bf16.msra.mxu0 %v9548
    %10031 = vmatprep.subr.bf16.mxu0 %v9545
    %10032 = vmatpush2.bf16.msra.mxu0 %v9544
    %10033 = vmatprep.mubr.bf16.mxu0 %v8397
    %10034 = vmatmul.mubr.bf16.gmra.mxu0 %v8396
    %v10035 = vpop.f32.mrf.mxu0
    %v10036 = vadd.f32 %v9995, %v10035
    %v10037 = vpop.f32.mrf.mxu0
    %v10038 = vadd.f32 %v9997, %v10037
    %v10039 = vpop.f32.mrf.mxu0
    %v10040 = vpop.f32.mrf.mxu0
    %10041 = vdwg.mxu0
    %10042 = vmatprep.subr.bf16.mxu0 %v9605
    %10043 = vmatpush1.bf16.msra.mxu0 %v9604
    %10044 = vmatprep.subr.bf16.mxu0 %v9601
    %10045 = vmatpush1.bf16.msra.mxu0 %v9600
    %10046 = vmatprep.subr.bf16.mxu0 %v9597
    %10047 = vmatpush1.bf16.msra.mxu0 %v9596
    %10048 = vmatprep.subr.bf16.mxu0 %v9593
    %10049 = vmatpush1.bf16.msra.mxu0 %v9592
    %10050 = vmatprep.subr.bf16.mxu0 %v9589
    %10051 = vmatpush1.bf16.msra.mxu0 %v9588
    %10052 = vmatprep.subr.bf16.mxu0 %v9585
    %10053 = vmatpush1.bf16.msra.mxu0 %v9584
    %10054 = vmatprep.subr.bf16.mxu0 %v9581
    %10055 = vmatpush1.bf16.msra.mxu0 %v9580
    %10056 = vmatprep.subr.bf16.mxu0 %v9577
    %10057 = vmatpush1.bf16.msra.mxu0 %v9576
    %10058 = vmatprep.subr.bf16.mxu0 %v9637
    %10059 = vmatpush2.bf16.msra.mxu0 %v9636
    %10060 = vmatprep.subr.bf16.mxu0 %v9633
    %10061 = vmatpush2.bf16.msra.mxu0 %v9632
    %10062 = vmatprep.subr.bf16.mxu0 %v9629
    %10063 = vmatpush2.bf16.msra.mxu0 %v9628
    %10064 = vmatprep.subr.bf16.mxu0 %v9625
    %10065 = vmatpush2.bf16.msra.mxu0 %v9624
    %10066 = vmatprep.subr.bf16.mxu0 %v9621
    %10067 = vmatpush2.bf16.msra.mxu0 %v9620
    %10068 = vmatprep.subr.bf16.mxu0 %v9617
    %10069 = vmatpush2.bf16.msra.mxu0 %v9616
    %10070 = vmatprep.subr.bf16.mxu0 %v9613
    %10071 = vmatpush2.bf16.msra.mxu0 %v9612
    %10072 = vmatprep.subr.bf16.mxu0 %v9609
    %10073 = vmatpush2.bf16.msra.mxu0 %v9608
    %10074 = vmatprep.mubr.bf16.mxu0 %v8399
    %10075 = vmatmul.mubr.bf16.gmra.mxu0 %v8398
    %v10076 = vpop.f32.mrf.mxu0
    %v10077 = vadd.f32 %v10036, %v10076
    %v10078 = vpop.f32.mrf.mxu0
    %v10079 = vadd.f32 %v10038, %v10078
    %v10080 = vpop.f32.mrf.mxu0
    %v10081 = vpop.f32.mrf.mxu0
    %10082 = vdwg.mxu0
    %10083 = vmatprep.subr.bf16.mxu0 %v9669
    %10084 = vmatpush1.bf16.msra.mxu0 %v9668
    %10085 = vmatprep.subr.bf16.mxu0 %v9665
    %10086 = vmatpush1.bf16.msra.mxu0 %v9664
    %10087 = vmatprep.subr.bf16.mxu0 %v9661
    %10088 = vmatpush1.bf16.msra.mxu0 %v9660
    %10089 = vmatprep.subr.bf16.mxu0 %v9657
    %10090 = vmatpush1.bf16.msra.mxu0 %v9656
    %10091 = vmatprep.subr.bf16.mxu0 %v9653
    %10092 = vmatpush1.bf16.msra.mxu0 %v9652
    %10093 = vmatprep.subr.bf16.mxu0 %v9649
    %10094 = vmatpush1.bf16.msra.mxu0 %v9648
    %10095 = vmatprep.subr.bf16.mxu0 %v9645
    %10096 = vmatpush1.bf16.msra.mxu0 %v9644
    %10097 = vmatprep.subr.bf16.mxu0 %v9641
    %10098 = vmatpush1.bf16.msra.mxu0 %v9640
    %10099 = vmatprep.subr.bf16.mxu0 %v9701
    %10100 = vmatpush2.bf16.msra.mxu0 %v9700
    %10101 = vmatprep.subr.bf16.mxu0 %v9697
    %10102 = vmatpush2.bf16.msra.mxu0 %v9696
    %10103 = vmatprep.subr.bf16.mxu0 %v9693
    %10104 = vmatpush2.bf16.msra.mxu0 %v9692
    %10105 = vmatprep.subr.bf16.mxu0 %v9689
    %10106 = vmatpush2.bf16.msra.mxu0 %v9688
    %10107 = vmatprep.subr.bf16.mxu0 %v9685
    %10108 = vmatpush2.bf16.msra.mxu0 %v9684
    %10109 = vmatprep.subr.bf16.mxu0 %v9681
    %10110 = vmatpush2.bf16.msra.mxu0 %v9680
    %10111 = vmatprep.subr.bf16.mxu0 %v9677
    %10112 = vmatpush2.bf16.msra.mxu0 %v9676
    %10113 = vmatprep.subr.bf16.mxu0 %v9673
    %10114 = vmatpush2.bf16.msra.mxu0 %v9672
    %10115 = vmatprep.mubr.bf16.mxu0 %v8401
    %10116 = vmatmul.mubr.bf16.gmra.mxu0 %v8400
    %v10117 = vpop.f32.mrf.mxu0
    %v10118 = vadd.f32 %v10077, %v10117
    %v10119 = vpop.f32.mrf.mxu0
    %v10120 = vadd.f32 %v10079, %v10119
    %v10121 = vpop.f32.mrf.mxu0
    %v10122 = vpop.f32.mrf.mxu0
    %10123 = vdwg.mxu0
    %10124 = vmatprep.subr.bf16.mxu0 %v9479
    %10125 = vmatpush1.bf16.msra.mxu0 %v9478
    %10126 = vmatprep.subr.bf16.mxu0 %v9475
    %10127 = vmatpush1.bf16.msra.mxu0 %v9474
    %10128 = vmatprep.subr.bf16.mxu0 %v9471
    %10129 = vmatpush1.bf16.msra.mxu0 %v9470
    %10130 = vmatprep.subr.bf16.mxu0 %v9467
    %10131 = vmatpush1.bf16.msra.mxu0 %v9466
    %10132 = vmatprep.subr.bf16.mxu0 %v9463
    %10133 = vmatpush1.bf16.msra.mxu0 %v9462
    %10134 = vmatprep.subr.bf16.mxu0 %v9459
    %10135 = vmatpush1.bf16.msra.mxu0 %v9458
    %10136 = vmatprep.subr.bf16.mxu0 %v9455
    %10137 = vmatpush1.bf16.msra.mxu0 %v9454
    %10138 = vmatprep.subr.bf16.mxu0 %v9451
    %10139 = vmatpush1.bf16.msra.mxu0 %v9450
    %10140 = vmatprep.subr.bf16.mxu0 %v9511
    %10141 = vmatpush2.bf16.msra.mxu0 %v9510
    %10142 = vmatprep.subr.bf16.mxu0 %v9507
    %10143 = vmatpush2.bf16.msra.mxu0 %v9506
    %10144 = vmatprep.subr.bf16.mxu0 %v9503
    %10145 = vmatpush2.bf16.msra.mxu0 %v9502
    %10146 = vmatprep.subr.bf16.mxu0 %v9499
    %10147 = vmatpush2.bf16.msra.mxu0 %v9498
    %10148 = vmatprep.subr.bf16.mxu0 %v9495
    %10149 = vmatpush2.bf16.msra.mxu0 %v9494
    %10150 = vmatprep.subr.bf16.mxu0 %v9491
    %10151 = vmatpush2.bf16.msra.mxu0 %v9490
    %10152 = vmatprep.subr.bf16.mxu0 %v9487
    %10153 = vmatpush2.bf16.msra.mxu0 %v9486
    %10154 = vmatprep.subr.bf16.mxu0 %v9483
    %10155 = vmatpush2.bf16.msra.mxu0 %v9482
    %10156 = vmatprep.mubr.bf16.mxu0 %v8395
    %10157 = vmatmul.mubr.bf16.gmra.mxu0 %v8394
    %v10158 = vpop.f32.mrf.mxu0
    %v10159 = vadd.f32 %v8671, %v10158
    %v10160 = vpop.f32.mrf.mxu0
    %v10161 = vadd.f32 %v8675, %v10160
    %v10162 = vpop.f32.mrf.mxu0
    %v10163 = vpop.f32.mrf.mxu0
    %10164 = vdwg.mxu0
    %10165 = vmatprep.subr.bf16.mxu0 %v9543
    %10166 = vmatpush1.bf16.msra.mxu0 %v9542
    %10167 = vmatprep.subr.bf16.mxu0 %v9539
    %10168 = vmatpush1.bf16.msra.mxu0 %v9538
    %10169 = vmatprep.subr.bf16.mxu0 %v9535
    %10170 = vmatpush1.bf16.msra.mxu0 %v9534
    %10171 = vmatprep.subr.bf16.mxu0 %v9531
    %10172 = vmatpush1.bf16.msra.mxu0 %v9530
    %10173 = vmatprep.subr.bf16.mxu0 %v9527
    %10174 = vmatpush1.bf16.msra.mxu0 %v9526
    %10175 = vmatprep.subr.bf16.mxu0 %v9523
    %10176 = vmatpush1.bf16.msra.mxu0 %v9522
    %10177 = vmatprep.subr.bf16.mxu0 %v9519
    %10178 = vmatpush1.bf16.msra.mxu0 %v9518
    %10179 = vmatprep.subr.bf16.mxu0 %v9515
    %10180 = vmatpush1.bf16.msra.mxu0 %v9514
    %10181 = vmatprep.subr.bf16.mxu0 %v9575
    %10182 = vmatpush2.bf16.msra.mxu0 %v9574
    %10183 = vmatprep.subr.bf16.mxu0 %v9571
    %10184 = vmatpush2.bf16.msra.mxu0 %v9570
    %10185 = vmatprep.subr.bf16.mxu0 %v9567
    %10186 = vmatpush2.bf16.msra.mxu0 %v9566
    %10187 = vmatprep.subr.bf16.mxu0 %v9563
    %10188 = vmatpush2.bf16.msra.mxu0 %v9562
    %10189 = vmatprep.subr.bf16.mxu0 %v9559
    %10190 = vmatpush2.bf16.msra.mxu0 %v9558
    %10191 = vmatprep.subr.bf16.mxu0 %v9555
    %10192 = vmatpush2.bf16.msra.mxu0 %v9554
    %10193 = vmatprep.subr.bf16.mxu0 %v9551
    %10194 = vmatpush2.bf16.msra.mxu0 %v9550
    %10195 = vmatprep.subr.bf16.mxu0 %v9547
    %10196 = vmatpush2.bf16.msra.mxu0 %v9546
    %10197 = vmatprep.mubr.bf16.mxu0 %v8397
    %10198 = vmatmul.mubr.bf16.gmra.mxu0 %v8396
    %v10199 = vpop.f32.mrf.mxu0
    %v10200 = vadd.f32 %v10159, %v10199
    %v10201 = vpop.f32.mrf.mxu0
    %v10202 = vadd.f32 %v10161, %v10201
    %v10203 = vpop.f32.mrf.mxu0
    %v10204 = vpop.f32.mrf.mxu0
    %10205 = vdwg.mxu0
    %10206 = vmatprep.subr.bf16.mxu0 %v9607
    %10207 = vmatpush1.bf16.msra.mxu0 %v9606
    %10208 = vmatprep.subr.bf16.mxu0 %v9603
    %10209 = vmatpush1.bf16.msra.mxu0 %v9602
    %10210 = vmatprep.subr.bf16.mxu0 %v9599
    %10211 = vmatpush1.bf16.msra.mxu0 %v9598
    %10212 = vmatprep.subr.bf16.mxu0 %v9595
    %10213 = vmatpush1.bf16.msra.mxu0 %v9594
    %10214 = vmatprep.subr.bf16.mxu0 %v9591
    %10215 = vmatpush1.bf16.msra.mxu0 %v9590
    %10216 = vmatprep.subr.bf16.mxu0 %v9587
    %10217 = vmatpush1.bf16.msra.mxu0 %v9586
    %10218 = vmatprep.subr.bf16.mxu0 %v9583
    %10219 = vmatpush1.bf16.msra.mxu0 %v9582
    %10220 = vmatprep.subr.bf16.mxu0 %v9579
    %10221 = vmatpush1.bf16.msra.mxu0 %v9578
    %10222 = vmatprep.subr.bf16.mxu0 %v9639
    %10223 = vmatpush2.bf16.msra.mxu0 %v9638
    %10224 = vmatprep.subr.bf16.mxu0 %v9635
    %10225 = vmatpush2.bf16.msra.mxu0 %v9634
    %10226 = vmatprep.subr.bf16.mxu0 %v9631
    %10227 = vmatpush2.bf16.msra.mxu0 %v9630
    %10228 = vmatprep.subr.bf16.mxu0 %v9627
    %10229 = vmatpush2.bf16.msra.mxu0 %v9626
    %10230 = vmatprep.subr.bf16.mxu0 %v9623
    %10231 = vmatpush2.bf16.msra.mxu0 %v9622
    %10232 = vmatprep.subr.bf16.mxu0 %v9619
    %10233 = vmatpush2.bf16.msra.mxu0 %v9618
    %10234 = vmatprep.subr.bf16.mxu0 %v9615
    %10235 = vmatpush2.bf16.msra.mxu0 %v9614
    %10236 = vmatprep.subr.bf16.mxu0 %v9611
    %10237 = vmatpush2.bf16.msra.mxu0 %v9610
    %10238 = vmatprep.mubr.bf16.mxu0 %v8399
    %10239 = vmatmul.mubr.bf16.gmra.mxu0 %v8398
    %v10240 = vpop.f32.mrf.mxu0
    %v10241 = vadd.f32 %v10200, %v10240
    %v10242 = vpop.f32.mrf.mxu0
    %v10243 = vadd.f32 %v10202, %v10242
    %v10244 = vpop.f32.mrf.mxu0
    %v10245 = vpop.f32.mrf.mxu0
    %10246 = vdwg.mxu0
    %10247 = vmatprep.subr.bf16.mxu0 %v9671
    %10248 = vmatpush1.bf16.msra.mxu0 %v9670
    %10249 = vmatprep.subr.bf16.mxu0 %v9667
    %10250 = vmatpush1.bf16.msra.mxu0 %v9666
    %10251 = vmatprep.subr.bf16.mxu0 %v9663
    %10252 = vmatpush1.bf16.msra.mxu0 %v9662
    %10253 = vmatprep.subr.bf16.mxu0 %v9659
    %10254 = vmatpush1.bf16.msra.mxu0 %v9658
    %10255 = vmatprep.subr.bf16.mxu0 %v9655
    %10256 = vmatpush1.bf16.msra.mxu0 %v9654
    %10257 = vmatprep.subr.bf16.mxu0 %v9651
    %10258 = vmatpush1.bf16.msra.mxu0 %v9650
    %10259 = vmatprep.subr.bf16.mxu0 %v9647
    %10260 = vmatpush1.bf16.msra.mxu0 %v9646
    %10261 = vmatprep.subr.bf16.mxu0 %v9643
    %10262 = vmatpush1.bf16.msra.mxu0 %v9642
    %10263 = vmatprep.subr.bf16.mxu0 %v9703
    %10264 = vmatpush2.bf16.msra.mxu0 %v9702
    %10265 = vmatprep.subr.bf16.mxu0 %v9699
    %10266 = vmatpush2.bf16.msra.mxu0 %v9698
    %10267 = vmatprep.subr.bf16.mxu0 %v9695
    %10268 = vmatpush2.bf16.msra.mxu0 %v9694
    %10269 = vmatprep.subr.bf16.mxu0 %v9691
    %10270 = vmatpush2.bf16.msra.mxu0 %v9690
    %10271 = vmatprep.subr.bf16.mxu0 %v9687
    %10272 = vmatpush2.bf16.msra.mxu0 %v9686
    %10273 = vmatprep.subr.bf16.mxu0 %v9683
    %10274 = vmatpush2.bf16.msra.mxu0 %v9682
    %10275 = vmatprep.subr.bf16.mxu0 %v9679
    %10276 = vmatpush2.bf16.msra.mxu0 %v9678
    %10277 = vmatprep.subr.bf16.mxu0 %v9675
    %10278 = vmatpush2.bf16.msra.mxu0 %v9674
    %10279 = vmatprep.mubr.bf16.mxu0 %v8401
    %10280 = vmatmul.mubr.bf16.gmra.mxu0 %v8400
    %v10281 = vpop.f32.mrf.mxu0
    %v10282 = vadd.f32 %v10241, %v10281
    %v10283 = vpop.f32.mrf.mxu0
    %v10284 = vadd.f32 %v10243, %v10283
    %v10285 = vpop.f32.mrf.mxu0
    %v10286 = vpop.f32.mrf.mxu0
    %10287 = vdwg.mxu0
    %vm10288 = vcmp.ge.f32.partialorder %v10118, 0.0
    %vm10289 = vcmp.ge.f32.partialorder %v10120, 0.0
    %vm10290 = vcmp.ge.f32.partialorder %v10282, 0.0
    %vm10291 = vcmp.ge.f32.partialorder %v10284, 0.0
    %v10292 = vmul.f32 %v10118, 0.2
    %v10293 = vmul.f32 %v10120, 0.2
    %v10294 = vmul.f32 %v10282, 0.2
    %v10295 = vmul.f32 %v10284, 0.2
    %v10296 = vsel %vm10288, %v10118, %v10292
    %v10297 = vsel %vm10289, %v10120, %v10293
    %v10298 = vsel %vm10290, %v10282, %v10294
    %v10299 = vsel %vm10291, %v10284, %v10295
    %v10300 = vadd.f32 %v10296, %v157
    %v10301 = vadd.f32 %v10297, %v159
    %v10302 = vadd.f32 %v10298, %v198
    %v10303 = vadd.f32 %v10299, %v200
    %v10304 = vpack.c.bf16 %v10300, %v10300
    %v10305 = vpack.c.bf16 %v10301, %v10301
    %v10306 = vpack.c.bf16 %v10302, %v10302
    %v10307 = vpack.c.bf16 %v10303, %v10303
    %v10308 = vld [vmem:[%s9] sm:$0xff]
    %v10309 = vld [vmem:[%s9 + $0x8] sm:$0xff]
    %v10310 = vld [vmem:[%s9 + $0x10] sm:$0xff]
    %v10311 = vld [vmem:[%s9 + $0x18] sm:$0xff]
    %v10312 = vld [vmem:[%s9 + $0x20] sm:$0xff]
    %v10313 = vld [vmem:[%s9 + $0x28] sm:$0xff]
    %v10314 = vld [vmem:[%s9 + $0x30] sm:$0xff]
    %v10315 = vld [vmem:[%s9 + $0x38] sm:$0xff]
    %v10316 = vld [vmem:[%s9 + $0x40] sm:$0xff]
    %v10317 = vld [vmem:[%s9 + $0x48] sm:$0xff]
    %v10318 = vld [vmem:[%s9 + $0x50] sm:$0xff]
    %v10319 = vld [vmem:[%s9 + $0x58] sm:$0xff]
    %v10320 = vld [vmem:[%s9 + $0x60] sm:$0xff]
    %v10321 = vld [vmem:[%s9 + $0x68] sm:$0xff]
    %v10322 = vld [vmem:[%s9 + $0x70] sm:$0xff]
    %v10323 = vld [vmem:[%s9 + $0x78] sm:$0xff]
    %v10324 = vld [vmem:[%s9 + $0x80] sm:$0xff]
    %v10325 = vld [vmem:[%s9 + $0x88] sm:$0xff]
    %v10326 = vld [vmem:[%s9 + $0x90] sm:$0xff]
    %v10327 = vld [vmem:[%s9 + $0x98] sm:$0xff]
    %v10328 = vld [vmem:[%s9 + $0xa0] sm:$0xff]
    %v10329 = vld [vmem:[%s9 + $0xa8] sm:$0xff]
    %v10330 = vld [vmem:[%s9 + $0xb0] sm:$0xff]
    %v10331 = vld [vmem:[%s9 + $0xb8] sm:$0xff]
    %v10332 = vld [vmem:[%s9 + $0xc0] sm:$0xff]
    %v10333 = vld [vmem:[%s9 + $0xc8] sm:$0xff]
    %v10334 = vld [vmem:[%s9 + $0xd0] sm:$0xff]
    %v10335 = vld [vmem:[%s9 + $0xd8] sm:$0xff]
    %v10336 = vld [vmem:[%s9 + $0xe0] sm:$0xff]
    %v10337 = vld [vmem:[%s9 + $0xe8] sm:$0xff]
    %v10338 = vld [vmem:[%s9 + $0xf0] sm:$0xff]
    %v10339 = vld [vmem:[%s9 + $0xf8] sm:$0xff]
    %v10340 = vld [vmem:[%s9 + $0x100] sm:$0xff]
    %v10341 = vld [vmem:[%s9 + $0x108] sm:$0xff]
    %v10342 = vld [vmem:[%s9 + $0x110] sm:$0xff]
    %v10343 = vld [vmem:[%s9 + $0x118] sm:$0xff]
    %v10344 = vld [vmem:[%s9 + $0x120] sm:$0xff]
    %v10345 = vld [vmem:[%s9 + $0x128] sm:$0xff]
    %v10346 = vld [vmem:[%s9 + $0x130] sm:$0xff]
    %v10347 = vld [vmem:[%s9 + $0x138] sm:$0xff]
    %v10348 = vld [vmem:[%s9 + $0x140] sm:$0xff]
    %v10349 = vld [vmem:[%s9 + $0x148] sm:$0xff]
    %v10350 = vld [vmem:[%s9 + $0x150] sm:$0xff]
    %v10351 = vld [vmem:[%s9 + $0x158] sm:$0xff]
    %v10352 = vld [vmem:[%s9 + $0x160] sm:$0xff]
    %v10353 = vld [vmem:[%s9 + $0x168] sm:$0xff]
    %v10354 = vld [vmem:[%s9 + $0x170] sm:$0xff]
    %v10355 = vld [vmem:[%s9 + $0x178] sm:$0xff]
    %v10356 = vld [vmem:[%s9 + $0x180] sm:$0xff]
    %v10357 = vld [vmem:[%s9 + $0x188] sm:$0xff]
    %v10358 = vld [vmem:[%s9 + $0x190] sm:$0xff]
    %v10359 = vld [vmem:[%s9 + $0x198] sm:$0xff]
    %v10360 = vld [vmem:[%s9 + $0x1a0] sm:$0xff]
    %v10361 = vld [vmem:[%s9 + $0x1a8] sm:$0xff]
    %v10362 = vld [vmem:[%s9 + $0x1b0] sm:$0xff]
    %v10363 = vld [vmem:[%s9 + $0x1b8] sm:$0xff]
    %v10364 = vld [vmem:[%s9 + $0x1c0] sm:$0xff]
    %v10365 = vld [vmem:[%s9 + $0x1c8] sm:$0xff]
    %v10366 = vld [vmem:[%s9 + $0x1d0] sm:$0xff]
    %v10367 = vld [vmem:[%s9 + $0x1d8] sm:$0xff]
    %v10368 = vld [vmem:[%s9 + $0x1e0] sm:$0xff]
    %v10369 = vld [vmem:[%s9 + $0x1e8] sm:$0xff]
    %v10370 = vld [vmem:[%s9 + $0x1f0] sm:$0xff]
    %v10371 = vld [vmem:[%s9 + $0x1f8] sm:$0xff]
    %v10372 = vld [vmem:[%s9 + $0x200] sm:$0xff]
    %v10373 = vld [vmem:[%s9 + $0x208] sm:$0xff]
    %v10374 = vld [vmem:[%s9 + $0x210] sm:$0xff]
    %v10375 = vld [vmem:[%s9 + $0x218] sm:$0xff]
    %v10376 = vld [vmem:[%s9 + $0x220] sm:$0xff]
    %v10377 = vld [vmem:[%s9 + $0x228] sm:$0xff]
    %v10378 = vld [vmem:[%s9 + $0x230] sm:$0xff]
    %v10379 = vld [vmem:[%s9 + $0x238] sm:$0xff]
    %v10380 = vld [vmem:[%s9 + $0x240] sm:$0xff]
    %v10381 = vld [vmem:[%s9 + $0x248] sm:$0xff]
    %v10382 = vld [vmem:[%s9 + $0x250] sm:$0xff]
    %v10383 = vld [vmem:[%s9 + $0x258] sm:$0xff]
    %v10384 = vld [vmem:[%s9 + $0x260] sm:$0xff]
    %v10385 = vld [vmem:[%s9 + $0x268] sm:$0xff]
    %v10386 = vld [vmem:[%s9 + $0x270] sm:$0xff]
    %v10387 = vld [vmem:[%s9 + $0x278] sm:$0xff]
    %v10388 = vld [vmem:[%s9 + $0x280] sm:$0xff]
    %v10389 = vld [vmem:[%s9 + $0x288] sm:$0xff]
    %v10390 = vld [vmem:[%s9 + $0x290] sm:$0xff]
    %v10391 = vld [vmem:[%s9 + $0x298] sm:$0xff]
    %v10392 = vld [vmem:[%s9 + $0x2a0] sm:$0xff]
    %v10393 = vld [vmem:[%s9 + $0x2a8] sm:$0xff]
    %v10394 = vld [vmem:[%s9 + $0x2b0] sm:$0xff]
    %v10395 = vld [vmem:[%s9 + $0x2b8] sm:$0xff]
    %v10396 = vld [vmem:[%s9 + $0x2c0] sm:$0xff]
    %v10397 = vld [vmem:[%s9 + $0x2c8] sm:$0xff]
    %v10398 = vld [vmem:[%s9 + $0x2d0] sm:$0xff]
    %v10399 = vld [vmem:[%s9 + $0x2d8] sm:$0xff]
    %v10400 = vld [vmem:[%s9 + $0x2e0] sm:$0xff]
    %v10401 = vld [vmem:[%s9 + $0x2e8] sm:$0xff]
    %v10402 = vld [vmem:[%s9 + $0x2f0] sm:$0xff]
    %v10403 = vld [vmem:[%s9 + $0x2f8] sm:$0xff]
    %v10404 = vld [vmem:[%s9 + $0x300] sm:$0xff]
    %v10405 = vld [vmem:[%s9 + $0x308] sm:$0xff]
    %v10406 = vld [vmem:[%s9 + $0x310] sm:$0xff]
    %v10407 = vld [vmem:[%s9 + $0x318] sm:$0xff]
    %v10408 = vld [vmem:[%s9 + $0x320] sm:$0xff]
    %v10409 = vld [vmem:[%s9 + $0x328] sm:$0xff]
    %v10410 = vld [vmem:[%s9 + $0x330] sm:$0xff]
    %v10411 = vld [vmem:[%s9 + $0x338] sm:$0xff]
    %v10412 = vld [vmem:[%s9 + $0x340] sm:$0xff]
    %v10413 = vld [vmem:[%s9 + $0x348] sm:$0xff]
    %v10414 = vld [vmem:[%s9 + $0x350] sm:$0xff]
    %v10415 = vld [vmem:[%s9 + $0x358] sm:$0xff]
    %v10416 = vld [vmem:[%s9 + $0x360] sm:$0xff]
    %v10417 = vld [vmem:[%s9 + $0x368] sm:$0xff]
    %v10418 = vld [vmem:[%s9 + $0x370] sm:$0xff]
    %v10419 = vld [vmem:[%s9 + $0x378] sm:$0xff]
    %v10420 = vld [vmem:[%s9 + $0x380] sm:$0xff]
    %v10421 = vld [vmem:[%s9 + $0x388] sm:$0xff]
    %v10422 = vld [vmem:[%s9 + $0x390] sm:$0xff]
    %v10423 = vld [vmem:[%s9 + $0x398] sm:$0xff]
    %v10424 = vld [vmem:[%s9 + $0x3a0] sm:$0xff]
    %v10425 = vld [vmem:[%s9 + $0x3a8] sm:$0xff]
    %v10426 = vld [vmem:[%s9 + $0x3b0] sm:$0xff]
    %v10427 = vld [vmem:[%s9 + $0x3b8] sm:$0xff]
    %v10428 = vld [vmem:[%s9 + $0x3c0] sm:$0xff]
    %v10429 = vld [vmem:[%s9 + $0x3c8] sm:$0xff]
    %v10430 = vld [vmem:[%s9 + $0x3d0] sm:$0xff]
    %v10431 = vld [vmem:[%s9 + $0x3d8] sm:$0xff]
    %v10432 = vld [vmem:[%s9 + $0x3e0] sm:$0xff]
    %v10433 = vld [vmem:[%s9 + $0x3e8] sm:$0xff]
    %v10434 = vld [vmem:[%s9 + $0x3f0] sm:$0xff]
    %v10435 = vld [vmem:[%s9 + $0x3f8] sm:$0xff]
    %v10436 = vld [vmem:[%s10] sm:$0xf]
    %v10438 = vlaneseq
    %v10439 = vshrl.u32 %v10438, 7
    %v10440 = vsub.s32 0, %v10439
    %v10441 = vrot.slane %v10436, %v10440
    %v10442 = vlaneseq
    %v10443 = vshrl.u32 %v10442, 7
    %v10444 = vsub.s32 1, %v10443
    %v10445 = vrot.slane %v10436, %v10444
    %v10446 = vlaneseq
    %v10447 = vshrl.u32 %v10446, 7
    %v10448 = vsub.s32 2, %v10447
    %v10449 = vrot.slane %v10436, %v10448
    %v10450 = vlaneseq
    %v10451 = vshrl.u32 %v10450, 7
    %v10452 = vsub.s32 3, %v10451
    %v10453 = vrot.slane %v10436, %v10452
    %v10586 = vunpack.c.l.b16 %v10308
    %v10587 = vunpack.c.h.b16 %v10308
    %v10588 = vunpack.c.l.b16 %v10309
    %v10589 = vunpack.c.h.b16 %v10309
    %v10590 = vunpack.c.l.b16 %v10310
    %v10591 = vunpack.c.h.b16 %v10310
    %v10592 = vunpack.c.l.b16 %v10311
    %v10593 = vunpack.c.h.b16 %v10311
    %v10594 = vunpack.c.l.b16 %v10312
    %v10595 = vunpack.c.h.b16 %v10312
    %v10596 = vunpack.c.l.b16 %v10313
    %v10597 = vunpack.c.h.b16 %v10313
    %v10598 = vunpack.c.l.b16 %v10314
    %v10599 = vunpack.c.h.b16 %v10314
    %v10600 = vunpack.c.l.b16 %v10315
    %v10601 = vunpack.c.h.b16 %v10315
    %v10602 = vunpack.c.l.b16 %v10316
    %v10603 = vunpack.c.h.b16 %v10316
    %v10604 = vunpack.c.l.b16 %v10317
    %v10605 = vunpack.c.h.b16 %v10317
    %v10606 = vunpack.c.l.b16 %v10318
    %v10607 = vunpack.c.h.b16 %v10318
    %v10608 = vunpack.c.l.b16 %v10319
    %v10609 = vunpack.c.h.b16 %v10319
    %v10610 = vunpack.c.l.b16 %v10320
    %v10611 = vunpack.c.h.b16 %v10320
    %v10612 = vunpack.c.l.b16 %v10321
    %v10613 = vunpack.c.h.b16 %v10321
    %v10614 = vunpack.c.l.b16 %v10322
    %v10615 = vunpack.c.h.b16 %v10322
    %v10616 = vunpack.c.l.b16 %v10323
    %v10617 = vunpack.c.h.b16 %v10323
    %v10618 = vunpack.c.l.b16 %v10324
    %v10619 = vunpack.c.h.b16 %v10324
    %v10620 = vunpack.c.l.b16 %v10325
    %v10621 = vunpack.c.h.b16 %v10325
    %v10622 = vunpack.c.l.b16 %v10326
    %v10623 = vunpack.c.h.b16 %v10326
    %v10624 = vunpack.c.l.b16 %v10327
    %v10625 = vunpack.c.h.b16 %v10327
    %v10626 = vunpack.c.l.b16 %v10328
    %v10627 = vunpack.c.h.b16 %v10328
    %v10628 = vunpack.c.l.b16 %v10329
    %v10629 = vunpack.c.h.b16 %v10329
    %v10630 = vunpack.c.l.b16 %v10330
    %v10631 = vunpack.c.h.b16 %v10330
    %v10632 = vunpack.c.l.b16 %v10331
    %v10633 = vunpack.c.h.b16 %v10331
    %v10634 = vunpack.c.l.b16 %v10332
    %v10635 = vunpack.c.h.b16 %v10332
    %v10636 = vunpack.c.l.b16 %v10333
    %v10637 = vunpack.c.h.b16 %v10333
    %v10638 = vunpack.c.l.b16 %v10334
    %v10639 = vunpack.c.h.b16 %v10334
    %v10640 = vunpack.c.l.b16 %v10335
    %v10641 = vunpack.c.h.b16 %v10335
    %v10642 = vunpack.c.l.b16 %v10336
    %v10643 = vunpack.c.h.b16 %v10336
    %v10644 = vunpack.c.l.b16 %v10337
    %v10645 = vunpack.c.h.b16 %v10337
    %v10646 = vunpack.c.l.b16 %v10338
    %v10647 = vunpack.c.h.b16 %v10338
    %v10648 = vunpack.c.l.b16 %v10339
    %v10649 = vunpack.c.h.b16 %v10339
    %v10650 = vunpack.c.l.b16 %v10340
    %v10651 = vunpack.c.h.b16 %v10340
    %v10652 = vunpack.c.l.b16 %v10341
    %v10653 = vunpack.c.h.b16 %v10341
    %v10654 = vunpack.c.l.b16 %v10342
    %v10655 = vunpack.c.h.b16 %v10342
    %v10656 = vunpack.c.l.b16 %v10343
    %v10657 = vunpack.c.h.b16 %v10343
    %v10658 = vunpack.c.l.b16 %v10344
    %v10659 = vunpack.c.h.b16 %v10344
    %v10660 = vunpack.c.l.b16 %v10345
    %v10661 = vunpack.c.h.b16 %v10345
    %v10662 = vunpack.c.l.b16 %v10346
    %v10663 = vunpack.c.h.b16 %v10346
    %v10664 = vunpack.c.l.b16 %v10347
    %v10665 = vunpack.c.h.b16 %v10347
    %v10666 = vunpack.c.l.b16 %v10348
    %v10667 = vunpack.c.h.b16 %v10348
    %v10668 = vunpack.c.l.b16 %v10349
    %v10669 = vunpack.c.h.b16 %v10349
    %v10670 = vunpack.c.l.b16 %v10350
    %v10671 = vunpack.c.h.b16 %v10350
    %v10672 = vunpack.c.l.b16 %v10351
    %v10673 = vunpack.c.h.b16 %v10351
    %v10674 = vunpack.c.l.b16 %v10352
    %v10675 = vunpack.c.h.b16 %v10352
    %v10676 = vunpack.c.l.b16 %v10353
    %v10677 = vunpack.c.h.b16 %v10353
    %v10678 = vunpack.c.l.b16 %v10354
    %v10679 = vunpack.c.h.b16 %v10354
    %v10680 = vunpack.c.l.b16 %v10355
    %v10681 = vunpack.c.h.b16 %v10355
    %v10682 = vunpack.c.l.b16 %v10356
    %v10683 = vunpack.c.h.b16 %v10356
    %v10684 = vunpack.c.l.b16 %v10357
    %v10685 = vunpack.c.h.b16 %v10357
    %v10686 = vunpack.c.l.b16 %v10358
    %v10687 = vunpack.c.h.b16 %v10358
    %v10688 = vunpack.c.l.b16 %v10359
    %v10689 = vunpack.c.h.b16 %v10359
    %v10690 = vunpack.c.l.b16 %v10360
    %v10691 = vunpack.c.h.b16 %v10360
    %v10692 = vunpack.c.l.b16 %v10361
    %v10693 = vunpack.c.h.b16 %v10361
    %v10694 = vunpack.c.l.b16 %v10362
    %v10695 = vunpack.c.h.b16 %v10362
    %v10696 = vunpack.c.l.b16 %v10363
    %v10697 = vunpack.c.h.b16 %v10363
    %v10698 = vunpack.c.l.b16 %v10364
    %v10699 = vunpack.c.h.b16 %v10364
    %v10700 = vunpack.c.l.b16 %v10365
    %v10701 = vunpack.c.h.b16 %v10365
    %v10702 = vunpack.c.l.b16 %v10366
    %v10703 = vunpack.c.h.b16 %v10366
    %v10704 = vunpack.c.l.b16 %v10367
    %v10705 = vunpack.c.h.b16 %v10367
    %v10706 = vunpack.c.l.b16 %v10368
    %v10707 = vunpack.c.h.b16 %v10368
    %v10708 = vunpack.c.l.b16 %v10369
    %v10709 = vunpack.c.h.b16 %v10369
    %v10710 = vunpack.c.l.b16 %v10370
    %v10711 = vunpack.c.h.b16 %v10370
    %v10712 = vunpack.c.l.b16 %v10371
    %v10713 = vunpack.c.h.b16 %v10371
    %v10714 = vunpack.c.l.b16 %v10372
    %v10715 = vunpack.c.h.b16 %v10372
    %v10716 = vunpack.c.l.b16 %v10373
    %v10717 = vunpack.c.h.b16 %v10373
    %v10718 = vunpack.c.l.b16 %v10374
    %v10719 = vunpack.c.h.b16 %v10374
    %v10720 = vunpack.c.l.b16 %v10375
    %v10721 = vunpack.c.h.b16 %v10375
    %v10722 = vunpack.c.l.b16 %v10376
    %v10723 = vunpack.c.h.b16 %v10376
    %v10724 = vunpack.c.l.b16 %v10377
    %v10725 = vunpack.c.h.b16 %v10377
    %v10726 = vunpack.c.l.b16 %v10378
    %v10727 = vunpack.c.h.b16 %v10378
    %v10728 = vunpack.c.l.b16 %v10379
    %v10729 = vunpack.c.h.b16 %v10379
    %v10730 = vunpack.c.l.b16 %v10380
    %v10731 = vunpack.c.h.b16 %v10380
    %v10732 = vunpack.c.l.b16 %v10381
    %v10733 = vunpack.c.h.b16 %v10381
    %v10734 = vunpack.c.l.b16 %v10382
    %v10735 = vunpack.c.h.b16 %v10382
    %v10736 = vunpack.c.l.b16 %v10383
    %v10737 = vunpack.c.h.b16 %v10383
    %v10738 = vunpack.c.l.b16 %v10384
    %v10739 = vunpack.c.h.b16 %v10384
    %v10740 = vunpack.c.l.b16 %v10385
    %v10741 = vunpack.c.h.b16 %v10385
    %v10742 = vunpack.c.l.b16 %v10386
    %v10743 = vunpack.c.h.b16 %v10386
    %v10744 = vunpack.c.l.b16 %v10387
    %v10745 = vunpack.c.h.b16 %v10387
    %v10746 = vunpack.c.l.b16 %v10388
    %v10747 = vunpack.c.h.b16 %v10388
    %v10748 = vunpack.c.l.b16 %v10389
    %v10749 = vunpack.c.h.b16 %v10389
    %v10750 = vunpack.c.l.b16 %v10390
    %v10751 = vunpack.c.h.b16 %v10390
    %v10752 = vunpack.c.l.b16 %v10391
    %v10753 = vunpack.c.h.b16 %v10391
    %v10754 = vunpack.c.l.b16 %v10392
    %v10755 = vunpack.c.h.b16 %v10392
    %v10756 = vunpack.c.l.b16 %v10393
    %v10757 = vunpack.c.h.b16 %v10393
    %v10758 = vunpack.c.l.b16 %v10394
    %v10759 = vunpack.c.h.b16 %v10394
    %v10760 = vunpack.c.l.b16 %v10395
    %v10761 = vunpack.c.h.b16 %v10395
    %v10762 = vunpack.c.l.b16 %v10396
    %v10763 = vunpack.c.h.b16 %v10396
    %v10764 = vunpack.c.l.b16 %v10397
    %v10765 = vunpack.c.h.b16 %v10397
    %v10766 = vunpack.c.l.b16 %v10398
    %v10767 = vunpack.c.h.b16 %v10398
    %v10768 = vunpack.c.l.b16 %v10399
    %v10769 = vunpack.c.h.b16 %v10399
    %v10770 = vunpack.c.l.b16 %v10400
    %v10771 = vunpack.c.h.b16 %v10400
    %v10772 = vunpack.c.l.b16 %v10401
    %v10773 = vunpack.c.h.b16 %v10401
    %v10774 = vunpack.c.l.b16 %v10402
    %v10775 = vunpack.c.h.b16 %v10402
    %v10776 = vunpack.c.l.b16 %v10403
    %v10777 = vunpack.c.h.b16 %v10403
    %v10778 = vunpack.c.l.b16 %v10404
    %v10779 = vunpack.c.h.b16 %v10404
    %v10780 = vunpack.c.l.b16 %v10405
    %v10781 = vunpack.c.h.b16 %v10405
    %v10782 = vunpack.c.l.b16 %v10406
    %v10783 = vunpack.c.h.b16 %v10406
    %v10784 = vunpack.c.l.b16 %v10407
    %v10785 = vunpack.c.h.b16 %v10407
    %v10786 = vunpack.c.l.b16 %v10408
    %v10787 = vunpack.c.h.b16 %v10408
    %v10788 = vunpack.c.l.b16 %v10409
    %v10789 = vunpack.c.h.b16 %v10409
    %v10790 = vunpack.c.l.b16 %v10410
    %v10791 = vunpack.c.h.b16 %v10410
    %v10792 = vunpack.c.l.b16 %v10411
    %v10793 = vunpack.c.h.b16 %v10411
    %v10794 = vunpack.c.l.b16 %v10412
    %v10795 = vunpack.c.h.b16 %v10412
    %v10796 = vunpack.c.l.b16 %v10413
    %v10797 = vunpack.c.h.b16 %v10413
    %v10798 = vunpack.c.l.b16 %v10414
    %v10799 = vunpack.c.h.b16 %v10414
    %v10800 = vunpack.c.l.b16 %v10415
    %v10801 = vunpack.c.h.b16 %v10415
    %v10802 = vunpack.c.l.b16 %v10416
    %v10803 = vunpack.c.h.b16 %v10416
    %v10804 = vunpack.c.l.b16 %v10417
    %v10805 = vunpack.c.h.b16 %v10417
    %v10806 = vunpack.c.l.b16 %v10418
    %v10807 = vunpack.c.h.b16 %v10418
    %v10808 = vunpack.c.l.b16 %v10419
    %v10809 = vunpack.c.h.b16 %v10419
    %v10810 = vunpack.c.l.b16 %v10420
    %v10811 = vunpack.c.h.b16 %v10420
    %v10812 = vunpack.c.l.b16 %v10421
    %v10813 = vunpack.c.h.b16 %v10421
    %v10814 = vunpack.c.l.b16 %v10422
    %v10815 = vunpack.c.h.b16 %v10422
    %v10816 = vunpack.c.l.b16 %v10423
    %v10817 = vunpack.c.h.b16 %v10423
    %v10818 = vunpack.c.l.b16 %v10424
    %v10819 = vunpack.c.h.b16 %v10424
    %v10820 = vunpack.c.l.b16 %v10425
    %v10821 = vunpack.c.h.b16 %v10425
    %v10822 = vunpack.c.l.b16 %v10426
    %v10823 = vunpack.c.h.b16 %v10426
    %v10824 = vunpack.c.l.b16 %v10427
    %v10825 = vunpack.c.h.b16 %v10427
    %v10826 = vunpack.c.l.b16 %v10428
    %v10827 = vunpack.c.h.b16 %v10428
    %v10828 = vunpack.c.l.b16 %v10429
    %v10829 = vunpack.c.h.b16 %v10429
    %v10830 = vunpack.c.l.b16 %v10430
    %v10831 = vunpack.c.h.b16 %v10430
    %v10832 = vunpack.c.l.b16 %v10431
    %v10833 = vunpack.c.h.b16 %v10431
    %v10834 = vunpack.c.l.b16 %v10432
    %v10835 = vunpack.c.h.b16 %v10432
    %v10836 = vunpack.c.l.b16 %v10433
    %v10837 = vunpack.c.h.b16 %v10433
    %v10838 = vunpack.c.l.b16 %v10434
    %v10839 = vunpack.c.h.b16 %v10434
    %v10840 = vunpack.c.l.b16 %v10435
    %v10841 = vunpack.c.h.b16 %v10435
    %v10842 = vpack.c.b16 %v10590, %v10586
    %v10843 = vpack.c.b16 %v10591, %v10587
    %v10844 = vpack.c.b16 %v10592, %v10588
    %v10845 = vpack.c.b16 %v10593, %v10589
    %v10846 = vpack.c.b16 %v10598, %v10594
    %v10847 = vpack.c.b16 %v10599, %v10595
    %v10848 = vpack.c.b16 %v10600, %v10596
    %v10849 = vpack.c.b16 %v10601, %v10597
    %v10850 = vpack.c.b16 %v10606, %v10602
    %v10851 = vpack.c.b16 %v10607, %v10603
    %v10852 = vpack.c.b16 %v10608, %v10604
    %v10853 = vpack.c.b16 %v10609, %v10605
    %v10854 = vpack.c.b16 %v10614, %v10610
    %v10855 = vpack.c.b16 %v10615, %v10611
    %v10856 = vpack.c.b16 %v10616, %v10612
    %v10857 = vpack.c.b16 %v10617, %v10613
    %v10858 = vpack.c.b16 %v10622, %v10618
    %v10859 = vpack.c.b16 %v10623, %v10619
    %v10860 = vpack.c.b16 %v10624, %v10620
    %v10861 = vpack.c.b16 %v10625, %v10621
    %v10862 = vpack.c.b16 %v10630, %v10626
    %v10863 = vpack.c.b16 %v10631, %v10627
    %v10864 = vpack.c.b16 %v10632, %v10628
    %v10865 = vpack.c.b16 %v10633, %v10629
    %v10866 = vpack.c.b16 %v10638, %v10634
    %v10867 = vpack.c.b16 %v10639, %v10635
    %v10868 = vpack.c.b16 %v10640, %v10636
    %v10869 = vpack.c.b16 %v10641, %v10637
    %v10870 = vpack.c.b16 %v10646, %v10642
    %v10871 = vpack.c.b16 %v10647, %v10643
    %v10872 = vpack.c.b16 %v10648, %v10644
    %v10873 = vpack.c.b16 %v10649, %v10645
    %v10874 = vpack.c.b16 %v10654, %v10650
    %v10875 = vpack.c.b16 %v10655, %v10651
    %v10876 = vpack.c.b16 %v10656, %v10652
    %v10877 = vpack.c.b16 %v10657, %v10653
    %v10878 = vpack.c.b16 %v10662, %v10658
    %v10879 = vpack.c.b16 %v10663, %v10659
    %v10880 = vpack.c.b16 %v10664, %v10660
    %v10881 = vpack.c.b16 %v10665, %v10661
    %v10882 = vpack.c.b16 %v10670, %v10666
    %v10883 = vpack.c.b16 %v10671, %v10667
    %v10884 = vpack.c.b16 %v10672, %v10668
    %v10885 = vpack.c.b16 %v10673, %v10669
    %v10886 = vpack.c.b16 %v10678, %v10674
    %v10887 = vpack.c.b16 %v10679, %v10675
    %v10888 = vpack.c.b16 %v10680, %v10676
    %v10889 = vpack.c.b16 %v10681, %v10677
    %v10890 = vpack.c.b16 %v10686, %v10682
    %v10891 = vpack.c.b16 %v10687, %v10683
    %v10892 = vpack.c.b16 %v10688, %v10684
    %v10893 = vpack.c.b16 %v10689, %v10685
    %v10894 = vpack.c.b16 %v10694, %v10690
    %v10895 = vpack.c.b16 %v10695, %v10691
    %v10896 = vpack.c.b16 %v10696, %v10692
    %v10897 = vpack.c.b16 %v10697, %v10693
    %v10898 = vpack.c.b16 %v10702, %v10698
    %v10899 = vpack.c.b16 %v10703, %v10699
    %v10900 = vpack.c.b16 %v10704, %v10700
    %v10901 = vpack.c.b16 %v10705, %v10701
    %v10902 = vpack.c.b16 %v10710, %v10706
    %v10903 = vpack.c.b16 %v10711, %v10707
    %v10904 = vpack.c.b16 %v10712, %v10708
    %v10905 = vpack.c.b16 %v10713, %v10709
    %v10906 = vpack.c.b16 %v10718, %v10714
    %v10907 = vpack.c.b16 %v10719, %v10715
    %v10908 = vpack.c.b16 %v10720, %v10716
    %v10909 = vpack.c.b16 %v10721, %v10717
    %v10910 = vpack.c.b16 %v10726, %v10722
    %v10911 = vpack.c.b16 %v10727, %v10723
    %v10912 = vpack.c.b16 %v10728, %v10724
    %v10913 = vpack.c.b16 %v10729, %v10725
    %v10914 = vpack.c.b16 %v10734, %v10730
    %v10915 = vpack.c.b16 %v10735, %v10731
    %v10916 = vpack.c.b16 %v10736, %v10732
    %v10917 = vpack.c.b16 %v10737, %v10733
    %v10918 = vpack.c.b16 %v10742, %v10738
    %v10919 = vpack.c.b16 %v10743, %v10739
    %v10920 = vpack.c.b16 %v10744, %v10740
    %v10921 = vpack.c.b16 %v10745, %v10741
    %v10922 = vpack.c.b16 %v10750, %v10746
    %v10923 = vpack.c.b16 %v10751, %v10747
    %v10924 = vpack.c.b16 %v10752, %v10748
    %v10925 = vpack.c.b16 %v10753, %v10749
    %v10926 = vpack.c.b16 %v10758, %v10754
    %v10927 = vpack.c.b16 %v10759, %v10755
    %v10928 = vpack.c.b16 %v10760, %v10756
    %v10929 = vpack.c.b16 %v10761, %v10757
    %v10930 = vpack.c.b16 %v10766, %v10762
    %v10931 = vpack.c.b16 %v10767, %v10763
    %v10932 = vpack.c.b16 %v10768, %v10764
    %v10933 = vpack.c.b16 %v10769, %v10765
    %v10934 = vpack.c.b16 %v10774, %v10770
    %v10935 = vpack.c.b16 %v10775, %v10771
    %v10936 = vpack.c.b16 %v10776, %v10772
    %v10937 = vpack.c.b16 %v10777, %v10773
    %v10938 = vpack.c.b16 %v10782, %v10778
    %v10939 = vpack.c.b16 %v10783, %v10779
    %v10940 = vpack.c.b16 %v10784, %v10780
    %v10941 = vpack.c.b16 %v10785, %v10781
    %v10942 = vpack.c.b16 %v10790, %v10786
    %v10943 = vpack.c.b16 %v10791, %v10787
    %v10944 = vpack.c.b16 %v10792, %v10788
    %v10945 = vpack.c.b16 %v10793, %v10789
    %v10946 = vpack.c.b16 %v10798, %v10794
    %v10947 = vpack.c.b16 %v10799, %v10795
    %v10948 = vpack.c.b16 %v10800, %v10796
    %v10949 = vpack.c.b16 %v10801, %v10797
    %v10950 = vpack.c.b16 %v10806, %v10802
    %v10951 = vpack.c.b16 %v10807, %v10803
    %v10952 = vpack.c.b16 %v10808, %v10804
    %v10953 = vpack.c.b16 %v10809, %v10805
    %v10954 = vpack.c.b16 %v10814, %v10810
    %v10955 = vpack.c.b16 %v10815, %v10811
    %v10956 = vpack.c.b16 %v10816, %v10812
    %v10957 = vpack.c.b16 %v10817, %v10813
    %v10958 = vpack.c.b16 %v10822, %v10818
    %v10959 = vpack.c.b16 %v10823, %v10819
    %v10960 = vpack.c.b16 %v10824, %v10820
    %v10961 = vpack.c.b16 %v10825, %v10821
    %v10962 = vpack.c.b16 %v10830, %v10826
    %v10963 = vpack.c.b16 %v10831, %v10827
    %v10964 = vpack.c.b16 %v10832, %v10828
    %v10965 = vpack.c.b16 %v10833, %v10829
    %v10966 = vpack.c.b16 %v10838, %v10834
    %v10967 = vpack.c.b16 %v10839, %v10835
    %v10968 = vpack.c.b16 %v10840, %v10836
    %v10969 = vpack.c.b16 %v10841, %v10837
    %11098 = vmatprep.subr.bf16.mxu0 %v10871
    %11099 = vmatpush1.bf16.msra.mxu0 %v10870
    %11100 = vmatprep.subr.bf16.mxu0 %v10867
    %11101 = vmatpush1.bf16.msra.mxu0 %v10866
    %11102 = vmatprep.subr.bf16.mxu0 %v10863
    %11103 = vmatpush1.bf16.msra.mxu0 %v10862
    %11104 = vmatprep.subr.bf16.mxu0 %v10859
    %11105 = vmatpush1.bf16.msra.mxu0 %v10858
    %11106 = vmatprep.subr.bf16.mxu0 %v10855
    %11107 = vmatpush1.bf16.msra.mxu0 %v10854
    %11108 = vmatprep.subr.bf16.mxu0 %v10851
    %11109 = vmatpush1.bf16.msra.mxu0 %v10850
    %11110 = vmatprep.subr.bf16.mxu0 %v10847
    %11111 = vmatpush1.bf16.msra.mxu0 %v10846
    %11112 = vmatprep.subr.bf16.mxu0 %v10843
    %11113 = vmatpush1.bf16.msra.mxu0 %v10842
    %11114 = vmatprep.subr.bf16.mxu0 %v10903
    %11115 = vmatpush2.bf16.msra.mxu0 %v10902
    %11116 = vmatprep.subr.bf16.mxu0 %v10899
    %11117 = vmatpush2.bf16.msra.mxu0 %v10898
    %11118 = vmatprep.subr.bf16.mxu0 %v10895
    %11119 = vmatpush2.bf16.msra.mxu0 %v10894
    %11120 = vmatprep.subr.bf16.mxu0 %v10891
    %11121 = vmatpush2.bf16.msra.mxu0 %v10890
    %11122 = vmatprep.subr.bf16.mxu0 %v10887
    %11123 = vmatpush2.bf16.msra.mxu0 %v10886
    %11124 = vmatprep.subr.bf16.mxu0 %v10883
    %11125 = vmatpush2.bf16.msra.mxu0 %v10882
    %11126 = vmatprep.subr.bf16.mxu0 %v10879
    %11127 = vmatpush2.bf16.msra.mxu0 %v10878
    %11128 = vmatprep.subr.bf16.mxu0 %v10875
    %11129 = vmatpush2.bf16.msra.mxu0 %v10874
    %11130 = vmatprep.mubr.bf16.mxu0 %v10305
    %11131 = vmatmul.mubr.bf16.gmra.mxu0 %v10304
    %v11132 = vpop.f32.mrf.mxu0
    %v11133 = vadd.f32 %v10441, %v11132
    %v11134 = vpop.f32.mrf.mxu0
    %v11135 = vadd.f32 %v10445, %v11134
    %v11136 = vpop.f32.mrf.mxu0
    %v11137 = vpop.f32.mrf.mxu0
    %11138 = vdwg.mxu0
    %11139 = vmatprep.subr.bf16.mxu0 %v10935
    %11140 = vmatpush1.bf16.msra.mxu0 %v10934
    %11141 = vmatprep.subr.bf16.mxu0 %v10931
    %11142 = vmatpush1.bf16.msra.mxu0 %v10930
    %11143 = vmatprep.subr.bf16.mxu0 %v10927
    %11144 = vmatpush1.bf16.msra.mxu0 %v10926
    %11145 = vmatprep.subr.bf16.mxu0 %v10923
    %11146 = vmatpush1.bf16.msra.mxu0 %v10922
    %11147 = vmatprep.subr.bf16.mxu0 %v10919
    %11148 = vmatpush1.bf16.msra.mxu0 %v10918
    %11149 = vmatprep.subr.bf16.mxu0 %v10915
    %11150 = vmatpush1.bf16.msra.mxu0 %v10914
    %11151 = vmatprep.subr.bf16.mxu0 %v10911
    %11152 = vmatpush1.bf16.msra.mxu0 %v10910
    %11153 = vmatprep.subr.bf16.mxu0 %v10907
    %11154 = vmatpush1.bf16.msra.mxu0 %v10906
    %11155 = vmatprep.subr.bf16.mxu0 %v10967
    %11156 = vmatpush2.bf16.msra.mxu0 %v10966
    %11157 = vmatprep.subr.bf16.mxu0 %v10963
    %11158 = vmatpush2.bf16.msra.mxu0 %v10962
    %11159 = vmatprep.subr.bf16.mxu0 %v10959
    %11160 = vmatpush2.bf16.msra.mxu0 %v10958
    %11161 = vmatprep.subr.bf16.mxu0 %v10955
    %11162 = vmatpush2.bf16.msra.mxu0 %v10954
    %11163 = vmatprep.subr.bf16.mxu0 %v10951
    %11164 = vmatpush2.bf16.msra.mxu0 %v10950
    %11165 = vmatprep.subr.bf16.mxu0 %v10947
    %11166 = vmatpush2.bf16.msra.mxu0 %v10946
    %11167 = vmatprep.subr.bf16.mxu0 %v10943
    %11168 = vmatpush2.bf16.msra.mxu0 %v10942
    %11169 = vmatprep.subr.bf16.mxu0 %v10939
    %11170 = vmatpush2.bf16.msra.mxu0 %v10938
    %11171 = vmatprep.mubr.bf16.mxu0 %v10307
    %11172 = vmatmul.mubr.bf16.gmra.mxu0 %v10306
    %v11173 = vpop.f32.mrf.mxu0
    %v11174 = vadd.f32 %v11133, %v11173
    %v11175 = vpop.f32.mrf.mxu0
    %v11176 = vadd.f32 %v11135, %v11175
    %v11177 = vpop.f32.mrf.mxu0
    %v11178 = vpop.f32.mrf.mxu0
    %11179 = vdwg.mxu0
    %11180 = vmatprep.subr.bf16.mxu0 %v10873
    %11181 = vmatpush1.bf16.msra.mxu0 %v10872
    %11182 = vmatprep.subr.bf16.mxu0 %v10869
    %11183 = vmatpush1.bf16.msra.mxu0 %v10868
    %11184 = vmatprep.subr.bf16.mxu0 %v10865
    %11185 = vmatpush1.bf16.msra.mxu0 %v10864
    %11186 = vmatprep.subr.bf16.mxu0 %v10861
    %11187 = vmatpush1.bf16.msra.mxu0 %v10860
    %11188 = vmatprep.subr.bf16.mxu0 %v10857
    %11189 = vmatpush1.bf16.msra.mxu0 %v10856
    %11190 = vmatprep.subr.bf16.mxu0 %v10853
    %11191 = vmatpush1.bf16.msra.mxu0 %v10852
    %11192 = vmatprep.subr.bf16.mxu0 %v10849
    %11193 = vmatpush1.bf16.msra.mxu0 %v10848
    %11194 = vmatprep.subr.bf16.mxu0 %v10845
    %11195 = vmatpush1.bf16.msra.mxu0 %v10844
    %11196 = vmatprep.subr.bf16.mxu0 %v10905
    %11197 = vmatpush2.bf16.msra.mxu0 %v10904
    %11198 = vmatprep.subr.bf16.mxu0 %v10901
    %11199 = vmatpush2.bf16.msra.mxu0 %v10900
    %11200 = vmatprep.subr.bf16.mxu0 %v10897
    %11201 = vmatpush2.bf16.msra.mxu0 %v10896
    %11202 = vmatprep.subr.bf16.mxu0 %v10893
    %11203 = vmatpush2.bf16.msra.mxu0 %v10892
    %11204 = vmatprep.subr.bf16.mxu0 %v10889
    %11205 = vmatpush2.bf16.msra.mxu0 %v10888
    %11206 = vmatprep.subr.bf16.mxu0 %v10885
    %11207 = vmatpush2.bf16.msra.mxu0 %v10884
    %11208 = vmatprep.subr.bf16.mxu0 %v10881
    %11209 = vmatpush2.bf16.msra.mxu0 %v10880
    %11210 = vmatprep.subr.bf16.mxu0 %v10877
    %11211 = vmatpush2.bf16.msra.mxu0 %v10876
    %11212 = vmatprep.mubr.bf16.mxu0 %v10305
    %11213 = vmatmul.mubr.bf16.gmra.mxu0 %v10304
    %v11214 = vpop.f32.mrf.mxu0
    %v11215 = vadd.f32 %v10449, %v11214
    %v11216 = vpop.f32.mrf.mxu0
    %v11217 = vadd.f32 %v10453, %v11216
    %v11218 = vpop.f32.mrf.mxu0
    %v11219 = vpop.f32.mrf.mxu0
    %11220 = vdwg.mxu0
    %11221 = vmatprep.subr.bf16.mxu0 %v10937
    %11222 = vmatpush1.bf16.msra.mxu0 %v10936
    %11223 = vmatprep.subr.bf16.mxu0 %v10933
    %11224 = vmatpush1.bf16.msra.mxu0 %v10932
    %11225 = vmatprep.subr.bf16.mxu0 %v10929
    %11226 = vmatpush1.bf16.msra.mxu0 %v10928
    %11227 = vmatprep.subr.bf16.mxu0 %v10925
    %11228 = vmatpush1.bf16.msra.mxu0 %v10924
    %11229 = vmatprep.subr.bf16.mxu0 %v10921
    %11230 = vmatpush1.bf16.msra.mxu0 %v10920
    %11231 = vmatprep.subr.bf16.mxu0 %v10917
    %11232 = vmatpush1.bf16.msra.mxu0 %v10916
    %11233 = vmatprep.subr.bf16.mxu0 %v10913
    %11234 = vmatpush1.bf16.msra.mxu0 %v10912
    %11235 = vmatprep.subr.bf16.mxu0 %v10909
    %11236 = vmatpush1.bf16.msra.mxu0 %v10908
    %11237 = vmatprep.subr.bf16.mxu0 %v10969
    %11238 = vmatpush2.bf16.msra.mxu0 %v10968
    %11239 = vmatprep.subr.bf16.mxu0 %v10965
    %11240 = vmatpush2.bf16.msra.mxu0 %v10964
    %11241 = vmatprep.subr.bf16.mxu0 %v10961
    %11242 = vmatpush2.bf16.msra.mxu0 %v10960
    %11243 = vmatprep.subr.bf16.mxu0 %v10957
    %11244 = vmatpush2.bf16.msra.mxu0 %v10956
    %11245 = vmatprep.subr.bf16.mxu0 %v10953
    %11246 = vmatpush2.bf16.msra.mxu0 %v10952
    %11247 = vmatprep.subr.bf16.mxu0 %v10949
    %11248 = vmatpush2.bf16.msra.mxu0 %v10948
    %11249 = vmatprep.subr.bf16.mxu0 %v10945
    %11250 = vmatpush2.bf16.msra.mxu0 %v10944
    %11251 = vmatprep.subr.bf16.mxu0 %v10941
    %11252 = vmatpush2.bf16.msra.mxu0 %v10940
    %11253 = vmatprep.mubr.bf16.mxu0 %v10307
    %11254 = vmatmul.mubr.bf16.gmra.mxu0 %v10306
    %v11255 = vpop.f32.mrf.mxu0
    %v11256 = vadd.f32 %v11215, %v11255
    %v11257 = vpop.f32.mrf.mxu0
    %v11258 = vadd.f32 %v11217, %v11257
    %v11259 = vpop.f32.mrf.mxu0
    %v11260 = vpop.f32.mrf.mxu0
    %11261 = vdwg.mxu0
    %vm11262 = vcmp.ge.f32.partialorder %v11174, 0.0
    %vm11263 = vcmp.ge.f32.partialorder %v11176, 0.0
    %vm11264 = vcmp.ge.f32.partialorder %v11256, 0.0
    %vm11265 = vcmp.ge.f32.partialorder %v11258, 0.0
    %v11266 = vmul.f32 %v11174, 0.2
    %v11267 = vmul.f32 %v11176, 0.2
    %v11268 = vmul.f32 %v11256, 0.2
    %v11269 = vmul.f32 %v11258, 0.2
    %v11270 = vsel %vm11262, %v11174, %v11266
    %v11271 = vsel %vm11263, %v11176, %v11267
    %v11272 = vsel %vm11264, %v11256, %v11268
    %v11273 = vsel %vm11265, %v11258, %v11269
    %v11274 = vpack.c.bf16 %v11270, %v11270
    %v11275 = vpack.c.bf16 %v11271, %v11271
    %v11276 = vpack.c.bf16 %v11272, %v11272
    %v11277 = vpack.c.bf16 %v11273, %v11273
    %v11278 = vld [vmem:[%s11] sm:$0xf]
    %v11279 = vld [vmem:[%s11 + $0x4] sm:$0xf]
    %v11280 = vld [vmem:[%s11 + $0x8] sm:$0xf]
    %v11281 = vld [vmem:[%s11 + $0xc] sm:$0xf]
    %v11282 = vld [vmem:[%s11 + $0x10] sm:$0xf]
    %v11283 = vld [vmem:[%s11 + $0x14] sm:$0xf]
    %v11284 = vld [vmem:[%s11 + $0x18] sm:$0xf]
    %v11285 = vld [vmem:[%s11 + $0x1c] sm:$0xf]
    %v11286 = vld [vmem:[%s11 + $0x20] sm:$0xf]
    %v11287 = vld [vmem:[%s11 + $0x24] sm:$0xf]
    %v11288 = vld [vmem:[%s11 + $0x28] sm:$0xf]
    %v11289 = vld [vmem:[%s11 + $0x2c] sm:$0xf]
    %v11290 = vld [vmem:[%s11 + $0x30] sm:$0xf]
    %v11291 = vld [vmem:[%s11 + $0x34] sm:$0xf]
    %v11292 = vld [vmem:[%s11 + $0x38] sm:$0xf]
    %v11293 = vld [vmem:[%s11 + $0x3c] sm:$0xf]
    %v11294 = vld [vmem:[%s11 + $0x40] sm:$0xf]
    %v11295 = vld [vmem:[%s11 + $0x44] sm:$0xf]
    %v11296 = vld [vmem:[%s11 + $0x48] sm:$0xf]
    %v11297 = vld [vmem:[%s11 + $0x4c] sm:$0xf]
    %v11298 = vld [vmem:[%s11 + $0x50] sm:$0xf]
    %v11299 = vld [vmem:[%s11 + $0x54] sm:$0xf]
    %v11300 = vld [vmem:[%s11 + $0x58] sm:$0xf]
    %v11301 = vld [vmem:[%s11 + $0x5c] sm:$0xf]
    %v11302 = vld [vmem:[%s11 + $0x60] sm:$0xf]
    %v11303 = vld [vmem:[%s11 + $0x64] sm:$0xf]
    %v11304 = vld [vmem:[%s11 + $0x68] sm:$0xf]
    %v11305 = vld [vmem:[%s11 + $0x6c] sm:$0xf]
    %v11306 = vld [vmem:[%s11 + $0x70] sm:$0xf]
    %v11307 = vld [vmem:[%s11 + $0x74] sm:$0xf]
    %v11308 = vld [vmem:[%s11 + $0x78] sm:$0xf]
    %v11309 = vld [vmem:[%s11 + $0x7c] sm:$0xf]
    %v11310 = vld [vmem:[%s11 + $0x80] sm:$0xf]
    %v11311 = vld [vmem:[%s11 + $0x84] sm:$0xf]
    %v11312 = vld [vmem:[%s11 + $0x88] sm:$0xf]
    %v11313 = vld [vmem:[%s11 + $0x8c] sm:$0xf]
    %v11314 = vld [vmem:[%s11 + $0x90] sm:$0xf]
    %v11315 = vld [vmem:[%s11 + $0x94] sm:$0xf]
    %v11316 = vld [vmem:[%s11 + $0x98] sm:$0xf]
    %v11317 = vld [vmem:[%s11 + $0x9c] sm:$0xf]
    %v11318 = vld [vmem:[%s11 + $0xa0] sm:$0xf]
    %v11319 = vld [vmem:[%s11 + $0xa4] sm:$0xf]
    %v11320 = vld [vmem:[%s11 + $0xa8] sm:$0xf]
    %v11321 = vld [vmem:[%s11 + $0xac] sm:$0xf]
    %v11322 = vld [vmem:[%s11 + $0xb0] sm:$0xf]
    %v11323 = vld [vmem:[%s11 + $0xb4] sm:$0xf]
    %v11324 = vld [vmem:[%s11 + $0xb8] sm:$0xf]
    %v11325 = vld [vmem:[%s11 + $0xbc] sm:$0xf]
    %v11326 = vld [vmem:[%s11 + $0xc0] sm:$0xf]
    %v11327 = vld [vmem:[%s11 + $0xc4] sm:$0xf]
    %v11328 = vld [vmem:[%s11 + $0xc8] sm:$0xf]
    %v11329 = vld [vmem:[%s11 + $0xcc] sm:$0xf]
    %v11330 = vld [vmem:[%s11 + $0xd0] sm:$0xf]
    %v11331 = vld [vmem:[%s11 + $0xd4] sm:$0xf]
    %v11332 = vld [vmem:[%s11 + $0xd8] sm:$0xf]
    %v11333 = vld [vmem:[%s11 + $0xdc] sm:$0xf]
    %v11334 = vld [vmem:[%s11 + $0xe0] sm:$0xf]
    %v11335 = vld [vmem:[%s11 + $0xe4] sm:$0xf]
    %v11336 = vld [vmem:[%s11 + $0xe8] sm:$0xf]
    %v11337 = vld [vmem:[%s11 + $0xec] sm:$0xf]
    %v11338 = vld [vmem:[%s11 + $0xf0] sm:$0xf]
    %v11339 = vld [vmem:[%s11 + $0xf4] sm:$0xf]
    %v11340 = vld [vmem:[%s11 + $0xf8] sm:$0xf]
    %v11341 = vld [vmem:[%s11 + $0xfc] sm:$0xf]
    %v11342 = vld [vmem:[%s12] sm:$0x1]
    %v11344 = vlaneseq
    %v11345 = vshrl.u32 %v11344, 7
    %v11346 = vsub.s32 0, %v11345
    %v11347 = vrot.slane %v11342, %v11346
    %v11413 = vunpack.c.l.b16 %v11278
    %v11414 = vunpack.c.l.b16 %v11279
    %v11415 = vunpack.c.l.b16 %v11280
    %v11416 = vunpack.c.l.b16 %v11281
    %v11417 = vunpack.c.l.b16 %v11282
    %v11418 = vunpack.c.l.b16 %v11283
    %v11419 = vunpack.c.l.b16 %v11284
    %v11420 = vunpack.c.l.b16 %v11285
    %v11421 = vunpack.c.l.b16 %v11286
    %v11422 = vunpack.c.l.b16 %v11287
    %v11423 = vunpack.c.l.b16 %v11288
    %v11424 = vunpack.c.l.b16 %v11289
    %v11425 = vunpack.c.l.b16 %v11290
    %v11426 = vunpack.c.l.b16 %v11291
    %v11427 = vunpack.c.l.b16 %v11292
    %v11428 = vunpack.c.l.b16 %v11293
    %v11429 = vunpack.c.l.b16 %v11294
    %v11430 = vunpack.c.l.b16 %v11295
    %v11431 = vunpack.c.l.b16 %v11296
    %v11432 = vunpack.c.l.b16 %v11297
    %v11433 = vunpack.c.l.b16 %v11298
    %v11434 = vunpack.c.l.b16 %v11299
    %v11435 = vunpack.c.l.b16 %v11300
    %v11436 = vunpack.c.l.b16 %v11301
    %v11437 = vunpack.c.l.b16 %v11302
    %v11438 = vunpack.c.l.b16 %v11303
    %v11439 = vunpack.c.l.b16 %v11304
    %v11440 = vunpack.c.l.b16 %v11305
    %v11441 = vunpack.c.l.b16 %v11306
    %v11442 = vunpack.c.l.b16 %v11307
    %v11443 = vunpack.c.l.b16 %v11308
    %v11444 = vunpack.c.l.b16 %v11309
    %v11445 = vunpack.c.l.b16 %v11310
    %v11446 = vunpack.c.l.b16 %v11311
    %v11447 = vunpack.c.l.b16 %v11312
    %v11448 = vunpack.c.l.b16 %v11313
    %v11449 = vunpack.c.l.b16 %v11314
    %v11450 = vunpack.c.l.b16 %v11315
    %v11451 = vunpack.c.l.b16 %v11316
    %v11452 = vunpack.c.l.b16 %v11317
    %v11453 = vunpack.c.l.b16 %v11318
    %v11454 = vunpack.c.l.b16 %v11319
    %v11455 = vunpack.c.l.b16 %v11320
    %v11456 = vunpack.c.l.b16 %v11321
    %v11457 = vunpack.c.l.b16 %v11322
    %v11458 = vunpack.c.l.b16 %v11323
    %v11459 = vunpack.c.l.b16 %v11324
    %v11460 = vunpack.c.l.b16 %v11325
    %v11461 = vunpack.c.l.b16 %v11326
    %v11462 = vunpack.c.l.b16 %v11327
    %v11463 = vunpack.c.l.b16 %v11328
    %v11464 = vunpack.c.l.b16 %v11329
    %v11465 = vunpack.c.l.b16 %v11330
    %v11466 = vunpack.c.l.b16 %v11331
    %v11467 = vunpack.c.l.b16 %v11332
    %v11468 = vunpack.c.l.b16 %v11333
    %v11469 = vunpack.c.l.b16 %v11334
    %v11470 = vunpack.c.l.b16 %v11335
    %v11471 = vunpack.c.l.b16 %v11336
    %v11472 = vunpack.c.l.b16 %v11337
    %v11473 = vunpack.c.l.b16 %v11338
    %v11474 = vunpack.c.l.b16 %v11339
    %v11475 = vunpack.c.l.b16 %v11340
    %v11476 = vunpack.c.l.b16 %v11341
    %v11477 = vpack.c.b16 %v11414, %v11413
    %v11478 = vpack.c.b16 %v11416, %v11415
    %v11479 = vpack.c.b16 %v11418, %v11417
    %v11480 = vpack.c.b16 %v11420, %v11419
    %v11481 = vpack.c.b16 %v11422, %v11421
    %v11482 = vpack.c.b16 %v11424, %v11423
    %v11483 = vpack.c.b16 %v11426, %v11425
    %v11484 = vpack.c.b16 %v11428, %v11427
    %v11485 = vpack.c.b16 %v11430, %v11429
    %v11486 = vpack.c.b16 %v11432, %v11431
    %v11487 = vpack.c.b16 %v11434, %v11433
    %v11488 = vpack.c.b16 %v11436, %v11435
    %v11489 = vpack.c.b16 %v11438, %v11437
    %v11490 = vpack.c.b16 %v11440, %v11439
    %v11491 = vpack.c.b16 %v11442, %v11441
    %v11492 = vpack.c.b16 %v11444, %v11443
    %v11493 = vpack.c.b16 %v11446, %v11445
    %v11494 = vpack.c.b16 %v11448, %v11447
    %v11495 = vpack.c.b16 %v11450, %v11449
    %v11496 = vpack.c.b16 %v11452, %v11451
    %v11497 = vpack.c.b16 %v11454, %v11453
    %v11498 = vpack.c.b16 %v11456, %v11455
    %v11499 = vpack.c.b16 %v11458, %v11457
    %v11500 = vpack.c.b16 %v11460, %v11459
    %v11501 = vpack.c.b16 %v11462, %v11461
    %v11502 = vpack.c.b16 %v11464, %v11463
    %v11503 = vpack.c.b16 %v11466, %v11465
    %v11504 = vpack.c.b16 %v11468, %v11467
    %v11505 = vpack.c.b16 %v11470, %v11469
    %v11506 = vpack.c.b16 %v11472, %v11471
    %v11507 = vpack.c.b16 %v11474, %v11473
    %v11508 = vpack.c.b16 %v11476, %v11475
    %11541 = vmatprep.subr.bf16.mxu0 0
    %11542 = vmatpush1.bf16.msra.mxu0 %v11484
    %11543 = vmatprep.subr.bf16.mxu0 0
    %11544 = vmatpush1.bf16.msra.mxu0 %v11483
    %11545 = vmatprep.subr.bf16.mxu0 0
    %11546 = vmatpush1.bf16.msra.mxu0 %v11482
    %11547 = vmatprep.subr.bf16.mxu0 0
    %11548 = vmatpush1.bf16.msra.mxu0 %v11481
    %11549 = vmatprep.subr.bf16.mxu0 0
    %11550 = vmatpush1.bf16.msra.mxu0 %v11480
    %11551 = vmatprep.subr.bf16.mxu0 0
    %11552 = vmatpush1.bf16.msra.mxu0 %v11479
    %11553 = vmatprep.subr.bf16.mxu0 0
    %11554 = vmatpush1.bf16.msra.mxu0 %v11478
    %11555 = vmatprep.subr.bf16.mxu0 0
    %11556 = vmatpush1.bf16.msra.mxu0 %v11477
    %11557 = vmatprep.subr.bf16.mxu0 0
    %11558 = vmatpush2.bf16.msra.mxu0 %v11492
    %11559 = vmatprep.subr.bf16.mxu0 0
    %11560 = vmatpush2.bf16.msra.mxu0 %v11491
    %11561 = vmatprep.subr.bf16.mxu0 0
    %11562 = vmatpush2.bf16.msra.mxu0 %v11490
    %11563 = vmatprep.subr.bf16.mxu0 0
    %11564 = vmatpush2.bf16.msra.mxu0 %v11489
    %11565 = vmatprep.subr.bf16.mxu0 0
    %11566 = vmatpush2.bf16.msra.mxu0 %v11488
    %11567 = vmatprep.subr.bf16.mxu0 0
    %11568 = vmatpush2.bf16.msra.mxu0 %v11487
    %11569 = vmatprep.subr.bf16.mxu0 0
    %11570 = vmatpush2.bf16.msra.mxu0 %v11486
    %11571 = vmatprep.subr.bf16.mxu0 0
    %11572 = vmatpush2.bf16.msra.mxu0 %v11485
    %11573 = vmatprep.mubr.bf16.mxu0 %v11275
    %11574 = vmatmul.mubr.bf16.gmra.mxu0 %v11274
    %v11575 = vpop.f32.mrf.mxu0
    %v11576 = vadd.f32 %v11347, %v11575
    %v11577 = vpop.f32.mrf.mxu0
    %v11578 = vpop.f32.mrf.mxu0
    %v11579 = vpop.f32.mrf.mxu0
    %11580 = vdwg.mxu0
    %11581 = vmatprep.subr.bf16.mxu0 0
    %11582 = vmatpush1.bf16.msra.mxu0 %v11500
    %11583 = vmatprep.subr.bf16.mxu0 0
    %11584 = vmatpush1.bf16.msra.mxu0 %v11499
    %11585 = vmatprep.subr.bf16.mxu0 0
    %11586 = vmatpush1.bf16.msra.mxu0 %v11498
    %11587 = vmatprep.subr.bf16.mxu0 0
    %11588 = vmatpush1.bf16.msra.mxu0 %v11497
    %11589 = vmatprep.subr.bf16.mxu0 0
    %11590 = vmatpush1.bf16.msra.mxu0 %v11496
    %11591 = vmatprep.subr.bf16.mxu0 0
    %11592 = vmatpush1.bf16.msra.mxu0 %v11495
    %11593 = vmatprep.subr.bf16.mxu0 0
    %11594 = vmatpush1.bf16.msra.mxu0 %v11494
    %11595 = vmatprep.subr.bf16.mxu0 0
    %11596 = vmatpush1.bf16.msra.mxu0 %v11493
    %11597 = vmatprep.subr.bf16.mxu0 0
    %11598 = vmatpush2.bf16.msra.mxu0 %v11508
    %11599 = vmatprep.subr.bf16.mxu0 0
    %11600 = vmatpush2.bf16.msra.mxu0 %v11507
    %11601 = vmatprep.subr.bf16.mxu0 0
    %11602 = vmatpush2.bf16.msra.mxu0 %v11506
    %11603 = vmatprep.subr.bf16.mxu0 0
    %11604 = vmatpush2.bf16.msra.mxu0 %v11505
    %11605 = vmatprep.subr.bf16.mxu0 0
    %11606 = vmatpush2.bf16.msra.mxu0 %v11504
    %11607 = vmatprep.subr.bf16.mxu0 0
    %11608 = vmatpush2.bf16.msra.mxu0 %v11503
    %11609 = vmatprep.subr.bf16.mxu0 0
    %11610 = vmatpush2.bf16.msra.mxu0 %v11502
    %11611 = vmatprep.subr.bf16.mxu0 0
    %11612 = vmatpush2.bf16.msra.mxu0 %v11501
    %11613 = vmatprep.mubr.bf16.mxu0 %v11277
    %11614 = vmatmul.mubr.bf16.gmra.mxu0 %v11276
    %v11615 = vpop.f32.mrf.mxu0
    %v11616 = vadd.f32 %v11576, %v11615
    %v11617 = vpop.f32.mrf.mxu0
    %v11618 = vpop.f32.mrf.mxu0
    %v11619 = vpop.f32.mrf.mxu0
    %11620 = vdwg.mxu0
    %11621 = vst [vmem:[#allocation2] sm:$0xff] %v11616
    // Predicated region
    $region54: #{single_head_classifier.1} parent=1 // pred_check
      _
    $region55: #{single_head_classifier.1} parent=1 // pred_check_branch
      %11623 = sbr.rel (0) target = $region57
    $region56: #{single_head_classifier.1} parent=1 // pred_region
      %s11625 = ssub.s32 128, 128
      %11626 = vsyncadd [#allocation3], %s11625
      %s11628 = sshll.u32 [#allocation2], 4
      %s11629 = int_to_ptr.vmem [resolvable:$true] %s11628
      %11631 = dma.vmem_to_hbm [thread:$0]  %s11629, 128, %s13, [#allocation3]
    $region57: #{single_head_classifier.1} parent=1 // pred_fallthru
      _
    // Predicated region
    $region58: #{single_head_classifier.1} parent=1 // pred_check
      _
    $region59: #{single_head_classifier.1} parent=1 // pred_check_branch
      %11633 = sbr.rel (0) target = $region61
    $region60: #{single_head_classifier.1} parent=1 // pred_region
      %11634 = dma.done [#allocation3], 128
    $region61: #{single_head_classifier.1} parent=1 // pred_fallthru
      _
    %11635 = vsyncpa [#allocation3], 1

</llo_original>
